<compile_context>
chip_gen: v7x
topology: tpu7x:2x2x1
jax: 0.10.0
libtpu: 0.0.40
codegen_flags: <defaults>
</compile_context>

<pallas_src>
import jax
import jax.numpy as jnp
from jax import lax
from jax.experimental import pallas as pl
from jax.experimental.pallas import tpu as pltpu

MAX_LENGTH = 50    # Config.max_length
NUM_CLASSES = 6
BATCH_SIZE = 32    # Config.batch_size


def _round_up(x, m):
    return (x + m - 1) // m * m


def _make_kernel(L, TB, H, C, Vp):
    """Fused embedding-gather + flatten + linear for one batch tile of TB rows."""

    def kernel(tok_ref, emb_ref, wt_ref, bias_ref, o_ref):
        # tok_ref  : [L, TB, 1] int32  (tokens, l-major so tok_ref[l] is one aligned tile)
        # emb_ref  : [Vp, H]    f32    (nn.Embedding.weight, vocab padded to 128 multiple)
        # wt_ref   : [L*H, C]   f32    (nn.Linear.weight pre-transposed in the wrapper)
        # bias_ref : [1, C]     f32
        # o_ref    : [TB, C]    f32
        emb = emb_ref[...]                                        # [Vp, H], lives in vregs
        lane = lax.broadcasted_iota(jnp.int32, (TB, Vp), 1)       # hoisted, built once
        acc = jnp.zeros((TB, C), dtype=jnp.float32)

        # Static unroll over sequence positions: each iteration is a handful of
        # VPU compares plus two small MXU matmuls (no scalar loads, no masked stores).
        for l in range(L):
            tok_l = tok_ref[l]                                    # [TB, 1] int32
            onehot = jnp.where(tok_l == lane, 1.0, 0.0).astype(jnp.float32)   # [TB, Vp]
            # Embedding gather on the MXU (OOB ids -> all-zero row, i.e. safe).
            g_l = jnp.dot(onehot, emb, preferred_element_type=jnp.float32)    # [TB, H]
            # Slice of the linear weight for this position (flatten folded into the sum).
            w_l = wt_ref[l * H:(l + 1) * H, :]                    # [H, C], 8-aligned slice
            acc = acc + jnp.dot(g_l, w_l, preferred_element_type=jnp.float32)

        o_ref[...] = (acc + bias_ref[...]).astype(o_ref.dtype)

    return kernel


def logistic_regression_forward(tokens, emb_table, weight, bias, *, batch_tile=None):
    """Forward pass matching LogisticRegression.forward(abstract).

    tokens    : [B, L] integer token ids
    emb_table : [V, H] float32   (nn.Embedding.weight)
    weight    : [6, L*H] float32 (nn.Linear.weight, PyTorch-native layout)
    bias      : [6] or [1, 6] float32 (nn.Linear.bias)
    returns   : [B, 6] float32
    """
    B, L = tokens.shape
    V, H = emb_table.shape
    C, D = weight.shape
    assert D == L * H, (D, L, H)

    TB = B if batch_tile is None else batch_tile
    assert B % TB == 0, (B, TB)
    assert TB % 8 == 0 or TB == B, "batch tile must be sublane aligned"

    # --- wrapper-side layout prep (cheap XLA ops, no compute hoisted out) -----
    Vp = _round_up(V, 128)                                   # lane-aligned one-hot width
    emb_pad = jnp.pad(emb_table.astype(jnp.float32), ((0, Vp - V), (0, 0)))   # [Vp, H]
    tok3 = tokens.astype(jnp.int32).T[:, :, None]            # [L, B, 1], l-major
    wt = weight.astype(jnp.float32).T                        # [D, C] lane dim = classes
    b2 = bias.reshape(1, C).astype(jnp.float32)              # [1, C]

    kernel = _make_kernel(L, TB, H, C, Vp)
    grid = (B // TB,)

    return pl.pallas_call(
        kernel,
        out_shape=jax.ShapeDtypeStruct((B, C), jnp.float32),
        grid=grid,
        in_specs=[
            pl.BlockSpec((L, TB, 1), lambda i: (0, i, 0)),    # tokens, tiled over batch
            pl.BlockSpec((Vp, H), lambda i: (0, 0)),          # embedding table (resident)
            pl.BlockSpec((D, C), lambda i: (0, 0)),           # W^T (resident)
            pl.BlockSpec((1, C), lambda i: (0, 0)),           # bias
        ],
        out_specs=pl.BlockSpec((TB, C), lambda i: (i, 0)),
        compiler_params=pltpu.CompilerParams(
            dimension_semantics=("parallel",),                # batch tiles -> both TCs on v7x
        ),
    )(tok3, emb_pad, wt, b2)


if __name__ == "__main__":
    # Shapes consistent with the module: input_size(vocab)=100, hidden_size=32,
    # max_length=50, batch_size=32 (Config.batch_size).
    B = BATCH_SIZE   # 32
    V = 100          # input_size (vocab size for nn.Embedding)
    H = 32           # hidden_size
    L = MAX_LENGTH   # 50
    D = L * H        # 1600 linear input features
    C = NUM_CLASSES  # 6

    key = jax.random.PRNGKey(0)
    k_tok, k_emb, k_w, k_b = jax.random.split(key, 4)

    tokens = jax.random.randint(k_tok, (B, L), 0, V, dtype=jnp.int32)

    # nn.Embedding default init: N(0, 1)
    emb_table = jax.random.normal(k_emb, (V, H), dtype=jnp.float32)

    # nn.Linear default init: U(-1/sqrt(fan_in), 1/sqrt(fan_in)), PyTorch-native [6, D].
    bound = 1.0 / (D ** 0.5)
    weight = jax.random.uniform(k_w, (C, D), jnp.float32, -bound, bound)
    bias = jax.random.uniform(k_b, (C,), jnp.float32, -bound, bound)

    out = logistic_regression_forward(tokens, emb_table, weight, bias, batch_tile=16)
    out = jax.block_until_ready(out)

    # Reference: plain JAX embedding gather + flatten + linear.
    ref = jnp.take(emb_table, tokens, axis=0).reshape(B, D) @ weight.T + bias
    assert out.shape == (B, C)
    assert jnp.allclose(out, ref, atol=1e-3, rtol=1e-3)

    print("KERNEL_OK")
</pallas_src>

<mosaic_0001>
module attributes {stable_mosaic.version = 11 : i64} {
  func.func @kernel(%arg0: i32, %arg1: memref<50x16x1xi32, #tpu.memory_space<vmem>>, %arg2: memref<128x32xf32, #tpu.memory_space<vmem>>, %arg3: memref<1600x6xf32, #tpu.memory_space<vmem>>, %arg4: memref<1x6xf32, #tpu.memory_space<vmem>>, %arg5: memref<16x6xf32, #tpu.memory_space<vmem>>) attributes {dimension_semantics = [#tpu.dimension_semantics<parallel>], iteration_bounds = array<i64: 2>, scalar_prefetch = 0 : i64, scratch_operands = 0 : i64, tpu.core_type = #tpu.core_type<tc>, window_params = [{transform_indices = @transform_0, window_bounds = array<i64: 50, 16, 1>}, {pipeline_mode = #tpu.pipeline_mode<synchronous>, transform_indices = @transform_1, window_bounds = array<i64: 128, 32>}, {pipeline_mode = #tpu.pipeline_mode<synchronous>, transform_indices = @transform_2, window_bounds = array<i64: 1600, 6>}, {pipeline_mode = #tpu.pipeline_mode<synchronous>, transform_indices = @transform_3, window_bounds = array<i64: 1, 6>}, {transform_indices = @transform_4, window_bounds = array<i64: 16, 6>}]} {
    %c0 = arith.constant 0 : index
    %c0_0 = arith.constant 0 : index
    %0 = vector.load %arg2[%c0, %c0_0] : memref<128x32xf32, #tpu.memory_space<vmem>>, vector<128x32xf32>
    %1 = tpu.iota {dimensions = array<i32: 1>} : vector<16x128xi32>
    %cst = arith.constant 0.000000e+00 : f32
    %2 = vector.broadcast %cst : f32 to vector<16x6xf32>
    %c0_1 = arith.constant 0 : index
    %c0_2 = arith.constant 0 : index
    %c0_3 = arith.constant 0 : index
    %3 = vector.load %arg1[%c0_1, %c0_2, %c0_3] : memref<50x16x1xi32, #tpu.memory_space<vmem>>, vector<1x16x1xi32>
    %4 = vector.shape_cast %3 : vector<1x16x1xi32> to vector<16x1xi32>
    %5 = vector.broadcast %4 : vector<16x1xi32> to vector<16x128xi32>
    %6 = arith.cmpi eq, %5, %1 : vector<16x128xi32>
    %cst_4 = arith.constant 1.000000e+00 : f32
    %cst_5 = arith.constant 0.000000e+00 : f32
    %7 = vector.broadcast %cst_4 : f32 to vector<16x128xf32>
    %8 = vector.broadcast %cst_5 : f32 to vector<16x128xf32>
    %9 = arith.select %6, %7, %8 : vector<16x128xi1>, vector<16x128xf32>
    %cst_6 = arith.constant dense<0.000000e+00> : vector<16x32xf32>
    %10 = tpu.matmul %9, %0, %cst_6 {dimension_numbers = #tpu.dot_dimension_numbers<[1], [0], [0], [1], [0, 0, 1, 1], [], []>} : vector<16x128xf32>, vector<128x32xf32>, vector<16x32xf32> -> vector<16x32xf32>
    %c0_7 = arith.constant 0 : index
    %c0_8 = arith.constant 0 : index
    %11 = vector.load %arg3[%c0_7, %c0_8] : memref<1600x6xf32, #tpu.memory_space<vmem>>, vector<32x6xf32>
    %cst_9 = arith.constant dense<0.000000e+00> : vector<16x6xf32>
    %12 = tpu.matmul %10, %11, %cst_9 {dimension_numbers = #tpu.dot_dimension_numbers<[1], [0], [0], [1], [0, 0, 1, 1], [], []>} : vector<16x32xf32>, vector<32x6xf32>, vector<16x6xf32> -> vector<16x6xf32>
    %13 = arith.addf %2, %12 : vector<16x6xf32>
    %c1 = arith.constant 1 : index
    %c0_10 = arith.constant 0 : index
    %c0_11 = arith.constant 0 : index
    %14 = vector.load %arg1[%c1, %c0_10, %c0_11] : memref<50x16x1xi32, #tpu.memory_space<vmem>>, vector<1x16x1xi32>
    %15 = vector.shape_cast %14 : vector<1x16x1xi32> to vector<16x1xi32>
    %16 = vector.broadcast %15 : vector<16x1xi32> to vector<16x128xi32>
    %17 = arith.cmpi eq, %16, %1 : vector<16x128xi32>
    %cst_12 = arith.constant 1.000000e+00 : f32
    %cst_13 = arith.constant 0.000000e+00 : f32
    %18 = vector.broadcast %cst_12 : f32 to vector<16x128xf32>
    %19 = vector.broadcast %cst_13 : f32 to vector<16x128xf32>
    %20 = arith.select %17, %18, %19 : vector<16x128xi1>, vector<16x128xf32>
    %cst_14 = arith.constant dense<0.000000e+00> : vector<16x32xf32>
    %21 = tpu.matmul %20, %0, %cst_14 {dimension_numbers = #tpu.dot_dimension_numbers<[1], [0], [0], [1], [0, 0, 1, 1], [], []>} : vector<16x128xf32>, vector<128x32xf32>, vector<16x32xf32> -> vector<16x32xf32>
    %c32 = arith.constant 32 : index
    %c0_15 = arith.constant 0 : index
    %22 = vector.load %arg3[%c32, %c0_15] : memref<1600x6xf32, #tpu.memory_space<vmem>>, vector<32x6xf32>
    %cst_16 = arith.constant dense<0.000000e+00> : vector<16x6xf32>
    %23 = tpu.matmul %21, %22, %cst_16 {dimension_numbers = #tpu.dot_dimension_numbers<[1], [0], [0], [1], [0, 0, 1, 1], [], []>} : vector<16x32xf32>, vector<32x6xf32>, vector<16x6xf32> -> vector<16x6xf32>
    %24 = arith.addf %13, %23 : vector<16x6xf32>
    %c2 = arith.constant 2 : index
    %c0_17 = arith.constant 0 : index
    %c0_18 = arith.constant 0 : index
    %25 = vector.load %arg1[%c2, %c0_17, %c0_18] : memref<50x16x1xi32, #tpu.memory_space<vmem>>, vector<1x16x1xi32>
    %26 = vector.shape_cast %25 : vector<1x16x1xi32> to vector<16x1xi32>
    %27 = vector.broadcast %26 : vector<16x1xi32> to vector<16x128xi32>
    %28 = arith.cmpi eq, %27, %1 : vector<16x128xi32>
    %cst_19 = arith.constant 1.000000e+00 : f32
    %cst_20 = arith.constant 0.000000e+00 : f32
    %29 = vector.broadcast %cst_19 : f32 to vector<16x128xf32>
    %30 = vector.broadcast %cst_20 : f32 to vector<16x128xf32>
    %31 = arith.select %28, %29, %30 : vector<16x128xi1>, vector<16x128xf32>
    %cst_21 = arith.constant dense<0.000000e+00> : vector<16x32xf32>
    %32 = tpu.matmul %31, %0, %cst_21 {dimension_numbers = #tpu.dot_dimension_numbers<[1], [0], [0], [1], [0, 0, 1, 1], [], []>} : vector<16x128xf32>, vector<128x32xf32>, vector<16x32xf32> -> vector<16x32xf32>
    %c64 = arith.constant 64 : index
    %c0_22 = arith.constant 0 : index
    %33 = vector.load %arg3[%c64, %c0_22] : memref<1600x6xf32, #tpu.memory_space<vmem>>, vector<32x6xf32>
    %cst_23 = arith.constant dense<0.000000e+00> : vector<16x6xf32>
    %34 = tpu.matmul %32, %33, %cst_23 {dimension_numbers = #tpu.dot_dimension_numbers<[1], [0], [0], [1], [0, 0, 1, 1], [], []>} : vector<16x32xf32>, vector<32x6xf32>, vector<16x6xf32> -> vector<16x6xf32>
    %35 = arith.addf %24, %34 : vector<16x6xf32>
    %c3 = arith.constant 3 : index
    %c0_24 = arith.constant 0 : index
    %c0_25 = arith.constant 0 : index
    %36 = vector.load %arg1[%c3, %c0_24, %c0_25] : memref<50x16x1xi32, #tpu.memory_space<vmem>>, vector<1x16x1xi32>
    %37 = vector.shape_cast %36 : vector<1x16x1xi32> to vector<16x1xi32>
    %38 = vector.broadcast %37 : vector<16x1xi32> to vector<16x128xi32>
    %39 = arith.cmpi eq, %38, %1 : vector<16x128xi32>
    %cst_26 = arith.constant 1.000000e+00 : f32
    %cst_27 = arith.constant 0.000000e+00 : f32
    %40 = vector.broadcast %cst_26 : f32 to vector<16x128xf32>
    %41 = vector.broadcast %cst_27 : f32 to vector<16x128xf32>
    %42 = arith.select %39, %40, %41 : vector<16x128xi1>, vector<16x128xf32>
    %cst_28 = arith.constant dense<0.000000e+00> : vector<16x32xf32>
    %43 = tpu.matmul %42, %0, %cst_28 {dimension_numbers = #tpu.dot_dimension_numbers<[1], [0], [0], [1], [0, 0, 1, 1], [], []>} : vector<16x128xf32>, vector<128x32xf32>, vector<16x32xf32> -> vector<16x32xf32>
    %c96 = arith.constant 96 : index
    %c0_29 = arith.constant 0 : index
    %44 = vector.load %arg3[%c96, %c0_29] : memref<1600x6xf32, #tpu.memory_space<vmem>>, vector<32x6xf32>
    %cst_30 = arith.constant dense<0.000000e+00> : vector<16x6xf32>
    %45 = tpu.matmul %43, %44, %cst_30 {dimension_numbers = #tpu.dot_dimension_numbers<[1], [0], [0], [1], [0, 0, 1, 1], [], []>} : vector<16x32xf32>, vector<32x6xf32>, vector<16x6xf32> -> vector<16x6xf32>
    %46 = arith.addf %35, %45 : vector<16x6xf32>
    %c4 = arith.constant 4 : index
    %c0_31 = arith.constant 0 : index
    %c0_32 = arith.constant 0 : index
    %47 = vector.load %arg1[%c4, %c0_31, %c0_32] : memref<50x16x1xi32, #tpu.memory_space<vmem>>, vector<1x16x1xi32>
    %48 = vector.shape_cast %47 : vector<1x16x1xi32> to vector<16x1xi32>
    %49 = vector.broadcast %48 : vector<16x1xi32> to vector<16x128xi32>
    %50 = arith.cmpi eq, %49, %1 : vector<16x128xi32>
    %cst_33 = arith.constant 1.000000e+00 : f32
    %cst_34 = arith.constant 0.000000e+00 : f32
    %51 = vector.broadcast %cst_33 : f32 to vector<16x128xf32>
    %52 = vector.broadcast %cst_34 : f32 to vector<16x128xf32>
    %53 = arith.select %50, %51, %52 : vector<16x128xi1>, vector<16x128xf32>
    %cst_35 = arith.constant dense<0.000000e+00> : vector<16x32xf32>
    %54 = tpu.matmul %53, %0, %cst_35 {dimension_numbers = #tpu.dot_dimension_numbers<[1], [0], [0], [1], [0, 0, 1, 1], [], []>} : vector<16x128xf32>, vector<128x32xf32>, vector<16x32xf32> -> vector<16x32xf32>
    %c128 = arith.constant 128 : index
    %c0_36 = arith.constant 0 : index
    %55 = vector.load %arg3[%c128, %c0_36] : memref<1600x6xf32, #tpu.memory_space<vmem>>, vector<32x6xf32>
    %cst_37 = arith.constant dense<0.000000e+00> : vector<16x6xf32>
    %56 = tpu.matmul %54, %55, %cst_37 {dimension_numbers = #tpu.dot_dimension_numbers<[1], [0], [0], [1], [0, 0, 1, 1], [], []>} : vector<16x32xf32>, vector<32x6xf32>, vector<16x6xf32> -> vector<16x6xf32>
    %57 = arith.addf %46, %56 : vector<16x6xf32>
    %c5 = arith.constant 5 : index
    %c0_38 = arith.constant 0 : index
    %c0_39 = arith.constant 0 : index
    %58 = vector.load %arg1[%c5, %c0_38, %c0_39] : memref<50x16x1xi32, #tpu.memory_space<vmem>>, vector<1x16x1xi32>
    %59 = vector.shape_cast %58 : vector<1x16x1xi32> to vector<16x1xi32>
    %60 = vector.broadcast %59 : vector<16x1xi32> to vector<16x128xi32>
    %61 = arith.cmpi eq, %60, %1 : vector<16x128xi32>
    %cst_40 = arith.constant 1.000000e+00 : f32
    %cst_41 = arith.constant 0.000000e+00 : f32
    %62 = vector.broadcast %cst_40 : f32 to vector<16x128xf32>
    %63 = vector.broadcast %cst_41 : f32 to vector<16x128xf32>
    %64 = arith.select %61, %62, %63 : vector<16x128xi1>, vector<16x128xf32>
    %cst_42 = arith.constant dense<0.000000e+00> : vector<16x32xf32>
    %65 = tpu.matmul %64, %0, %cst_42 {dimension_numbers = #tpu.dot_dimension_numbers<[1], [0], [0], [1], [0, 0, 1, 1], [], []>} : vector<16x128xf32>, vector<128x32xf32>, vector<16x32xf32> -> vector<16x32xf32>
    %c160 = arith.constant 160 : index
    %c0_43 = arith.constant 0 : index
    %66 = vector.load %arg3[%c160, %c0_43] : memref<1600x6xf32, #tpu.memory_space<vmem>>, vector<32x6xf32>
    %cst_44 = arith.constant dense<0.000000e+00> : vector<16x6xf32>
    %67 = tpu.matmul %65, %66, %cst_44 {dimension_numbers = #tpu.dot_dimension_numbers<[1], [0], [0], [1], [0, 0, 1, 1], [], []>} : vector<16x32xf32>, vector<32x6xf32>, vector<16x6xf32> -> vector<16x6xf32>
    %68 = arith.addf %57, %67 : vector<16x6xf32>
    %c6 = arith.constant 6 : index
    %c0_45 = arith.constant 0 : index
    %c0_46 = arith.constant 0 : index
    %69 = vector.load %arg1[%c6, %c0_45, %c0_46] : memref<50x16x1xi32, #tpu.memory_space<vmem>>, vector<1x16x1xi32>
    %70 = vector.shape_cast %69 : vector<1x16x1xi32> to vector<16x1xi32>
    %71 = vector.broadcast %70 : vector<16x1xi32> to vector<16x128xi32>
    %72 = arith.cmpi eq, %71, %1 : vector<16x128xi32>
    %cst_47 = arith.constant 1.000000e+00 : f32
    %cst_48 = arith.constant 0.000000e+00 : f32
    %73 = vector.broadcast %cst_47 : f32 to vector<16x128xf32>
    %74 = vector.broadcast %cst_48 : f32 to vector<16x128xf32>
    %75 = arith.select %72, %73, %74 : vector<16x128xi1>, vector<16x128xf32>
    %cst_49 = arith.constant dense<0.000000e+00> : vector<16x32xf32>
    %76 = tpu.matmul %75, %0, %cst_49 {dimension_numbers = #tpu.dot_dimension_numbers<[1], [0], [0], [1], [0, 0, 1, 1], [], []>} : vector<16x128xf32>, vector<128x32xf32>, vector<16x32xf32> -> vector<16x32xf32>
    %c192 = arith.constant 192 : index
    %c0_50 = arith.constant 0 : index
    %77 = vector.load %arg3[%c192, %c0_50] : memref<1600x6xf32, #tpu.memory_space<vmem>>, vector<32x6xf32>
    %cst_51 = arith.constant dense<0.000000e+00> : vector<16x6xf32>
    %78 = tpu.matmul %76, %77, %cst_51 {dimension_numbers = #tpu.dot_dimension_numbers<[1], [0], [0], [1], [0, 0, 1, 1], [], []>} : vector<16x32xf32>, vector<32x6xf32>, vector<16x6xf32> -> vector<16x6xf32>
    %79 = arith.addf %68, %78 : vector<16x6xf32>
    %c7 = arith.constant 7 : index
    %c0_52 = arith.constant 0 : index
    %c0_53 = arith.constant 0 : index
    %80 = vector.load %arg1[%c7, %c0_52, %c0_53] : memref<50x16x1xi32, #tpu.memory_space<vmem>>, vector<1x16x1xi32>
    %81 = vector.shape_cast %80 : vector<1x16x1xi32> to vector<16x1xi32>
    %82 = vector.broadcast %81 : vector<16x1xi32> to vector<16x128xi32>
    %83 = arith.cmpi eq, %82, %1 : vector<16x128xi32>
    %cst_54 = arith.constant 1.000000e+00 : f32
    %cst_55 = arith.constant 0.000000e+00 : f32
    %84 = vector.broadcast %cst_54 : f32 to vector<16x128xf32>
    %85 = vector.broadcast %cst_55 : f32 to vector<16x128xf32>
    %86 = arith.select %83, %84, %85 : vector<16x128xi1>, vector<16x128xf32>
    %cst_56 = arith.constant dense<0.000000e+00> : vector<16x32xf32>
    %87 = tpu.matmul %86, %0, %cst_56 {dimension_numbers = #tpu.dot_dimension_numbers<[1], [0], [0], [1], [0, 0, 1, 1], [], []>} : vector<16x128xf32>, vector<128x32xf32>, vector<16x32xf32> -> vector<16x32xf32>
    %c224 = arith.constant 224 : index
    %c0_57 = arith.constant 0 : index
    %88 = vector.load %arg3[%c224, %c0_57] : memref<1600x6xf32, #tpu.memory_space<vmem>>, vector<32x6xf32>
    %cst_58 = arith.constant dense<0.000000e+00> : vector<16x6xf32>
    %89 = tpu.matmul %87, %88, %cst_58 {dimension_numbers = #tpu.dot_dimension_numbers<[1], [0], [0], [1], [0, 0, 1, 1], [], []>} : vector<16x32xf32>, vector<32x6xf32>, vector<16x6xf32> -> vector<16x6xf32>
    %90 = arith.addf %79, %89 : vector<16x6xf32>
    %c8 = arith.constant 8 : index
    %c0_59 = arith.constant 0 : index
    %c0_60 = arith.constant 0 : index
    %91 = vector.load %arg1[%c8, %c0_59, %c0_60] : memref<50x16x1xi32, #tpu.memory_space<vmem>>, vector<1x16x1xi32>
    %92 = vector.shape_cast %91 : vector<1x16x1xi32> to vector<16x1xi32>
    %93 = vector.broadcast %92 : vector<16x1xi32> to vector<16x128xi32>
    %94 = arith.cmpi eq, %93, %1 : vector<16x128xi32>
    %cst_61 = arith.constant 1.000000e+00 : f32
    %cst_62 = arith.constant 0.000000e+00 : f32
    %95 = vector.broadcast %cst_61 : f32 to vector<16x128xf32>
    %96 = vector.broadcast %cst_62 : f32 to vector<16x128xf32>
    %97 = arith.select %94, %95, %96 : vector<16x128xi1>, vector<16x128xf32>
    %cst_63 = arith.constant dense<0.000000e+00> : vector<16x32xf32>
    %98 = tpu.matmul %97, %0, %cst_63 {dimension_numbers = #tpu.dot_dimension_numbers<[1], [0], [0], [1], [0, 0, 1, 1], [], []>} : vector<16x128xf32>, vector<128x32xf32>, vector<16x32xf32> -> vector<16x32xf32>
    %c256 = arith.constant 256 : index
    %c0_64 = arith.constant 0 : index
    %99 = vector.load %arg3[%c256, %c0_64] : memref<1600x6xf32, #tpu.memory_space<vmem>>, vector<32x6xf32>
    %cst_65 = arith.constant dense<0.000000e+00> : vector<16x6xf32>
    %100 = tpu.matmul %98, %99, %cst_65 {dimension_numbers = #tpu.dot_dimension_numbers<[1], [0], [0], [1], [0, 0, 1, 1], [], []>} : vector<16x32xf32>, vector<32x6xf32>, vector<16x6xf32> -> vector<16x6xf32>
    %101 = arith.addf %90, %100 : vector<16x6xf32>
    %c9 = arith.constant 9 : index
    %c0_66 = arith.constant 0 : index
    %c0_67 = arith.constant 0 : index
    %102 = vector.load %arg1[%c9, %c0_66, %c0_67] : memref<50x16x1xi32, #tpu.memory_space<vmem>>, vector<1x16x1xi32>
    %103 = vector.shape_cast %102 : vector<1x16x1xi32> to vector<16x1xi32>
    %104 = vector.broadcast %103 : vector<16x1xi32> to vector<16x128xi32>
    %105 = arith.cmpi eq, %104, %1 : vector<16x128xi32>
    %cst_68 = arith.constant 1.000000e+00 : f32
    %cst_69 = arith.constant 0.000000e+00 : f32
    %106 = vector.broadcast %cst_68 : f32 to vector<16x128xf32>
    %107 = vector.broadcast %cst_69 : f32 to vector<16x128xf32>
    %108 = arith.select %105, %106, %107 : vector<16x128xi1>, vector<16x128xf32>
    %cst_70 = arith.constant dense<0.000000e+00> : vector<16x32xf32>
    %109 = tpu.matmul %108, %0, %cst_70 {dimension_numbers = #tpu.dot_dimension_numbers<[1], [0], [0], [1], [0, 0, 1, 1], [], []>} : vector<16x128xf32>, vector<128x32xf32>, vector<16x32xf32> -> vector<16x32xf32>
    %c288 = arith.constant 288 : index
    %c0_71 = arith.constant 0 : index
    %110 = vector.load %arg3[%c288, %c0_71] : memref<1600x6xf32, #tpu.memory_space<vmem>>, vector<32x6xf32>
    %cst_72 = arith.constant dense<0.000000e+00> : vector<16x6xf32>
    %111 = tpu.matmul %109, %110, %cst_72 {dimension_numbers = #tpu.dot_dimension_numbers<[1], [0], [0], [1], [0, 0, 1, 1], [], []>} : vector<16x32xf32>, vector<32x6xf32>, vector<16x6xf32> -> vector<16x6xf32>
    %112 = arith.addf %101, %111 : vector<16x6xf32>
    %c10 = arith.constant 10 : index
    %c0_73 = arith.constant 0 : index
    %c0_74 = arith.constant 0 : index
    %113 = vector.load %arg1[%c10, %c0_73, %c0_74] : memref<50x16x1xi32, #tpu.memory_space<vmem>>, vector<1x16x1xi32>
    %114 = vector.shape_cast %113 : vector<1x16x1xi32> to vector<16x1xi32>
    %115 = vector.broadcast %114 : vector<16x1xi32> to vector<16x128xi32>
    %116 = arith.cmpi eq, %115, %1 : vector<16x128xi32>
    %cst_75 = arith.constant 1.000000e+00 : f32
    %cst_76 = arith.constant 0.000000e+00 : f32
    %117 = vector.broadcast %cst_75 : f32 to vector<16x128xf32>
    %118 = vector.broadcast %cst_76 : f32 to vector<16x128xf32>
    %119 = arith.select %116, %117, %118 : vector<16x128xi1>, vector<16x128xf32>
    %cst_77 = arith.constant dense<0.000000e+00> : vector<16x32xf32>
    %120 = tpu.matmul %119, %0, %cst_77 {dimension_numbers = #tpu.dot_dimension_numbers<[1], [0], [0], [1], [0, 0, 1, 1], [], []>} : vector<16x128xf32>, vector<128x32xf32>, vector<16x32xf32> -> vector<16x32xf32>
    %c320 = arith.constant 320 : index
    %c0_78 = arith.constant 0 : index
    %121 = vector.load %arg3[%c320, %c0_78] : memref<1600x6xf32, #tpu.memory_space<vmem>>, vector<32x6xf32>
    %cst_79 = arith.constant dense<0.000000e+00> : vector<16x6xf32>
    %122 = tpu.matmul %120, %121, %cst_79 {dimension_numbers = #tpu.dot_dimension_numbers<[1], [0], [0], [1], [0, 0, 1, 1], [], []>} : vector<16x32xf32>, vector<32x6xf32>, vector<16x6xf32> -> vector<16x6xf32>
    %123 = arith.addf %112, %122 : vector<16x6xf32>
    %c11 = arith.constant 11 : index
    %c0_80 = arith.constant 0 : index
    %c0_81 = arith.constant 0 : index
    %124 = vector.load %arg1[%c11, %c0_80, %c0_81] : memref<50x16x1xi32, #tpu.memory_space<vmem>>, vector<1x16x1xi32>
    %125 = vector.shape_cast %124 : vector<1x16x1xi32> to vector<16x1xi32>
    %126 = vector.broadcast %125 : vector<16x1xi32> to vector<16x128xi32>
    %127 = arith.cmpi eq, %126, %1 : vector<16x128xi32>
    %cst_82 = arith.constant 1.000000e+00 : f32
    %cst_83 = arith.constant 0.000000e+00 : f32
    %128 = vector.broadcast %cst_82 : f32 to vector<16x128xf32>
    %129 = vector.broadcast %cst_83 : f32 to vector<16x128xf32>
    %130 = arith.select %127, %128, %129 : vector<16x128xi1>, vector<16x128xf32>
    %cst_84 = arith.constant dense<0.000000e+00> : vector<16x32xf32>
    %131 = tpu.matmul %130, %0, %cst_84 {dimension_numbers = #tpu.dot_dimension_numbers<[1], [0], [0], [1], [0, 0, 1, 1], [], []>} : vector<16x128xf32>, vector<128x32xf32>, vector<16x32xf32> -> vector<16x32xf32>
    %c352 = arith.constant 352 : index
    %c0_85 = arith.constant 0 : index
    %132 = vector.load %arg3[%c352, %c0_85] : memref<1600x6xf32, #tpu.memory_space<vmem>>, vector<32x6xf32>
    %cst_86 = arith.constant dense<0.000000e+00> : vector<16x6xf32>
    %133 = tpu.matmul %131, %132, %cst_86 {dimension_numbers = #tpu.dot_dimension_numbers<[1], [0], [0], [1], [0, 0, 1, 1], [], []>} : vector<16x32xf32>, vector<32x6xf32>, vector<16x6xf32> -> vector<16x6xf32>
    %134 = arith.addf %123, %133 : vector<16x6xf32>
    %c12 = arith.constant 12 : index
    %c0_87 = arith.constant 0 : index
    %c0_88 = arith.constant 0 : index
    %135 = vector.load %arg1[%c12, %c0_87, %c0_88] : memref<50x16x1xi32, #tpu.memory_space<vmem>>, vector<1x16x1xi32>
    %136 = vector.shape_cast %135 : vector<1x16x1xi32> to vector<16x1xi32>
    %137 = vector.broadcast %136 : vector<16x1xi32> to vector<16x128xi32>
    %138 = arith.cmpi eq, %137, %1 : vector<16x128xi32>
    %cst_89 = arith.constant 1.000000e+00 : f32
    %cst_90 = arith.constant 0.000000e+00 : f32
    %139 = vector.broadcast %cst_89 : f32 to vector<16x128xf32>
    %140 = vector.broadcast %cst_90 : f32 to vector<16x128xf32>
    %141 = arith.select %138, %139, %140 : vector<16x128xi1>, vector<16x128xf32>
    %cst_91 = arith.constant dense<0.000000e+00> : vector<16x32xf32>
    %142 = tpu.matmul %141, %0, %cst_91 {dimension_numbers = #tpu.dot_dimension_numbers<[1], [0], [0], [1], [0, 0, 1, 1], [], []>} : vector<16x128xf32>, vector<128x32xf32>, vector<16x32xf32> -> vector<16x32xf32>
    %c384 = arith.constant 384 : index
    %c0_92 = arith.constant 0 : index
    %143 = vector.load %arg3[%c384, %c0_92] : memref<1600x6xf32, #tpu.memory_space<vmem>>, vector<32x6xf32>
    %cst_93 = arith.constant dense<0.000000e+00> : vector<16x6xf32>
    %144 = tpu.matmul %142, %143, %cst_93 {dimension_numbers = #tpu.dot_dimension_numbers<[1], [0], [0], [1], [0, 0, 1, 1], [], []>} : vector<16x32xf32>, vector<32x6xf32>, vector<16x6xf32> -> vector<16x6xf32>
    %145 = arith.addf %134, %144 : vector<16x6xf32>
    %c13 = arith.constant 13 : index
    %c0_94 = arith.constant 0 : index
    %c0_95 = arith.constant 0 : index
    %146 = vector.load %arg1[%c13, %c0_94, %c0_95] : memref<50x16x1xi32, #tpu.memory_space<vmem>>, vector<1x16x1xi32>
    %147 = vector.shape_cast %146 : vector<1x16x1xi32> to vector<16x1xi32>
    %148 = vector.broadcast %147 : vector<16x1xi32> to vector<16x128xi32>
    %149 = arith.cmpi eq, %148, %1 : vector<16x128xi32>
    %cst_96 = arith.constant 1.000000e+00 : f32
    %cst_97 = arith.constant 0.000000e+00 : f32
    %150 = vector.broadcast %cst_96 : f32 to vector<16x128xf32>
    %151 = vector.broadcast %cst_97 : f32 to vector<16x128xf32>
    %152 = arith.select %149, %150, %151 : vector<16x128xi1>, vector<16x128xf32>
    %cst_98 = arith.constant dense<0.000000e+00> : vector<16x32xf32>
    %153 = tpu.matmul %152, %0, %cst_98 {dimension_numbers = #tpu.dot_dimension_numbers<[1], [0], [0], [1], [0, 0, 1, 1], [], []>} : vector<16x128xf32>, vector<128x32xf32>, vector<16x32xf32> -> vector<16x32xf32>
    %c416 = arith.constant 416 : index
    %c0_99 = arith.constant 0 : index
    %154 = vector.load %arg3[%c416, %c0_99] : memref<1600x6xf32, #tpu.memory_space<vmem>>, vector<32x6xf32>
    %cst_100 = arith.constant dense<0.000000e+00> : vector<16x6xf32>
    %155 = tpu.matmul %153, %154, %cst_100 {dimension_numbers = #tpu.dot_dimension_numbers<[1], [0], [0], [1], [0, 0, 1, 1], [], []>} : vector<16x32xf32>, vector<32x6xf32>, vector<16x6xf32> -> vector<16x6xf32>
    %156 = arith.addf %145, %155 : vector<16x6xf32>
    %c14 = arith.constant 14 : index
    %c0_101 = arith.constant 0 : index
    %c0_102 = arith.constant 0 : index
    %157 = vector.load %arg1[%c14, %c0_101, %c0_102] : memref<50x16x1xi32, #tpu.memory_space<vmem>>, vector<1x16x1xi32>
    %158 = vector.shape_cast %157 : vector<1x16x1xi32> to vector<16x1xi32>
    %159 = vector.broadcast %158 : vector<16x1xi32> to vector<16x128xi32>
    %160 = arith.cmpi eq, %159, %1 : vector<16x128xi32>
    %cst_103 = arith.constant 1.000000e+00 : f32
    %cst_104 = arith.constant 0.000000e+00 : f32
    %161 = vector.broadcast %cst_103 : f32 to vector<16x128xf32>
    %162 = vector.broadcast %cst_104 : f32 to vector<16x128xf32>
    %163 = arith.select %160, %161, %162 : vector<16x128xi1>, vector<16x128xf32>
    %cst_105 = arith.constant dense<0.000000e+00> : vector<16x32xf32>
    %164 = tpu.matmul %163, %0, %cst_105 {dimension_numbers = #tpu.dot_dimension_numbers<[1], [0], [0], [1], [0, 0, 1, 1], [], []>} : vector<16x128xf32>, vector<128x32xf32>, vector<16x32xf32> -> vector<16x32xf32>
    %c448 = arith.constant 448 : index
    %c0_106 = arith.constant 0 : index
    %165 = vector.load %arg3[%c448, %c0_106] : memref<1600x6xf32, #tpu.memory_space<vmem>>, vector<32x6xf32>
    %cst_107 = arith.constant dense<0.000000e+00> : vector<16x6xf32>
    %166 = tpu.matmul %164, %165, %cst_107 {dimension_numbers = #tpu.dot_dimension_numbers<[1], [0], [0], [1], [0, 0, 1, 1], [], []>} : vector<16x32xf32>, vector<32x6xf32>, vector<16x6xf32> -> vector<16x6xf32>
    %167 = arith.addf %156, %166 : vector<16x6xf32>
    %c15 = arith.constant 15 : index
    %c0_108 = arith.constant 0 : index
    %c0_109 = arith.constant 0 : index
    %168 = vector.load %arg1[%c15, %c0_108, %c0_109] : memref<50x16x1xi32, #tpu.memory_space<vmem>>, vector<1x16x1xi32>
    %169 = vector.shape_cast %168 : vector<1x16x1xi32> to vector<16x1xi32>
    %170 = vector.broadcast %169 : vector<16x1xi32> to vector<16x128xi32>
    %171 = arith.cmpi eq, %170, %1 : vector<16x128xi32>
    %cst_110 = arith.constant 1.000000e+00 : f32
    %cst_111 = arith.constant 0.000000e+00 : f32
    %172 = vector.broadcast %cst_110 : f32 to vector<16x128xf32>
    %173 = vector.broadcast %cst_111 : f32 to vector<16x128xf32>
    %174 = arith.select %171, %172, %173 : vector<16x128xi1>, vector<16x128xf32>
    %cst_112 = arith.constant dense<0.000000e+00> : vector<16x32xf32>
    %175 = tpu.matmul %174, %0, %cst_112 {dimension_numbers = #tpu.dot_dimension_numbers<[1], [0], [0], [1], [0, 0, 1, 1], [], []>} : vector<16x128xf32>, vector<128x32xf32>, vector<16x32xf32> -> vector<16x32xf32>
    %c480 = arith.constant 480 : index
    %c0_113 = arith.constant 0 : index
    %176 = vector.load %arg3[%c480, %c0_113] : memref<1600x6xf32, #tpu.memory_space<vmem>>, vector<32x6xf32>
    %cst_114 = arith.constant dense<0.000000e+00> : vector<16x6xf32>
    %177 = tpu.matmul %175, %176, %cst_114 {dimension_numbers = #tpu.dot_dimension_numbers<[1], [0], [0], [1], [0, 0, 1, 1], [], []>} : vector<16x32xf32>, vector<32x6xf32>, vector<16x6xf32> -> vector<16x6xf32>
    %178 = arith.addf %167, %177 : vector<16x6xf32>
    %c16 = arith.constant 16 : index
    %c0_115 = arith.constant 0 : index
    %c0_116 = arith.constant 0 : index
    %179 = vector.load %arg1[%c16, %c0_115, %c0_116] : memref<50x16x1xi32, #tpu.memory_space<vmem>>, vector<1x16x1xi32>
    %180 = vector.shape_cast %179 : vector<1x16x1xi32> to vector<16x1xi32>
    %181 = vector.broadcast %180 : vector<16x1xi32> to vector<16x128xi32>
    %182 = arith.cmpi eq, %181, %1 : vector<16x128xi32>
    %cst_117 = arith.constant 1.000000e+00 : f32
    %cst_118 = arith.constant 0.000000e+00 : f32
    %183 = vector.broadcast %cst_117 : f32 to vector<16x128xf32>
    %184 = vector.broadcast %cst_118 : f32 to vector<16x128xf32>
    %185 = arith.select %182, %183, %184 : vector<16x128xi1>, vector<16x128xf32>
    %cst_119 = arith.constant dense<0.000000e+00> : vector<16x32xf32>
    %186 = tpu.matmul %185, %0, %cst_119 {dimension_numbers = #tpu.dot_dimension_numbers<[1], [0], [0], [1], [0, 0, 1, 1], [], []>} : vector<16x128xf32>, vector<128x32xf32>, vector<16x32xf32> -> vector<16x32xf32>
    %c512 = arith.constant 512 : index
    %c0_120 = arith.constant 0 : index
    %187 = vector.load %arg3[%c512, %c0_120] : memref<1600x6xf32, #tpu.memory_space<vmem>>, vector<32x6xf32>
    %cst_121 = arith.constant dense<0.000000e+00> : vector<16x6xf32>
    %188 = tpu.matmul %186, %187, %cst_121 {dimension_numbers = #tpu.dot_dimension_numbers<[1], [0], [0], [1], [0, 0, 1, 1], [], []>} : vector<16x32xf32>, vector<32x6xf32>, vector<16x6xf32> -> vector<16x6xf32>
    %189 = arith.addf %178, %188 : vector<16x6xf32>
    %c17 = arith.constant 17 : index
    %c0_122 = arith.constant 0 : index
    %c0_123 = arith.constant 0 : index
    %190 = vector.load %arg1[%c17, %c0_122, %c0_123] : memref<50x16x1xi32, #tpu.memory_space<vmem>>, vector<1x16x1xi32>
    %191 = vector.shape_cast %190 : vector<1x16x1xi32> to vector<16x1xi32>
    %192 = vector.broadcast %191 : vector<16x1xi32> to vector<16x128xi32>
    %193 = arith.cmpi eq, %192, %1 : vector<16x128xi32>
    %cst_124 = arith.constant 1.000000e+00 : f32
    %cst_125 = arith.constant 0.000000e+00 : f32
    %194 = vector.broadcast %cst_124 : f32 to vector<16x128xf32>
    %195 = vector.broadcast %cst_125 : f32 to vector<16x128xf32>
    %196 = arith.select %193, %194, %195 : vector<16x128xi1>, vector<16x128xf32>
    %cst_126 = arith.constant dense<0.000000e+00> : vector<16x32xf32>
    %197 = tpu.matmul %196, %0, %cst_126 {dimension_numbers = #tpu.dot_dimension_numbers<[1], [0], [0], [1], [0, 0, 1, 1], [], []>} : vector<16x128xf32>, vector<128x32xf32>, vector<16x32xf32> -> vector<16x32xf32>
    %c544 = arith.constant 544 : index
    %c0_127 = arith.constant 0 : index
    %198 = vector.load %arg3[%c544, %c0_127] : memref<1600x6xf32, #tpu.memory_space<vmem>>, vector<32x6xf32>
    %cst_128 = arith.constant dense<0.000000e+00> : vector<16x6xf32>
    %199 = tpu.matmul %197, %198, %cst_128 {dimension_numbers = #tpu.dot_dimension_numbers<[1], [0], [0], [1], [0, 0, 1, 1], [], []>} : vector<16x32xf32>, vector<32x6xf32>, vector<16x6xf32> -> vector<16x6xf32>
    %200 = arith.addf %189, %199 : vector<16x6xf32>
    %c18 = arith.constant 18 : index
    %c0_129 = arith.constant 0 : index
    %c0_130 = arith.constant 0 : index
    %201 = vector.load %arg1[%c18, %c0_129, %c0_130] : memref<50x16x1xi32, #tpu.memory_space<vmem>>, vector<1x16x1xi32>
    %202 = vector.shape_cast %201 : vector<1x16x1xi32> to vector<16x1xi32>
    %203 = vector.broadcast %202 : vector<16x1xi32> to vector<16x128xi32>
    %204 = arith.cmpi eq, %203, %1 : vector<16x128xi32>
    %cst_131 = arith.constant 1.000000e+00 : f32
    %cst_132 = arith.constant 0.000000e+00 : f32
    %205 = vector.broadcast %cst_131 : f32 to vector<16x128xf32>
    %206 = vector.broadcast %cst_132 : f32 to vector<16x128xf32>
    %207 = arith.select %204, %205, %206 : vector<16x128xi1>, vector<16x128xf32>
    %cst_133 = arith.constant dense<0.000000e+00> : vector<16x32xf32>
    %208 = tpu.matmul %207, %0, %cst_133 {dimension_numbers = #tpu.dot_dimension_numbers<[1], [0], [0], [1], [0, 0, 1, 1], [], []>} : vector<16x128xf32>, vector<128x32xf32>, vector<16x32xf32> -> vector<16x32xf32>
    %c576 = arith.constant 576 : index
    %c0_134 = arith.constant 0 : index
    %209 = vector.load %arg3[%c576, %c0_134] : memref<1600x6xf32, #tpu.memory_space<vmem>>, vector<32x6xf32>
    %cst_135 = arith.constant dense<0.000000e+00> : vector<16x6xf32>
    %210 = tpu.matmul %208, %209, %cst_135 {dimension_numbers = #tpu.dot_dimension_numbers<[1], [0], [0], [1], [0, 0, 1, 1], [], []>} : vector<16x32xf32>, vector<32x6xf32>, vector<16x6xf32> -> vector<16x6xf32>
    %211 = arith.addf %200, %210 : vector<16x6xf32>
    %c19 = arith.constant 19 : index
    %c0_136 = arith.constant 0 : index
    %c0_137 = arith.constant 0 : index
    %212 = vector.load %arg1[%c19, %c0_136, %c0_137] : memref<50x16x1xi32, #tpu.memory_space<vmem>>, vector<1x16x1xi32>
    %213 = vector.shape_cast %212 : vector<1x16x1xi32> to vector<16x1xi32>
    %214 = vector.broadcast %213 : vector<16x1xi32> to vector<16x128xi32>
    %215 = arith.cmpi eq, %214, %1 : vector<16x128xi32>
    %cst_138 = arith.constant 1.000000e+00 : f32
    %cst_139 = arith.constant 0.000000e+00 : f32
    %216 = vector.broadcast %cst_138 : f32 to vector<16x128xf32>
    %217 = vector.broadcast %cst_139 : f32 to vector<16x128xf32>
    %218 = arith.select %215, %216, %217 : vector<16x128xi1>, vector<16x128xf32>
    %cst_140 = arith.constant dense<0.000000e+00> : vector<16x32xf32>
    %219 = tpu.matmul %218, %0, %cst_140 {dimension_numbers = #tpu.dot_dimension_numbers<[1], [0], [0], [1], [0, 0, 1, 1], [], []>} : vector<16x128xf32>, vector<128x32xf32>, vector<16x32xf32> -> vector<16x32xf32>
    %c608 = arith.constant 608 : index
    %c0_141 = arith.constant 0 : index
    %220 = vector.load %arg3[%c608, %c0_141] : memref<1600x6xf32, #tpu.memory_space<vmem>>, vector<32x6xf32>
    %cst_142 = arith.constant dense<0.000000e+00> : vector<16x6xf32>
    %221 = tpu.matmul %219, %220, %cst_142 {dimension_numbers = #tpu.dot_dimension_numbers<[1], [0], [0], [1], [0, 0, 1, 1], [], []>} : vector<16x32xf32>, vector<32x6xf32>, vector<16x6xf32> -> vector<16x6xf32>
    %222 = arith.addf %211, %221 : vector<16x6xf32>
    %c20 = arith.constant 20 : index
    %c0_143 = arith.constant 0 : index
    %c0_144 = arith.constant 0 : index
    %223 = vector.load %arg1[%c20, %c0_143, %c0_144] : memref<50x16x1xi32, #tpu.memory_space<vmem>>, vector<1x16x1xi32>
    %224 = vector.shape_cast %223 : vector<1x16x1xi32> to vector<16x1xi32>
    %225 = vector.broadcast %224 : vector<16x1xi32> to vector<16x128xi32>
    %226 = arith.cmpi eq, %225, %1 : vector<16x128xi32>
    %cst_145 = arith.constant 1.000000e+00 : f32
    %cst_146 = arith.constant 0.000000e+00 : f32
    %227 = vector.broadcast %cst_145 : f32 to vector<16x128xf32>
    %228 = vector.broadcast %cst_146 : f32 to vector<16x128xf32>
    %229 = arith.select %226, %227, %228 : vector<16x128xi1>, vector<16x128xf32>
    %cst_147 = arith.constant dense<0.000000e+00> : vector<16x32xf32>
    %230 = tpu.matmul %229, %0, %cst_147 {dimension_numbers = #tpu.dot_dimension_numbers<[1], [0], [0], [1], [0, 0, 1, 1], [], []>} : vector<16x128xf32>, vector<128x32xf32>, vector<16x32xf32> -> vector<16x32xf32>
    %c640 = arith.constant 640 : index
    %c0_148 = arith.constant 0 : index
    %231 = vector.load %arg3[%c640, %c0_148] : memref<1600x6xf32, #tpu.memory_space<vmem>>, vector<32x6xf32>
    %cst_149 = arith.constant dense<0.000000e+00> : vector<16x6xf32>
    %232 = tpu.matmul %230, %231, %cst_149 {dimension_numbers = #tpu.dot_dimension_numbers<[1], [0], [0], [1], [0, 0, 1, 1], [], []>} : vector<16x32xf32>, vector<32x6xf32>, vector<16x6xf32> -> vector<16x6xf32>
    %233 = arith.addf %222, %232 : vector<16x6xf32>
    %c21 = arith.constant 21 : index
    %c0_150 = arith.constant 0 : index
    %c0_151 = arith.constant 0 : index
    %234 = vector.load %arg1[%c21, %c0_150, %c0_151] : memref<50x16x1xi32, #tpu.memory_space<vmem>>, vector<1x16x1xi32>
    %235 = vector.shape_cast %234 : vector<1x16x1xi32> to vector<16x1xi32>
    %236 = vector.broadcast %235 : vector<16x1xi32> to vector<16x128xi32>
    %237 = arith.cmpi eq, %236, %1 : vector<16x128xi32>
    %cst_152 = arith.constant 1.000000e+00 : f32
    %cst_153 = arith.constant 0.000000e+00 : f32
    %238 = vector.broadcast %cst_152 : f32 to vector<16x128xf32>
    %239 = vector.broadcast %cst_153 : f32 to vector<16x128xf32>
    %240 = arith.select %237, %238, %239 : vector<16x128xi1>, vector<16x128xf32>
    %cst_154 = arith.constant dense<0.000000e+00> : vector<16x32xf32>
    %241 = tpu.matmul %240, %0, %cst_154 {dimension_numbers = #tpu.dot_dimension_numbers<[1], [0], [0], [1], [0, 0, 1, 1], [], []>} : vector<16x128xf32>, vector<128x32xf32>, vector<16x32xf32> -> vector<16x32xf32>
    %c672 = arith.constant 672 : index
    %c0_155 = arith.constant 0 : index
    %242 = vector.load %arg3[%c672, %c0_155] : memref<1600x6xf32, #tpu.memory_space<vmem>>, vector<32x6xf32>
    %cst_156 = arith.constant dense<0.000000e+00> : vector<16x6xf32>
    %243 = tpu.matmul %241, %242, %cst_156 {dimension_numbers = #tpu.dot_dimension_numbers<[1], [0], [0], [1], [0, 0, 1, 1], [], []>} : vector<16x32xf32>, vector<32x6xf32>, vector<16x6xf32> -> vector<16x6xf32>
    %244 = arith.addf %233, %243 : vector<16x6xf32>
    %c22 = arith.constant 22 : index
    %c0_157 = arith.constant 0 : index
    %c0_158 = arith.constant 0 : index
    %245 = vector.load %arg1[%c22, %c0_157, %c0_158] : memref<50x16x1xi32, #tpu.memory_space<vmem>>, vector<1x16x1xi32>
    %246 = vector.shape_cast %245 : vector<1x16x1xi32> to vector<16x1xi32>
    %247 = vector.broadcast %246 : vector<16x1xi32> to vector<16x128xi32>
    %248 = arith.cmpi eq, %247, %1 : vector<16x128xi32>
    %cst_159 = arith.constant 1.000000e+00 : f32
    %cst_160 = arith.constant 0.000000e+00 : f32
    %249 = vector.broadcast %cst_159 : f32 to vector<16x128xf32>
    %250 = vector.broadcast %cst_160 : f32 to vector<16x128xf32>
    %251 = arith.select %248, %249, %250 : vector<16x128xi1>, vector<16x128xf32>
    %cst_161 = arith.constant dense<0.000000e+00> : vector<16x32xf32>
    %252 = tpu.matmul %251, %0, %cst_161 {dimension_numbers = #tpu.dot_dimension_numbers<[1], [0], [0], [1], [0, 0, 1, 1], [], []>} : vector<16x128xf32>, vector<128x32xf32>, vector<16x32xf32> -> vector<16x32xf32>
    %c704 = arith.constant 704 : index
    %c0_162 = arith.constant 0 : index
    %253 = vector.load %arg3[%c704, %c0_162] : memref<1600x6xf32, #tpu.memory_space<vmem>>, vector<32x6xf32>
    %cst_163 = arith.constant dense<0.000000e+00> : vector<16x6xf32>
    %254 = tpu.matmul %252, %253, %cst_163 {dimension_numbers = #tpu.dot_dimension_numbers<[1], [0], [0], [1], [0, 0, 1, 1], [], []>} : vector<16x32xf32>, vector<32x6xf32>, vector<16x6xf32> -> vector<16x6xf32>
    %255 = arith.addf %244, %254 : vector<16x6xf32>
    %c23 = arith.constant 23 : index
    %c0_164 = arith.constant 0 : index
    %c0_165 = arith.constant 0 : index
    %256 = vector.load %arg1[%c23, %c0_164, %c0_165] : memref<50x16x1xi32, #tpu.memory_space<vmem>>, vector<1x16x1xi32>
    %257 = vector.shape_cast %256 : vector<1x16x1xi32> to vector<16x1xi32>
    %258 = vector.broadcast %257 : vector<16x1xi32> to vector<16x128xi32>
    %259 = arith.cmpi eq, %258, %1 : vector<16x128xi32>
    %cst_166 = arith.constant 1.000000e+00 : f32
    %cst_167 = arith.constant 0.000000e+00 : f32
    %260 = vector.broadcast %cst_166 : f32 to vector<16x128xf32>
    %261 = vector.broadcast %cst_167 : f32 to vector<16x128xf32>
    %262 = arith.select %259, %260, %261 : vector<16x128xi1>, vector<16x128xf32>
    %cst_168 = arith.constant dense<0.000000e+00> : vector<16x32xf32>
    %263 = tpu.matmul %262, %0, %cst_168 {dimension_numbers = #tpu.dot_dimension_numbers<[1], [0], [0], [1], [0, 0, 1, 1], [], []>} : vector<16x128xf32>, vector<128x32xf32>, vector<16x32xf32> -> vector<16x32xf32>
    %c736 = arith.constant 736 : index
    %c0_169 = arith.constant 0 : index
    %264 = vector.load %arg3[%c736, %c0_169] : memref<1600x6xf32, #tpu.memory_space<vmem>>, vector<32x6xf32>
    %cst_170 = arith.constant dense<0.000000e+00> : vector<16x6xf32>
    %265 = tpu.matmul %263, %264, %cst_170 {dimension_numbers = #tpu.dot_dimension_numbers<[1], [0], [0], [1], [0, 0, 1, 1], [], []>} : vector<16x32xf32>, vector<32x6xf32>, vector<16x6xf32> -> vector<16x6xf32>
    %266 = arith.addf %255, %265 : vector<16x6xf32>
    %c24 = arith.constant 24 : index
    %c0_171 = arith.constant 0 : index
    %c0_172 = arith.constant 0 : index
    %267 = vector.load %arg1[%c24, %c0_171, %c0_172] : memref<50x16x1xi32, #tpu.memory_space<vmem>>, vector<1x16x1xi32>
    %268 = vector.shape_cast %267 : vector<1x16x1xi32> to vector<16x1xi32>
    %269 = vector.broadcast %268 : vector<16x1xi32> to vector<16x128xi32>
    %270 = arith.cmpi eq, %269, %1 : vector<16x128xi32>
    %cst_173 = arith.constant 1.000000e+00 : f32
    %cst_174 = arith.constant 0.000000e+00 : f32
    %271 = vector.broadcast %cst_173 : f32 to vector<16x128xf32>
    %272 = vector.broadcast %cst_174 : f32 to vector<16x128xf32>
    %273 = arith.select %270, %271, %272 : vector<16x128xi1>, vector<16x128xf32>
    %cst_175 = arith.constant dense<0.000000e+00> : vector<16x32xf32>
    %274 = tpu.matmul %273, %0, %cst_175 {dimension_numbers = #tpu.dot_dimension_numbers<[1], [0], [0], [1], [0, 0, 1, 1], [], []>} : vector<16x128xf32>, vector<128x32xf32>, vector<16x32xf32> -> vector<16x32xf32>
    %c768 = arith.constant 768 : index
    %c0_176 = arith.constant 0 : index
    %275 = vector.load %arg3[%c768, %c0_176] : memref<1600x6xf32, #tpu.memory_space<vmem>>, vector<32x6xf32>
    %cst_177 = arith.constant dense<0.000000e+00> : vector<16x6xf32>
    %276 = tpu.matmul %274, %275, %cst_177 {dimension_numbers = #tpu.dot_dimension_numbers<[1], [0], [0], [1], [0, 0, 1, 1], [], []>} : vector<16x32xf32>, vector<32x6xf32>, vector<16x6xf32> -> vector<16x6xf32>
    %277 = arith.addf %266, %276 : vector<16x6xf32>
    %c25 = arith.constant 25 : index
    %c0_178 = arith.constant 0 : index
    %c0_179 = arith.constant 0 : index
    %278 = vector.load %arg1[%c25, %c0_178, %c0_179] : memref<50x16x1xi32, #tpu.memory_space<vmem>>, vector<1x16x1xi32>
    %279 = vector.shape_cast %278 : vector<1x16x1xi32> to vector<16x1xi32>
    %280 = vector.broadcast %279 : vector<16x1xi32> to vector<16x128xi32>
    %281 = arith.cmpi eq, %280, %1 : vector<16x128xi32>
    %cst_180 = arith.constant 1.000000e+00 : f32
    %cst_181 = arith.constant 0.000000e+00 : f32
    %282 = vector.broadcast %cst_180 : f32 to vector<16x128xf32>
    %283 = vector.broadcast %cst_181 : f32 to vector<16x128xf32>
    %284 = arith.select %281, %282, %283 : vector<16x128xi1>, vector<16x128xf32>
    %cst_182 = arith.constant dense<0.000000e+00> : vector<16x32xf32>
    %285 = tpu.matmul %284, %0, %cst_182 {dimension_numbers = #tpu.dot_dimension_numbers<[1], [0], [0], [1], [0, 0, 1, 1], [], []>} : vector<16x128xf32>, vector<128x32xf32>, vector<16x32xf32> -> vector<16x32xf32>
    %c800 = arith.constant 800 : index
    %c0_183 = arith.constant 0 : index
    %286 = vector.load %arg3[%c800, %c0_183] : memref<1600x6xf32, #tpu.memory_space<vmem>>, vector<32x6xf32>
    %cst_184 = arith.constant dense<0.000000e+00> : vector<16x6xf32>
    %287 = tpu.matmul %285, %286, %cst_184 {dimension_numbers = #tpu.dot_dimension_numbers<[1], [0], [0], [1], [0, 0, 1, 1], [], []>} : vector<16x32xf32>, vector<32x6xf32>, vector<16x6xf32> -> vector<16x6xf32>
    %288 = arith.addf %277, %287 : vector<16x6xf32>
    %c26 = arith.constant 26 : index
    %c0_185 = arith.constant 0 : index
    %c0_186 = arith.constant 0 : index
    %289 = vector.load %arg1[%c26, %c0_185, %c0_186] : memref<50x16x1xi32, #tpu.memory_space<vmem>>, vector<1x16x1xi32>
    %290 = vector.shape_cast %289 : vector<1x16x1xi32> to vector<16x1xi32>
    %291 = vector.broadcast %290 : vector<16x1xi32> to vector<16x128xi32>
    %292 = arith.cmpi eq, %291, %1 : vector<16x128xi32>
    %cst_187 = arith.constant 1.000000e+00 : f32
    %cst_188 = arith.constant 0.000000e+00 : f32
    %293 = vector.broadcast %cst_187 : f32 to vector<16x128xf32>
    %294 = vector.broadcast %cst_188 : f32 to vector<16x128xf32>
    %295 = arith.select %292, %293, %294 : vector<16x128xi1>, vector<16x128xf32>
    %cst_189 = arith.constant dense<0.000000e+00> : vector<16x32xf32>
    %296 = tpu.matmul %295, %0, %cst_189 {dimension_numbers = #tpu.dot_dimension_numbers<[1], [0], [0], [1], [0, 0, 1, 1], [], []>} : vector<16x128xf32>, vector<128x32xf32>, vector<16x32xf32> -> vector<16x32xf32>
    %c832 = arith.constant 832 : index
    %c0_190 = arith.constant 0 : index
    %297 = vector.load %arg3[%c832, %c0_190] : memref<1600x6xf32, #tpu.memory_space<vmem>>, vector<32x6xf32>
    %cst_191 = arith.constant dense<0.000000e+00> : vector<16x6xf32>
    %298 = tpu.matmul %296, %297, %cst_191 {dimension_numbers = #tpu.dot_dimension_numbers<[1], [0], [0], [1], [0, 0, 1, 1], [], []>} : vector<16x32xf32>, vector<32x6xf32>, vector<16x6xf32> -> vector<16x6xf32>
    %299 = arith.addf %288, %298 : vector<16x6xf32>
    %c27 = arith.constant 27 : index
    %c0_192 = arith.constant 0 : index
    %c0_193 = arith.constant 0 : index
    %300 = vector.load %arg1[%c27, %c0_192, %c0_193] : memref<50x16x1xi32, #tpu.memory_space<vmem>>, vector<1x16x1xi32>
    %301 = vector.shape_cast %300 : vector<1x16x1xi32> to vector<16x1xi32>
    %302 = vector.broadcast %301 : vector<16x1xi32> to vector<16x128xi32>
    %303 = arith.cmpi eq, %302, %1 : vector<16x128xi32>
    %cst_194 = arith.constant 1.000000e+00 : f32
    %cst_195 = arith.constant 0.000000e+00 : f32
    %304 = vector.broadcast %cst_194 : f32 to vector<16x128xf32>
    %305 = vector.broadcast %cst_195 : f32 to vector<16x128xf32>
    %306 = arith.select %303, %304, %305 : vector<16x128xi1>, vector<16x128xf32>
    %cst_196 = arith.constant dense<0.000000e+00> : vector<16x32xf32>
    %307 = tpu.matmul %306, %0, %cst_196 {dimension_numbers = #tpu.dot_dimension_numbers<[1], [0], [0], [1], [0, 0, 1, 1], [], []>} : vector<16x128xf32>, vector<128x32xf32>, vector<16x32xf32> -> vector<16x32xf32>
    %c864 = arith.constant 864 : index
    %c0_197 = arith.constant 0 : index
    %308 = vector.load %arg3[%c864, %c0_197] : memref<1600x6xf32, #tpu.memory_space<vmem>>, vector<32x6xf32>
    %cst_198 = arith.constant dense<0.000000e+00> : vector<16x6xf32>
    %309 = tpu.matmul %307, %308, %cst_198 {dimension_numbers = #tpu.dot_dimension_numbers<[1], [0], [0], [1], [0, 0, 1, 1], [], []>} : vector<16x32xf32>, vector<32x6xf32>, vector<16x6xf32> -> vector<16x6xf32>
    %310 = arith.addf %299, %309 : vector<16x6xf32>
    %c28 = arith.constant 28 : index
    %c0_199 = arith.constant 0 : index
    %c0_200 = arith.constant 0 : index
    %311 = vector.load %arg1[%c28, %c0_199, %c0_200] : memref<50x16x1xi32, #tpu.memory_space<vmem>>, vector<1x16x1xi32>
    %312 = vector.shape_cast %311 : vector<1x16x1xi32> to vector<16x1xi32>
    %313 = vector.broadcast %312 : vector<16x1xi32> to vector<16x128xi32>
    %314 = arith.cmpi eq, %313, %1 : vector<16x128xi32>
    %cst_201 = arith.constant 1.000000e+00 : f32
    %cst_202 = arith.constant 0.000000e+00 : f32
    %315 = vector.broadcast %cst_201 : f32 to vector<16x128xf32>
    %316 = vector.broadcast %cst_202 : f32 to vector<16x128xf32>
    %317 = arith.select %314, %315, %316 : vector<16x128xi1>, vector<16x128xf32>
    %cst_203 = arith.constant dense<0.000000e+00> : vector<16x32xf32>
    %318 = tpu.matmul %317, %0, %cst_203 {dimension_numbers = #tpu.dot_dimension_numbers<[1], [0], [0], [1], [0, 0, 1, 1], [], []>} : vector<16x128xf32>, vector<128x32xf32>, vector<16x32xf32> -> vector<16x32xf32>
    %c896 = arith.constant 896 : index
    %c0_204 = arith.constant 0 : index
    %319 = vector.load %arg3[%c896, %c0_204] : memref<1600x6xf32, #tpu.memory_space<vmem>>, vector<32x6xf32>
    %cst_205 = arith.constant dense<0.000000e+00> : vector<16x6xf32>
    %320 = tpu.matmul %318, %319, %cst_205 {dimension_numbers = #tpu.dot_dimension_numbers<[1], [0], [0], [1], [0, 0, 1, 1], [], []>} : vector<16x32xf32>, vector<32x6xf32>, vector<16x6xf32> -> vector<16x6xf32>
    %321 = arith.addf %310, %320 : vector<16x6xf32>
    %c29 = arith.constant 29 : index
    %c0_206 = arith.constant 0 : index
    %c0_207 = arith.constant 0 : index
    %322 = vector.load %arg1[%c29, %c0_206, %c0_207] : memref<50x16x1xi32, #tpu.memory_space<vmem>>, vector<1x16x1xi32>
    %323 = vector.shape_cast %322 : vector<1x16x1xi32> to vector<16x1xi32>
    %324 = vector.broadcast %323 : vector<16x1xi32> to vector<16x128xi32>
    %325 = arith.cmpi eq, %324, %1 : vector<16x128xi32>
    %cst_208 = arith.constant 1.000000e+00 : f32
    %cst_209 = arith.constant 0.000000e+00 : f32
    %326 = vector.broadcast %cst_208 : f32 to vector<16x128xf32>
    %327 = vector.broadcast %cst_209 : f32 to vector<16x128xf32>
    %328 = arith.select %325, %326, %327 : vector<16x128xi1>, vector<16x128xf32>
    %cst_210 = arith.constant dense<0.000000e+00> : vector<16x32xf32>
    %329 = tpu.matmul %328, %0, %cst_210 {dimension_numbers = #tpu.dot_dimension_numbers<[1], [0], [0], [1], [0, 0, 1, 1], [], []>} : vector<16x128xf32>, vector<128x32xf32>, vector<16x32xf32> -> vector<16x32xf32>
    %c928 = arith.constant 928 : index
    %c0_211 = arith.constant 0 : index
    %330 = vector.load %arg3[%c928, %c0_211] : memref<1600x6xf32, #tpu.memory_space<vmem>>, vector<32x6xf32>
    %cst_212 = arith.constant dense<0.000000e+00> : vector<16x6xf32>
    %331 = tpu.matmul %329, %330, %cst_212 {dimension_numbers = #tpu.dot_dimension_numbers<[1], [0], [0], [1], [0, 0, 1, 1], [], []>} : vector<16x32xf32>, vector<32x6xf32>, vector<16x6xf32> -> vector<16x6xf32>
    %332 = arith.addf %321, %331 : vector<16x6xf32>
    %c30 = arith.constant 30 : index
    %c0_213 = arith.constant 0 : index
    %c0_214 = arith.constant 0 : index
    %333 = vector.load %arg1[%c30, %c0_213, %c0_214] : memref<50x16x1xi32, #tpu.memory_space<vmem>>, vector<1x16x1xi32>
    %334 = vector.shape_cast %333 : vector<1x16x1xi32> to vector<16x1xi32>
    %335 = vector.broadcast %334 : vector<16x1xi32> to vector<16x128xi32>
    %336 = arith.cmpi eq, %335, %1 : vector<16x128xi32>
    %cst_215 = arith.constant 1.000000e+00 : f32
    %cst_216 = arith.constant 0.000000e+00 : f32
    %337 = vector.broadcast %cst_215 : f32 to vector<16x128xf32>
    %338 = vector.broadcast %cst_216 : f32 to vector<16x128xf32>
    %339 = arith.select %336, %337, %338 : vector<16x128xi1>, vector<16x128xf32>
    %cst_217 = arith.constant dense<0.000000e+00> : vector<16x32xf32>
    %340 = tpu.matmul %339, %0, %cst_217 {dimension_numbers = #tpu.dot_dimension_numbers<[1], [0], [0], [1], [0, 0, 1, 1], [], []>} : vector<16x128xf32>, vector<128x32xf32>, vector<16x32xf32> -> vector<16x32xf32>
    %c960 = arith.constant 960 : index
    %c0_218 = arith.constant 0 : index
    %341 = vector.load %arg3[%c960, %c0_218] : memref<1600x6xf32, #tpu.memory_space<vmem>>, vector<32x6xf32>
    %cst_219 = arith.constant dense<0.000000e+00> : vector<16x6xf32>
    %342 = tpu.matmul %340, %341, %cst_219 {dimension_numbers = #tpu.dot_dimension_numbers<[1], [0], [0], [1], [0, 0, 1, 1], [], []>} : vector<16x32xf32>, vector<32x6xf32>, vector<16x6xf32> -> vector<16x6xf32>
    %343 = arith.addf %332, %342 : vector<16x6xf32>
    %c31 = arith.constant 31 : index
    %c0_220 = arith.constant 0 : index
    %c0_221 = arith.constant 0 : index
    %344 = vector.load %arg1[%c31, %c0_220, %c0_221] : memref<50x16x1xi32, #tpu.memory_space<vmem>>, vector<1x16x1xi32>
    %345 = vector.shape_cast %344 : vector<1x16x1xi32> to vector<16x1xi32>
    %346 = vector.broadcast %345 : vector<16x1xi32> to vector<16x128xi32>
    %347 = arith.cmpi eq, %346, %1 : vector<16x128xi32>
    %cst_222 = arith.constant 1.000000e+00 : f32
    %cst_223 = arith.constant 0.000000e+00 : f32
    %348 = vector.broadcast %cst_222 : f32 to vector<16x128xf32>
    %349 = vector.broadcast %cst_223 : f32 to vector<16x128xf32>
    %350 = arith.select %347, %348, %349 : vector<16x128xi1>, vector<16x128xf32>
    %cst_224 = arith.constant dense<0.000000e+00> : vector<16x32xf32>
    %351 = tpu.matmul %350, %0, %cst_224 {dimension_numbers = #tpu.dot_dimension_numbers<[1], [0], [0], [1], [0, 0, 1, 1], [], []>} : vector<16x128xf32>, vector<128x32xf32>, vector<16x32xf32> -> vector<16x32xf32>
    %c992 = arith.constant 992 : index
    %c0_225 = arith.constant 0 : index
    %352 = vector.load %arg3[%c992, %c0_225] : memref<1600x6xf32, #tpu.memory_space<vmem>>, vector<32x6xf32>
    %cst_226 = arith.constant dense<0.000000e+00> : vector<16x6xf32>
    %353 = tpu.matmul %351, %352, %cst_226 {dimension_numbers = #tpu.dot_dimension_numbers<[1], [0], [0], [1], [0, 0, 1, 1], [], []>} : vector<16x32xf32>, vector<32x6xf32>, vector<16x6xf32> -> vector<16x6xf32>
    %354 = arith.addf %343, %353 : vector<16x6xf32>
    %c32_227 = arith.constant 32 : index
    %c0_228 = arith.constant 0 : index
    %c0_229 = arith.constant 0 : index
    %355 = vector.load %arg1[%c32_227, %c0_228, %c0_229] : memref<50x16x1xi32, #tpu.memory_space<vmem>>, vector<1x16x1xi32>
    %356 = vector.shape_cast %355 : vector<1x16x1xi32> to vector<16x1xi32>
    %357 = vector.broadcast %356 : vector<16x1xi32> to vector<16x128xi32>
    %358 = arith.cmpi eq, %357, %1 : vector<16x128xi32>
    %cst_230 = arith.constant 1.000000e+00 : f32
    %cst_231 = arith.constant 0.000000e+00 : f32
    %359 = vector.broadcast %cst_230 : f32 to vector<16x128xf32>
    %360 = vector.broadcast %cst_231 : f32 to vector<16x128xf32>
    %361 = arith.select %358, %359, %360 : vector<16x128xi1>, vector<16x128xf32>
    %cst_232 = arith.constant dense<0.000000e+00> : vector<16x32xf32>
    %362 = tpu.matmul %361, %0, %cst_232 {dimension_numbers = #tpu.dot_dimension_numbers<[1], [0], [0], [1], [0, 0, 1, 1], [], []>} : vector<16x128xf32>, vector<128x32xf32>, vector<16x32xf32> -> vector<16x32xf32>
    %c1024 = arith.constant 1024 : index
    %c0_233 = arith.constant 0 : index
    %363 = vector.load %arg3[%c1024, %c0_233] : memref<1600x6xf32, #tpu.memory_space<vmem>>, vector<32x6xf32>
    %cst_234 = arith.constant dense<0.000000e+00> : vector<16x6xf32>
    %364 = tpu.matmul %362, %363, %cst_234 {dimension_numbers = #tpu.dot_dimension_numbers<[1], [0], [0], [1], [0, 0, 1, 1], [], []>} : vector<16x32xf32>, vector<32x6xf32>, vector<16x6xf32> -> vector<16x6xf32>
    %365 = arith.addf %354, %364 : vector<16x6xf32>
    %c33 = arith.constant 33 : index
    %c0_235 = arith.constant 0 : index
    %c0_236 = arith.constant 0 : index
    %366 = vector.load %arg1[%c33, %c0_235, %c0_236] : memref<50x16x1xi32, #tpu.memory_space<vmem>>, vector<1x16x1xi32>
    %367 = vector.shape_cast %366 : vector<1x16x1xi32> to vector<16x1xi32>
    %368 = vector.broadcast %367 : vector<16x1xi32> to vector<16x128xi32>
    %369 = arith.cmpi eq, %368, %1 : vector<16x128xi32>
    %cst_237 = arith.constant 1.000000e+00 : f32
    %cst_238 = arith.constant 0.000000e+00 : f32
    %370 = vector.broadcast %cst_237 : f32 to vector<16x128xf32>
    %371 = vector.broadcast %cst_238 : f32 to vector<16x128xf32>
    %372 = arith.select %369, %370, %371 : vector<16x128xi1>, vector<16x128xf32>
    %cst_239 = arith.constant dense<0.000000e+00> : vector<16x32xf32>
    %373 = tpu.matmul %372, %0, %cst_239 {dimension_numbers = #tpu.dot_dimension_numbers<[1], [0], [0], [1], [0, 0, 1, 1], [], []>} : vector<16x128xf32>, vector<128x32xf32>, vector<16x32xf32> -> vector<16x32xf32>
    %c1056 = arith.constant 1056 : index
    %c0_240 = arith.constant 0 : index
    %374 = vector.load %arg3[%c1056, %c0_240] : memref<1600x6xf32, #tpu.memory_space<vmem>>, vector<32x6xf32>
    %cst_241 = arith.constant dense<0.000000e+00> : vector<16x6xf32>
    %375 = tpu.matmul %373, %374, %cst_241 {dimension_numbers = #tpu.dot_dimension_numbers<[1], [0], [0], [1], [0, 0, 1, 1], [], []>} : vector<16x32xf32>, vector<32x6xf32>, vector<16x6xf32> -> vector<16x6xf32>
    %376 = arith.addf %365, %375 : vector<16x6xf32>
    %c34 = arith.constant 34 : index
    %c0_242 = arith.constant 0 : index
    %c0_243 = arith.constant 0 : index
    %377 = vector.load %arg1[%c34, %c0_242, %c0_243] : memref<50x16x1xi32, #tpu.memory_space<vmem>>, vector<1x16x1xi32>
    %378 = vector.shape_cast %377 : vector<1x16x1xi32> to vector<16x1xi32>
    %379 = vector.broadcast %378 : vector<16x1xi32> to vector<16x128xi32>
    %380 = arith.cmpi eq, %379, %1 : vector<16x128xi32>
    %cst_244 = arith.constant 1.000000e+00 : f32
    %cst_245 = arith.constant 0.000000e+00 : f32
    %381 = vector.broadcast %cst_244 : f32 to vector<16x128xf32>
    %382 = vector.broadcast %cst_245 : f32 to vector<16x128xf32>
    %383 = arith.select %380, %381, %382 : vector<16x128xi1>, vector<16x128xf32>
    %cst_246 = arith.constant dense<0.000000e+00> : vector<16x32xf32>
    %384 = tpu.matmul %383, %0, %cst_246 {dimension_numbers = #tpu.dot_dimension_numbers<[1], [0], [0], [1], [0, 0, 1, 1], [], []>} : vector<16x128xf32>, vector<128x32xf32>, vector<16x32xf32> -> vector<16x32xf32>
    %c1088 = arith.constant 1088 : index
    %c0_247 = arith.constant 0 : index
    %385 = vector.load %arg3[%c1088, %c0_247] : memref<1600x6xf32, #tpu.memory_space<vmem>>, vector<32x6xf32>
    %cst_248 = arith.constant dense<0.000000e+00> : vector<16x6xf32>
    %386 = tpu.matmul %384, %385, %cst_248 {dimension_numbers = #tpu.dot_dimension_numbers<[1], [0], [0], [1], [0, 0, 1, 1], [], []>} : vector<16x32xf32>, vector<32x6xf32>, vector<16x6xf32> -> vector<16x6xf32>
    %387 = arith.addf %376, %386 : vector<16x6xf32>
    %c35 = arith.constant 35 : index
    %c0_249 = arith.constant 0 : index
    %c0_250 = arith.constant 0 : index
    %388 = vector.load %arg1[%c35, %c0_249, %c0_250] : memref<50x16x1xi32, #tpu.memory_space<vmem>>, vector<1x16x1xi32>
    %389 = vector.shape_cast %388 : vector<1x16x1xi32> to vector<16x1xi32>
    %390 = vector.broadcast %389 : vector<16x1xi32> to vector<16x128xi32>
    %391 = arith.cmpi eq, %390, %1 : vector<16x128xi32>
    %cst_251 = arith.constant 1.000000e+00 : f32
    %cst_252 = arith.constant 0.000000e+00 : f32
    %392 = vector.broadcast %cst_251 : f32 to vector<16x128xf32>
    %393 = vector.broadcast %cst_252 : f32 to vector<16x128xf32>
    %394 = arith.select %391, %392, %393 : vector<16x128xi1>, vector<16x128xf32>
    %cst_253 = arith.constant dense<0.000000e+00> : vector<16x32xf32>
    %395 = tpu.matmul %394, %0, %cst_253 {dimension_numbers = #tpu.dot_dimension_numbers<[1], [0], [0], [1], [0, 0, 1, 1], [], []>} : vector<16x128xf32>, vector<128x32xf32>, vector<16x32xf32> -> vector<16x32xf32>
    %c1120 = arith.constant 1120 : index
    %c0_254 = arith.constant 0 : index
    %396 = vector.load %arg3[%c1120, %c0_254] : memref<1600x6xf32, #tpu.memory_space<vmem>>, vector<32x6xf32>
    %cst_255 = arith.constant dense<0.000000e+00> : vector<16x6xf32>
    %397 = tpu.matmul %395, %396, %cst_255 {dimension_numbers = #tpu.dot_dimension_numbers<[1], [0], [0], [1], [0, 0, 1, 1], [], []>} : vector<16x32xf32>, vector<32x6xf32>, vector<16x6xf32> -> vector<16x6xf32>
    %398 = arith.addf %387, %397 : vector<16x6xf32>
    %c36 = arith.constant 36 : index
    %c0_256 = arith.constant 0 : index
    %c0_257 = arith.constant 0 : index
    %399 = vector.load %arg1[%c36, %c0_256, %c0_257] : memref<50x16x1xi32, #tpu.memory_space<vmem>>, vector<1x16x1xi32>
    %400 = vector.shape_cast %399 : vector<1x16x1xi32> to vector<16x1xi32>
    %401 = vector.broadcast %400 : vector<16x1xi32> to vector<16x128xi32>
    %402 = arith.cmpi eq, %401, %1 : vector<16x128xi32>
    %cst_258 = arith.constant 1.000000e+00 : f32
    %cst_259 = arith.constant 0.000000e+00 : f32
    %403 = vector.broadcast %cst_258 : f32 to vector<16x128xf32>
    %404 = vector.broadcast %cst_259 : f32 to vector<16x128xf32>
    %405 = arith.select %402, %403, %404 : vector<16x128xi1>, vector<16x128xf32>
    %cst_260 = arith.constant dense<0.000000e+00> : vector<16x32xf32>
    %406 = tpu.matmul %405, %0, %cst_260 {dimension_numbers = #tpu.dot_dimension_numbers<[1], [0], [0], [1], [0, 0, 1, 1], [], []>} : vector<16x128xf32>, vector<128x32xf32>, vector<16x32xf32> -> vector<16x32xf32>
    %c1152 = arith.constant 1152 : index
    %c0_261 = arith.constant 0 : index
    %407 = vector.load %arg3[%c1152, %c0_261] : memref<1600x6xf32, #tpu.memory_space<vmem>>, vector<32x6xf32>
    %cst_262 = arith.constant dense<0.000000e+00> : vector<16x6xf32>
    %408 = tpu.matmul %406, %407, %cst_262 {dimension_numbers = #tpu.dot_dimension_numbers<[1], [0], [0], [1], [0, 0, 1, 1], [], []>} : vector<16x32xf32>, vector<32x6xf32>, vector<16x6xf32> -> vector<16x6xf32>
    %409 = arith.addf %398, %408 : vector<16x6xf32>
    %c37 = arith.constant 37 : index
    %c0_263 = arith.constant 0 : index
    %c0_264 = arith.constant 0 : index
    %410 = vector.load %arg1[%c37, %c0_263, %c0_264] : memref<50x16x1xi32, #tpu.memory_space<vmem>>, vector<1x16x1xi32>
    %411 = vector.shape_cast %410 : vector<1x16x1xi32> to vector<16x1xi32>
    %412 = vector.broadcast %411 : vector<16x1xi32> to vector<16x128xi32>
    %413 = arith.cmpi eq, %412, %1 : vector<16x128xi32>
    %cst_265 = arith.constant 1.000000e+00 : f32
    %cst_266 = arith.constant 0.000000e+00 : f32
    %414 = vector.broadcast %cst_265 : f32 to vector<16x128xf32>
    %415 = vector.broadcast %cst_266 : f32 to vector<16x128xf32>
    %416 = arith.select %413, %414, %415 : vector<16x128xi1>, vector<16x128xf32>
    %cst_267 = arith.constant dense<0.000000e+00> : vector<16x32xf32>
    %417 = tpu.matmul %416, %0, %cst_267 {dimension_numbers = #tpu.dot_dimension_numbers<[1], [0], [0], [1], [0, 0, 1, 1], [], []>} : vector<16x128xf32>, vector<128x32xf32>, vector<16x32xf32> -> vector<16x32xf32>
    %c1184 = arith.constant 1184 : index
    %c0_268 = arith.constant 0 : index
    %418 = vector.load %arg3[%c1184, %c0_268] : memref<1600x6xf32, #tpu.memory_space<vmem>>, vector<32x6xf32>
    %cst_269 = arith.constant dense<0.000000e+00> : vector<16x6xf32>
    %419 = tpu.matmul %417, %418, %cst_269 {dimension_numbers = #tpu.dot_dimension_numbers<[1], [0], [0], [1], [0, 0, 1, 1], [], []>} : vector<16x32xf32>, vector<32x6xf32>, vector<16x6xf32> -> vector<16x6xf32>
    %420 = arith.addf %409, %419 : vector<16x6xf32>
    %c38 = arith.constant 38 : index
    %c0_270 = arith.constant 0 : index
    %c0_271 = arith.constant 0 : index
    %421 = vector.load %arg1[%c38, %c0_270, %c0_271] : memref<50x16x1xi32, #tpu.memory_space<vmem>>, vector<1x16x1xi32>
    %422 = vector.shape_cast %421 : vector<1x16x1xi32> to vector<16x1xi32>
    %423 = vector.broadcast %422 : vector<16x1xi32> to vector<16x128xi32>
    %424 = arith.cmpi eq, %423, %1 : vector<16x128xi32>
    %cst_272 = arith.constant 1.000000e+00 : f32
    %cst_273 = arith.constant 0.000000e+00 : f32
    %425 = vector.broadcast %cst_272 : f32 to vector<16x128xf32>
    %426 = vector.broadcast %cst_273 : f32 to vector<16x128xf32>
    %427 = arith.select %424, %425, %426 : vector<16x128xi1>, vector<16x128xf32>
    %cst_274 = arith.constant dense<0.000000e+00> : vector<16x32xf32>
    %428 = tpu.matmul %427, %0, %cst_274 {dimension_numbers = #tpu.dot_dimension_numbers<[1], [0], [0], [1], [0, 0, 1, 1], [], []>} : vector<16x128xf32>, vector<128x32xf32>, vector<16x32xf32> -> vector<16x32xf32>
    %c1216 = arith.constant 1216 : index
    %c0_275 = arith.constant 0 : index
    %429 = vector.load %arg3[%c1216, %c0_275] : memref<1600x6xf32, #tpu.memory_space<vmem>>, vector<32x6xf32>
    %cst_276 = arith.constant dense<0.000000e+00> : vector<16x6xf32>
    %430 = tpu.matmul %428, %429, %cst_276 {dimension_numbers = #tpu.dot_dimension_numbers<[1], [0], [0], [1], [0, 0, 1, 1], [], []>} : vector<16x32xf32>, vector<32x6xf32>, vector<16x6xf32> -> vector<16x6xf32>
    %431 = arith.addf %420, %430 : vector<16x6xf32>
    %c39 = arith.constant 39 : index
    %c0_277 = arith.constant 0 : index
    %c0_278 = arith.constant 0 : index
    %432 = vector.load %arg1[%c39, %c0_277, %c0_278] : memref<50x16x1xi32, #tpu.memory_space<vmem>>, vector<1x16x1xi32>
    %433 = vector.shape_cast %432 : vector<1x16x1xi32> to vector<16x1xi32>
    %434 = vector.broadcast %433 : vector<16x1xi32> to vector<16x128xi32>
    %435 = arith.cmpi eq, %434, %1 : vector<16x128xi32>
    %cst_279 = arith.constant 1.000000e+00 : f32
    %cst_280 = arith.constant 0.000000e+00 : f32
    %436 = vector.broadcast %cst_279 : f32 to vector<16x128xf32>
    %437 = vector.broadcast %cst_280 : f32 to vector<16x128xf32>
    %438 = arith.select %435, %436, %437 : vector<16x128xi1>, vector<16x128xf32>
    %cst_281 = arith.constant dense<0.000000e+00> : vector<16x32xf32>
    %439 = tpu.matmul %438, %0, %cst_281 {dimension_numbers = #tpu.dot_dimension_numbers<[1], [0], [0], [1], [0, 0, 1, 1], [], []>} : vector<16x128xf32>, vector<128x32xf32>, vector<16x32xf32> -> vector<16x32xf32>
    %c1248 = arith.constant 1248 : index
    %c0_282 = arith.constant 0 : index
    %440 = vector.load %arg3[%c1248, %c0_282] : memref<1600x6xf32, #tpu.memory_space<vmem>>, vector<32x6xf32>
    %cst_283 = arith.constant dense<0.000000e+00> : vector<16x6xf32>
    %441 = tpu.matmul %439, %440, %cst_283 {dimension_numbers = #tpu.dot_dimension_numbers<[1], [0], [0], [1], [0, 0, 1, 1], [], []>} : vector<16x32xf32>, vector<32x6xf32>, vector<16x6xf32> -> vector<16x6xf32>
    %442 = arith.addf %431, %441 : vector<16x6xf32>
    %c40 = arith.constant 40 : index
    %c0_284 = arith.constant 0 : index
    %c0_285 = arith.constant 0 : index
    %443 = vector.load %arg1[%c40, %c0_284, %c0_285] : memref<50x16x1xi32, #tpu.memory_space<vmem>>, vector<1x16x1xi32>
    %444 = vector.shape_cast %443 : vector<1x16x1xi32> to vector<16x1xi32>
    %445 = vector.broadcast %444 : vector<16x1xi32> to vector<16x128xi32>
    %446 = arith.cmpi eq, %445, %1 : vector<16x128xi32>
    %cst_286 = arith.constant 1.000000e+00 : f32
    %cst_287 = arith.constant 0.000000e+00 : f32
    %447 = vector.broadcast %cst_286 : f32 to vector<16x128xf32>
    %448 = vector.broadcast %cst_287 : f32 to vector<16x128xf32>
    %449 = arith.select %446, %447, %448 : vector<16x128xi1>, vector<16x128xf32>
    %cst_288 = arith.constant dense<0.000000e+00> : vector<16x32xf32>
    %450 = tpu.matmul %449, %0, %cst_288 {dimension_numbers = #tpu.dot_dimension_numbers<[1], [0], [0], [1], [0, 0, 1, 1], [], []>} : vector<16x128xf32>, vector<128x32xf32>, vector<16x32xf32> -> vector<16x32xf32>
    %c1280 = arith.constant 1280 : index
    %c0_289 = arith.constant 0 : index
    %451 = vector.load %arg3[%c1280, %c0_289] : memref<1600x6xf32, #tpu.memory_space<vmem>>, vector<32x6xf32>
    %cst_290 = arith.constant dense<0.000000e+00> : vector<16x6xf32>
    %452 = tpu.matmul %450, %451, %cst_290 {dimension_numbers = #tpu.dot_dimension_numbers<[1], [0], [0], [1], [0, 0, 1, 1], [], []>} : vector<16x32xf32>, vector<32x6xf32>, vector<16x6xf32> -> vector<16x6xf32>
    %453 = arith.addf %442, %452 : vector<16x6xf32>
    %c41 = arith.constant 41 : index
    %c0_291 = arith.constant 0 : index
    %c0_292 = arith.constant 0 : index
    %454 = vector.load %arg1[%c41, %c0_291, %c0_292] : memref<50x16x1xi32, #tpu.memory_space<vmem>>, vector<1x16x1xi32>
    %455 = vector.shape_cast %454 : vector<1x16x1xi32> to vector<16x1xi32>
    %456 = vector.broadcast %455 : vector<16x1xi32> to vector<16x128xi32>
    %457 = arith.cmpi eq, %456, %1 : vector<16x128xi32>
    %cst_293 = arith.constant 1.000000e+00 : f32
    %cst_294 = arith.constant 0.000000e+00 : f32
    %458 = vector.broadcast %cst_293 : f32 to vector<16x128xf32>
    %459 = vector.broadcast %cst_294 : f32 to vector<16x128xf32>
    %460 = arith.select %457, %458, %459 : vector<16x128xi1>, vector<16x128xf32>
    %cst_295 = arith.constant dense<0.000000e+00> : vector<16x32xf32>
    %461 = tpu.matmul %460, %0, %cst_295 {dimension_numbers = #tpu.dot_dimension_numbers<[1], [0], [0], [1], [0, 0, 1, 1], [], []>} : vector<16x128xf32>, vector<128x32xf32>, vector<16x32xf32> -> vector<16x32xf32>
    %c1312 = arith.constant 1312 : index
    %c0_296 = arith.constant 0 : index
    %462 = vector.load %arg3[%c1312, %c0_296] : memref<1600x6xf32, #tpu.memory_space<vmem>>, vector<32x6xf32>
    %cst_297 = arith.constant dense<0.000000e+00> : vector<16x6xf32>
    %463 = tpu.matmul %461, %462, %cst_297 {dimension_numbers = #tpu.dot_dimension_numbers<[1], [0], [0], [1], [0, 0, 1, 1], [], []>} : vector<16x32xf32>, vector<32x6xf32>, vector<16x6xf32> -> vector<16x6xf32>
    %464 = arith.addf %453, %463 : vector<16x6xf32>
    %c42 = arith.constant 42 : index
    %c0_298 = arith.constant 0 : index
    %c0_299 = arith.constant 0 : index
    %465 = vector.load %arg1[%c42, %c0_298, %c0_299] : memref<50x16x1xi32, #tpu.memory_space<vmem>>, vector<1x16x1xi32>
    %466 = vector.shape_cast %465 : vector<1x16x1xi32> to vector<16x1xi32>
    %467 = vector.broadcast %466 : vector<16x1xi32> to vector<16x128xi32>
    %468 = arith.cmpi eq, %467, %1 : vector<16x128xi32>
    %cst_300 = arith.constant 1.000000e+00 : f32
    %cst_301 = arith.constant 0.000000e+00 : f32
    %469 = vector.broadcast %cst_300 : f32 to vector<16x128xf32>
    %470 = vector.broadcast %cst_301 : f32 to vector<16x128xf32>
    %471 = arith.select %468, %469, %470 : vector<16x128xi1>, vector<16x128xf32>
    %cst_302 = arith.constant dense<0.000000e+00> : vector<16x32xf32>
    %472 = tpu.matmul %471, %0, %cst_302 {dimension_numbers = #tpu.dot_dimension_numbers<[1], [0], [0], [1], [0, 0, 1, 1], [], []>} : vector<16x128xf32>, vector<128x32xf32>, vector<16x32xf32> -> vector<16x32xf32>
    %c1344 = arith.constant 1344 : index
    %c0_303 = arith.constant 0 : index
    %473 = vector.load %arg3[%c1344, %c0_303] : memref<1600x6xf32, #tpu.memory_space<vmem>>, vector<32x6xf32>
    %cst_304 = arith.constant dense<0.000000e+00> : vector<16x6xf32>
    %474 = tpu.matmul %472, %473, %cst_304 {dimension_numbers = #tpu.dot_dimension_numbers<[1], [0], [0], [1], [0, 0, 1, 1], [], []>} : vector<16x32xf32>, vector<32x6xf32>, vector<16x6xf32> -> vector<16x6xf32>
    %475 = arith.addf %464, %474 : vector<16x6xf32>
    %c43 = arith.constant 43 : index
    %c0_305 = arith.constant 0 : index
    %c0_306 = arith.constant 0 : index
    %476 = vector.load %arg1[%c43, %c0_305, %c0_306] : memref<50x16x1xi32, #tpu.memory_space<vmem>>, vector<1x16x1xi32>
    %477 = vector.shape_cast %476 : vector<1x16x1xi32> to vector<16x1xi32>
    %478 = vector.broadcast %477 : vector<16x1xi32> to vector<16x128xi32>
    %479 = arith.cmpi eq, %478, %1 : vector<16x128xi32>
    %cst_307 = arith.constant 1.000000e+00 : f32
    %cst_308 = arith.constant 0.000000e+00 : f32
    %480 = vector.broadcast %cst_307 : f32 to vector<16x128xf32>
    %481 = vector.broadcast %cst_308 : f32 to vector<16x128xf32>
    %482 = arith.select %479, %480, %481 : vector<16x128xi1>, vector<16x128xf32>
    %cst_309 = arith.constant dense<0.000000e+00> : vector<16x32xf32>
    %483 = tpu.matmul %482, %0, %cst_309 {dimension_numbers = #tpu.dot_dimension_numbers<[1], [0], [0], [1], [0, 0, 1, 1], [], []>} : vector<16x128xf32>, vector<128x32xf32>, vector<16x32xf32> -> vector<16x32xf32>
    %c1376 = arith.constant 1376 : index
    %c0_310 = arith.constant 0 : index
    %484 = vector.load %arg3[%c1376, %c0_310] : memref<1600x6xf32, #tpu.memory_space<vmem>>, vector<32x6xf32>
    %cst_311 = arith.constant dense<0.000000e+00> : vector<16x6xf32>
    %485 = tpu.matmul %483, %484, %cst_311 {dimension_numbers = #tpu.dot_dimension_numbers<[1], [0], [0], [1], [0, 0, 1, 1], [], []>} : vector<16x32xf32>, vector<32x6xf32>, vector<16x6xf32> -> vector<16x6xf32>
    %486 = arith.addf %475, %485 : vector<16x6xf32>
    %c44 = arith.constant 44 : index
    %c0_312 = arith.constant 0 : index
    %c0_313 = arith.constant 0 : index
    %487 = vector.load %arg1[%c44, %c0_312, %c0_313] : memref<50x16x1xi32, #tpu.memory_space<vmem>>, vector<1x16x1xi32>
    %488 = vector.shape_cast %487 : vector<1x16x1xi32> to vector<16x1xi32>
    %489 = vector.broadcast %488 : vector<16x1xi32> to vector<16x128xi32>
    %490 = arith.cmpi eq, %489, %1 : vector<16x128xi32>
    %cst_314 = arith.constant 1.000000e+00 : f32
    %cst_315 = arith.constant 0.000000e+00 : f32
    %491 = vector.broadcast %cst_314 : f32 to vector<16x128xf32>
    %492 = vector.broadcast %cst_315 : f32 to vector<16x128xf32>
    %493 = arith.select %490, %491, %492 : vector<16x128xi1>, vector<16x128xf32>
    %cst_316 = arith.constant dense<0.000000e+00> : vector<16x32xf32>
    %494 = tpu.matmul %493, %0, %cst_316 {dimension_numbers = #tpu.dot_dimension_numbers<[1], [0], [0], [1], [0, 0, 1, 1], [], []>} : vector<16x128xf32>, vector<128x32xf32>, vector<16x32xf32> -> vector<16x32xf32>
    %c1408 = arith.constant 1408 : index
    %c0_317 = arith.constant 0 : index
    %495 = vector.load %arg3[%c1408, %c0_317] : memref<1600x6xf32, #tpu.memory_space<vmem>>, vector<32x6xf32>
    %cst_318 = arith.constant dense<0.000000e+00> : vector<16x6xf32>
    %496 = tpu.matmul %494, %495, %cst_318 {dimension_numbers = #tpu.dot_dimension_numbers<[1], [0], [0], [1], [0, 0, 1, 1], [], []>} : vector<16x32xf32>, vector<32x6xf32>, vector<16x6xf32> -> vector<16x6xf32>
    %497 = arith.addf %486, %496 : vector<16x6xf32>
    %c45 = arith.constant 45 : index
    %c0_319 = arith.constant 0 : index
    %c0_320 = arith.constant 0 : index
    %498 = vector.load %arg1[%c45, %c0_319, %c0_320] : memref<50x16x1xi32, #tpu.memory_space<vmem>>, vector<1x16x1xi32>
    %499 = vector.shape_cast %498 : vector<1x16x1xi32> to vector<16x1xi32>
    %500 = vector.broadcast %499 : vector<16x1xi32> to vector<16x128xi32>
    %501 = arith.cmpi eq, %500, %1 : vector<16x128xi32>
    %cst_321 = arith.constant 1.000000e+00 : f32
    %cst_322 = arith.constant 0.000000e+00 : f32
    %502 = vector.broadcast %cst_321 : f32 to vector<16x128xf32>
    %503 = vector.broadcast %cst_322 : f32 to vector<16x128xf32>
    %504 = arith.select %501, %502, %503 : vector<16x128xi1>, vector<16x128xf32>
    %cst_323 = arith.constant dense<0.000000e+00> : vector<16x32xf32>
    %505 = tpu.matmul %504, %0, %cst_323 {dimension_numbers = #tpu.dot_dimension_numbers<[1], [0], [0], [1], [0, 0, 1, 1], [], []>} : vector<16x128xf32>, vector<128x32xf32>, vector<16x32xf32> -> vector<16x32xf32>
    %c1440 = arith.constant 1440 : index
    %c0_324 = arith.constant 0 : index
    %506 = vector.load %arg3[%c1440, %c0_324] : memref<1600x6xf32, #tpu.memory_space<vmem>>, vector<32x6xf32>
    %cst_325 = arith.constant dense<0.000000e+00> : vector<16x6xf32>
    %507 = tpu.matmul %505, %506, %cst_325 {dimension_numbers = #tpu.dot_dimension_numbers<[1], [0], [0], [1], [0, 0, 1, 1], [], []>} : vector<16x32xf32>, vector<32x6xf32>, vector<16x6xf32> -> vector<16x6xf32>
    %508 = arith.addf %497, %507 : vector<16x6xf32>
    %c46 = arith.constant 46 : index
    %c0_326 = arith.constant 0 : index
    %c0_327 = arith.constant 0 : index
    %509 = vector.load %arg1[%c46, %c0_326, %c0_327] : memref<50x16x1xi32, #tpu.memory_space<vmem>>, vector<1x16x1xi32>
    %510 = vector.shape_cast %509 : vector<1x16x1xi32> to vector<16x1xi32>
    %511 = vector.broadcast %510 : vector<16x1xi32> to vector<16x128xi32>
    %512 = arith.cmpi eq, %511, %1 : vector<16x128xi32>
    %cst_328 = arith.constant 1.000000e+00 : f32
    %cst_329 = arith.constant 0.000000e+00 : f32
    %513 = vector.broadcast %cst_328 : f32 to vector<16x128xf32>
    %514 = vector.broadcast %cst_329 : f32 to vector<16x128xf32>
    %515 = arith.select %512, %513, %514 : vector<16x128xi1>, vector<16x128xf32>
    %cst_330 = arith.constant dense<0.000000e+00> : vector<16x32xf32>
    %516 = tpu.matmul %515, %0, %cst_330 {dimension_numbers = #tpu.dot_dimension_numbers<[1], [0], [0], [1], [0, 0, 1, 1], [], []>} : vector<16x128xf32>, vector<128x32xf32>, vector<16x32xf32> -> vector<16x32xf32>
    %c1472 = arith.constant 1472 : index
    %c0_331 = arith.constant 0 : index
    %517 = vector.load %arg3[%c1472, %c0_331] : memref<1600x6xf32, #tpu.memory_space<vmem>>, vector<32x6xf32>
    %cst_332 = arith.constant dense<0.000000e+00> : vector<16x6xf32>
    %518 = tpu.matmul %516, %517, %cst_332 {dimension_numbers = #tpu.dot_dimension_numbers<[1], [0], [0], [1], [0, 0, 1, 1], [], []>} : vector<16x32xf32>, vector<32x6xf32>, vector<16x6xf32> -> vector<16x6xf32>
    %519 = arith.addf %508, %518 : vector<16x6xf32>
    %c47 = arith.constant 47 : index
    %c0_333 = arith.constant 0 : index
    %c0_334 = arith.constant 0 : index
    %520 = vector.load %arg1[%c47, %c0_333, %c0_334] : memref<50x16x1xi32, #tpu.memory_space<vmem>>, vector<1x16x1xi32>
    %521 = vector.shape_cast %520 : vector<1x16x1xi32> to vector<16x1xi32>
    %522 = vector.broadcast %521 : vector<16x1xi32> to vector<16x128xi32>
    %523 = arith.cmpi eq, %522, %1 : vector<16x128xi32>
    %cst_335 = arith.constant 1.000000e+00 : f32
    %cst_336 = arith.constant 0.000000e+00 : f32
    %524 = vector.broadcast %cst_335 : f32 to vector<16x128xf32>
    %525 = vector.broadcast %cst_336 : f32 to vector<16x128xf32>
    %526 = arith.select %523, %524, %525 : vector<16x128xi1>, vector<16x128xf32>
    %cst_337 = arith.constant dense<0.000000e+00> : vector<16x32xf32>
    %527 = tpu.matmul %526, %0, %cst_337 {dimension_numbers = #tpu.dot_dimension_numbers<[1], [0], [0], [1], [0, 0, 1, 1], [], []>} : vector<16x128xf32>, vector<128x32xf32>, vector<16x32xf32> -> vector<16x32xf32>
    %c1504 = arith.constant 1504 : index
    %c0_338 = arith.constant 0 : index
    %528 = vector.load %arg3[%c1504, %c0_338] : memref<1600x6xf32, #tpu.memory_space<vmem>>, vector<32x6xf32>
    %cst_339 = arith.constant dense<0.000000e+00> : vector<16x6xf32>
    %529 = tpu.matmul %527, %528, %cst_339 {dimension_numbers = #tpu.dot_dimension_numbers<[1], [0], [0], [1], [0, 0, 1, 1], [], []>} : vector<16x32xf32>, vector<32x6xf32>, vector<16x6xf32> -> vector<16x6xf32>
    %530 = arith.addf %519, %529 : vector<16x6xf32>
    %c48 = arith.constant 48 : index
    %c0_340 = arith.constant 0 : index
    %c0_341 = arith.constant 0 : index
    %531 = vector.load %arg1[%c48, %c0_340, %c0_341] : memref<50x16x1xi32, #tpu.memory_space<vmem>>, vector<1x16x1xi32>
    %532 = vector.shape_cast %531 : vector<1x16x1xi32> to vector<16x1xi32>
    %533 = vector.broadcast %532 : vector<16x1xi32> to vector<16x128xi32>
    %534 = arith.cmpi eq, %533, %1 : vector<16x128xi32>
    %cst_342 = arith.constant 1.000000e+00 : f32
    %cst_343 = arith.constant 0.000000e+00 : f32
    %535 = vector.broadcast %cst_342 : f32 to vector<16x128xf32>
    %536 = vector.broadcast %cst_343 : f32 to vector<16x128xf32>
    %537 = arith.select %534, %535, %536 : vector<16x128xi1>, vector<16x128xf32>
    %cst_344 = arith.constant dense<0.000000e+00> : vector<16x32xf32>
    %538 = tpu.matmul %537, %0, %cst_344 {dimension_numbers = #tpu.dot_dimension_numbers<[1], [0], [0], [1], [0, 0, 1, 1], [], []>} : vector<16x128xf32>, vector<128x32xf32>, vector<16x32xf32> -> vector<16x32xf32>
    %c1536 = arith.constant 1536 : index
    %c0_345 = arith.constant 0 : index
    %539 = vector.load %arg3[%c1536, %c0_345] : memref<1600x6xf32, #tpu.memory_space<vmem>>, vector<32x6xf32>
    %cst_346 = arith.constant dense<0.000000e+00> : vector<16x6xf32>
    %540 = tpu.matmul %538, %539, %cst_346 {dimension_numbers = #tpu.dot_dimension_numbers<[1], [0], [0], [1], [0, 0, 1, 1], [], []>} : vector<16x32xf32>, vector<32x6xf32>, vector<16x6xf32> -> vector<16x6xf32>
    %541 = arith.addf %530, %540 : vector<16x6xf32>
    %c49 = arith.constant 49 : index
    %c0_347 = arith.constant 0 : index
    %c0_348 = arith.constant 0 : index
    %542 = vector.load %arg1[%c49, %c0_347, %c0_348] : memref<50x16x1xi32, #tpu.memory_space<vmem>>, vector<1x16x1xi32>
    %543 = vector.shape_cast %542 : vector<1x16x1xi32> to vector<16x1xi32>
    %544 = vector.broadcast %543 : vector<16x1xi32> to vector<16x128xi32>
    %545 = arith.cmpi eq, %544, %1 : vector<16x128xi32>
    %cst_349 = arith.constant 1.000000e+00 : f32
    %cst_350 = arith.constant 0.000000e+00 : f32
    %546 = vector.broadcast %cst_349 : f32 to vector<16x128xf32>
    %547 = vector.broadcast %cst_350 : f32 to vector<16x128xf32>
    %548 = arith.select %545, %546, %547 : vector<16x128xi1>, vector<16x128xf32>
    %cst_351 = arith.constant dense<0.000000e+00> : vector<16x32xf32>
    %549 = tpu.matmul %548, %0, %cst_351 {dimension_numbers = #tpu.dot_dimension_numbers<[1], [0], [0], [1], [0, 0, 1, 1], [], []>} : vector<16x128xf32>, vector<128x32xf32>, vector<16x32xf32> -> vector<16x32xf32>
    %c1568 = arith.constant 1568 : index
    %c0_352 = arith.constant 0 : index
    %550 = vector.load %arg3[%c1568, %c0_352] : memref<1600x6xf32, #tpu.memory_space<vmem>>, vector<32x6xf32>
    %cst_353 = arith.constant dense<0.000000e+00> : vector<16x6xf32>
    %551 = tpu.matmul %549, %550, %cst_353 {dimension_numbers = #tpu.dot_dimension_numbers<[1], [0], [0], [1], [0, 0, 1, 1], [], []>} : vector<16x32xf32>, vector<32x6xf32>, vector<16x6xf32> -> vector<16x6xf32>
    %552 = arith.addf %541, %551 : vector<16x6xf32>
    %c0_354 = arith.constant 0 : index
    %c0_355 = arith.constant 0 : index
    %553 = vector.load %arg4[%c0_354, %c0_355] : memref<1x6xf32, #tpu.memory_space<vmem>>, vector<1x6xf32>
    %554 = vector.broadcast %553 : vector<1x6xf32> to vector<16x6xf32>
    %555 = arith.addf %552, %554 : vector<16x6xf32>
    %c0_356 = arith.constant 0 : index
    %c0_357 = arith.constant 0 : index
    %556 = vector.load %arg5[%c0_356, %c0_357] : memref<16x6xf32, #tpu.memory_space<vmem>>, vector<16x6xf32>
    tpu.vector_store %arg5[%c0_356, %c0_357], %555 {strides = array<i32>} : memref<16x6xf32, #tpu.memory_space<vmem>>, vector<16x6xf32>,
    return
  }
  func.func @transform_0(%arg0: i32) -> (i32, i32, i32) {
    %c0_i32 = arith.constant 0 : i32
    %c0_i32_0 = arith.constant 0 : i32
    %c0_i32_1 = arith.constant 0 : i32
    return %c0_i32, %arg0, %c0_i32_0 : i32, i32, i32
  }
  func.func @transform_1(%arg0: i32) -> (i32, i32) {
    %c0_i32 = arith.constant 0 : i32
    %c0_i32_0 = arith.constant 0 : i32
    %c0_i32_1 = arith.constant 0 : i32
    return %c0_i32, %c0_i32_0 : i32, i32
  }
  func.func @transform_2(%arg0: i32) -> (i32, i32) {
    %c0_i32 = arith.constant 0 : i32
    %c0_i32_0 = arith.constant 0 : i32
    %c0_i32_1 = arith.constant 0 : i32
    return %c0_i32, %c0_i32_0 : i32, i32
  }
  func.func @transform_3(%arg0: i32) -> (i32, i32) {
    %c0_i32 = arith.constant 0 : i32
    %c0_i32_0 = arith.constant 0 : i32
    %c0_i32_1 = arith.constant 0 : i32
    return %c0_i32, %c0_i32_0 : i32, i32
  }
  func.func @transform_4(%arg0: i32) -> (i32, i32) {
    %c0_i32 = arith.constant 0 : i32
    %c0_i32_0 = arith.constant 0 : i32
    return %arg0, %c0_i32 : i32, i32
  }
}

</mosaic_0001>

<llo_original>
// kernel: tpu_custom_call.1
$region0: #{tpu_custom_call.1}
  #allocation0 [shape = 'u32[]', space=smem, size = 0x4, offset = 0x4, fixed_abs, tag = 'smem constant byte address 0x4 - core index']
  #allocation1 [shape = 'u32[144,128]{1,0:T(1,128)}', space=vmem, size = 0x12000, scoped, tag = 'internal scratch']
  %s0 = inlined_call_operand.vmem [shape: s32[50,32,1], index: 0, kind: input, shape index: {}]
  %s1 = inlined_call_operand.vmem [shape: f32[128,32], index: 1, kind: input, shape index: {}]
  %s2 = inlined_call_operand.vmem [shape: f32[1600,6], index: 2, kind: input, shape index: {}]
  %s3 = inlined_call_operand.vmem [shape: f32[1,6], index: 3, kind: input, shape index: {}]
  %s4 = inlined_call_operand.vmem [shape: f32[32,6], index: 4, kind: output, shape index: {}]
  %s5 = sld [smem:[#allocation0]]
  $region87: #{tpu_custom_call.1} parent=0
    _
  %s7 = ssub.s32 1, %s5
  %s8 = scalar_select 0, %s7, %s5
  $region1: #{tpu_custom_call.1} parent=0
    #allocation2 [shape = 'u8[819200]{0}', space=vmem, size = 0xc8000, scoped, tag = 'input window, operand 0']
    loop: start=0, step=1, limit=4
    $region2: #{tpu_custom_call.1} parent=1 // loop_pre_header
      _
    $region3: #{tpu_custom_call.1} parent=1 // loop_header
      %s10 = sphi 0, %s14
      %p11 = scmp.ge.s32.totalorder %s10, 4
      %s20 = sphi 0, %s22
      %s23 = sphi 0, %s20
      %s24 = sphi 0, %s23
      %s40 = sphi 0, %s24
      %s44 = sphi 0, %s44
      %s46 = sphi 0, %s44
      %s47 = sphi 0, %s46
      %s61 = sphi 0, %s47
      %s65 = sphi 0, %s65
      %s67 = sphi 0, %s65
      %s68 = sphi 0, %s67
      %s82 = sphi 0, %s68
      %s86 = sphi 0, %s86
      %s88 = sphi 0, %s86
      %s89 = sphi 0, %s88
      %s103 = sphi 0, %s89
      %s109 = sphi 0, %s111
      %s112 = sphi 0, %s109
      %s113 = sphi 0, %s112
      %s129 = sphi 0, %s113
    $region4: #{tpu_custom_call.1} parent=1 // loop_header_branch
      %13 = sbr.rel (%p11) target = $region8
    $region5: #{tpu_custom_call.1} parent=1 // loop_body
      %s15 = ssub.s32 %s10, 1
      %s16 = ssub.s32 %s10, 2
      %s17 = sadd.s32 %s10, 1
      %s18 = ssub.s32 %s10, %s17
      %p19 = scmp.eq.s32.totalorder %s18, 0
      %s21 = sadd.s32 %s20, 1
      %s22 = scalar_select %p19, %s20, %s21
      %p25 = pneg %p19
      %p26 = scmp.eq.s32.totalorder %s10, 1
      %p27 = por %p25, %p26
      %p28 = scmp.ne.s32.totalorder %s20, %s23
      %p29 = scmp.eq.s32.totalorder %s10, 0
      %p30 = por %p28, %p29
      %p31 = scmp.ne.s32.totalorder %s20, %s23
      %p32 = scmp.eq.s32.totalorder %s15, 1
      %p33 = por %p31, %p32
      %p34 = scmp.ne.s32.totalorder %s23, %s24
      %p35 = scmp.eq.s32.totalorder %s15, 0
      %p36 = por %p34, %p35
      %p37 = scmp.ne.s32.totalorder %s23, %s24
      %p38 = scmp.eq.s32.totalorder %s16, 1
      %p39 = por %p37, %p38
      %p41 = scmp.ne.s32.totalorder %s24, %s40
      %p42 = scmp.eq.s32.totalorder %s16, 0
      %p43 = por %p41, %p42
      %s45 = sadd.s32 %s44, 1
      %p48 = scmp.eq.s32.totalorder %s10, 1
      %p49 = scmp.ne.s32.totalorder %s44, %s46
      %p50 = scmp.eq.s32.totalorder %s10, 0
      %p51 = por %p49, %p50
      %p52 = scmp.ne.s32.totalorder %s44, %s46
      %p53 = scmp.eq.s32.totalorder %s15, 1
      %p54 = por %p52, %p53
      %p55 = scmp.ne.s32.totalorder %s46, %s47
      %p56 = scmp.eq.s32.totalorder %s15, 0
      %p57 = por %p55, %p56
      %p58 = scmp.ne.s32.totalorder %s46, %s47
      %p59 = scmp.eq.s32.totalorder %s16, 1
      %p60 = por %p58, %p59
      %p62 = scmp.ne.s32.totalorder %s47, %s61
      %p63 = scmp.eq.s32.totalorder %s16, 0
      %p64 = por %p62, %p63
      %s66 = sadd.s32 %s65, 1
      %p69 = scmp.eq.s32.totalorder %s10, 1
      %p70 = scmp.ne.s32.totalorder %s65, %s67
      %p71 = scmp.eq.s32.totalorder %s10, 0
      %p72 = por %p70, %p71
      %p73 = scmp.ne.s32.totalorder %s65, %s67
      %p74 = scmp.eq.s32.totalorder %s15, 1
      %p75 = por %p73, %p74
      %p76 = scmp.ne.s32.totalorder %s67, %s68
      %p77 = scmp.eq.s32.totalorder %s15, 0
      %p78 = por %p76, %p77
      %p79 = scmp.ne.s32.totalorder %s67, %s68
      %p80 = scmp.eq.s32.totalorder %s16, 1
      %p81 = por %p79, %p80
      %p83 = scmp.ne.s32.totalorder %s68, %s82
      %p84 = scmp.eq.s32.totalorder %s16, 0
      %p85 = por %p83, %p84
      %s87 = sadd.s32 %s86, 1
      %p90 = scmp.eq.s32.totalorder %s10, 1
      %p91 = scmp.ne.s32.totalorder %s86, %s88
      %p92 = scmp.eq.s32.totalorder %s10, 0
      %p93 = por %p91, %p92
      %p94 = scmp.ne.s32.totalorder %s86, %s88
      %p95 = scmp.eq.s32.totalorder %s15, 1
      %p96 = por %p94, %p95
      %p97 = scmp.ne.s32.totalorder %s88, %s89
      %p98 = scmp.eq.s32.totalorder %s15, 0
      %p99 = por %p97, %p98
      %p100 = scmp.ne.s32.totalorder %s88, %s89
      %p101 = scmp.eq.s32.totalorder %s16, 1
      %p102 = por %p100, %p101
      %p104 = scmp.ne.s32.totalorder %s89, %s103
      %p105 = scmp.eq.s32.totalorder %s16, 0
      %p106 = por %p104, %p105
      %s107 = ssub.s32 %s10, %s17
      %p108 = scmp.eq.s32.totalorder %s107, 0
      %s110 = sadd.s32 %s109, 1
      %s111 = scalar_select %p108, %s109, %s110
      %p114 = pneg %p108
      %p115 = scmp.eq.s32.totalorder %s10, 1
      %p116 = por %p114, %p115
      %p117 = scmp.ne.s32.totalorder %s109, %s112
      %p118 = scmp.eq.s32.totalorder %s10, 0
      %p119 = por %p117, %p118
      %p120 = scmp.ne.s32.totalorder %s109, %s112
      %p121 = scmp.eq.s32.totalorder %s15, 1
      %p122 = por %p120, %p121
      %p123 = scmp.ne.s32.totalorder %s112, %s113
      %p124 = scmp.eq.s32.totalorder %s15, 0
      %p125 = por %p123, %p124
      %p126 = scmp.ne.s32.totalorder %s112, %s113
      %p127 = scmp.eq.s32.totalorder %s16, 1
      %p128 = por %p126, %p127
      %p130 = scmp.ne.s32.totalorder %s113, %s129
      %p131 = scmp.eq.s32.totalorder %s16, 0
      %p132 = por %p130, %p131
      %p133 = scmp.le.s32.totalorder 1, %s10
      %p134 = scmp.lt.s32.totalorder %s10, 3
      %p135 = pnand %p133, %p134
      %p136 = pneg %p135
      // Predicated region
      $region9: #{tpu_custom_call.1} parent=5 // pred_check
        _
      $region10: #{tpu_custom_call.1} parent=5 // pred_check_branch
        %138 = sbr.rel (%p135) target = $region12
      $region11: #{tpu_custom_call.1} parent=5 // pred_region
        %s139 = ssub.s32 %s10, 1
        // Predicated region
        $region13: #{tpu_custom_call.1} parent=11 // pred_check
          %p140 = pneg %p57
        $region14: #{tpu_custom_call.1} parent=11 // pred_check_branch
          %142 = sbr.rel (%p140) target = $region16
        $region15: #{tpu_custom_call.1} parent=11 // pred_region
          _
        $region16: #{tpu_custom_call.1} parent=11 // pred_fallthru
          _
        // Predicated region
        $region17: #{tpu_custom_call.1} parent=11 // pred_check
          %p143 = pneg %p78
        $region18: #{tpu_custom_call.1} parent=11 // pred_check_branch
          %145 = sbr.rel (%p143) target = $region20
        $region19: #{tpu_custom_call.1} parent=11 // pred_region
          _
        $region20: #{tpu_custom_call.1} parent=11 // pred_fallthru
          _
        // Predicated region
        $region21: #{tpu_custom_call.1} parent=11 // pred_check
          %p146 = pneg %p99
        $region22: #{tpu_custom_call.1} parent=11 // pred_check_branch
          %148 = sbr.rel (%p146) target = $region24
        $region23: #{tpu_custom_call.1} parent=11 // pred_region
          _
        $region24: #{tpu_custom_call.1} parent=11 // pred_fallthru
          _
      $region12: #{tpu_custom_call.1} parent=5 // pred_fallthru
        _
      %p149 = scmp.lt.s32.totalorder %s10, 2
      // Predicated region
      $region25: #{tpu_custom_call.1} parent=5 // pred_check
        %p150 = pneg %p149
      $region26: #{tpu_custom_call.1} parent=5 // pred_check_branch
        %152 = sbr.rel (%p150) target = $region28
      $region27: #{tpu_custom_call.1} parent=5 // pred_region
        // Predicated region
        $region29: #{tpu_custom_call.1} parent=27 // pred_check
          %p153 = pneg %p30
        $region30: #{tpu_custom_call.1} parent=27 // pred_check_branch
          %155 = sbr.rel (%p153) target = $region32
        $region31: #{tpu_custom_call.1} parent=27 // pred_region
          %s156 = sand.u32 %s20, 1
          %s157 = sand.u32 %s20, 1
          %s158 = smul.addr %s157, 800
          %s159 = scalar_lea.vmem [#allocation2], %s158
          %s160 = smul.u32 2, %s10
          %s161 = smul.addr %s160, 8
          %s162 = scalar_lea.vmem %s0, %s161
          // Predicated region
          $region33: #{tpu_custom_call.1} parent=31 // pred_check
            _
          $region34: #{tpu_custom_call.1} parent=31 // pred_check_branch
            %164 = sbr.rel (0) target = $region36
          $region35: #{tpu_custom_call.1} parent=31 // pred_region
            // Predicated region
            $region37: #{tpu_custom_call.1} parent=35 // pred_check
              _
            $region38: #{tpu_custom_call.1} parent=35 // pred_check_branch
              %166 = sbr.rel (0) target = $region40
            $region39: #{tpu_custom_call.1} parent=35 // pred_region
              // Predicated region
              $region52: #{tpu_custom_call.1} parent=39 // pred_check
                _
              $region53: #{tpu_custom_call.1} parent=39 // pred_check_branch
                %379 = sbr.rel (0) target = $region55
              $region54: #{tpu_custom_call.1} parent=39 // pred_region
                loop: start=0, step=1, limit=1
                $region56: #{tpu_custom_call.1} parent=54 // loop_pre_header
                  _
                $region57: #{tpu_custom_call.1} parent=54 // loop_header
                  %s381 = sphi 0, %s385
                  %p382 = scmp.ge.s32.totalorder %s381, 1
                  %s386 = sphi %s162, %s162
                  %s387 = sphi %s159, %s159
                $region58: #{tpu_custom_call.1} parent=54 // loop_header_branch
                  %384 = sbr.rel (%p382) target = $region62
                $region59: #{tpu_custom_call.1} parent=54 // loop_body
                  %v388 = vld [vmem:[%s386] sm:$0xff]
                  %389 = vst [vmem:[%s387] sm:$0xff] %v388
                  %v390 = vld [vmem:[%s386 + $0x8] sm:$0xff]
                  %391 = vst [vmem:[%s387 + $0x8] sm:$0xff] %v390
                  %v392 = vld [vmem:[%s386 + $0x20] sm:$0xff]
                  %393 = vst [vmem:[%s387 + $0x10] sm:$0xff] %v392
                  %v394 = vld [vmem:[%s386 + $0x28] sm:$0xff]
                  %395 = vst [vmem:[%s387 + $0x18] sm:$0xff] %v394
                  %v396 = vld [vmem:[%s386 + $0x40] sm:$0xff]
                  %397 = vst [vmem:[%s387 + $0x20] sm:$0xff] %v396
                  %v398 = vld [vmem:[%s386 + $0x48] sm:$0xff]
                  %399 = vst [vmem:[%s387 + $0x28] sm:$0xff] %v398
                  %v400 = vld [vmem:[%s386 + $0x60] sm:$0xff]
                  %401 = vst [vmem:[%s387 + $0x30] sm:$0xff] %v400
                  %v402 = vld [vmem:[%s386 + $0x68] sm:$0xff]
                  %403 = vst [vmem:[%s387 + $0x38] sm:$0xff] %v402
                  %v404 = vld [vmem:[%s386 + $0x80] sm:$0xff]
                  %405 = vst [vmem:[%s387 + $0x40] sm:$0xff] %v404
                  %v406 = vld [vmem:[%s386 + $0x88] sm:$0xff]
                  %407 = vst [vmem:[%s387 + $0x48] sm:$0xff] %v406
                  %v408 = vld [vmem:[%s386 + $0xa0] sm:$0xff]
                  %409 = vst [vmem:[%s387 + $0x50] sm:$0xff] %v408
                  %v410 = vld [vmem:[%s386 + $0xa8] sm:$0xff]
                  %411 = vst [vmem:[%s387 + $0x58] sm:$0xff] %v410
                  %v412 = vld [vmem:[%s386 + $0xc0] sm:$0xff]
                  %413 = vst [vmem:[%s387 + $0x60] sm:$0xff] %v412
                  %v414 = vld [vmem:[%s386 + $0xc8] sm:$0xff]
                  %415 = vst [vmem:[%s387 + $0x68] sm:$0xff] %v414
                  %v416 = vld [vmem:[%s386 + $0xe0] sm:$0xff]
                  %417 = vst [vmem:[%s387 + $0x70] sm:$0xff] %v416
                  %v418 = vld [vmem:[%s386 + $0xe8] sm:$0xff]
                  %419 = vst [vmem:[%s387 + $0x78] sm:$0xff] %v418
                  %v420 = vld [vmem:[%s386 + $0x100] sm:$0xff]
                  %421 = vst [vmem:[%s387 + $0x80] sm:$0xff] %v420
                  %v422 = vld [vmem:[%s386 + $0x108] sm:$0xff]
                  %423 = vst [vmem:[%s387 + $0x88] sm:$0xff] %v422
                  %v424 = vld [vmem:[%s386 + $0x120] sm:$0xff]
                  %425 = vst [vmem:[%s387 + $0x90] sm:$0xff] %v424
                  %v426 = vld [vmem:[%s386 + $0x128] sm:$0xff]
                  %427 = vst [vmem:[%s387 + $0x98] sm:$0xff] %v426
                  %v428 = vld [vmem:[%s386 + $0x140] sm:$0xff]
                  %429 = vst [vmem:[%s387 + $0xa0] sm:$0xff] %v428
                  %v430 = vld [vmem:[%s386 + $0x148] sm:$0xff]
                  %431 = vst [vmem:[%s387 + $0xa8] sm:$0xff] %v430
                  %v432 = vld [vmem:[%s386 + $0x160] sm:$0xff]
                  %433 = vst [vmem:[%s387 + $0xb0] sm:$0xff] %v432
                  %v434 = vld [vmem:[%s386 + $0x168] sm:$0xff]
                  %435 = vst [vmem:[%s387 + $0xb8] sm:$0xff] %v434
                  %v436 = vld [vmem:[%s386 + $0x180] sm:$0xff]
                  %437 = vst [vmem:[%s387 + $0xc0] sm:$0xff] %v436
                  %v438 = vld [vmem:[%s386 + $0x188] sm:$0xff]
                  %439 = vst [vmem:[%s387 + $0xc8] sm:$0xff] %v438
                  %v440 = vld [vmem:[%s386 + $0x1a0] sm:$0xff]
                  %441 = vst [vmem:[%s387 + $0xd0] sm:$0xff] %v440
                  %v442 = vld [vmem:[%s386 + $0x1a8] sm:$0xff]
                  %443 = vst [vmem:[%s387 + $0xd8] sm:$0xff] %v442
                  %v444 = vld [vmem:[%s386 + $0x1c0] sm:$0xff]
                  %445 = vst [vmem:[%s387 + $0xe0] sm:$0xff] %v444
                  %v446 = vld [vmem:[%s386 + $0x1c8] sm:$0xff]
                  %447 = vst [vmem:[%s387 + $0xe8] sm:$0xff] %v446
                  %v448 = vld [vmem:[%s386 + $0x1e0] sm:$0xff]
                  %449 = vst [vmem:[%s387 + $0xf0] sm:$0xff] %v448
                  %v450 = vld [vmem:[%s386 + $0x1e8] sm:$0xff]
                  %451 = vst [vmem:[%s387 + $0xf8] sm:$0xff] %v450
                  %v452 = vld [vmem:[%s386 + $0x200] sm:$0xff]
                  %453 = vst [vmem:[%s387 + $0x100] sm:$0xff] %v452
                  %v454 = vld [vmem:[%s386 + $0x208] sm:$0xff]
                  %455 = vst [vmem:[%s387 + $0x108] sm:$0xff] %v454
                  %v456 = vld [vmem:[%s386 + $0x220] sm:$0xff]
                  %457 = vst [vmem:[%s387 + $0x110] sm:$0xff] %v456
                  %v458 = vld [vmem:[%s386 + $0x228] sm:$0xff]
                  %459 = vst [vmem:[%s387 + $0x118] sm:$0xff] %v458
                  %v460 = vld [vmem:[%s386 + $0x240] sm:$0xff]
                  %461 = vst [vmem:[%s387 + $0x120] sm:$0xff] %v460
                  %v462 = vld [vmem:[%s386 + $0x248] sm:$0xff]
                  %463 = vst [vmem:[%s387 + $0x128] sm:$0xff] %v462
                  %v464 = vld [vmem:[%s386 + $0x260] sm:$0xff]
                  %465 = vst [vmem:[%s387 + $0x130] sm:$0xff] %v464
                  %v466 = vld [vmem:[%s386 + $0x268] sm:$0xff]
                  %467 = vst [vmem:[%s387 + $0x138] sm:$0xff] %v466
                  %v468 = vld [vmem:[%s386 + $0x280] sm:$0xff]
                  %469 = vst [vmem:[%s387 + $0x140] sm:$0xff] %v468
                  %v470 = vld [vmem:[%s386 + $0x288] sm:$0xff]
                  %471 = vst [vmem:[%s387 + $0x148] sm:$0xff] %v470
                  %v472 = vld [vmem:[%s386 + $0x2a0] sm:$0xff]
                  %473 = vst [vmem:[%s387 + $0x150] sm:$0xff] %v472
                  %v474 = vld [vmem:[%s386 + $0x2a8] sm:$0xff]
                  %475 = vst [vmem:[%s387 + $0x158] sm:$0xff] %v474
                  %v476 = vld [vmem:[%s386 + $0x2c0] sm:$0xff]
                  %477 = vst [vmem:[%s387 + $0x160] sm:$0xff] %v476
                  %v478 = vld [vmem:[%s386 + $0x2c8] sm:$0xff]
                  %479 = vst [vmem:[%s387 + $0x168] sm:$0xff] %v478
                  %v480 = vld [vmem:[%s386 + $0x2e0] sm:$0xff]
                  %481 = vst [vmem:[%s387 + $0x170] sm:$0xff] %v480
                  %v482 = vld [vmem:[%s386 + $0x2e8] sm:$0xff]
                  %483 = vst [vmem:[%s387 + $0x178] sm:$0xff] %v482
                  %v484 = vld [vmem:[%s386 + $0x300] sm:$0xff]
                  %485 = vst [vmem:[%s387 + $0x180] sm:$0xff] %v484
                  %v486 = vld [vmem:[%s386 + $0x308] sm:$0xff]
                  %487 = vst [vmem:[%s387 + $0x188] sm:$0xff] %v486
                  %v488 = vld [vmem:[%s386 + $0x320] sm:$0xff]
                  %489 = vst [vmem:[%s387 + $0x190] sm:$0xff] %v488
                  %v490 = vld [vmem:[%s386 + $0x328] sm:$0xff]
                  %491 = vst [vmem:[%s387 + $0x198] sm:$0xff] %v490
                  %v492 = vld [vmem:[%s386 + $0x340] sm:$0xff]
                  %493 = vst [vmem:[%s387 + $0x1a0] sm:$0xff] %v492
                  %v494 = vld [vmem:[%s386 + $0x348] sm:$0xff]
                  %495 = vst [vmem:[%s387 + $0x1a8] sm:$0xff] %v494
                  %v496 = vld [vmem:[%s386 + $0x360] sm:$0xff]
                  %497 = vst [vmem:[%s387 + $0x1b0] sm:$0xff] %v496
                  %v498 = vld [vmem:[%s386 + $0x368] sm:$0xff]
                  %499 = vst [vmem:[%s387 + $0x1b8] sm:$0xff] %v498
                  %v500 = vld [vmem:[%s386 + $0x380] sm:$0xff]
                  %501 = vst [vmem:[%s387 + $0x1c0] sm:$0xff] %v500
                  %v502 = vld [vmem:[%s386 + $0x388] sm:$0xff]
                  %503 = vst [vmem:[%s387 + $0x1c8] sm:$0xff] %v502
                  %v504 = vld [vmem:[%s386 + $0x3a0] sm:$0xff]
                  %505 = vst [vmem:[%s387 + $0x1d0] sm:$0xff] %v504
                  %v506 = vld [vmem:[%s386 + $0x3a8] sm:$0xff]
                  %507 = vst [vmem:[%s387 + $0x1d8] sm:$0xff] %v506
                  %v508 = vld [vmem:[%s386 + $0x3c0] sm:$0xff]
                  %509 = vst [vmem:[%s387 + $0x1e0] sm:$0xff] %v508
                  %v510 = vld [vmem:[%s386 + $0x3c8] sm:$0xff]
                  %511 = vst [vmem:[%s387 + $0x1e8] sm:$0xff] %v510
                  %v512 = vld [vmem:[%s386 + $0x3e0] sm:$0xff]
                  %513 = vst [vmem:[%s387 + $0x1f0] sm:$0xff] %v512
                  %v514 = vld [vmem:[%s386 + $0x3e8] sm:$0xff]
                  %515 = vst [vmem:[%s387 + $0x1f8] sm:$0xff] %v514
                  %v516 = vld [vmem:[%s386 + $0x400] sm:$0xff]
                  %517 = vst [vmem:[%s387 + $0x200] sm:$0xff] %v516
                  %v518 = vld [vmem:[%s386 + $0x408] sm:$0xff]
                  %519 = vst [vmem:[%s387 + $0x208] sm:$0xff] %v518
                  %v520 = vld [vmem:[%s386 + $0x420] sm:$0xff]
                  %521 = vst [vmem:[%s387 + $0x210] sm:$0xff] %v520
                  %v522 = vld [vmem:[%s386 + $0x428] sm:$0xff]
                  %523 = vst [vmem:[%s387 + $0x218] sm:$0xff] %v522
                  %v524 = vld [vmem:[%s386 + $0x440] sm:$0xff]
                  %525 = vst [vmem:[%s387 + $0x220] sm:$0xff] %v524
                  %v526 = vld [vmem:[%s386 + $0x448] sm:$0xff]
                  %527 = vst [vmem:[%s387 + $0x228] sm:$0xff] %v526
                  %v528 = vld [vmem:[%s386 + $0x460] sm:$0xff]
                  %529 = vst [vmem:[%s387 + $0x230] sm:$0xff] %v528
                  %v530 = vld [vmem:[%s386 + $0x468] sm:$0xff]
                  %531 = vst [vmem:[%s387 + $0x238] sm:$0xff] %v530
                  %v532 = vld [vmem:[%s386 + $0x480] sm:$0xff]
                  %533 = vst [vmem:[%s387 + $0x240] sm:$0xff] %v532
                  %v534 = vld [vmem:[%s386 + $0x488] sm:$0xff]
                  %535 = vst [vmem:[%s387 + $0x248] sm:$0xff] %v534
                  %v536 = vld [vmem:[%s386 + $0x4a0] sm:$0xff]
                  %537 = vst [vmem:[%s387 + $0x250] sm:$0xff] %v536
                  %v538 = vld [vmem:[%s386 + $0x4a8] sm:$0xff]
                  %539 = vst [vmem:[%s387 + $0x258] sm:$0xff] %v538
                  %v540 = vld [vmem:[%s386 + $0x4c0] sm:$0xff]
                  %541 = vst [vmem:[%s387 + $0x260] sm:$0xff] %v540
                  %v542 = vld [vmem:[%s386 + $0x4c8] sm:$0xff]
                  %543 = vst [vmem:[%s387 + $0x268] sm:$0xff] %v542
                  %v544 = vld [vmem:[%s386 + $0x4e0] sm:$0xff]
                  %545 = vst [vmem:[%s387 + $0x270] sm:$0xff] %v544
                  %v546 = vld [vmem:[%s386 + $0x4e8] sm:$0xff]
                  %547 = vst [vmem:[%s387 + $0x278] sm:$0xff] %v546
                  %v548 = vld [vmem:[%s386 + $0x500] sm:$0xff]
                  %549 = vst [vmem:[%s387 + $0x280] sm:$0xff] %v548
                  %v550 = vld [vmem:[%s386 + $0x508] sm:$0xff]
                  %551 = vst [vmem:[%s387 + $0x288] sm:$0xff] %v550
                  %v552 = vld [vmem:[%s386 + $0x520] sm:$0xff]
                  %553 = vst [vmem:[%s387 + $0x290] sm:$0xff] %v552
                  %v554 = vld [vmem:[%s386 + $0x528] sm:$0xff]
                  %555 = vst [vmem:[%s387 + $0x298] sm:$0xff] %v554
                  %v556 = vld [vmem:[%s386 + $0x540] sm:$0xff]
                  %557 = vst [vmem:[%s387 + $0x2a0] sm:$0xff] %v556
                  %v558 = vld [vmem:[%s386 + $0x548] sm:$0xff]
                  %559 = vst [vmem:[%s387 + $0x2a8] sm:$0xff] %v558
                  %v560 = vld [vmem:[%s386 + $0x560] sm:$0xff]
                  %561 = vst [vmem:[%s387 + $0x2b0] sm:$0xff] %v560
                  %v562 = vld [vmem:[%s386 + $0x568] sm:$0xff]
                  %563 = vst [vmem:[%s387 + $0x2b8] sm:$0xff] %v562
                  %v564 = vld [vmem:[%s386 + $0x580] sm:$0xff]
                  %565 = vst [vmem:[%s387 + $0x2c0] sm:$0xff] %v564
                  %v566 = vld [vmem:[%s386 + $0x588] sm:$0xff]
                  %567 = vst [vmem:[%s387 + $0x2c8] sm:$0xff] %v566
                  %v568 = vld [vmem:[%s386 + $0x5a0] sm:$0xff]
                  %569 = vst [vmem:[%s387 + $0x2d0] sm:$0xff] %v568
                  %v570 = vld [vmem:[%s386 + $0x5a8] sm:$0xff]
                  %571 = vst [vmem:[%s387 + $0x2d8] sm:$0xff] %v570
                  %v572 = vld [vmem:[%s386 + $0x5c0] sm:$0xff]
                  %573 = vst [vmem:[%s387 + $0x2e0] sm:$0xff] %v572
                  %v574 = vld [vmem:[%s386 + $0x5c8] sm:$0xff]
                  %575 = vst [vmem:[%s387 + $0x2e8] sm:$0xff] %v574
                  %v576 = vld [vmem:[%s386 + $0x5e0] sm:$0xff]
                  %577 = vst [vmem:[%s387 + $0x2f0] sm:$0xff] %v576
                  %v578 = vld [vmem:[%s386 + $0x5e8] sm:$0xff]
                  %579 = vst [vmem:[%s387 + $0x2f8] sm:$0xff] %v578
                  %v580 = vld [vmem:[%s386 + $0x600] sm:$0xff]
                  %581 = vst [vmem:[%s387 + $0x300] sm:$0xff] %v580
                  %v582 = vld [vmem:[%s386 + $0x608] sm:$0xff]
                  %583 = vst [vmem:[%s387 + $0x308] sm:$0xff] %v582
                  %v584 = vld [vmem:[%s386 + $0x620] sm:$0xff]
                  %585 = vst [vmem:[%s387 + $0x310] sm:$0xff] %v584
                  %v586 = vld [vmem:[%s386 + $0x628] sm:$0xff]
                  %587 = vst [vmem:[%s387 + $0x318] sm:$0xff] %v586
                $region60: #{tpu_custom_call.1} parent=54 // loop_footer
                  %s385 = sadd.s32 1, %s381
                $region61: #{tpu_custom_call.1} parent=54 // loop_footer_branch
                  %380 = sbr.rel target = $region57
                $region62: #{tpu_custom_call.1} parent=54 // loop_exit
                  _
              $region55: #{tpu_custom_call.1} parent=39 // pred_fallthru
                _
              // Predicated region
              $region63: #{tpu_custom_call.1} parent=39 // pred_check
                _
              $region64: #{tpu_custom_call.1} parent=39 // pred_check_branch
                %589 = sbr.rel target = $region66
              $region65: #{tpu_custom_call.1} parent=39 // pred_region
                _
              $region66: #{tpu_custom_call.1} parent=39 // pred_fallthru
                _
            $region40: #{tpu_custom_call.1} parent=35 // pred_fallthru
              _
            // Predicated region
            $region41: #{tpu_custom_call.1} parent=35 // pred_check
              _
            $region42: #{tpu_custom_call.1} parent=35 // pred_check_branch
              %168 = sbr.rel target = $region44
            $region43: #{tpu_custom_call.1} parent=35 // pred_region
              loop: start=0, step=1, limit=1
              $region45: #{tpu_custom_call.1} parent=43 // loop_pre_header
                _
              $region46: #{tpu_custom_call.1} parent=43 // loop_header
                %s171 = sphi 0, %s175
                %p172 = scmp.ge.s32.totalorder %s171, 1
                %s176 = sphi %s162, %s162
                %s177 = sphi %s159, %s159
              $region47: #{tpu_custom_call.1} parent=43 // loop_header_branch
                %174 = sbr.rel (%p172) target = $region51
              $region48: #{tpu_custom_call.1} parent=43 // loop_body
                %v178 = vld [vmem:[%s176] sm:$0xff]
                %179 = vst [vmem:[%s177] sm:$0xff] %v178
                %v180 = vld [vmem:[%s176 + $0x8] sm:$0xff]
                %181 = vst [vmem:[%s177 + $0x8] sm:$0xff] %v180
                %v182 = vld [vmem:[%s176 + $0x20] sm:$0xff]
                %183 = vst [vmem:[%s177 + $0x10] sm:$0xff] %v182
                %v184 = vld [vmem:[%s176 + $0x28] sm:$0xff]
                %185 = vst [vmem:[%s177 + $0x18] sm:$0xff] %v184
                %v186 = vld [vmem:[%s176 + $0x40] sm:$0xff]
                %187 = vst [vmem:[%s177 + $0x20] sm:$0xff] %v186
                %v188 = vld [vmem:[%s176 + $0x48] sm:$0xff]
                %189 = vst [vmem:[%s177 + $0x28] sm:$0xff] %v188
                %v190 = vld [vmem:[%s176 + $0x60] sm:$0xff]
                %191 = vst [vmem:[%s177 + $0x30] sm:$0xff] %v190
                %v192 = vld [vmem:[%s176 + $0x68] sm:$0xff]
                %193 = vst [vmem:[%s177 + $0x38] sm:$0xff] %v192
                %v194 = vld [vmem:[%s176 + $0x80] sm:$0xff]
                %195 = vst [vmem:[%s177 + $0x40] sm:$0xff] %v194
                %v196 = vld [vmem:[%s176 + $0x88] sm:$0xff]
                %197 = vst [vmem:[%s177 + $0x48] sm:$0xff] %v196
                %v198 = vld [vmem:[%s176 + $0xa0] sm:$0xff]
                %199 = vst [vmem:[%s177 + $0x50] sm:$0xff] %v198
                %v200 = vld [vmem:[%s176 + $0xa8] sm:$0xff]
                %201 = vst [vmem:[%s177 + $0x58] sm:$0xff] %v200
                %v202 = vld [vmem:[%s176 + $0xc0] sm:$0xff]
                %203 = vst [vmem:[%s177 + $0x60] sm:$0xff] %v202
                %v204 = vld [vmem:[%s176 + $0xc8] sm:$0xff]
                %205 = vst [vmem:[%s177 + $0x68] sm:$0xff] %v204
                %v206 = vld [vmem:[%s176 + $0xe0] sm:$0xff]
                %207 = vst [vmem:[%s177 + $0x70] sm:$0xff] %v206
                %v208 = vld [vmem:[%s176 + $0xe8] sm:$0xff]
                %209 = vst [vmem:[%s177 + $0x78] sm:$0xff] %v208
                %v210 = vld [vmem:[%s176 + $0x100] sm:$0xff]
                %211 = vst [vmem:[%s177 + $0x80] sm:$0xff] %v210
                %v212 = vld [vmem:[%s176 + $0x108] sm:$0xff]
                %213 = vst [vmem:[%s177 + $0x88] sm:$0xff] %v212
                %v214 = vld [vmem:[%s176 + $0x120] sm:$0xff]
                %215 = vst [vmem:[%s177 + $0x90] sm:$0xff] %v214
                %v216 = vld [vmem:[%s176 + $0x128] sm:$0xff]
                %217 = vst [vmem:[%s177 + $0x98] sm:$0xff] %v216
                %v218 = vld [vmem:[%s176 + $0x140] sm:$0xff]
                %219 = vst [vmem:[%s177 + $0xa0] sm:$0xff] %v218
                %v220 = vld [vmem:[%s176 + $0x148] sm:$0xff]
                %221 = vst [vmem:[%s177 + $0xa8] sm:$0xff] %v220
                %v222 = vld [vmem:[%s176 + $0x160] sm:$0xff]
                %223 = vst [vmem:[%s177 + $0xb0] sm:$0xff] %v222
                %v224 = vld [vmem:[%s176 + $0x168] sm:$0xff]
                %225 = vst [vmem:[%s177 + $0xb8] sm:$0xff] %v224
                %v226 = vld [vmem:[%s176 + $0x180] sm:$0xff]
                %227 = vst [vmem:[%s177 + $0xc0] sm:$0xff] %v226
                %v228 = vld [vmem:[%s176 + $0x188] sm:$0xff]
                %229 = vst [vmem:[%s177 + $0xc8] sm:$0xff] %v228
                %v230 = vld [vmem:[%s176 + $0x1a0] sm:$0xff]
                %231 = vst [vmem:[%s177 + $0xd0] sm:$0xff] %v230
                %v232 = vld [vmem:[%s176 + $0x1a8] sm:$0xff]
                %233 = vst [vmem:[%s177 + $0xd8] sm:$0xff] %v232
                %v234 = vld [vmem:[%s176 + $0x1c0] sm:$0xff]
                %235 = vst [vmem:[%s177 + $0xe0] sm:$0xff] %v234
                %v236 = vld [vmem:[%s176 + $0x1c8] sm:$0xff]
                %237 = vst [vmem:[%s177 + $0xe8] sm:$0xff] %v236
                %v238 = vld [vmem:[%s176 + $0x1e0] sm:$0xff]
                %239 = vst [vmem:[%s177 + $0xf0] sm:$0xff] %v238
                %v240 = vld [vmem:[%s176 + $0x1e8] sm:$0xff]
                %241 = vst [vmem:[%s177 + $0xf8] sm:$0xff] %v240
                %v242 = vld [vmem:[%s176 + $0x200] sm:$0xff]
                %243 = vst [vmem:[%s177 + $0x100] sm:$0xff] %v242
                %v244 = vld [vmem:[%s176 + $0x208] sm:$0xff]
                %245 = vst [vmem:[%s177 + $0x108] sm:$0xff] %v244
                %v246 = vld [vmem:[%s176 + $0x220] sm:$0xff]
                %247 = vst [vmem:[%s177 + $0x110] sm:$0xff] %v246
                %v248 = vld [vmem:[%s176 + $0x228] sm:$0xff]
                %249 = vst [vmem:[%s177 + $0x118] sm:$0xff] %v248
                %v250 = vld [vmem:[%s176 + $0x240] sm:$0xff]
                %251 = vst [vmem:[%s177 + $0x120] sm:$0xff] %v250
                %v252 = vld [vmem:[%s176 + $0x248] sm:$0xff]
                %253 = vst [vmem:[%s177 + $0x128] sm:$0xff] %v252
                %v254 = vld [vmem:[%s176 + $0x260] sm:$0xff]
                %255 = vst [vmem:[%s177 + $0x130] sm:$0xff] %v254
                %v256 = vld [vmem:[%s176 + $0x268] sm:$0xff]
                %257 = vst [vmem:[%s177 + $0x138] sm:$0xff] %v256
                %v258 = vld [vmem:[%s176 + $0x280] sm:$0xff]
                %259 = vst [vmem:[%s177 + $0x140] sm:$0xff] %v258
                %v260 = vld [vmem:[%s176 + $0x288] sm:$0xff]
                %261 = vst [vmem:[%s177 + $0x148] sm:$0xff] %v260
                %v262 = vld [vmem:[%s176 + $0x2a0] sm:$0xff]
                %263 = vst [vmem:[%s177 + $0x150] sm:$0xff] %v262
                %v264 = vld [vmem:[%s176 + $0x2a8] sm:$0xff]
                %265 = vst [vmem:[%s177 + $0x158] sm:$0xff] %v264
                %v266 = vld [vmem:[%s176 + $0x2c0] sm:$0xff]
                %267 = vst [vmem:[%s177 + $0x160] sm:$0xff] %v266
                %v268 = vld [vmem:[%s176 + $0x2c8] sm:$0xff]
                %269 = vst [vmem:[%s177 + $0x168] sm:$0xff] %v268
                %v270 = vld [vmem:[%s176 + $0x2e0] sm:$0xff]
                %271 = vst [vmem:[%s177 + $0x170] sm:$0xff] %v270
                %v272 = vld [vmem:[%s176 + $0x2e8] sm:$0xff]
                %273 = vst [vmem:[%s177 + $0x178] sm:$0xff] %v272
                %v274 = vld [vmem:[%s176 + $0x300] sm:$0xff]
                %275 = vst [vmem:[%s177 + $0x180] sm:$0xff] %v274
                %v276 = vld [vmem:[%s176 + $0x308] sm:$0xff]
                %277 = vst [vmem:[%s177 + $0x188] sm:$0xff] %v276
                %v278 = vld [vmem:[%s176 + $0x320] sm:$0xff]
                %279 = vst [vmem:[%s177 + $0x190] sm:$0xff] %v278
                %v280 = vld [vmem:[%s176 + $0x328] sm:$0xff]
                %281 = vst [vmem:[%s177 + $0x198] sm:$0xff] %v280
                %v282 = vld [vmem:[%s176 + $0x340] sm:$0xff]
                %283 = vst [vmem:[%s177 + $0x1a0] sm:$0xff] %v282
                %v284 = vld [vmem:[%s176 + $0x348] sm:$0xff]
                %285 = vst [vmem:[%s177 + $0x1a8] sm:$0xff] %v284
                %v286 = vld [vmem:[%s176 + $0x360] sm:$0xff]
                %287 = vst [vmem:[%s177 + $0x1b0] sm:$0xff] %v286
                %v288 = vld [vmem:[%s176 + $0x368] sm:$0xff]
                %289 = vst [vmem:[%s177 + $0x1b8] sm:$0xff] %v288
                %v290 = vld [vmem:[%s176 + $0x380] sm:$0xff]
                %291 = vst [vmem:[%s177 + $0x1c0] sm:$0xff] %v290
                %v292 = vld [vmem:[%s176 + $0x388] sm:$0xff]
                %293 = vst [vmem:[%s177 + $0x1c8] sm:$0xff] %v292
                %v294 = vld [vmem:[%s176 + $0x3a0] sm:$0xff]
                %295 = vst [vmem:[%s177 + $0x1d0] sm:$0xff] %v294
                %v296 = vld [vmem:[%s176 + $0x3a8] sm:$0xff]
                %297 = vst [vmem:[%s177 + $0x1d8] sm:$0xff] %v296
                %v298 = vld [vmem:[%s176 + $0x3c0] sm:$0xff]
                %299 = vst [vmem:[%s177 + $0x1e0] sm:$0xff] %v298
                %v300 = vld [vmem:[%s176 + $0x3c8] sm:$0xff]
                %301 = vst [vmem:[%s177 + $0x1e8] sm:$0xff] %v300
                %v302 = vld [vmem:[%s176 + $0x3e0] sm:$0xff]
                %303 = vst [vmem:[%s177 + $0x1f0] sm:$0xff] %v302
                %v304 = vld [vmem:[%s176 + $0x3e8] sm:$0xff]
                %305 = vst [vmem:[%s177 + $0x1f8] sm:$0xff] %v304
                %v306 = vld [vmem:[%s176 + $0x400] sm:$0xff]
                %307 = vst [vmem:[%s177 + $0x200] sm:$0xff] %v306
                %v308 = vld [vmem:[%s176 + $0x408] sm:$0xff]
                %309 = vst [vmem:[%s177 + $0x208] sm:$0xff] %v308
                %v310 = vld [vmem:[%s176 + $0x420] sm:$0xff]
                %311 = vst [vmem:[%s177 + $0x210] sm:$0xff] %v310
                %v312 = vld [vmem:[%s176 + $0x428] sm:$0xff]
                %313 = vst [vmem:[%s177 + $0x218] sm:$0xff] %v312
                %v314 = vld [vmem:[%s176 + $0x440] sm:$0xff]
                %315 = vst [vmem:[%s177 + $0x220] sm:$0xff] %v314
                %v316 = vld [vmem:[%s176 + $0x448] sm:$0xff]
                %317 = vst [vmem:[%s177 + $0x228] sm:$0xff] %v316
                %v318 = vld [vmem:[%s176 + $0x460] sm:$0xff]
                %319 = vst [vmem:[%s177 + $0x230] sm:$0xff] %v318
                %v320 = vld [vmem:[%s176 + $0x468] sm:$0xff]
                %321 = vst [vmem:[%s177 + $0x238] sm:$0xff] %v320
                %v322 = vld [vmem:[%s176 + $0x480] sm:$0xff]
                %323 = vst [vmem:[%s177 + $0x240] sm:$0xff] %v322
                %v324 = vld [vmem:[%s176 + $0x488] sm:$0xff]
                %325 = vst [vmem:[%s177 + $0x248] sm:$0xff] %v324
                %v326 = vld [vmem:[%s176 + $0x4a0] sm:$0xff]
                %327 = vst [vmem:[%s177 + $0x250] sm:$0xff] %v326
                %v328 = vld [vmem:[%s176 + $0x4a8] sm:$0xff]
                %329 = vst [vmem:[%s177 + $0x258] sm:$0xff] %v328
                %v330 = vld [vmem:[%s176 + $0x4c0] sm:$0xff]
                %331 = vst [vmem:[%s177 + $0x260] sm:$0xff] %v330
                %v332 = vld [vmem:[%s176 + $0x4c8] sm:$0xff]
                %333 = vst [vmem:[%s177 + $0x268] sm:$0xff] %v332
                %v334 = vld [vmem:[%s176 + $0x4e0] sm:$0xff]
                %335 = vst [vmem:[%s177 + $0x270] sm:$0xff] %v334
                %v336 = vld [vmem:[%s176 + $0x4e8] sm:$0xff]
                %337 = vst [vmem:[%s177 + $0x278] sm:$0xff] %v336
                %v338 = vld [vmem:[%s176 + $0x500] sm:$0xff]
                %339 = vst [vmem:[%s177 + $0x280] sm:$0xff] %v338
                %v340 = vld [vmem:[%s176 + $0x508] sm:$0xff]
                %341 = vst [vmem:[%s177 + $0x288] sm:$0xff] %v340
                %v342 = vld [vmem:[%s176 + $0x520] sm:$0xff]
                %343 = vst [vmem:[%s177 + $0x290] sm:$0xff] %v342
                %v344 = vld [vmem:[%s176 + $0x528] sm:$0xff]
                %345 = vst [vmem:[%s177 + $0x298] sm:$0xff] %v344
                %v346 = vld [vmem:[%s176 + $0x540] sm:$0xff]
                %347 = vst [vmem:[%s177 + $0x2a0] sm:$0xff] %v346
                %v348 = vld [vmem:[%s176 + $0x548] sm:$0xff]
                %349 = vst [vmem:[%s177 + $0x2a8] sm:$0xff] %v348
                %v350 = vld [vmem:[%s176 + $0x560] sm:$0xff]
                %351 = vst [vmem:[%s177 + $0x2b0] sm:$0xff] %v350
                %v352 = vld [vmem:[%s176 + $0x568] sm:$0xff]
                %353 = vst [vmem:[%s177 + $0x2b8] sm:$0xff] %v352
                %v354 = vld [vmem:[%s176 + $0x580] sm:$0xff]
                %355 = vst [vmem:[%s177 + $0x2c0] sm:$0xff] %v354
                %v356 = vld [vmem:[%s176 + $0x588] sm:$0xff]
                %357 = vst [vmem:[%s177 + $0x2c8] sm:$0xff] %v356
                %v358 = vld [vmem:[%s176 + $0x5a0] sm:$0xff]
                %359 = vst [vmem:[%s177 + $0x2d0] sm:$0xff] %v358
                %v360 = vld [vmem:[%s176 + $0x5a8] sm:$0xff]
                %361 = vst [vmem:[%s177 + $0x2d8] sm:$0xff] %v360
                %v362 = vld [vmem:[%s176 + $0x5c0] sm:$0xff]
                %363 = vst [vmem:[%s177 + $0x2e0] sm:$0xff] %v362
                %v364 = vld [vmem:[%s176 + $0x5c8] sm:$0xff]
                %365 = vst [vmem:[%s177 + $0x2e8] sm:$0xff] %v364
                %v366 = vld [vmem:[%s176 + $0x5e0] sm:$0xff]
                %367 = vst [vmem:[%s177 + $0x2f0] sm:$0xff] %v366
                %v368 = vld [vmem:[%s176 + $0x5e8] sm:$0xff]
                %369 = vst [vmem:[%s177 + $0x2f8] sm:$0xff] %v368
                %v370 = vld [vmem:[%s176 + $0x600] sm:$0xff]
                %371 = vst [vmem:[%s177 + $0x300] sm:$0xff] %v370
                %v372 = vld [vmem:[%s176 + $0x608] sm:$0xff]
                %373 = vst [vmem:[%s177 + $0x308] sm:$0xff] %v372
                %v374 = vld [vmem:[%s176 + $0x620] sm:$0xff]
                %375 = vst [vmem:[%s177 + $0x310] sm:$0xff] %v374
                %v376 = vld [vmem:[%s176 + $0x628] sm:$0xff]
                %377 = vst [vmem:[%s177 + $0x318] sm:$0xff] %v376
              $region49: #{tpu_custom_call.1} parent=43 // loop_footer
                %s175 = sadd.s32 1, %s171
              $region50: #{tpu_custom_call.1} parent=43 // loop_footer_branch
                %170 = sbr.rel target = $region46
              $region51: #{tpu_custom_call.1} parent=43 // loop_exit
                _
            $region44: #{tpu_custom_call.1} parent=35 // pred_fallthru
              _
          $region36: #{tpu_custom_call.1} parent=31 // pred_fallthru
            _
          %590 = vnop
        $region32: #{tpu_custom_call.1} parent=27 // pred_fallthru
          _
      $region28: #{tpu_custom_call.1} parent=5 // pred_fallthru
        _
      %p591 = scmp.le.s32.totalorder 1, %s10
      %p592 = scmp.lt.s32.totalorder %s10, 3
      %p593 = pnand %p591, %p592
      %p594 = pneg %p593
      // Predicated region
      $region67: #{tpu_custom_call.1} parent=5 // pred_check
        _
      $region68: #{tpu_custom_call.1} parent=5 // pred_check_branch
        %596 = sbr.rel (%p593) target = $region70
      $region69: #{tpu_custom_call.1} parent=5 // pred_region
        %s597 = ssub.s32 %s10, 1
        %s598 = sand.u32 %s23, 1
        %s599 = sand.u32 %s23, 1
        %s600 = smul.addr %s599, 800
        %s601 = scalar_lea.vmem [#allocation2], %s600
        // Predicated region
        $region71: #{tpu_custom_call.1} parent=69 // pred_check
          %p602 = pneg %p36
        $region72: #{tpu_custom_call.1} parent=69 // pred_check_branch
          %604 = sbr.rel (%p602) target = $region74
        $region73: #{tpu_custom_call.1} parent=69 // pred_region
          _
        $region74: #{tpu_custom_call.1} parent=69 // pred_fallthru
          _
        %s605 = sand.u32 %s23, 1
        %s606 = sand.u32 %s23, 1
        %s607 = smul.addr %s606, 800
        %s608 = scalar_lea.vmem [#allocation2], %s607
        %p609 = pneg %p36
        %p610 = pneg %p33
        %p611 = pneg %p57
        %p612 = pneg %p54
        %p613 = pneg %p78
        %p614 = pneg %p75
        %p615 = pneg %p99
        %p616 = pneg %p96
        %p617 = pneg %p125
        %p618 = pneg %p122
        %s619 = smul.u32 2, %s15
        %p620 = scmp.lt.s32.totalorder %s619, 3
        %s621 = scalar_select %p620, %s619, 3
        %s622 = smul.addr %s621, 8
        %s623 = scalar_lea.vmem %s4, %s622
        %s624 = smul.u32 2, %s15
        %s625 = smul.u32 2, %s15
        %p626 = scmp.lt.s32.totalorder %s625, 3
        %s627 = scalar_select %p626, %s625, 3
        %s628 = smul.addr %s627, 8
        %s629 = scalar_lea.vmem %s4, %s628
        %s630 = smul.u32 2, %s15
        %v631 = vld [vmem:[%s1] sm:$0xff]
        %v632 = vld [vmem:[%s1 + $0x8] sm:$0xff]
        %v633 = vld [vmem:[%s1 + $0x10] sm:$0xff]
        %v634 = vld [vmem:[%s1 + $0x18] sm:$0xff]
        %v635 = vld [vmem:[%s1 + $0x20] sm:$0xff]
        %v636 = vld [vmem:[%s1 + $0x28] sm:$0xff]
        %v637 = vld [vmem:[%s1 + $0x30] sm:$0xff]
        %v638 = vld [vmem:[%s1 + $0x38] sm:$0xff]
        %v639 = vld [vmem:[%s1 + $0x40] sm:$0xff]
        %v640 = vld [vmem:[%s1 + $0x48] sm:$0xff]
        %v641 = vld [vmem:[%s1 + $0x50] sm:$0xff]
        %v642 = vld [vmem:[%s1 + $0x58] sm:$0xff]
        %v643 = vld [vmem:[%s1 + $0x60] sm:$0xff]
        %v644 = vld [vmem:[%s1 + $0x68] sm:$0xff]
        %v645 = vld [vmem:[%s1 + $0x70] sm:$0xff]
        %v646 = vld [vmem:[%s1 + $0x78] sm:$0xff]
        %v647 = vlaneseq
        %v648 = vand.u32 %v647, 127
        %v649 = vld [vmem:[%s601] sm:$0xff]
        %v650 = vld [vmem:[%s601 + $0x8] sm:$0xff]
        %651 = vset.pattern.permute.xlu0 0
        %652 = vperm.xlu0 %651, %v649
        %v653 = vpop.permute.xlu0 %652
        %654 = vset.pattern.permute.xlu0 0
        %655 = vperm.xlu0 %654, %v650
        %v656 = vpop.permute.xlu0 %655
        %vm657 = vcmp.eq.s32.totalorder %v653, %v648
        %vm658 = vcmp.eq.s32.totalorder %v656, %v648
        %v659 = vsel %vm657, 1.0, 0.0
        %v660 = vsel %vm658, 1.0, 0.0
        %661 = vmatprep.subr.mxu0 0.0
        %662 = vmatpush1.msra.mxu0 %v631
        %663 = vmatprep.subr.mxu0 0.0
        %664 = vmatpush1.msra.mxu0 %v632
        %665 = vmatprep.subr.mxu0 0.0
        %666 = vmatpush1.msra.mxu0 %v633
        %667 = vmatprep.subr.mxu0 0.0
        %668 = vmatpush1.msra.mxu0 %v634
        %669 = vmatprep.subr.mxu0 0.0
        %670 = vmatpush1.msra.mxu0 %v635
        %671 = vmatprep.subr.mxu0 0.0
        %672 = vmatpush1.msra.mxu0 %v636
        %673 = vmatprep.subr.mxu0 0.0
        %674 = vmatpush1.msra.mxu0 %v637
        %675 = vmatprep.subr.mxu0 0.0
        %676 = vmatpush1.msra.mxu0 %v638
        %677 = vmatprep.subr.mxu0 0.0
        %678 = vmatpush1.msra.mxu0 %v639
        %679 = vmatprep.subr.mxu0 0.0
        %680 = vmatpush1.msra.mxu0 %v640
        %681 = vmatprep.subr.mxu0 0.0
        %682 = vmatpush1.msra.mxu0 %v641
        %683 = vmatprep.subr.mxu0 0.0
        %684 = vmatpush1.msra.mxu0 %v642
        %685 = vmatprep.subr.mxu0 0.0
        %686 = vmatpush1.msra.mxu0 %v643
        %687 = vmatprep.subr.mxu0 0.0
        %688 = vmatpush1.msra.mxu0 %v644
        %689 = vmatprep.subr.mxu0 0.0
        %690 = vmatpush1.msra.mxu0 %v645
        %691 = vmatprep.subr.mxu0 0.0
        %692 = vmatpush1.msra.mxu0 %v646
        %693 = vmatprep.subr.mxu0 0.0
        %694 = vmatpush1.msra.mxu0 0.0
        %695 = vmatprep.subr.mxu0 0.0
        %696 = vmatpush1.msra.mxu0 0.0
        %697 = vmatprep.subr.mxu0 0.0
        %698 = vmatpush1.msra.mxu0 0.0
        %699 = vmatprep.subr.mxu0 0.0
        %700 = vmatpush1.msra.mxu0 0.0
        %701 = vmatprep.subr.mxu0 0.0
        %702 = vmatpush1.msra.mxu0 0.0
        %703 = vmatprep.subr.mxu0 0.0
        %704 = vmatpush1.msra.mxu0 0.0
        %705 = vmatprep.subr.mxu0 0.0
        %706 = vmatpush1.msra.mxu0 0.0
        %707 = vmatprep.subr.mxu0 0.0
        %708 = vmatpush1.msra.mxu0 0.0
        %709 = vmatprep.subr.mxu0 0.0
        %710 = vmatpush1.msra.mxu0 0.0
        %711 = vmatprep.subr.mxu0 0.0
        %712 = vmatpush1.msra.mxu0 0.0
        %713 = vmatprep.subr.mxu0 0.0
        %714 = vmatpush1.msra.mxu0 0.0
        %715 = vmatprep.subr.mxu0 0.0
        %716 = vmatpush1.msra.mxu0 0.0
        %717 = vmatprep.subr.mxu0 0.0
        %718 = vmatpush1.msra.mxu0 0.0
        %719 = vmatprep.subr.mxu0 0.0
        %720 = vmatpush1.msra.mxu0 0.0
        %721 = vmatprep.subr.mxu0 0.0
        %722 = vmatpush1.msra.mxu0 0.0
        %723 = vmatprep.subr.mxu0 0.0
        %724 = vmatpush1.msra.mxu0 0.0
        %725 = vmatprep.mubr.f32.mxu0 0.0
        %726 = vmatmul.mubr.f32.gmra.mrb[0].mxu0 %v659
        %v727 = vpop.f32.mrb[0].mxu0
        %v728 = vadd.f32 0.0, %v727
        %v729 = vpop.f32.mrb[0].mxu0
        %730 = vmatprep.mubr.f32.mxu0 0.0
        %731 = vmatmul.mubr.f32.gmra.mrb[0].mxu0 %v660
        %v732 = vpop.f32.mrb[0].mxu0
        %v733 = vadd.f32 0.0, %v732
        %v734 = vpop.f32.mrb[0].mxu0
        %735 = vdwg.mxu0
        %v736 = vld [vmem:[%s2] sm:$0xff]
        %v737 = vld [vmem:[%s2 + $0x8] sm:$0xff]
        %v738 = vld [vmem:[%s2 + $0x10] sm:$0xff]
        %v739 = vld [vmem:[%s2 + $0x18] sm:$0xff]
        %s740 = scalar_lea.vmem %s601, 16 [#allocation2]
        %v741 = vld [vmem:[%s740] sm:$0xff]
        %v742 = vld [vmem:[%s740 + $0x8] sm:$0xff]
        %743 = vset.pattern.permute.xlu0 0
        %744 = vperm.xlu0 %743, %v741
        %v745 = vpop.permute.xlu0 %744
        %746 = vset.pattern.permute.xlu0 0
        %747 = vperm.xlu0 %746, %v742
        %v748 = vpop.permute.xlu0 %747
        %vm749 = vcmp.eq.s32.totalorder %v745, %v648
        %vm750 = vcmp.eq.s32.totalorder %v748, %v648
        %v751 = vsel %vm749, 1.0, 0.0
        %v752 = vsel %vm750, 1.0, 0.0
        %753 = vmatprep.subr.mxu0 0.0
        %754 = vmatpush1.msra.mxu0 %v631
        %755 = vmatprep.subr.mxu0 0.0
        %756 = vmatpush1.msra.mxu0 %v632
        %757 = vmatprep.subr.mxu0 0.0
        %758 = vmatpush1.msra.mxu0 %v633
        %759 = vmatprep.subr.mxu0 0.0
        %760 = vmatpush1.msra.mxu0 %v634
        %761 = vmatprep.subr.mxu0 0.0
        %762 = vmatpush1.msra.mxu0 %v635
        %763 = vmatprep.subr.mxu0 0.0
        %764 = vmatpush1.msra.mxu0 %v636
        %765 = vmatprep.subr.mxu0 0.0
        %766 = vmatpush1.msra.mxu0 %v637
        %767 = vmatprep.subr.mxu0 0.0
        %768 = vmatpush1.msra.mxu0 %v638
        %769 = vmatprep.subr.mxu0 0.0
        %770 = vmatpush1.msra.mxu0 %v639
        %771 = vmatprep.subr.mxu0 0.0
        %772 = vmatpush1.msra.mxu0 %v640
        %773 = vmatprep.subr.mxu0 0.0
        %774 = vmatpush1.msra.mxu0 %v641
        %775 = vmatprep.subr.mxu0 0.0
        %776 = vmatpush1.msra.mxu0 %v642
        %777 = vmatprep.subr.mxu0 0.0
        %778 = vmatpush1.msra.mxu0 %v643
        %779 = vmatprep.subr.mxu0 0.0
        %780 = vmatpush1.msra.mxu0 %v644
        %781 = vmatprep.subr.mxu0 0.0
        %782 = vmatpush1.msra.mxu0 %v645
        %783 = vmatprep.subr.mxu0 0.0
        %784 = vmatpush1.msra.mxu0 %v646
        %785 = vmatprep.subr.mxu0 0.0
        %786 = vmatpush1.msra.mxu0 0.0
        %787 = vmatprep.subr.mxu0 0.0
        %788 = vmatpush1.msra.mxu0 0.0
        %789 = vmatprep.subr.mxu0 0.0
        %790 = vmatpush1.msra.mxu0 0.0
        %791 = vmatprep.subr.mxu0 0.0
        %792 = vmatpush1.msra.mxu0 0.0
        %793 = vmatprep.subr.mxu0 0.0
        %794 = vmatpush1.msra.mxu0 0.0
        %795 = vmatprep.subr.mxu0 0.0
        %796 = vmatpush1.msra.mxu0 0.0
        %797 = vmatprep.subr.mxu0 0.0
        %798 = vmatpush1.msra.mxu0 0.0
        %799 = vmatprep.subr.mxu0 0.0
        %800 = vmatpush1.msra.mxu0 0.0
        %801 = vmatprep.subr.mxu0 0.0
        %802 = vmatpush1.msra.mxu0 0.0
        %803 = vmatprep.subr.mxu0 0.0
        %804 = vmatpush1.msra.mxu0 0.0
        %805 = vmatprep.subr.mxu0 0.0
        %806 = vmatpush1.msra.mxu0 0.0
        %807 = vmatprep.subr.mxu0 0.0
        %808 = vmatpush1.msra.mxu0 0.0
        %809 = vmatprep.subr.mxu0 0.0
        %810 = vmatpush1.msra.mxu0 0.0
        %811 = vmatprep.subr.mxu0 0.0
        %812 = vmatpush1.msra.mxu0 0.0
        %813 = vmatprep.subr.mxu0 0.0
        %814 = vmatpush1.msra.mxu0 0.0
        %815 = vmatprep.subr.mxu0 0.0
        %816 = vmatpush1.msra.mxu0 0.0
        %817 = vmatprep.mubr.f32.mxu0 0.0
        %818 = vmatmul.mubr.f32.gmra.mrb[0].mxu0 %v751
        %v819 = vpop.f32.mrb[0].mxu0
        %v820 = vadd.f32 0.0, %v819
        %v821 = vpop.f32.mrb[0].mxu0
        %822 = vmatprep.mubr.f32.mxu0 0.0
        %823 = vmatmul.mubr.f32.gmra.mrb[0].mxu0 %v752
        %v824 = vpop.f32.mrb[0].mxu0
        %v825 = vadd.f32 0.0, %v824
        %v826 = vpop.f32.mrb[0].mxu0
        %827 = vdwg.mxu0
        %v828 = vld [vmem:[%s2 + $0x20] sm:$0xff]
        %v829 = vld [vmem:[%s2 + $0x28] sm:$0xff]
        %v830 = vld [vmem:[%s2 + $0x30] sm:$0xff]
        %v831 = vld [vmem:[%s2 + $0x38] sm:$0xff]
        %vm832 = vcmask 261120
        %v834 = vsel %vm832, %v820, 0
        %v837 = vsel %vm832, %v825, 0
        %839 = vmatprep.subr.mxu0 0.0
        %840 = vmatpush1.msra.mxu0 %v828
        %841 = vmatprep.subr.mxu0 0.0
        %842 = vmatpush1.msra.mxu0 %v829
        %843 = vmatprep.subr.mxu0 0.0
        %844 = vmatpush1.msra.mxu0 %v830
        %845 = vmatprep.subr.mxu0 0.0
        %846 = vmatpush1.msra.mxu0 %v831
        %847 = vmatprep.subr.mxu0 0.0
        %848 = vmatpush1.msra.mxu0 0.0
        %849 = vmatprep.subr.mxu0 0.0
        %850 = vmatpush1.msra.mxu0 0.0
        %851 = vmatprep.subr.mxu0 0.0
        %852 = vmatpush1.msra.mxu0 0.0
        %853 = vmatprep.subr.mxu0 0.0
        %854 = vmatpush1.msra.mxu0 0.0
        %855 = vmatprep.subr.mxu0 0.0
        %856 = vmatpush1.msra.mxu0 0.0
        %857 = vmatprep.subr.mxu0 0.0
        %858 = vmatpush1.msra.mxu0 0.0
        %859 = vmatprep.subr.mxu0 0.0
        %860 = vmatpush1.msra.mxu0 0.0
        %861 = vmatprep.subr.mxu0 0.0
        %862 = vmatpush1.msra.mxu0 0.0
        %863 = vmatprep.subr.mxu0 0.0
        %864 = vmatpush1.msra.mxu0 0.0
        %865 = vmatprep.subr.mxu0 0.0
        %866 = vmatpush1.msra.mxu0 0.0
        %867 = vmatprep.subr.mxu0 0.0
        %868 = vmatpush1.msra.mxu0 0.0
        %869 = vmatprep.subr.mxu0 0.0
        %870 = vmatpush1.msra.mxu0 0.0
        %871 = vmatprep.subr.mxu0 0.0
        %872 = vmatpush1.msra.mxu0 0.0
        %873 = vmatprep.subr.mxu0 0.0
        %874 = vmatpush1.msra.mxu0 0.0
        %875 = vmatprep.subr.mxu0 0.0
        %876 = vmatpush1.msra.mxu0 0.0
        %877 = vmatprep.subr.mxu0 0.0
        %878 = vmatpush1.msra.mxu0 0.0
        %879 = vmatprep.subr.mxu0 0.0
        %880 = vmatpush1.msra.mxu0 0.0
        %881 = vmatprep.subr.mxu0 0.0
        %882 = vmatpush1.msra.mxu0 0.0
        %883 = vmatprep.subr.mxu0 0.0
        %884 = vmatpush1.msra.mxu0 0.0
        %885 = vmatprep.subr.mxu0 0.0
        %886 = vmatpush1.msra.mxu0 0.0
        %887 = vmatprep.subr.mxu0 0.0
        %888 = vmatpush1.msra.mxu0 0.0
        %889 = vmatprep.subr.mxu0 0.0
        %890 = vmatpush1.msra.mxu0 0.0
        %891 = vmatprep.subr.mxu0 0.0
        %892 = vmatpush1.msra.mxu0 0.0
        %893 = vmatprep.subr.mxu0 0.0
        %894 = vmatpush1.msra.mxu0 0.0
        %895 = vmatprep.subr.mxu0 0.0
        %896 = vmatpush1.msra.mxu0 0.0
        %897 = vmatprep.subr.mxu0 0.0
        %898 = vmatpush1.msra.mxu0 0.0
        %899 = vmatprep.subr.mxu0 0.0
        %900 = vmatpush1.msra.mxu0 0.0
        %901 = vmatprep.subr.mxu0 0.0
        %902 = vmatpush1.msra.mxu0 0.0
        %903 = vmatprep.mubr.f32.mxu0 0.0
        %904 = vmatmul.mubr.f32.gmra.mrb[0].mxu0 %v834
        %v905 = vpop.f32.mrb[0].mxu0
        %v906 = vadd.f32 0.0, %v905
        %v907 = vpop.f32.mrb[0].mxu0
        %908 = vmatprep.mubr.f32.mxu0 0.0
        %909 = vmatmul.mubr.f32.gmra.mrb[0].mxu0 %v837
        %v910 = vpop.f32.mrb[0].mxu0
        %v911 = vadd.f32 0.0, %v910
        %v912 = vpop.f32.mrb[0].mxu0
        %913 = vdwg.mxu0
        %v915 = vsel %vm832, %v728, 0
        %v918 = vsel %vm832, %v733, 0
        %920 = vmatprep.subr.mxu0 0.0
        %921 = vmatpush1.msra.mxu0 %v736
        %922 = vmatprep.subr.mxu0 0.0
        %923 = vmatpush1.msra.mxu0 %v737
        %924 = vmatprep.subr.mxu0 0.0
        %925 = vmatpush1.msra.mxu0 %v738
        %926 = vmatprep.subr.mxu0 0.0
        %927 = vmatpush1.msra.mxu0 %v739
        %928 = vmatprep.subr.mxu0 0.0
        %929 = vmatpush1.msra.mxu0 0.0
        %930 = vmatprep.subr.mxu0 0.0
        %931 = vmatpush1.msra.mxu0 0.0
        %932 = vmatprep.subr.mxu0 0.0
        %933 = vmatpush1.msra.mxu0 0.0
        %934 = vmatprep.subr.mxu0 0.0
        %935 = vmatpush1.msra.mxu0 0.0
        %936 = vmatprep.subr.mxu0 0.0
        %937 = vmatpush1.msra.mxu0 0.0
        %938 = vmatprep.subr.mxu0 0.0
        %939 = vmatpush1.msra.mxu0 0.0
        %940 = vmatprep.subr.mxu0 0.0
        %941 = vmatpush1.msra.mxu0 0.0
        %942 = vmatprep.subr.mxu0 0.0
        %943 = vmatpush1.msra.mxu0 0.0
        %944 = vmatprep.subr.mxu0 0.0
        %945 = vmatpush1.msra.mxu0 0.0
        %946 = vmatprep.subr.mxu0 0.0
        %947 = vmatpush1.msra.mxu0 0.0
        %948 = vmatprep.subr.mxu0 0.0
        %949 = vmatpush1.msra.mxu0 0.0
        %950 = vmatprep.subr.mxu0 0.0
        %951 = vmatpush1.msra.mxu0 0.0
        %952 = vmatprep.subr.mxu0 0.0
        %953 = vmatpush1.msra.mxu0 0.0
        %954 = vmatprep.subr.mxu0 0.0
        %955 = vmatpush1.msra.mxu0 0.0
        %956 = vmatprep.subr.mxu0 0.0
        %957 = vmatpush1.msra.mxu0 0.0
        %958 = vmatprep.subr.mxu0 0.0
        %959 = vmatpush1.msra.mxu0 0.0
        %960 = vmatprep.subr.mxu0 0.0
        %961 = vmatpush1.msra.mxu0 0.0
        %962 = vmatprep.subr.mxu0 0.0
        %963 = vmatpush1.msra.mxu0 0.0
        %964 = vmatprep.subr.mxu0 0.0
        %965 = vmatpush1.msra.mxu0 0.0
        %966 = vmatprep.subr.mxu0 0.0
        %967 = vmatpush1.msra.mxu0 0.0
        %968 = vmatprep.subr.mxu0 0.0
        %969 = vmatpush1.msra.mxu0 0.0
        %970 = vmatprep.subr.mxu0 0.0
        %971 = vmatpush1.msra.mxu0 0.0
        %972 = vmatprep.subr.mxu0 0.0
        %973 = vmatpush1.msra.mxu0 0.0
        %974 = vmatprep.subr.mxu0 0.0
        %975 = vmatpush1.msra.mxu0 0.0
        %976 = vmatprep.subr.mxu0 0.0
        %977 = vmatpush1.msra.mxu0 0.0
        %978 = vmatprep.subr.mxu0 0.0
        %979 = vmatpush1.msra.mxu0 0.0
        %980 = vmatprep.subr.mxu0 0.0
        %981 = vmatpush1.msra.mxu0 0.0
        %982 = vmatprep.subr.mxu0 0.0
        %983 = vmatpush1.msra.mxu0 0.0
        %984 = vmatprep.mubr.f32.mxu0 0.0
        %985 = vmatmul.mubr.f32.gmra.mrb[0].mxu0 %v915
        %v986 = vpop.f32.mrb[0].mxu0
        %v987 = vadd.f32 %v906, %v986
        %v988 = vpop.f32.mrb[0].mxu0
        %989 = vmatprep.mubr.f32.mxu0 0.0
        %990 = vmatmul.mubr.f32.gmra.mrb[0].mxu0 %v918
        %v991 = vpop.f32.mrb[0].mxu0
        %v992 = vadd.f32 %v911, %v991
        %v993 = vpop.f32.mrb[0].mxu0
        %994 = vdwg.mxu0
        %s995 = scalar_lea.vmem %s601, 32 [#allocation2]
        %v996 = vld [vmem:[%s995] sm:$0xff]
        %v997 = vld [vmem:[%s995 + $0x8] sm:$0xff]
        %998 = vset.pattern.permute.xlu0 0
        %999 = vperm.xlu0 %998, %v996
        %v1000 = vpop.permute.xlu0 %999
        %1001 = vset.pattern.permute.xlu0 0
        %1002 = vperm.xlu0 %1001, %v997
        %v1003 = vpop.permute.xlu0 %1002
        %vm1004 = vcmp.eq.s32.totalorder %v1000, %v648
        %vm1005 = vcmp.eq.s32.totalorder %v1003, %v648
        %v1006 = vsel %vm1004, 1.0, 0.0
        %v1007 = vsel %vm1005, 1.0, 0.0
        %1008 = vmatprep.subr.mxu0 0.0
        %1009 = vmatpush1.msra.mxu0 %v631
        %1010 = vmatprep.subr.mxu0 0.0
        %1011 = vmatpush1.msra.mxu0 %v632
        %1012 = vmatprep.subr.mxu0 0.0
        %1013 = vmatpush1.msra.mxu0 %v633
        %1014 = vmatprep.subr.mxu0 0.0
        %1015 = vmatpush1.msra.mxu0 %v634
        %1016 = vmatprep.subr.mxu0 0.0
        %1017 = vmatpush1.msra.mxu0 %v635
        %1018 = vmatprep.subr.mxu0 0.0
        %1019 = vmatpush1.msra.mxu0 %v636
        %1020 = vmatprep.subr.mxu0 0.0
        %1021 = vmatpush1.msra.mxu0 %v637
        %1022 = vmatprep.subr.mxu0 0.0
        %1023 = vmatpush1.msra.mxu0 %v638
        %1024 = vmatprep.subr.mxu0 0.0
        %1025 = vmatpush1.msra.mxu0 %v639
        %1026 = vmatprep.subr.mxu0 0.0
        %1027 = vmatpush1.msra.mxu0 %v640
        %1028 = vmatprep.subr.mxu0 0.0
        %1029 = vmatpush1.msra.mxu0 %v641
        %1030 = vmatprep.subr.mxu0 0.0
        %1031 = vmatpush1.msra.mxu0 %v642
        %1032 = vmatprep.subr.mxu0 0.0
        %1033 = vmatpush1.msra.mxu0 %v643
        %1034 = vmatprep.subr.mxu0 0.0
        %1035 = vmatpush1.msra.mxu0 %v644
        %1036 = vmatprep.subr.mxu0 0.0
        %1037 = vmatpush1.msra.mxu0 %v645
        %1038 = vmatprep.subr.mxu0 0.0
        %1039 = vmatpush1.msra.mxu0 %v646
        %1040 = vmatprep.subr.mxu0 0.0
        %1041 = vmatpush1.msra.mxu0 0.0
        %1042 = vmatprep.subr.mxu0 0.0
        %1043 = vmatpush1.msra.mxu0 0.0
        %1044 = vmatprep.subr.mxu0 0.0
        %1045 = vmatpush1.msra.mxu0 0.0
        %1046 = vmatprep.subr.mxu0 0.0
        %1047 = vmatpush1.msra.mxu0 0.0
        %1048 = vmatprep.subr.mxu0 0.0
        %1049 = vmatpush1.msra.mxu0 0.0
        %1050 = vmatprep.subr.mxu0 0.0
        %1051 = vmatpush1.msra.mxu0 0.0
        %1052 = vmatprep.subr.mxu0 0.0
        %1053 = vmatpush1.msra.mxu0 0.0
        %1054 = vmatprep.subr.mxu0 0.0
        %1055 = vmatpush1.msra.mxu0 0.0
        %1056 = vmatprep.subr.mxu0 0.0
        %1057 = vmatpush1.msra.mxu0 0.0
        %1058 = vmatprep.subr.mxu0 0.0
        %1059 = vmatpush1.msra.mxu0 0.0
        %1060 = vmatprep.subr.mxu0 0.0
        %1061 = vmatpush1.msra.mxu0 0.0
        %1062 = vmatprep.subr.mxu0 0.0
        %1063 = vmatpush1.msra.mxu0 0.0
        %1064 = vmatprep.subr.mxu0 0.0
        %1065 = vmatpush1.msra.mxu0 0.0
        %1066 = vmatprep.subr.mxu0 0.0
        %1067 = vmatpush1.msra.mxu0 0.0
        %1068 = vmatprep.subr.mxu0 0.0
        %1069 = vmatpush1.msra.mxu0 0.0
        %1070 = vmatprep.subr.mxu0 0.0
        %1071 = vmatpush1.msra.mxu0 0.0
        %1072 = vmatprep.mubr.f32.mxu0 0.0
        %1073 = vmatmul.mubr.f32.gmra.mrb[0].mxu0 %v1006
        %v1074 = vpop.f32.mrb[0].mxu0
        %v1075 = vadd.f32 0.0, %v1074
        %v1076 = vpop.f32.mrb[0].mxu0
        %1077 = vmatprep.mubr.f32.mxu0 0.0
        %1078 = vmatmul.mubr.f32.gmra.mrb[0].mxu0 %v1007
        %v1079 = vpop.f32.mrb[0].mxu0
        %v1080 = vadd.f32 0.0, %v1079
        %v1081 = vpop.f32.mrb[0].mxu0
        %1082 = vdwg.mxu0
        %v1083 = vld [vmem:[%s2 + $0x40] sm:$0xff]
        %v1084 = vld [vmem:[%s2 + $0x48] sm:$0xff]
        %v1085 = vld [vmem:[%s2 + $0x50] sm:$0xff]
        %v1086 = vld [vmem:[%s2 + $0x58] sm:$0xff]
        %v1088 = vsel %vm832, %v1075, 0
        %v1091 = vsel %vm832, %v1080, 0
        %1093 = vmatprep.subr.mxu0 0.0
        %1094 = vmatpush1.msra.mxu0 %v1083
        %1095 = vmatprep.subr.mxu0 0.0
        %1096 = vmatpush1.msra.mxu0 %v1084
        %1097 = vmatprep.subr.mxu0 0.0
        %1098 = vmatpush1.msra.mxu0 %v1085
        %1099 = vmatprep.subr.mxu0 0.0
        %1100 = vmatpush1.msra.mxu0 %v1086
        %1101 = vmatprep.subr.mxu0 0.0
        %1102 = vmatpush1.msra.mxu0 0.0
        %1103 = vmatprep.subr.mxu0 0.0
        %1104 = vmatpush1.msra.mxu0 0.0
        %1105 = vmatprep.subr.mxu0 0.0
        %1106 = vmatpush1.msra.mxu0 0.0
        %1107 = vmatprep.subr.mxu0 0.0
        %1108 = vmatpush1.msra.mxu0 0.0
        %1109 = vmatprep.subr.mxu0 0.0
        %1110 = vmatpush1.msra.mxu0 0.0
        %1111 = vmatprep.subr.mxu0 0.0
        %1112 = vmatpush1.msra.mxu0 0.0
        %1113 = vmatprep.subr.mxu0 0.0
        %1114 = vmatpush1.msra.mxu0 0.0
        %1115 = vmatprep.subr.mxu0 0.0
        %1116 = vmatpush1.msra.mxu0 0.0
        %1117 = vmatprep.subr.mxu0 0.0
        %1118 = vmatpush1.msra.mxu0 0.0
        %1119 = vmatprep.subr.mxu0 0.0
        %1120 = vmatpush1.msra.mxu0 0.0
        %1121 = vmatprep.subr.mxu0 0.0
        %1122 = vmatpush1.msra.mxu0 0.0
        %1123 = vmatprep.subr.mxu0 0.0
        %1124 = vmatpush1.msra.mxu0 0.0
        %1125 = vmatprep.subr.mxu0 0.0
        %1126 = vmatpush1.msra.mxu0 0.0
        %1127 = vmatprep.subr.mxu0 0.0
        %1128 = vmatpush1.msra.mxu0 0.0
        %1129 = vmatprep.subr.mxu0 0.0
        %1130 = vmatpush1.msra.mxu0 0.0
        %1131 = vmatprep.subr.mxu0 0.0
        %1132 = vmatpush1.msra.mxu0 0.0
        %1133 = vmatprep.subr.mxu0 0.0
        %1134 = vmatpush1.msra.mxu0 0.0
        %1135 = vmatprep.subr.mxu0 0.0
        %1136 = vmatpush1.msra.mxu0 0.0
        %1137 = vmatprep.subr.mxu0 0.0
        %1138 = vmatpush1.msra.mxu0 0.0
        %1139 = vmatprep.subr.mxu0 0.0
        %1140 = vmatpush1.msra.mxu0 0.0
        %1141 = vmatprep.subr.mxu0 0.0
        %1142 = vmatpush1.msra.mxu0 0.0
        %1143 = vmatprep.subr.mxu0 0.0
        %1144 = vmatpush1.msra.mxu0 0.0
        %1145 = vmatprep.subr.mxu0 0.0
        %1146 = vmatpush1.msra.mxu0 0.0
        %1147 = vmatprep.subr.mxu0 0.0
        %1148 = vmatpush1.msra.mxu0 0.0
        %1149 = vmatprep.subr.mxu0 0.0
        %1150 = vmatpush1.msra.mxu0 0.0
        %1151 = vmatprep.subr.mxu0 0.0
        %1152 = vmatpush1.msra.mxu0 0.0
        %1153 = vmatprep.subr.mxu0 0.0
        %1154 = vmatpush1.msra.mxu0 0.0
        %1155 = vmatprep.subr.mxu0 0.0
        %1156 = vmatpush1.msra.mxu0 0.0
        %1157 = vmatprep.mubr.f32.mxu0 0.0
        %1158 = vmatmul.mubr.f32.gmra.mrb[0].mxu0 %v1088
        %v1159 = vpop.f32.mrb[0].mxu0
        %v1160 = vadd.f32 0.0, %v1159
        %v1161 = vpop.f32.mrb[0].mxu0
        %1162 = vmatprep.mubr.f32.mxu0 0.0
        %1163 = vmatmul.mubr.f32.gmra.mrb[0].mxu0 %v1091
        %v1164 = vpop.f32.mrb[0].mxu0
        %v1165 = vadd.f32 0.0, %v1164
        %v1166 = vpop.f32.mrb[0].mxu0
        %1167 = vdwg.mxu0
        %v1168 = vadd.f32 %v987, %v1160
        %v1169 = vadd.f32 %v992, %v1165
        %s1170 = scalar_lea.vmem %s601, 48 [#allocation2]
        %v1171 = vld [vmem:[%s1170] sm:$0xff]
        %v1172 = vld [vmem:[%s1170 + $0x8] sm:$0xff]
        %1173 = vset.pattern.permute.xlu0 0
        %1174 = vperm.xlu0 %1173, %v1171
        %v1175 = vpop.permute.xlu0 %1174
        %1176 = vset.pattern.permute.xlu0 0
        %1177 = vperm.xlu0 %1176, %v1172
        %v1178 = vpop.permute.xlu0 %1177
        %vm1179 = vcmp.eq.s32.totalorder %v1175, %v648
        %vm1180 = vcmp.eq.s32.totalorder %v1178, %v648
        %v1181 = vsel %vm1179, 1.0, 0.0
        %v1182 = vsel %vm1180, 1.0, 0.0
        %1183 = vmatprep.subr.mxu0 0.0
        %1184 = vmatpush1.msra.mxu0 %v631
        %1185 = vmatprep.subr.mxu0 0.0
        %1186 = vmatpush1.msra.mxu0 %v632
        %1187 = vmatprep.subr.mxu0 0.0
        %1188 = vmatpush1.msra.mxu0 %v633
        %1189 = vmatprep.subr.mxu0 0.0
        %1190 = vmatpush1.msra.mxu0 %v634
        %1191 = vmatprep.subr.mxu0 0.0
        %1192 = vmatpush1.msra.mxu0 %v635
        %1193 = vmatprep.subr.mxu0 0.0
        %1194 = vmatpush1.msra.mxu0 %v636
        %1195 = vmatprep.subr.mxu0 0.0
        %1196 = vmatpush1.msra.mxu0 %v637
        %1197 = vmatprep.subr.mxu0 0.0
        %1198 = vmatpush1.msra.mxu0 %v638
        %1199 = vmatprep.subr.mxu0 0.0
        %1200 = vmatpush1.msra.mxu0 %v639
        %1201 = vmatprep.subr.mxu0 0.0
        %1202 = vmatpush1.msra.mxu0 %v640
        %1203 = vmatprep.subr.mxu0 0.0
        %1204 = vmatpush1.msra.mxu0 %v641
        %1205 = vmatprep.subr.mxu0 0.0
        %1206 = vmatpush1.msra.mxu0 %v642
        %1207 = vmatprep.subr.mxu0 0.0
        %1208 = vmatpush1.msra.mxu0 %v643
        %1209 = vmatprep.subr.mxu0 0.0
        %1210 = vmatpush1.msra.mxu0 %v644
        %1211 = vmatprep.subr.mxu0 0.0
        %1212 = vmatpush1.msra.mxu0 %v645
        %1213 = vmatprep.subr.mxu0 0.0
        %1214 = vmatpush1.msra.mxu0 %v646
        %1215 = vmatprep.subr.mxu0 0.0
        %1216 = vmatpush1.msra.mxu0 0.0
        %1217 = vmatprep.subr.mxu0 0.0
        %1218 = vmatpush1.msra.mxu0 0.0
        %1219 = vmatprep.subr.mxu0 0.0
        %1220 = vmatpush1.msra.mxu0 0.0
        %1221 = vmatprep.subr.mxu0 0.0
        %1222 = vmatpush1.msra.mxu0 0.0
        %1223 = vmatprep.subr.mxu0 0.0
        %1224 = vmatpush1.msra.mxu0 0.0
        %1225 = vmatprep.subr.mxu0 0.0
        %1226 = vmatpush1.msra.mxu0 0.0
        %1227 = vmatprep.subr.mxu0 0.0
        %1228 = vmatpush1.msra.mxu0 0.0
        %1229 = vmatprep.subr.mxu0 0.0
        %1230 = vmatpush1.msra.mxu0 0.0
        %1231 = vmatprep.subr.mxu0 0.0
        %1232 = vmatpush1.msra.mxu0 0.0
        %1233 = vmatprep.subr.mxu0 0.0
        %1234 = vmatpush1.msra.mxu0 0.0
        %1235 = vmatprep.subr.mxu0 0.0
        %1236 = vmatpush1.msra.mxu0 0.0
        %1237 = vmatprep.subr.mxu0 0.0
        %1238 = vmatpush1.msra.mxu0 0.0
        %1239 = vmatprep.subr.mxu0 0.0
        %1240 = vmatpush1.msra.mxu0 0.0
        %1241 = vmatprep.subr.mxu0 0.0
        %1242 = vmatpush1.msra.mxu0 0.0
        %1243 = vmatprep.subr.mxu0 0.0
        %1244 = vmatpush1.msra.mxu0 0.0
        %1245 = vmatprep.subr.mxu0 0.0
        %1246 = vmatpush1.msra.mxu0 0.0
        %1247 = vmatprep.mubr.f32.mxu0 0.0
        %1248 = vmatmul.mubr.f32.gmra.mrb[0].mxu0 %v1181
        %v1249 = vpop.f32.mrb[0].mxu0
        %v1250 = vadd.f32 0.0, %v1249
        %v1251 = vpop.f32.mrb[0].mxu0
        %1252 = vmatprep.mubr.f32.mxu0 0.0
        %1253 = vmatmul.mubr.f32.gmra.mrb[0].mxu0 %v1182
        %v1254 = vpop.f32.mrb[0].mxu0
        %v1255 = vadd.f32 0.0, %v1254
        %v1256 = vpop.f32.mrb[0].mxu0
        %1257 = vdwg.mxu0
        %v1258 = vld [vmem:[%s2 + $0x60] sm:$0xff]
        %v1259 = vld [vmem:[%s2 + $0x68] sm:$0xff]
        %v1260 = vld [vmem:[%s2 + $0x70] sm:$0xff]
        %v1261 = vld [vmem:[%s2 + $0x78] sm:$0xff]
        %v1263 = vsel %vm832, %v1250, 0
        %v1266 = vsel %vm832, %v1255, 0
        %1268 = vmatprep.subr.mxu0 0.0
        %1269 = vmatpush1.msra.mxu0 %v1258
        %1270 = vmatprep.subr.mxu0 0.0
        %1271 = vmatpush1.msra.mxu0 %v1259
        %1272 = vmatprep.subr.mxu0 0.0
        %1273 = vmatpush1.msra.mxu0 %v1260
        %1274 = vmatprep.subr.mxu0 0.0
        %1275 = vmatpush1.msra.mxu0 %v1261
        %1276 = vmatprep.subr.mxu0 0.0
        %1277 = vmatpush1.msra.mxu0 0.0
        %1278 = vmatprep.subr.mxu0 0.0
        %1279 = vmatpush1.msra.mxu0 0.0
        %1280 = vmatprep.subr.mxu0 0.0
        %1281 = vmatpush1.msra.mxu0 0.0
        %1282 = vmatprep.subr.mxu0 0.0
        %1283 = vmatpush1.msra.mxu0 0.0
        %1284 = vmatprep.subr.mxu0 0.0
        %1285 = vmatpush1.msra.mxu0 0.0
        %1286 = vmatprep.subr.mxu0 0.0
        %1287 = vmatpush1.msra.mxu0 0.0
        %1288 = vmatprep.subr.mxu0 0.0
        %1289 = vmatpush1.msra.mxu0 0.0
        %1290 = vmatprep.subr.mxu0 0.0
        %1291 = vmatpush1.msra.mxu0 0.0
        %1292 = vmatprep.subr.mxu0 0.0
        %1293 = vmatpush1.msra.mxu0 0.0
        %1294 = vmatprep.subr.mxu0 0.0
        %1295 = vmatpush1.msra.mxu0 0.0
        %1296 = vmatprep.subr.mxu0 0.0
        %1297 = vmatpush1.msra.mxu0 0.0
        %1298 = vmatprep.subr.mxu0 0.0
        %1299 = vmatpush1.msra.mxu0 0.0
        %1300 = vmatprep.subr.mxu0 0.0
        %1301 = vmatpush1.msra.mxu0 0.0
        %1302 = vmatprep.subr.mxu0 0.0
        %1303 = vmatpush1.msra.mxu0 0.0
        %1304 = vmatprep.subr.mxu0 0.0
        %1305 = vmatpush1.msra.mxu0 0.0
        %1306 = vmatprep.subr.mxu0 0.0
        %1307 = vmatpush1.msra.mxu0 0.0
        %1308 = vmatprep.subr.mxu0 0.0
        %1309 = vmatpush1.msra.mxu0 0.0
        %1310 = vmatprep.subr.mxu0 0.0
        %1311 = vmatpush1.msra.mxu0 0.0
        %1312 = vmatprep.subr.mxu0 0.0
        %1313 = vmatpush1.msra.mxu0 0.0
        %1314 = vmatprep.subr.mxu0 0.0
        %1315 = vmatpush1.msra.mxu0 0.0
        %1316 = vmatprep.subr.mxu0 0.0
        %1317 = vmatpush1.msra.mxu0 0.0
        %1318 = vmatprep.subr.mxu0 0.0
        %1319 = vmatpush1.msra.mxu0 0.0
        %1320 = vmatprep.subr.mxu0 0.0
        %1321 = vmatpush1.msra.mxu0 0.0
        %1322 = vmatprep.subr.mxu0 0.0
        %1323 = vmatpush1.msra.mxu0 0.0
        %1324 = vmatprep.subr.mxu0 0.0
        %1325 = vmatpush1.msra.mxu0 0.0
        %1326 = vmatprep.subr.mxu0 0.0
        %1327 = vmatpush1.msra.mxu0 0.0
        %1328 = vmatprep.subr.mxu0 0.0
        %1329 = vmatpush1.msra.mxu0 0.0
        %1330 = vmatprep.subr.mxu0 0.0
        %1331 = vmatpush1.msra.mxu0 0.0
        %1332 = vmatprep.mubr.f32.mxu0 0.0
        %1333 = vmatmul.mubr.f32.gmra.mrb[0].mxu0 %v1263
        %v1334 = vpop.f32.mrb[0].mxu0
        %v1335 = vadd.f32 0.0, %v1334
        %v1336 = vpop.f32.mrb[0].mxu0
        %1337 = vmatprep.mubr.f32.mxu0 0.0
        %1338 = vmatmul.mubr.f32.gmra.mrb[0].mxu0 %v1266
        %v1339 = vpop.f32.mrb[0].mxu0
        %v1340 = vadd.f32 0.0, %v1339
        %v1341 = vpop.f32.mrb[0].mxu0
        %1342 = vdwg.mxu0
        %v1343 = vadd.f32 %v1168, %v1335
        %v1344 = vadd.f32 %v1169, %v1340
        %s1345 = scalar_lea.vmem %s601, 64 [#allocation2]
        %v1346 = vld [vmem:[%s1345] sm:$0xff]
        %v1347 = vld [vmem:[%s1345 + $0x8] sm:$0xff]
        %1348 = vset.pattern.permute.xlu0 0
        %1349 = vperm.xlu0 %1348, %v1346
        %v1350 = vpop.permute.xlu0 %1349
        %1351 = vset.pattern.permute.xlu0 0
        %1352 = vperm.xlu0 %1351, %v1347
        %v1353 = vpop.permute.xlu0 %1352
        %vm1354 = vcmp.eq.s32.totalorder %v1350, %v648
        %vm1355 = vcmp.eq.s32.totalorder %v1353, %v648
        %v1356 = vsel %vm1354, 1.0, 0.0
        %v1357 = vsel %vm1355, 1.0, 0.0
        %1358 = vmatprep.subr.mxu0 0.0
        %1359 = vmatpush1.msra.mxu0 %v631
        %1360 = vmatprep.subr.mxu0 0.0
        %1361 = vmatpush1.msra.mxu0 %v632
        %1362 = vmatprep.subr.mxu0 0.0
        %1363 = vmatpush1.msra.mxu0 %v633
        %1364 = vmatprep.subr.mxu0 0.0
        %1365 = vmatpush1.msra.mxu0 %v634
        %1366 = vmatprep.subr.mxu0 0.0
        %1367 = vmatpush1.msra.mxu0 %v635
        %1368 = vmatprep.subr.mxu0 0.0
        %1369 = vmatpush1.msra.mxu0 %v636
        %1370 = vmatprep.subr.mxu0 0.0
        %1371 = vmatpush1.msra.mxu0 %v637
        %1372 = vmatprep.subr.mxu0 0.0
        %1373 = vmatpush1.msra.mxu0 %v638
        %1374 = vmatprep.subr.mxu0 0.0
        %1375 = vmatpush1.msra.mxu0 %v639
        %1376 = vmatprep.subr.mxu0 0.0
        %1377 = vmatpush1.msra.mxu0 %v640
        %1378 = vmatprep.subr.mxu0 0.0
        %1379 = vmatpush1.msra.mxu0 %v641
        %1380 = vmatprep.subr.mxu0 0.0
        %1381 = vmatpush1.msra.mxu0 %v642
        %1382 = vmatprep.subr.mxu0 0.0
        %1383 = vmatpush1.msra.mxu0 %v643
        %1384 = vmatprep.subr.mxu0 0.0
        %1385 = vmatpush1.msra.mxu0 %v644
        %1386 = vmatprep.subr.mxu0 0.0
        %1387 = vmatpush1.msra.mxu0 %v645
        %1388 = vmatprep.subr.mxu0 0.0
        %1389 = vmatpush1.msra.mxu0 %v646
        %1390 = vmatprep.subr.mxu0 0.0
        %1391 = vmatpush1.msra.mxu0 0.0
        %1392 = vmatprep.subr.mxu0 0.0
        %1393 = vmatpush1.msra.mxu0 0.0
        %1394 = vmatprep.subr.mxu0 0.0
        %1395 = vmatpush1.msra.mxu0 0.0
        %1396 = vmatprep.subr.mxu0 0.0
        %1397 = vmatpush1.msra.mxu0 0.0
        %1398 = vmatprep.subr.mxu0 0.0
        %1399 = vmatpush1.msra.mxu0 0.0
        %1400 = vmatprep.subr.mxu0 0.0
        %1401 = vmatpush1.msra.mxu0 0.0
        %1402 = vmatprep.subr.mxu0 0.0
        %1403 = vmatpush1.msra.mxu0 0.0
        %1404 = vmatprep.subr.mxu0 0.0
        %1405 = vmatpush1.msra.mxu0 0.0
        %1406 = vmatprep.subr.mxu0 0.0
        %1407 = vmatpush1.msra.mxu0 0.0
        %1408 = vmatprep.subr.mxu0 0.0
        %1409 = vmatpush1.msra.mxu0 0.0
        %1410 = vmatprep.subr.mxu0 0.0
        %1411 = vmatpush1.msra.mxu0 0.0
        %1412 = vmatprep.subr.mxu0 0.0
        %1413 = vmatpush1.msra.mxu0 0.0
        %1414 = vmatprep.subr.mxu0 0.0
        %1415 = vmatpush1.msra.mxu0 0.0
        %1416 = vmatprep.subr.mxu0 0.0
        %1417 = vmatpush1.msra.mxu0 0.0
        %1418 = vmatprep.subr.mxu0 0.0
        %1419 = vmatpush1.msra.mxu0 0.0
        %1420 = vmatprep.subr.mxu0 0.0
        %1421 = vmatpush1.msra.mxu0 0.0
        %1422 = vmatprep.mubr.f32.mxu0 0.0
        %1423 = vmatmul.mubr.f32.gmra.mrb[0].mxu0 %v1356
        %v1424 = vpop.f32.mrb[0].mxu0
        %v1425 = vadd.f32 0.0, %v1424
        %v1426 = vpop.f32.mrb[0].mxu0
        %1427 = vmatprep.mubr.f32.mxu0 0.0
        %1428 = vmatmul.mubr.f32.gmra.mrb[0].mxu0 %v1357
        %v1429 = vpop.f32.mrb[0].mxu0
        %v1430 = vadd.f32 0.0, %v1429
        %v1431 = vpop.f32.mrb[0].mxu0
        %1432 = vdwg.mxu0
        %v1433 = vld [vmem:[%s2 + $0x80] sm:$0xff]
        %v1434 = vld [vmem:[%s2 + $0x88] sm:$0xff]
        %v1435 = vld [vmem:[%s2 + $0x90] sm:$0xff]
        %v1436 = vld [vmem:[%s2 + $0x98] sm:$0xff]
        %v1438 = vsel %vm832, %v1425, 0
        %v1441 = vsel %vm832, %v1430, 0
        %1443 = vmatprep.subr.mxu0 0.0
        %1444 = vmatpush1.msra.mxu0 %v1433
        %1445 = vmatprep.subr.mxu0 0.0
        %1446 = vmatpush1.msra.mxu0 %v1434
        %1447 = vmatprep.subr.mxu0 0.0
        %1448 = vmatpush1.msra.mxu0 %v1435
        %1449 = vmatprep.subr.mxu0 0.0
        %1450 = vmatpush1.msra.mxu0 %v1436
        %1451 = vmatprep.subr.mxu0 0.0
        %1452 = vmatpush1.msra.mxu0 0.0
        %1453 = vmatprep.subr.mxu0 0.0
        %1454 = vmatpush1.msra.mxu0 0.0
        %1455 = vmatprep.subr.mxu0 0.0
        %1456 = vmatpush1.msra.mxu0 0.0
        %1457 = vmatprep.subr.mxu0 0.0
        %1458 = vmatpush1.msra.mxu0 0.0
        %1459 = vmatprep.subr.mxu0 0.0
        %1460 = vmatpush1.msra.mxu0 0.0
        %1461 = vmatprep.subr.mxu0 0.0
        %1462 = vmatpush1.msra.mxu0 0.0
        %1463 = vmatprep.subr.mxu0 0.0
        %1464 = vmatpush1.msra.mxu0 0.0
        %1465 = vmatprep.subr.mxu0 0.0
        %1466 = vmatpush1.msra.mxu0 0.0
        %1467 = vmatprep.subr.mxu0 0.0
        %1468 = vmatpush1.msra.mxu0 0.0
        %1469 = vmatprep.subr.mxu0 0.0
        %1470 = vmatpush1.msra.mxu0 0.0
        %1471 = vmatprep.subr.mxu0 0.0
        %1472 = vmatpush1.msra.mxu0 0.0
        %1473 = vmatprep.subr.mxu0 0.0
        %1474 = vmatpush1.msra.mxu0 0.0
        %1475 = vmatprep.subr.mxu0 0.0
        %1476 = vmatpush1.msra.mxu0 0.0
        %1477 = vmatprep.subr.mxu0 0.0
        %1478 = vmatpush1.msra.mxu0 0.0
        %1479 = vmatprep.subr.mxu0 0.0
        %1480 = vmatpush1.msra.mxu0 0.0
        %1481 = vmatprep.subr.mxu0 0.0
        %1482 = vmatpush1.msra.mxu0 0.0
        %1483 = vmatprep.subr.mxu0 0.0
        %1484 = vmatpush1.msra.mxu0 0.0
        %1485 = vmatprep.subr.mxu0 0.0
        %1486 = vmatpush1.msra.mxu0 0.0
        %1487 = vmatprep.subr.mxu0 0.0
        %1488 = vmatpush1.msra.mxu0 0.0
        %1489 = vmatprep.subr.mxu0 0.0
        %1490 = vmatpush1.msra.mxu0 0.0
        %1491 = vmatprep.subr.mxu0 0.0
        %1492 = vmatpush1.msra.mxu0 0.0
        %1493 = vmatprep.subr.mxu0 0.0
        %1494 = vmatpush1.msra.mxu0 0.0
        %1495 = vmatprep.subr.mxu0 0.0
        %1496 = vmatpush1.msra.mxu0 0.0
        %1497 = vmatprep.subr.mxu0 0.0
        %1498 = vmatpush1.msra.mxu0 0.0
        %1499 = vmatprep.subr.mxu0 0.0
        %1500 = vmatpush1.msra.mxu0 0.0
        %1501 = vmatprep.subr.mxu0 0.0
        %1502 = vmatpush1.msra.mxu0 0.0
        %1503 = vmatprep.subr.mxu0 0.0
        %1504 = vmatpush1.msra.mxu0 0.0
        %1505 = vmatprep.subr.mxu0 0.0
        %1506 = vmatpush1.msra.mxu0 0.0
        %1507 = vmatprep.mubr.f32.mxu0 0.0
        %1508 = vmatmul.mubr.f32.gmra.mrb[0].mxu0 %v1438
        %v1509 = vpop.f32.mrb[0].mxu0
        %v1510 = vadd.f32 0.0, %v1509
        %v1511 = vpop.f32.mrb[0].mxu0
        %1512 = vmatprep.mubr.f32.mxu0 0.0
        %1513 = vmatmul.mubr.f32.gmra.mrb[0].mxu0 %v1441
        %v1514 = vpop.f32.mrb[0].mxu0
        %v1515 = vadd.f32 0.0, %v1514
        %v1516 = vpop.f32.mrb[0].mxu0
        %1517 = vdwg.mxu0
        %v1518 = vadd.f32 %v1343, %v1510
        %v1519 = vadd.f32 %v1344, %v1515
        %s1520 = scalar_lea.vmem %s601, 80 [#allocation2]
        %v1521 = vld [vmem:[%s1520] sm:$0xff]
        %v1522 = vld [vmem:[%s1520 + $0x8] sm:$0xff]
        %1523 = vset.pattern.permute.xlu0 0
        %1524 = vperm.xlu0 %1523, %v1521
        %v1525 = vpop.permute.xlu0 %1524
        %1526 = vset.pattern.permute.xlu0 0
        %1527 = vperm.xlu0 %1526, %v1522
        %v1528 = vpop.permute.xlu0 %1527
        %vm1529 = vcmp.eq.s32.totalorder %v1525, %v648
        %vm1530 = vcmp.eq.s32.totalorder %v1528, %v648
        %v1531 = vsel %vm1529, 1.0, 0.0
        %v1532 = vsel %vm1530, 1.0, 0.0
        %1533 = vmatprep.subr.mxu0 0.0
        %1534 = vmatpush1.msra.mxu0 %v631
        %1535 = vmatprep.subr.mxu0 0.0
        %1536 = vmatpush1.msra.mxu0 %v632
        %1537 = vmatprep.subr.mxu0 0.0
        %1538 = vmatpush1.msra.mxu0 %v633
        %1539 = vmatprep.subr.mxu0 0.0
        %1540 = vmatpush1.msra.mxu0 %v634
        %1541 = vmatprep.subr.mxu0 0.0
        %1542 = vmatpush1.msra.mxu0 %v635
        %1543 = vmatprep.subr.mxu0 0.0
        %1544 = vmatpush1.msra.mxu0 %v636
        %1545 = vmatprep.subr.mxu0 0.0
        %1546 = vmatpush1.msra.mxu0 %v637
        %1547 = vmatprep.subr.mxu0 0.0
        %1548 = vmatpush1.msra.mxu0 %v638
        %1549 = vmatprep.subr.mxu0 0.0
        %1550 = vmatpush1.msra.mxu0 %v639
        %1551 = vmatprep.subr.mxu0 0.0
        %1552 = vmatpush1.msra.mxu0 %v640
        %1553 = vmatprep.subr.mxu0 0.0
        %1554 = vmatpush1.msra.mxu0 %v641
        %1555 = vmatprep.subr.mxu0 0.0
        %1556 = vmatpush1.msra.mxu0 %v642
        %1557 = vmatprep.subr.mxu0 0.0
        %1558 = vmatpush1.msra.mxu0 %v643
        %1559 = vmatprep.subr.mxu0 0.0
        %1560 = vmatpush1.msra.mxu0 %v644
        %1561 = vmatprep.subr.mxu0 0.0
        %1562 = vmatpush1.msra.mxu0 %v645
        %1563 = vmatprep.subr.mxu0 0.0
        %1564 = vmatpush1.msra.mxu0 %v646
        %1565 = vmatprep.subr.mxu0 0.0
        %1566 = vmatpush1.msra.mxu0 0.0
        %1567 = vmatprep.subr.mxu0 0.0
        %1568 = vmatpush1.msra.mxu0 0.0
        %1569 = vmatprep.subr.mxu0 0.0
        %1570 = vmatpush1.msra.mxu0 0.0
        %1571 = vmatprep.subr.mxu0 0.0
        %1572 = vmatpush1.msra.mxu0 0.0
        %1573 = vmatprep.subr.mxu0 0.0
        %1574 = vmatpush1.msra.mxu0 0.0
        %1575 = vmatprep.subr.mxu0 0.0
        %1576 = vmatpush1.msra.mxu0 0.0
        %1577 = vmatprep.subr.mxu0 0.0
        %1578 = vmatpush1.msra.mxu0 0.0
        %1579 = vmatprep.subr.mxu0 0.0
        %1580 = vmatpush1.msra.mxu0 0.0
        %1581 = vmatprep.subr.mxu0 0.0
        %1582 = vmatpush1.msra.mxu0 0.0
        %1583 = vmatprep.subr.mxu0 0.0
        %1584 = vmatpush1.msra.mxu0 0.0
        %1585 = vmatprep.subr.mxu0 0.0
        %1586 = vmatpush1.msra.mxu0 0.0
        %1587 = vmatprep.subr.mxu0 0.0
        %1588 = vmatpush1.msra.mxu0 0.0
        %1589 = vmatprep.subr.mxu0 0.0
        %1590 = vmatpush1.msra.mxu0 0.0
        %1591 = vmatprep.subr.mxu0 0.0
        %1592 = vmatpush1.msra.mxu0 0.0
        %1593 = vmatprep.subr.mxu0 0.0
        %1594 = vmatpush1.msra.mxu0 0.0
        %1595 = vmatprep.subr.mxu0 0.0
        %1596 = vmatpush1.msra.mxu0 0.0
        %1597 = vmatprep.mubr.f32.mxu0 0.0
        %1598 = vmatmul.mubr.f32.gmra.mrb[0].mxu0 %v1531
        %v1599 = vpop.f32.mrb[0].mxu0
        %v1600 = vadd.f32 0.0, %v1599
        %v1601 = vpop.f32.mrb[0].mxu0
        %1602 = vmatprep.mubr.f32.mxu0 0.0
        %1603 = vmatmul.mubr.f32.gmra.mrb[0].mxu0 %v1532
        %v1604 = vpop.f32.mrb[0].mxu0
        %v1605 = vadd.f32 0.0, %v1604
        %v1606 = vpop.f32.mrb[0].mxu0
        %1607 = vdwg.mxu0
        %v1608 = vld [vmem:[%s2 + $0xa0] sm:$0xff]
        %v1609 = vld [vmem:[%s2 + $0xa8] sm:$0xff]
        %v1610 = vld [vmem:[%s2 + $0xb0] sm:$0xff]
        %v1611 = vld [vmem:[%s2 + $0xb8] sm:$0xff]
        %v1613 = vsel %vm832, %v1600, 0
        %v1616 = vsel %vm832, %v1605, 0
        %1618 = vmatprep.subr.mxu0 0.0
        %1619 = vmatpush1.msra.mxu0 %v1608
        %1620 = vmatprep.subr.mxu0 0.0
        %1621 = vmatpush1.msra.mxu0 %v1609
        %1622 = vmatprep.subr.mxu0 0.0
        %1623 = vmatpush1.msra.mxu0 %v1610
        %1624 = vmatprep.subr.mxu0 0.0
        %1625 = vmatpush1.msra.mxu0 %v1611
        %1626 = vmatprep.subr.mxu0 0.0
        %1627 = vmatpush1.msra.mxu0 0.0
        %1628 = vmatprep.subr.mxu0 0.0
        %1629 = vmatpush1.msra.mxu0 0.0
        %1630 = vmatprep.subr.mxu0 0.0
        %1631 = vmatpush1.msra.mxu0 0.0
        %1632 = vmatprep.subr.mxu0 0.0
        %1633 = vmatpush1.msra.mxu0 0.0
        %1634 = vmatprep.subr.mxu0 0.0
        %1635 = vmatpush1.msra.mxu0 0.0
        %1636 = vmatprep.subr.mxu0 0.0
        %1637 = vmatpush1.msra.mxu0 0.0
        %1638 = vmatprep.subr.mxu0 0.0
        %1639 = vmatpush1.msra.mxu0 0.0
        %1640 = vmatprep.subr.mxu0 0.0
        %1641 = vmatpush1.msra.mxu0 0.0
        %1642 = vmatprep.subr.mxu0 0.0
        %1643 = vmatpush1.msra.mxu0 0.0
        %1644 = vmatprep.subr.mxu0 0.0
        %1645 = vmatpush1.msra.mxu0 0.0
        %1646 = vmatprep.subr.mxu0 0.0
        %1647 = vmatpush1.msra.mxu0 0.0
        %1648 = vmatprep.subr.mxu0 0.0
        %1649 = vmatpush1.msra.mxu0 0.0
        %1650 = vmatprep.subr.mxu0 0.0
        %1651 = vmatpush1.msra.mxu0 0.0
        %1652 = vmatprep.subr.mxu0 0.0
        %1653 = vmatpush1.msra.mxu0 0.0
        %1654 = vmatprep.subr.mxu0 0.0
        %1655 = vmatpush1.msra.mxu0 0.0
        %1656 = vmatprep.subr.mxu0 0.0
        %1657 = vmatpush1.msra.mxu0 0.0
        %1658 = vmatprep.subr.mxu0 0.0
        %1659 = vmatpush1.msra.mxu0 0.0
        %1660 = vmatprep.subr.mxu0 0.0
        %1661 = vmatpush1.msra.mxu0 0.0
        %1662 = vmatprep.subr.mxu0 0.0
        %1663 = vmatpush1.msra.mxu0 0.0
        %1664 = vmatprep.subr.mxu0 0.0
        %1665 = vmatpush1.msra.mxu0 0.0
        %1666 = vmatprep.subr.mxu0 0.0
        %1667 = vmatpush1.msra.mxu0 0.0
        %1668 = vmatprep.subr.mxu0 0.0
        %1669 = vmatpush1.msra.mxu0 0.0
        %1670 = vmatprep.subr.mxu0 0.0
        %1671 = vmatpush1.msra.mxu0 0.0
        %1672 = vmatprep.subr.mxu0 0.0
        %1673 = vmatpush1.msra.mxu0 0.0
        %1674 = vmatprep.subr.mxu0 0.0
        %1675 = vmatpush1.msra.mxu0 0.0
        %1676 = vmatprep.subr.mxu0 0.0
        %1677 = vmatpush1.msra.mxu0 0.0
        %1678 = vmatprep.subr.mxu0 0.0
        %1679 = vmatpush1.msra.mxu0 0.0
        %1680 = vmatprep.subr.mxu0 0.0
        %1681 = vmatpush1.msra.mxu0 0.0
        %1682 = vmatprep.mubr.f32.mxu0 0.0
        %1683 = vmatmul.mubr.f32.gmra.mrb[0].mxu0 %v1613
        %v1684 = vpop.f32.mrb[0].mxu0
        %v1685 = vadd.f32 0.0, %v1684
        %v1686 = vpop.f32.mrb[0].mxu0
        %1687 = vmatprep.mubr.f32.mxu0 0.0
        %1688 = vmatmul.mubr.f32.gmra.mrb[0].mxu0 %v1616
        %v1689 = vpop.f32.mrb[0].mxu0
        %v1690 = vadd.f32 0.0, %v1689
        %v1691 = vpop.f32.mrb[0].mxu0
        %1692 = vdwg.mxu0
        %v1693 = vadd.f32 %v1518, %v1685
        %v1694 = vadd.f32 %v1519, %v1690
        %s1695 = scalar_lea.vmem %s601, 96 [#allocation2]
        %v1696 = vld [vmem:[%s1695] sm:$0xff]
        %v1697 = vld [vmem:[%s1695 + $0x8] sm:$0xff]
        %1698 = vset.pattern.permute.xlu0 0
        %1699 = vperm.xlu0 %1698, %v1696
        %v1700 = vpop.permute.xlu0 %1699
        %1701 = vset.pattern.permute.xlu0 0
        %1702 = vperm.xlu0 %1701, %v1697
        %v1703 = vpop.permute.xlu0 %1702
        %vm1704 = vcmp.eq.s32.totalorder %v1700, %v648
        %vm1705 = vcmp.eq.s32.totalorder %v1703, %v648
        %v1706 = vsel %vm1704, 1.0, 0.0
        %v1707 = vsel %vm1705, 1.0, 0.0
        %1708 = vmatprep.subr.mxu0 0.0
        %1709 = vmatpush1.msra.mxu0 %v631
        %1710 = vmatprep.subr.mxu0 0.0
        %1711 = vmatpush1.msra.mxu0 %v632
        %1712 = vmatprep.subr.mxu0 0.0
        %1713 = vmatpush1.msra.mxu0 %v633
        %1714 = vmatprep.subr.mxu0 0.0
        %1715 = vmatpush1.msra.mxu0 %v634
        %1716 = vmatprep.subr.mxu0 0.0
        %1717 = vmatpush1.msra.mxu0 %v635
        %1718 = vmatprep.subr.mxu0 0.0
        %1719 = vmatpush1.msra.mxu0 %v636
        %1720 = vmatprep.subr.mxu0 0.0
        %1721 = vmatpush1.msra.mxu0 %v637
        %1722 = vmatprep.subr.mxu0 0.0
        %1723 = vmatpush1.msra.mxu0 %v638
        %1724 = vmatprep.subr.mxu0 0.0
        %1725 = vmatpush1.msra.mxu0 %v639
        %1726 = vmatprep.subr.mxu0 0.0
        %1727 = vmatpush1.msra.mxu0 %v640
        %1728 = vmatprep.subr.mxu0 0.0
        %1729 = vmatpush1.msra.mxu0 %v641
        %1730 = vmatprep.subr.mxu0 0.0
        %1731 = vmatpush1.msra.mxu0 %v642
        %1732 = vmatprep.subr.mxu0 0.0
        %1733 = vmatpush1.msra.mxu0 %v643
        %1734 = vmatprep.subr.mxu0 0.0
        %1735 = vmatpush1.msra.mxu0 %v644
        %1736 = vmatprep.subr.mxu0 0.0
        %1737 = vmatpush1.msra.mxu0 %v645
        %1738 = vmatprep.subr.mxu0 0.0
        %1739 = vmatpush1.msra.mxu0 %v646
        %1740 = vmatprep.subr.mxu0 0.0
        %1741 = vmatpush1.msra.mxu0 0.0
        %1742 = vmatprep.subr.mxu0 0.0
        %1743 = vmatpush1.msra.mxu0 0.0
        %1744 = vmatprep.subr.mxu0 0.0
        %1745 = vmatpush1.msra.mxu0 0.0
        %1746 = vmatprep.subr.mxu0 0.0
        %1747 = vmatpush1.msra.mxu0 0.0
        %1748 = vmatprep.subr.mxu0 0.0
        %1749 = vmatpush1.msra.mxu0 0.0
        %1750 = vmatprep.subr.mxu0 0.0
        %1751 = vmatpush1.msra.mxu0 0.0
        %1752 = vmatprep.subr.mxu0 0.0
        %1753 = vmatpush1.msra.mxu0 0.0
        %1754 = vmatprep.subr.mxu0 0.0
        %1755 = vmatpush1.msra.mxu0 0.0
        %1756 = vmatprep.subr.mxu0 0.0
        %1757 = vmatpush1.msra.mxu0 0.0
        %1758 = vmatprep.subr.mxu0 0.0
        %1759 = vmatpush1.msra.mxu0 0.0
        %1760 = vmatprep.subr.mxu0 0.0
        %1761 = vmatpush1.msra.mxu0 0.0
        %1762 = vmatprep.subr.mxu0 0.0
        %1763 = vmatpush1.msra.mxu0 0.0
        %1764 = vmatprep.subr.mxu0 0.0
        %1765 = vmatpush1.msra.mxu0 0.0
        %1766 = vmatprep.subr.mxu0 0.0
        %1767 = vmatpush1.msra.mxu0 0.0
        %1768 = vmatprep.subr.mxu0 0.0
        %1769 = vmatpush1.msra.mxu0 0.0
        %1770 = vmatprep.subr.mxu0 0.0
        %1771 = vmatpush1.msra.mxu0 0.0
        %1772 = vmatprep.mubr.f32.mxu0 0.0
        %1773 = vmatmul.mubr.f32.gmra.mrb[0].mxu0 %v1706
        %v1774 = vpop.f32.mrb[0].mxu0
        %v1775 = vadd.f32 0.0, %v1774
        %v1776 = vpop.f32.mrb[0].mxu0
        %1777 = vmatprep.mubr.f32.mxu0 0.0
        %1778 = vmatmul.mubr.f32.gmra.mrb[0].mxu0 %v1707
        %v1779 = vpop.f32.mrb[0].mxu0
        %v1780 = vadd.f32 0.0, %v1779
        %v1781 = vpop.f32.mrb[0].mxu0
        %1782 = vdwg.mxu0
        %v1783 = vld [vmem:[%s2 + $0xc0] sm:$0xff]
        %v1784 = vld [vmem:[%s2 + $0xc8] sm:$0xff]
        %v1785 = vld [vmem:[%s2 + $0xd0] sm:$0xff]
        %v1786 = vld [vmem:[%s2 + $0xd8] sm:$0xff]
        %v1788 = vsel %vm832, %v1775, 0
        %v1791 = vsel %vm832, %v1780, 0
        %1793 = vmatprep.subr.mxu0 0.0
        %1794 = vmatpush1.msra.mxu0 %v1783
        %1795 = vmatprep.subr.mxu0 0.0
        %1796 = vmatpush1.msra.mxu0 %v1784
        %1797 = vmatprep.subr.mxu0 0.0
        %1798 = vmatpush1.msra.mxu0 %v1785
        %1799 = vmatprep.subr.mxu0 0.0
        %1800 = vmatpush1.msra.mxu0 %v1786
        %1801 = vmatprep.subr.mxu0 0.0
        %1802 = vmatpush1.msra.mxu0 0.0
        %1803 = vmatprep.subr.mxu0 0.0
        %1804 = vmatpush1.msra.mxu0 0.0
        %1805 = vmatprep.subr.mxu0 0.0
        %1806 = vmatpush1.msra.mxu0 0.0
        %1807 = vmatprep.subr.mxu0 0.0
        %1808 = vmatpush1.msra.mxu0 0.0
        %1809 = vmatprep.subr.mxu0 0.0
        %1810 = vmatpush1.msra.mxu0 0.0
        %1811 = vmatprep.subr.mxu0 0.0
        %1812 = vmatpush1.msra.mxu0 0.0
        %1813 = vmatprep.subr.mxu0 0.0
        %1814 = vmatpush1.msra.mxu0 0.0
        %1815 = vmatprep.subr.mxu0 0.0
        %1816 = vmatpush1.msra.mxu0 0.0
        %1817 = vmatprep.subr.mxu0 0.0
        %1818 = vmatpush1.msra.mxu0 0.0
        %1819 = vmatprep.subr.mxu0 0.0
        %1820 = vmatpush1.msra.mxu0 0.0
        %1821 = vmatprep.subr.mxu0 0.0
        %1822 = vmatpush1.msra.mxu0 0.0
        %1823 = vmatprep.subr.mxu0 0.0
        %1824 = vmatpush1.msra.mxu0 0.0
        %1825 = vmatprep.subr.mxu0 0.0
        %1826 = vmatpush1.msra.mxu0 0.0
        %1827 = vmatprep.subr.mxu0 0.0
        %1828 = vmatpush1.msra.mxu0 0.0
        %1829 = vmatprep.subr.mxu0 0.0
        %1830 = vmatpush1.msra.mxu0 0.0
        %1831 = vmatprep.subr.mxu0 0.0
        %1832 = vmatpush1.msra.mxu0 0.0
        %1833 = vmatprep.subr.mxu0 0.0
        %1834 = vmatpush1.msra.mxu0 0.0
        %1835 = vmatprep.subr.mxu0 0.0
        %1836 = vmatpush1.msra.mxu0 0.0
        %1837 = vmatprep.subr.mxu0 0.0
        %1838 = vmatpush1.msra.mxu0 0.0
        %1839 = vmatprep.subr.mxu0 0.0
        %1840 = vmatpush1.msra.mxu0 0.0
        %1841 = vmatprep.subr.mxu0 0.0
        %1842 = vmatpush1.msra.mxu0 0.0
        %1843 = vmatprep.subr.mxu0 0.0
        %1844 = vmatpush1.msra.mxu0 0.0
        %1845 = vmatprep.subr.mxu0 0.0
        %1846 = vmatpush1.msra.mxu0 0.0
        %1847 = vmatprep.subr.mxu0 0.0
        %1848 = vmatpush1.msra.mxu0 0.0
        %1849 = vmatprep.subr.mxu0 0.0
        %1850 = vmatpush1.msra.mxu0 0.0
        %1851 = vmatprep.subr.mxu0 0.0
        %1852 = vmatpush1.msra.mxu0 0.0
        %1853 = vmatprep.subr.mxu0 0.0
        %1854 = vmatpush1.msra.mxu0 0.0
        %1855 = vmatprep.subr.mxu0 0.0
        %1856 = vmatpush1.msra.mxu0 0.0
        %1857 = vmatprep.mubr.f32.mxu0 0.0
        %1858 = vmatmul.mubr.f32.gmra.mrb[0].mxu0 %v1788
        %v1859 = vpop.f32.mrb[0].mxu0
        %v1860 = vadd.f32 0.0, %v1859
        %v1861 = vpop.f32.mrb[0].mxu0
        %1862 = vmatprep.mubr.f32.mxu0 0.0
        %1863 = vmatmul.mubr.f32.gmra.mrb[0].mxu0 %v1791
        %v1864 = vpop.f32.mrb[0].mxu0
        %v1865 = vadd.f32 0.0, %v1864
        %v1866 = vpop.f32.mrb[0].mxu0
        %1867 = vdwg.mxu0
        %v1868 = vadd.f32 %v1693, %v1860
        %v1869 = vadd.f32 %v1694, %v1865
        %s1870 = scalar_lea.vmem %s601, 112 [#allocation2]
        %v1871 = vld [vmem:[%s1870] sm:$0xff]
        %v1872 = vld [vmem:[%s1870 + $0x8] sm:$0xff]
        %1873 = vset.pattern.permute.xlu0 0
        %1874 = vperm.xlu0 %1873, %v1871
        %v1875 = vpop.permute.xlu0 %1874
        %1876 = vset.pattern.permute.xlu0 0
        %1877 = vperm.xlu0 %1876, %v1872
        %v1878 = vpop.permute.xlu0 %1877
        %vm1879 = vcmp.eq.s32.totalorder %v1875, %v648
        %vm1880 = vcmp.eq.s32.totalorder %v1878, %v648
        %v1881 = vsel %vm1879, 1.0, 0.0
        %v1882 = vsel %vm1880, 1.0, 0.0
        %1883 = vmatprep.subr.mxu0 0.0
        %1884 = vmatpush1.msra.mxu0 %v631
        %1885 = vmatprep.subr.mxu0 0.0
        %1886 = vmatpush1.msra.mxu0 %v632
        %1887 = vmatprep.subr.mxu0 0.0
        %1888 = vmatpush1.msra.mxu0 %v633
        %1889 = vmatprep.subr.mxu0 0.0
        %1890 = vmatpush1.msra.mxu0 %v634
        %1891 = vmatprep.subr.mxu0 0.0
        %1892 = vmatpush1.msra.mxu0 %v635
        %1893 = vmatprep.subr.mxu0 0.0
        %1894 = vmatpush1.msra.mxu0 %v636
        %1895 = vmatprep.subr.mxu0 0.0
        %1896 = vmatpush1.msra.mxu0 %v637
        %1897 = vmatprep.subr.mxu0 0.0
        %1898 = vmatpush1.msra.mxu0 %v638
        %1899 = vmatprep.subr.mxu0 0.0
        %1900 = vmatpush1.msra.mxu0 %v639
        %1901 = vmatprep.subr.mxu0 0.0
        %1902 = vmatpush1.msra.mxu0 %v640
        %1903 = vmatprep.subr.mxu0 0.0
        %1904 = vmatpush1.msra.mxu0 %v641
        %1905 = vmatprep.subr.mxu0 0.0
        %1906 = vmatpush1.msra.mxu0 %v642
        %1907 = vmatprep.subr.mxu0 0.0
        %1908 = vmatpush1.msra.mxu0 %v643
        %1909 = vmatprep.subr.mxu0 0.0
        %1910 = vmatpush1.msra.mxu0 %v644
        %1911 = vmatprep.subr.mxu0 0.0
        %1912 = vmatpush1.msra.mxu0 %v645
        %1913 = vmatprep.subr.mxu0 0.0
        %1914 = vmatpush1.msra.mxu0 %v646
        %1915 = vmatprep.subr.mxu0 0.0
        %1916 = vmatpush1.msra.mxu0 0.0
        %1917 = vmatprep.subr.mxu0 0.0
        %1918 = vmatpush1.msra.mxu0 0.0
        %1919 = vmatprep.subr.mxu0 0.0
        %1920 = vmatpush1.msra.mxu0 0.0
        %1921 = vmatprep.subr.mxu0 0.0
        %1922 = vmatpush1.msra.mxu0 0.0
        %1923 = vmatprep.subr.mxu0 0.0
        %1924 = vmatpush1.msra.mxu0 0.0
        %1925 = vmatprep.subr.mxu0 0.0
        %1926 = vmatpush1.msra.mxu0 0.0
        %1927 = vmatprep.subr.mxu0 0.0
        %1928 = vmatpush1.msra.mxu0 0.0
        %1929 = vmatprep.subr.mxu0 0.0
        %1930 = vmatpush1.msra.mxu0 0.0
        %1931 = vmatprep.subr.mxu0 0.0
        %1932 = vmatpush1.msra.mxu0 0.0
        %1933 = vmatprep.subr.mxu0 0.0
        %1934 = vmatpush1.msra.mxu0 0.0
        %1935 = vmatprep.subr.mxu0 0.0
        %1936 = vmatpush1.msra.mxu0 0.0
        %1937 = vmatprep.subr.mxu0 0.0
        %1938 = vmatpush1.msra.mxu0 0.0
        %1939 = vmatprep.subr.mxu0 0.0
        %1940 = vmatpush1.msra.mxu0 0.0
        %1941 = vmatprep.subr.mxu0 0.0
        %1942 = vmatpush1.msra.mxu0 0.0
        %1943 = vmatprep.subr.mxu0 0.0
        %1944 = vmatpush1.msra.mxu0 0.0
        %1945 = vmatprep.subr.mxu0 0.0
        %1946 = vmatpush1.msra.mxu0 0.0
        %1947 = vmatprep.mubr.f32.mxu0 0.0
        %1948 = vmatmul.mubr.f32.gmra.mrb[0].mxu0 %v1881
        %v1949 = vpop.f32.mrb[0].mxu0
        %v1950 = vadd.f32 0.0, %v1949
        %v1951 = vpop.f32.mrb[0].mxu0
        %1952 = vmatprep.mubr.f32.mxu0 0.0
        %1953 = vmatmul.mubr.f32.gmra.mrb[0].mxu0 %v1882
        %v1954 = vpop.f32.mrb[0].mxu0
        %v1955 = vadd.f32 0.0, %v1954
        %v1956 = vpop.f32.mrb[0].mxu0
        %1957 = vdwg.mxu0
        %v1958 = vld [vmem:[%s2 + $0xe0] sm:$0xff]
        %v1959 = vld [vmem:[%s2 + $0xe8] sm:$0xff]
        %v1960 = vld [vmem:[%s2 + $0xf0] sm:$0xff]
        %v1961 = vld [vmem:[%s2 + $0xf8] sm:$0xff]
        %v1963 = vsel %vm832, %v1950, 0
        %v1966 = vsel %vm832, %v1955, 0
        %1968 = vmatprep.subr.mxu0 0.0
        %1969 = vmatpush1.msra.mxu0 %v1958
        %1970 = vmatprep.subr.mxu0 0.0
        %1971 = vmatpush1.msra.mxu0 %v1959
        %1972 = vmatprep.subr.mxu0 0.0
        %1973 = vmatpush1.msra.mxu0 %v1960
        %1974 = vmatprep.subr.mxu0 0.0
        %1975 = vmatpush1.msra.mxu0 %v1961
        %1976 = vmatprep.subr.mxu0 0.0
        %1977 = vmatpush1.msra.mxu0 0.0
        %1978 = vmatprep.subr.mxu0 0.0
        %1979 = vmatpush1.msra.mxu0 0.0
        %1980 = vmatprep.subr.mxu0 0.0
        %1981 = vmatpush1.msra.mxu0 0.0
        %1982 = vmatprep.subr.mxu0 0.0
        %1983 = vmatpush1.msra.mxu0 0.0
        %1984 = vmatprep.subr.mxu0 0.0
        %1985 = vmatpush1.msra.mxu0 0.0
        %1986 = vmatprep.subr.mxu0 0.0
        %1987 = vmatpush1.msra.mxu0 0.0
        %1988 = vmatprep.subr.mxu0 0.0
        %1989 = vmatpush1.msra.mxu0 0.0
        %1990 = vmatprep.subr.mxu0 0.0
        %1991 = vmatpush1.msra.mxu0 0.0
        %1992 = vmatprep.subr.mxu0 0.0
        %1993 = vmatpush1.msra.mxu0 0.0
        %1994 = vmatprep.subr.mxu0 0.0
        %1995 = vmatpush1.msra.mxu0 0.0
        %1996 = vmatprep.subr.mxu0 0.0
        %1997 = vmatpush1.msra.mxu0 0.0
        %1998 = vmatprep.subr.mxu0 0.0
        %1999 = vmatpush1.msra.mxu0 0.0
        %2000 = vmatprep.subr.mxu0 0.0
        %2001 = vmatpush1.msra.mxu0 0.0
        %2002 = vmatprep.subr.mxu0 0.0
        %2003 = vmatpush1.msra.mxu0 0.0
        %2004 = vmatprep.subr.mxu0 0.0
        %2005 = vmatpush1.msra.mxu0 0.0
        %2006 = vmatprep.subr.mxu0 0.0
        %2007 = vmatpush1.msra.mxu0 0.0
        %2008 = vmatprep.subr.mxu0 0.0
        %2009 = vmatpush1.msra.mxu0 0.0
        %2010 = vmatprep.subr.mxu0 0.0
        %2011 = vmatpush1.msra.mxu0 0.0
        %2012 = vmatprep.subr.mxu0 0.0
        %2013 = vmatpush1.msra.mxu0 0.0
        %2014 = vmatprep.subr.mxu0 0.0
        %2015 = vmatpush1.msra.mxu0 0.0
        %2016 = vmatprep.subr.mxu0 0.0
        %2017 = vmatpush1.msra.mxu0 0.0
        %2018 = vmatprep.subr.mxu0 0.0
        %2019 = vmatpush1.msra.mxu0 0.0
        %2020 = vmatprep.subr.mxu0 0.0
        %2021 = vmatpush1.msra.mxu0 0.0
        %2022 = vmatprep.subr.mxu0 0.0
        %2023 = vmatpush1.msra.mxu0 0.0
        %2024 = vmatprep.subr.mxu0 0.0
        %2025 = vmatpush1.msra.mxu0 0.0
        %2026 = vmatprep.subr.mxu0 0.0
        %2027 = vmatpush1.msra.mxu0 0.0
        %2028 = vmatprep.subr.mxu0 0.0
        %2029 = vmatpush1.msra.mxu0 0.0
        %2030 = vmatprep.subr.mxu0 0.0
        %2031 = vmatpush1.msra.mxu0 0.0
        %2032 = vmatprep.mubr.f32.mxu0 0.0
        %2033 = vmatmul.mubr.f32.gmra.mrb[0].mxu0 %v1963
        %v2034 = vpop.f32.mrb[0].mxu0
        %v2035 = vadd.f32 0.0, %v2034
        %v2036 = vpop.f32.mrb[0].mxu0
        %2037 = vmatprep.mubr.f32.mxu0 0.0
        %2038 = vmatmul.mubr.f32.gmra.mrb[0].mxu0 %v1966
        %v2039 = vpop.f32.mrb[0].mxu0
        %v2040 = vadd.f32 0.0, %v2039
        %v2041 = vpop.f32.mrb[0].mxu0
        %2042 = vdwg.mxu0
        %v2043 = vadd.f32 %v1868, %v2035
        %v2044 = vadd.f32 %v1869, %v2040
        %s2045 = scalar_lea.vmem %s601, 128 [#allocation2]
        %v2046 = vld [vmem:[%s2045] sm:$0xff]
        %v2047 = vld [vmem:[%s2045 + $0x8] sm:$0xff]
        %2048 = vset.pattern.permute.xlu0 0
        %2049 = vperm.xlu0 %2048, %v2046
        %v2050 = vpop.permute.xlu0 %2049
        %2051 = vset.pattern.permute.xlu0 0
        %2052 = vperm.xlu0 %2051, %v2047
        %v2053 = vpop.permute.xlu0 %2052
        %vm2054 = vcmp.eq.s32.totalorder %v2050, %v648
        %vm2055 = vcmp.eq.s32.totalorder %v2053, %v648
        %v2056 = vsel %vm2054, 1.0, 0.0
        %v2057 = vsel %vm2055, 1.0, 0.0
        %2058 = vmatprep.subr.mxu0 0.0
        %2059 = vmatpush1.msra.mxu0 %v631
        %2060 = vmatprep.subr.mxu0 0.0
        %2061 = vmatpush1.msra.mxu0 %v632
        %2062 = vmatprep.subr.mxu0 0.0
        %2063 = vmatpush1.msra.mxu0 %v633
        %2064 = vmatprep.subr.mxu0 0.0
        %2065 = vmatpush1.msra.mxu0 %v634
        %2066 = vmatprep.subr.mxu0 0.0
        %2067 = vmatpush1.msra.mxu0 %v635
        %2068 = vmatprep.subr.mxu0 0.0
        %2069 = vmatpush1.msra.mxu0 %v636
        %2070 = vmatprep.subr.mxu0 0.0
        %2071 = vmatpush1.msra.mxu0 %v637
        %2072 = vmatprep.subr.mxu0 0.0
        %2073 = vmatpush1.msra.mxu0 %v638
        %2074 = vmatprep.subr.mxu0 0.0
        %2075 = vmatpush1.msra.mxu0 %v639
        %2076 = vmatprep.subr.mxu0 0.0
        %2077 = vmatpush1.msra.mxu0 %v640
        %2078 = vmatprep.subr.mxu0 0.0
        %2079 = vmatpush1.msra.mxu0 %v641
        %2080 = vmatprep.subr.mxu0 0.0
        %2081 = vmatpush1.msra.mxu0 %v642
        %2082 = vmatprep.subr.mxu0 0.0
        %2083 = vmatpush1.msra.mxu0 %v643
        %2084 = vmatprep.subr.mxu0 0.0
        %2085 = vmatpush1.msra.mxu0 %v644
        %2086 = vmatprep.subr.mxu0 0.0
        %2087 = vmatpush1.msra.mxu0 %v645
        %2088 = vmatprep.subr.mxu0 0.0
        %2089 = vmatpush1.msra.mxu0 %v646
        %2090 = vmatprep.subr.mxu0 0.0
        %2091 = vmatpush1.msra.mxu0 0.0
        %2092 = vmatprep.subr.mxu0 0.0
        %2093 = vmatpush1.msra.mxu0 0.0
        %2094 = vmatprep.subr.mxu0 0.0
        %2095 = vmatpush1.msra.mxu0 0.0
        %2096 = vmatprep.subr.mxu0 0.0
        %2097 = vmatpush1.msra.mxu0 0.0
        %2098 = vmatprep.subr.mxu0 0.0
        %2099 = vmatpush1.msra.mxu0 0.0
        %2100 = vmatprep.subr.mxu0 0.0
        %2101 = vmatpush1.msra.mxu0 0.0
        %2102 = vmatprep.subr.mxu0 0.0
        %2103 = vmatpush1.msra.mxu0 0.0
        %2104 = vmatprep.subr.mxu0 0.0
        %2105 = vmatpush1.msra.mxu0 0.0
        %2106 = vmatprep.subr.mxu0 0.0
        %2107 = vmatpush1.msra.mxu0 0.0
        %2108 = vmatprep.subr.mxu0 0.0
        %2109 = vmatpush1.msra.mxu0 0.0
        %2110 = vmatprep.subr.mxu0 0.0
        %2111 = vmatpush1.msra.mxu0 0.0
        %2112 = vmatprep.subr.mxu0 0.0
        %2113 = vmatpush1.msra.mxu0 0.0
        %2114 = vmatprep.subr.mxu0 0.0
        %2115 = vmatpush1.msra.mxu0 0.0
        %2116 = vmatprep.subr.mxu0 0.0
        %2117 = vmatpush1.msra.mxu0 0.0
        %2118 = vmatprep.subr.mxu0 0.0
        %2119 = vmatpush1.msra.mxu0 0.0
        %2120 = vmatprep.subr.mxu0 0.0
        %2121 = vmatpush1.msra.mxu0 0.0
        %2122 = vmatprep.mubr.f32.mxu0 0.0
        %2123 = vmatmul.mubr.f32.gmra.mrb[0].mxu0 %v2056
        %v2124 = vpop.f32.mrb[0].mxu0
        %v2125 = vadd.f32 0.0, %v2124
        %v2126 = vpop.f32.mrb[0].mxu0
        %2127 = vmatprep.mubr.f32.mxu0 0.0
        %2128 = vmatmul.mubr.f32.gmra.mrb[0].mxu0 %v2057
        %v2129 = vpop.f32.mrb[0].mxu0
        %v2130 = vadd.f32 0.0, %v2129
        %v2131 = vpop.f32.mrb[0].mxu0
        %2132 = vdwg.mxu0
        %v2133 = vld [vmem:[%s2 + $0x100] sm:$0xff]
        %v2134 = vld [vmem:[%s2 + $0x108] sm:$0xff]
        %v2135 = vld [vmem:[%s2 + $0x110] sm:$0xff]
        %v2136 = vld [vmem:[%s2 + $0x118] sm:$0xff]
        %v2138 = vsel %vm832, %v2125, 0
        %v2141 = vsel %vm832, %v2130, 0
        %2143 = vmatprep.subr.mxu0 0.0
        %2144 = vmatpush1.msra.mxu0 %v2133
        %2145 = vmatprep.subr.mxu0 0.0
        %2146 = vmatpush1.msra.mxu0 %v2134
        %2147 = vmatprep.subr.mxu0 0.0
        %2148 = vmatpush1.msra.mxu0 %v2135
        %2149 = vmatprep.subr.mxu0 0.0
        %2150 = vmatpush1.msra.mxu0 %v2136
        %2151 = vmatprep.subr.mxu0 0.0
        %2152 = vmatpush1.msra.mxu0 0.0
        %2153 = vmatprep.subr.mxu0 0.0
        %2154 = vmatpush1.msra.mxu0 0.0
        %2155 = vmatprep.subr.mxu0 0.0
        %2156 = vmatpush1.msra.mxu0 0.0
        %2157 = vmatprep.subr.mxu0 0.0
        %2158 = vmatpush1.msra.mxu0 0.0
        %2159 = vmatprep.subr.mxu0 0.0
        %2160 = vmatpush1.msra.mxu0 0.0
        %2161 = vmatprep.subr.mxu0 0.0
        %2162 = vmatpush1.msra.mxu0 0.0
        %2163 = vmatprep.subr.mxu0 0.0
        %2164 = vmatpush1.msra.mxu0 0.0
        %2165 = vmatprep.subr.mxu0 0.0
        %2166 = vmatpush1.msra.mxu0 0.0
        %2167 = vmatprep.subr.mxu0 0.0
        %2168 = vmatpush1.msra.mxu0 0.0
        %2169 = vmatprep.subr.mxu0 0.0
        %2170 = vmatpush1.msra.mxu0 0.0
        %2171 = vmatprep.subr.mxu0 0.0
        %2172 = vmatpush1.msra.mxu0 0.0
        %2173 = vmatprep.subr.mxu0 0.0
        %2174 = vmatpush1.msra.mxu0 0.0
        %2175 = vmatprep.subr.mxu0 0.0
        %2176 = vmatpush1.msra.mxu0 0.0
        %2177 = vmatprep.subr.mxu0 0.0
        %2178 = vmatpush1.msra.mxu0 0.0
        %2179 = vmatprep.subr.mxu0 0.0
        %2180 = vmatpush1.msra.mxu0 0.0
        %2181 = vmatprep.subr.mxu0 0.0
        %2182 = vmatpush1.msra.mxu0 0.0
        %2183 = vmatprep.subr.mxu0 0.0
        %2184 = vmatpush1.msra.mxu0 0.0
        %2185 = vmatprep.subr.mxu0 0.0
        %2186 = vmatpush1.msra.mxu0 0.0
        %2187 = vmatprep.subr.mxu0 0.0
        %2188 = vmatpush1.msra.mxu0 0.0
        %2189 = vmatprep.subr.mxu0 0.0
        %2190 = vmatpush1.msra.mxu0 0.0
        %2191 = vmatprep.subr.mxu0 0.0
        %2192 = vmatpush1.msra.mxu0 0.0
        %2193 = vmatprep.subr.mxu0 0.0
        %2194 = vmatpush1.msra.mxu0 0.0
        %2195 = vmatprep.subr.mxu0 0.0
        %2196 = vmatpush1.msra.mxu0 0.0
        %2197 = vmatprep.subr.mxu0 0.0
        %2198 = vmatpush1.msra.mxu0 0.0
        %2199 = vmatprep.subr.mxu0 0.0
        %2200 = vmatpush1.msra.mxu0 0.0
        %2201 = vmatprep.subr.mxu0 0.0
        %2202 = vmatpush1.msra.mxu0 0.0
        %2203 = vmatprep.subr.mxu0 0.0
        %2204 = vmatpush1.msra.mxu0 0.0
        %2205 = vmatprep.subr.mxu0 0.0
        %2206 = vmatpush1.msra.mxu0 0.0
        %2207 = vmatprep.mubr.f32.mxu0 0.0
        %2208 = vmatmul.mubr.f32.gmra.mrb[0].mxu0 %v2138
        %v2209 = vpop.f32.mrb[0].mxu0
        %v2210 = vadd.f32 0.0, %v2209
        %v2211 = vpop.f32.mrb[0].mxu0
        %2212 = vmatprep.mubr.f32.mxu0 0.0
        %2213 = vmatmul.mubr.f32.gmra.mrb[0].mxu0 %v2141
        %v2214 = vpop.f32.mrb[0].mxu0
        %v2215 = vadd.f32 0.0, %v2214
        %v2216 = vpop.f32.mrb[0].mxu0
        %2217 = vdwg.mxu0
        %v2218 = vadd.f32 %v2043, %v2210
        %v2219 = vadd.f32 %v2044, %v2215
        %s2220 = scalar_lea.vmem %s601, 144 [#allocation2]
        %v2221 = vld [vmem:[%s2220] sm:$0xff]
        %v2222 = vld [vmem:[%s2220 + $0x8] sm:$0xff]
        %2223 = vset.pattern.permute.xlu0 0
        %2224 = vperm.xlu0 %2223, %v2221
        %v2225 = vpop.permute.xlu0 %2224
        %2226 = vset.pattern.permute.xlu0 0
        %2227 = vperm.xlu0 %2226, %v2222
        %v2228 = vpop.permute.xlu0 %2227
        %vm2229 = vcmp.eq.s32.totalorder %v2225, %v648
        %vm2230 = vcmp.eq.s32.totalorder %v2228, %v648
        %v2231 = vsel %vm2229, 1.0, 0.0
        %v2232 = vsel %vm2230, 1.0, 0.0
        %2233 = vmatprep.subr.mxu0 0.0
        %2234 = vmatpush1.msra.mxu0 %v631
        %2235 = vmatprep.subr.mxu0 0.0
        %2236 = vmatpush1.msra.mxu0 %v632
        %2237 = vmatprep.subr.mxu0 0.0
        %2238 = vmatpush1.msra.mxu0 %v633
        %2239 = vmatprep.subr.mxu0 0.0
        %2240 = vmatpush1.msra.mxu0 %v634
        %2241 = vmatprep.subr.mxu0 0.0
        %2242 = vmatpush1.msra.mxu0 %v635
        %2243 = vmatprep.subr.mxu0 0.0
        %2244 = vmatpush1.msra.mxu0 %v636
        %2245 = vmatprep.subr.mxu0 0.0
        %2246 = vmatpush1.msra.mxu0 %v637
        %2247 = vmatprep.subr.mxu0 0.0
        %2248 = vmatpush1.msra.mxu0 %v638
        %2249 = vmatprep.subr.mxu0 0.0
        %2250 = vmatpush1.msra.mxu0 %v639
        %2251 = vmatprep.subr.mxu0 0.0
        %2252 = vmatpush1.msra.mxu0 %v640
        %2253 = vmatprep.subr.mxu0 0.0
        %2254 = vmatpush1.msra.mxu0 %v641
        %2255 = vmatprep.subr.mxu0 0.0
        %2256 = vmatpush1.msra.mxu0 %v642
        %2257 = vmatprep.subr.mxu0 0.0
        %2258 = vmatpush1.msra.mxu0 %v643
        %2259 = vmatprep.subr.mxu0 0.0
        %2260 = vmatpush1.msra.mxu0 %v644
        %2261 = vmatprep.subr.mxu0 0.0
        %2262 = vmatpush1.msra.mxu0 %v645
        %2263 = vmatprep.subr.mxu0 0.0
        %2264 = vmatpush1.msra.mxu0 %v646
        %2265 = vmatprep.subr.mxu0 0.0
        %2266 = vmatpush1.msra.mxu0 0.0
        %2267 = vmatprep.subr.mxu0 0.0
        %2268 = vmatpush1.msra.mxu0 0.0
        %2269 = vmatprep.subr.mxu0 0.0
        %2270 = vmatpush1.msra.mxu0 0.0
        %2271 = vmatprep.subr.mxu0 0.0
        %2272 = vmatpush1.msra.mxu0 0.0
        %2273 = vmatprep.subr.mxu0 0.0
        %2274 = vmatpush1.msra.mxu0 0.0
        %2275 = vmatprep.subr.mxu0 0.0
        %2276 = vmatpush1.msra.mxu0 0.0
        %2277 = vmatprep.subr.mxu0 0.0
        %2278 = vmatpush1.msra.mxu0 0.0
        %2279 = vmatprep.subr.mxu0 0.0
        %2280 = vmatpush1.msra.mxu0 0.0
        %2281 = vmatprep.subr.mxu0 0.0
        %2282 = vmatpush1.msra.mxu0 0.0
        %2283 = vmatprep.subr.mxu0 0.0
        %2284 = vmatpush1.msra.mxu0 0.0
        %2285 = vmatprep.subr.mxu0 0.0
        %2286 = vmatpush1.msra.mxu0 0.0
        %2287 = vmatprep.subr.mxu0 0.0
        %2288 = vmatpush1.msra.mxu0 0.0
        %2289 = vmatprep.subr.mxu0 0.0
        %2290 = vmatpush1.msra.mxu0 0.0
        %2291 = vmatprep.subr.mxu0 0.0
        %2292 = vmatpush1.msra.mxu0 0.0
        %2293 = vmatprep.subr.mxu0 0.0
        %2294 = vmatpush1.msra.mxu0 0.0
        %2295 = vmatprep.subr.mxu0 0.0
        %2296 = vmatpush1.msra.mxu0 0.0
        %2297 = vmatprep.mubr.f32.mxu0 0.0
        %2298 = vmatmul.mubr.f32.gmra.mrb[0].mxu0 %v2231
        %v2299 = vpop.f32.mrb[0].mxu0
        %v2300 = vadd.f32 0.0, %v2299
        %v2301 = vpop.f32.mrb[0].mxu0
        %2302 = vmatprep.mubr.f32.mxu0 0.0
        %2303 = vmatmul.mubr.f32.gmra.mrb[0].mxu0 %v2232
        %v2304 = vpop.f32.mrb[0].mxu0
        %v2305 = vadd.f32 0.0, %v2304
        %v2306 = vpop.f32.mrb[0].mxu0
        %2307 = vdwg.mxu0
        %v2308 = vld [vmem:[%s2 + $0x120] sm:$0xff]
        %v2309 = vld [vmem:[%s2 + $0x128] sm:$0xff]
        %v2310 = vld [vmem:[%s2 + $0x130] sm:$0xff]
        %v2311 = vld [vmem:[%s2 + $0x138] sm:$0xff]
        %v2313 = vsel %vm832, %v2300, 0
        %v2316 = vsel %vm832, %v2305, 0
        %2318 = vmatprep.subr.mxu0 0.0
        %2319 = vmatpush1.msra.mxu0 %v2308
        %2320 = vmatprep.subr.mxu0 0.0
        %2321 = vmatpush1.msra.mxu0 %v2309
        %2322 = vmatprep.subr.mxu0 0.0
        %2323 = vmatpush1.msra.mxu0 %v2310
        %2324 = vmatprep.subr.mxu0 0.0
        %2325 = vmatpush1.msra.mxu0 %v2311
        %2326 = vmatprep.subr.mxu0 0.0
        %2327 = vmatpush1.msra.mxu0 0.0
        %2328 = vmatprep.subr.mxu0 0.0
        %2329 = vmatpush1.msra.mxu0 0.0
        %2330 = vmatprep.subr.mxu0 0.0
        %2331 = vmatpush1.msra.mxu0 0.0
        %2332 = vmatprep.subr.mxu0 0.0
        %2333 = vmatpush1.msra.mxu0 0.0
        %2334 = vmatprep.subr.mxu0 0.0
        %2335 = vmatpush1.msra.mxu0 0.0
        %2336 = vmatprep.subr.mxu0 0.0
        %2337 = vmatpush1.msra.mxu0 0.0
        %2338 = vmatprep.subr.mxu0 0.0
        %2339 = vmatpush1.msra.mxu0 0.0
        %2340 = vmatprep.subr.mxu0 0.0
        %2341 = vmatpush1.msra.mxu0 0.0
        %2342 = vmatprep.subr.mxu0 0.0
        %2343 = vmatpush1.msra.mxu0 0.0
        %2344 = vmatprep.subr.mxu0 0.0
        %2345 = vmatpush1.msra.mxu0 0.0
        %2346 = vmatprep.subr.mxu0 0.0
        %2347 = vmatpush1.msra.mxu0 0.0
        %2348 = vmatprep.subr.mxu0 0.0
        %2349 = vmatpush1.msra.mxu0 0.0
        %2350 = vmatprep.subr.mxu0 0.0
        %2351 = vmatpush1.msra.mxu0 0.0
        %2352 = vmatprep.subr.mxu0 0.0
        %2353 = vmatpush1.msra.mxu0 0.0
        %2354 = vmatprep.subr.mxu0 0.0
        %2355 = vmatpush1.msra.mxu0 0.0
        %2356 = vmatprep.subr.mxu0 0.0
        %2357 = vmatpush1.msra.mxu0 0.0
        %2358 = vmatprep.subr.mxu0 0.0
        %2359 = vmatpush1.msra.mxu0 0.0
        %2360 = vmatprep.subr.mxu0 0.0
        %2361 = vmatpush1.msra.mxu0 0.0
        %2362 = vmatprep.subr.mxu0 0.0
        %2363 = vmatpush1.msra.mxu0 0.0
        %2364 = vmatprep.subr.mxu0 0.0
        %2365 = vmatpush1.msra.mxu0 0.0
        %2366 = vmatprep.subr.mxu0 0.0
        %2367 = vmatpush1.msra.mxu0 0.0
        %2368 = vmatprep.subr.mxu0 0.0
        %2369 = vmatpush1.msra.mxu0 0.0
        %2370 = vmatprep.subr.mxu0 0.0
        %2371 = vmatpush1.msra.mxu0 0.0
        %2372 = vmatprep.subr.mxu0 0.0
        %2373 = vmatpush1.msra.mxu0 0.0
        %2374 = vmatprep.subr.mxu0 0.0
        %2375 = vmatpush1.msra.mxu0 0.0
        %2376 = vmatprep.subr.mxu0 0.0
        %2377 = vmatpush1.msra.mxu0 0.0
        %2378 = vmatprep.subr.mxu0 0.0
        %2379 = vmatpush1.msra.mxu0 0.0
        %2380 = vmatprep.subr.mxu0 0.0
        %2381 = vmatpush1.msra.mxu0 0.0
        %2382 = vmatprep.mubr.f32.mxu0 0.0
        %2383 = vmatmul.mubr.f32.gmra.mrb[0].mxu0 %v2313
        %v2384 = vpop.f32.mrb[0].mxu0
        %v2385 = vadd.f32 0.0, %v2384
        %v2386 = vpop.f32.mrb[0].mxu0
        %2387 = vmatprep.mubr.f32.mxu0 0.0
        %2388 = vmatmul.mubr.f32.gmra.mrb[0].mxu0 %v2316
        %v2389 = vpop.f32.mrb[0].mxu0
        %v2390 = vadd.f32 0.0, %v2389
        %v2391 = vpop.f32.mrb[0].mxu0
        %2392 = vdwg.mxu0
        %v2393 = vadd.f32 %v2218, %v2385
        %v2394 = vadd.f32 %v2219, %v2390
        %s2395 = scalar_lea.vmem %s601, 160 [#allocation2]
        %v2396 = vld [vmem:[%s2395] sm:$0xff]
        %v2397 = vld [vmem:[%s2395 + $0x8] sm:$0xff]
        %2398 = vset.pattern.permute.xlu0 0
        %2399 = vperm.xlu0 %2398, %v2396
        %v2400 = vpop.permute.xlu0 %2399
        %2401 = vset.pattern.permute.xlu0 0
        %2402 = vperm.xlu0 %2401, %v2397
        %v2403 = vpop.permute.xlu0 %2402
        %vm2404 = vcmp.eq.s32.totalorder %v2400, %v648
        %vm2405 = vcmp.eq.s32.totalorder %v2403, %v648
        %v2406 = vsel %vm2404, 1.0, 0.0
        %v2407 = vsel %vm2405, 1.0, 0.0
        %2408 = vmatprep.subr.mxu0 0.0
        %2409 = vmatpush1.msra.mxu0 %v631
        %2410 = vmatprep.subr.mxu0 0.0
        %2411 = vmatpush1.msra.mxu0 %v632
        %2412 = vmatprep.subr.mxu0 0.0
        %2413 = vmatpush1.msra.mxu0 %v633
        %2414 = vmatprep.subr.mxu0 0.0
        %2415 = vmatpush1.msra.mxu0 %v634
        %2416 = vmatprep.subr.mxu0 0.0
        %2417 = vmatpush1.msra.mxu0 %v635
        %2418 = vmatprep.subr.mxu0 0.0
        %2419 = vmatpush1.msra.mxu0 %v636
        %2420 = vmatprep.subr.mxu0 0.0
        %2421 = vmatpush1.msra.mxu0 %v637
        %2422 = vmatprep.subr.mxu0 0.0
        %2423 = vmatpush1.msra.mxu0 %v638
        %2424 = vmatprep.subr.mxu0 0.0
        %2425 = vmatpush1.msra.mxu0 %v639
        %2426 = vmatprep.subr.mxu0 0.0
        %2427 = vmatpush1.msra.mxu0 %v640
        %2428 = vmatprep.subr.mxu0 0.0
        %2429 = vmatpush1.msra.mxu0 %v641
        %2430 = vmatprep.subr.mxu0 0.0
        %2431 = vmatpush1.msra.mxu0 %v642
        %2432 = vmatprep.subr.mxu0 0.0
        %2433 = vmatpush1.msra.mxu0 %v643
        %2434 = vmatprep.subr.mxu0 0.0
        %2435 = vmatpush1.msra.mxu0 %v644
        %2436 = vmatprep.subr.mxu0 0.0
        %2437 = vmatpush1.msra.mxu0 %v645
        %2438 = vmatprep.subr.mxu0 0.0
        %2439 = vmatpush1.msra.mxu0 %v646
        %2440 = vmatprep.subr.mxu0 0.0
        %2441 = vmatpush1.msra.mxu0 0.0
        %2442 = vmatprep.subr.mxu0 0.0
        %2443 = vmatpush1.msra.mxu0 0.0
        %2444 = vmatprep.subr.mxu0 0.0
        %2445 = vmatpush1.msra.mxu0 0.0
        %2446 = vmatprep.subr.mxu0 0.0
        %2447 = vmatpush1.msra.mxu0 0.0
        %2448 = vmatprep.subr.mxu0 0.0
        %2449 = vmatpush1.msra.mxu0 0.0
        %2450 = vmatprep.subr.mxu0 0.0
        %2451 = vmatpush1.msra.mxu0 0.0
        %2452 = vmatprep.subr.mxu0 0.0
        %2453 = vmatpush1.msra.mxu0 0.0
        %2454 = vmatprep.subr.mxu0 0.0
        %2455 = vmatpush1.msra.mxu0 0.0
        %2456 = vmatprep.subr.mxu0 0.0
        %2457 = vmatpush1.msra.mxu0 0.0
        %2458 = vmatprep.subr.mxu0 0.0
        %2459 = vmatpush1.msra.mxu0 0.0
        %2460 = vmatprep.subr.mxu0 0.0
        %2461 = vmatpush1.msra.mxu0 0.0
        %2462 = vmatprep.subr.mxu0 0.0
        %2463 = vmatpush1.msra.mxu0 0.0
        %2464 = vmatprep.subr.mxu0 0.0
        %2465 = vmatpush1.msra.mxu0 0.0
        %2466 = vmatprep.subr.mxu0 0.0
        %2467 = vmatpush1.msra.mxu0 0.0
        %2468 = vmatprep.subr.mxu0 0.0
        %2469 = vmatpush1.msra.mxu0 0.0
        %2470 = vmatprep.subr.mxu0 0.0
        %2471 = vmatpush1.msra.mxu0 0.0
        %2472 = vmatprep.mubr.f32.mxu0 0.0
        %2473 = vmatmul.mubr.f32.gmra.mrb[0].mxu0 %v2406
        %v2474 = vpop.f32.mrb[0].mxu0
        %v2475 = vadd.f32 0.0, %v2474
        %v2476 = vpop.f32.mrb[0].mxu0
        %2477 = vmatprep.mubr.f32.mxu0 0.0
        %2478 = vmatmul.mubr.f32.gmra.mrb[0].mxu0 %v2407
        %v2479 = vpop.f32.mrb[0].mxu0
        %v2480 = vadd.f32 0.0, %v2479
        %v2481 = vpop.f32.mrb[0].mxu0
        %2482 = vdwg.mxu0
        %v2483 = vld [vmem:[%s2 + $0x140] sm:$0xff]
        %v2484 = vld [vmem:[%s2 + $0x148] sm:$0xff]
        %v2485 = vld [vmem:[%s2 + $0x150] sm:$0xff]
        %v2486 = vld [vmem:[%s2 + $0x158] sm:$0xff]
        %v2488 = vsel %vm832, %v2475, 0
        %v2491 = vsel %vm832, %v2480, 0
        %2493 = vmatprep.subr.mxu0 0.0
        %2494 = vmatpush1.msra.mxu0 %v2483
        %2495 = vmatprep.subr.mxu0 0.0
        %2496 = vmatpush1.msra.mxu0 %v2484
        %2497 = vmatprep.subr.mxu0 0.0
        %2498 = vmatpush1.msra.mxu0 %v2485
        %2499 = vmatprep.subr.mxu0 0.0
        %2500 = vmatpush1.msra.mxu0 %v2486
        %2501 = vmatprep.subr.mxu0 0.0
        %2502 = vmatpush1.msra.mxu0 0.0
        %2503 = vmatprep.subr.mxu0 0.0
        %2504 = vmatpush1.msra.mxu0 0.0
        %2505 = vmatprep.subr.mxu0 0.0
        %2506 = vmatpush1.msra.mxu0 0.0
        %2507 = vmatprep.subr.mxu0 0.0
        %2508 = vmatpush1.msra.mxu0 0.0
        %2509 = vmatprep.subr.mxu0 0.0
        %2510 = vmatpush1.msra.mxu0 0.0
        %2511 = vmatprep.subr.mxu0 0.0
        %2512 = vmatpush1.msra.mxu0 0.0
        %2513 = vmatprep.subr.mxu0 0.0
        %2514 = vmatpush1.msra.mxu0 0.0
        %2515 = vmatprep.subr.mxu0 0.0
        %2516 = vmatpush1.msra.mxu0 0.0
        %2517 = vmatprep.subr.mxu0 0.0
        %2518 = vmatpush1.msra.mxu0 0.0
        %2519 = vmatprep.subr.mxu0 0.0
        %2520 = vmatpush1.msra.mxu0 0.0
        %2521 = vmatprep.subr.mxu0 0.0
        %2522 = vmatpush1.msra.mxu0 0.0
        %2523 = vmatprep.subr.mxu0 0.0
        %2524 = vmatpush1.msra.mxu0 0.0
        %2525 = vmatprep.subr.mxu0 0.0
        %2526 = vmatpush1.msra.mxu0 0.0
        %2527 = vmatprep.subr.mxu0 0.0
        %2528 = vmatpush1.msra.mxu0 0.0
        %2529 = vmatprep.subr.mxu0 0.0
        %2530 = vmatpush1.msra.mxu0 0.0
        %2531 = vmatprep.subr.mxu0 0.0
        %2532 = vmatpush1.msra.mxu0 0.0
        %2533 = vmatprep.subr.mxu0 0.0
        %2534 = vmatpush1.msra.mxu0 0.0
        %2535 = vmatprep.subr.mxu0 0.0
        %2536 = vmatpush1.msra.mxu0 0.0
        %2537 = vmatprep.subr.mxu0 0.0
        %2538 = vmatpush1.msra.mxu0 0.0
        %2539 = vmatprep.subr.mxu0 0.0
        %2540 = vmatpush1.msra.mxu0 0.0
        %2541 = vmatprep.subr.mxu0 0.0
        %2542 = vmatpush1.msra.mxu0 0.0
        %2543 = vmatprep.subr.mxu0 0.0
        %2544 = vmatpush1.msra.mxu0 0.0
        %2545 = vmatprep.subr.mxu0 0.0
        %2546 = vmatpush1.msra.mxu0 0.0
        %2547 = vmatprep.subr.mxu0 0.0
        %2548 = vmatpush1.msra.mxu0 0.0
        %2549 = vmatprep.subr.mxu0 0.0
        %2550 = vmatpush1.msra.mxu0 0.0
        %2551 = vmatprep.subr.mxu0 0.0
        %2552 = vmatpush1.msra.mxu0 0.0
        %2553 = vmatprep.subr.mxu0 0.0
        %2554 = vmatpush1.msra.mxu0 0.0
        %2555 = vmatprep.subr.mxu0 0.0
        %2556 = vmatpush1.msra.mxu0 0.0
        %2557 = vmatprep.mubr.f32.mxu0 0.0
        %2558 = vmatmul.mubr.f32.gmra.mrb[0].mxu0 %v2488
        %v2559 = vpop.f32.mrb[0].mxu0
        %v2560 = vadd.f32 0.0, %v2559
        %v2561 = vpop.f32.mrb[0].mxu0
        %2562 = vmatprep.mubr.f32.mxu0 0.0
        %2563 = vmatmul.mubr.f32.gmra.mrb[0].mxu0 %v2491
        %v2564 = vpop.f32.mrb[0].mxu0
        %v2565 = vadd.f32 0.0, %v2564
        %v2566 = vpop.f32.mrb[0].mxu0
        %2567 = vdwg.mxu0
        %v2568 = vadd.f32 %v2393, %v2560
        %v2569 = vadd.f32 %v2394, %v2565
        %s2570 = scalar_lea.vmem %s601, 176 [#allocation2]
        %v2571 = vld [vmem:[%s2570] sm:$0xff]
        %v2572 = vld [vmem:[%s2570 + $0x8] sm:$0xff]
        %2573 = vset.pattern.permute.xlu0 0
        %2574 = vperm.xlu0 %2573, %v2571
        %v2575 = vpop.permute.xlu0 %2574
        %2576 = vset.pattern.permute.xlu0 0
        %2577 = vperm.xlu0 %2576, %v2572
        %v2578 = vpop.permute.xlu0 %2577
        %vm2579 = vcmp.eq.s32.totalorder %v2575, %v648
        %vm2580 = vcmp.eq.s32.totalorder %v2578, %v648
        %v2581 = vsel %vm2579, 1.0, 0.0
        %v2582 = vsel %vm2580, 1.0, 0.0
        %2583 = vmatprep.subr.mxu0 0.0
        %2584 = vmatpush1.msra.mxu0 %v631
        %2585 = vmatprep.subr.mxu0 0.0
        %2586 = vmatpush1.msra.mxu0 %v632
        %2587 = vmatprep.subr.mxu0 0.0
        %2588 = vmatpush1.msra.mxu0 %v633
        %2589 = vmatprep.subr.mxu0 0.0
        %2590 = vmatpush1.msra.mxu0 %v634
        %2591 = vmatprep.subr.mxu0 0.0
        %2592 = vmatpush1.msra.mxu0 %v635
        %2593 = vmatprep.subr.mxu0 0.0
        %2594 = vmatpush1.msra.mxu0 %v636
        %2595 = vmatprep.subr.mxu0 0.0
        %2596 = vmatpush1.msra.mxu0 %v637
        %2597 = vmatprep.subr.mxu0 0.0
        %2598 = vmatpush1.msra.mxu0 %v638
        %2599 = vmatprep.subr.mxu0 0.0
        %2600 = vmatpush1.msra.mxu0 %v639
        %2601 = vmatprep.subr.mxu0 0.0
        %2602 = vmatpush1.msra.mxu0 %v640
        %2603 = vmatprep.subr.mxu0 0.0
        %2604 = vmatpush1.msra.mxu0 %v641
        %2605 = vmatprep.subr.mxu0 0.0
        %2606 = vmatpush1.msra.mxu0 %v642
        %2607 = vmatprep.subr.mxu0 0.0
        %2608 = vmatpush1.msra.mxu0 %v643
        %2609 = vmatprep.subr.mxu0 0.0
        %2610 = vmatpush1.msra.mxu0 %v644
        %2611 = vmatprep.subr.mxu0 0.0
        %2612 = vmatpush1.msra.mxu0 %v645
        %2613 = vmatprep.subr.mxu0 0.0
        %2614 = vmatpush1.msra.mxu0 %v646
        %2615 = vmatprep.subr.mxu0 0.0
        %2616 = vmatpush1.msra.mxu0 0.0
        %2617 = vmatprep.subr.mxu0 0.0
        %2618 = vmatpush1.msra.mxu0 0.0
        %2619 = vmatprep.subr.mxu0 0.0
        %2620 = vmatpush1.msra.mxu0 0.0
        %2621 = vmatprep.subr.mxu0 0.0
        %2622 = vmatpush1.msra.mxu0 0.0
        %2623 = vmatprep.subr.mxu0 0.0
        %2624 = vmatpush1.msra.mxu0 0.0
        %2625 = vmatprep.subr.mxu0 0.0
        %2626 = vmatpush1.msra.mxu0 0.0
        %2627 = vmatprep.subr.mxu0 0.0
        %2628 = vmatpush1.msra.mxu0 0.0
        %2629 = vmatprep.subr.mxu0 0.0
        %2630 = vmatpush1.msra.mxu0 0.0
        %2631 = vmatprep.subr.mxu0 0.0
        %2632 = vmatpush1.msra.mxu0 0.0
        %2633 = vmatprep.subr.mxu0 0.0
        %2634 = vmatpush1.msra.mxu0 0.0
        %2635 = vmatprep.subr.mxu0 0.0
        %2636 = vmatpush1.msra.mxu0 0.0
        %2637 = vmatprep.subr.mxu0 0.0
        %2638 = vmatpush1.msra.mxu0 0.0
        %2639 = vmatprep.subr.mxu0 0.0
        %2640 = vmatpush1.msra.mxu0 0.0
        %2641 = vmatprep.subr.mxu0 0.0
        %2642 = vmatpush1.msra.mxu0 0.0
        %2643 = vmatprep.subr.mxu0 0.0
        %2644 = vmatpush1.msra.mxu0 0.0
        %2645 = vmatprep.subr.mxu0 0.0
        %2646 = vmatpush1.msra.mxu0 0.0
        %2647 = vmatprep.mubr.f32.mxu0 0.0
        %2648 = vmatmul.mubr.f32.gmra.mrb[0].mxu0 %v2581
        %v2649 = vpop.f32.mrb[0].mxu0
        %v2650 = vadd.f32 0.0, %v2649
        %v2651 = vpop.f32.mrb[0].mxu0
        %2652 = vmatprep.mubr.f32.mxu0 0.0
        %2653 = vmatmul.mubr.f32.gmra.mrb[0].mxu0 %v2582
        %v2654 = vpop.f32.mrb[0].mxu0
        %v2655 = vadd.f32 0.0, %v2654
        %v2656 = vpop.f32.mrb[0].mxu0
        %2657 = vdwg.mxu0
        %v2658 = vld [vmem:[%s2 + $0x160] sm:$0xff]
        %v2659 = vld [vmem:[%s2 + $0x168] sm:$0xff]
        %v2660 = vld [vmem:[%s2 + $0x170] sm:$0xff]
        %v2661 = vld [vmem:[%s2 + $0x178] sm:$0xff]
        %v2663 = vsel %vm832, %v2650, 0
        %v2666 = vsel %vm832, %v2655, 0
        %2668 = vmatprep.subr.mxu0 0.0
        %2669 = vmatpush1.msra.mxu0 %v2658
        %2670 = vmatprep.subr.mxu0 0.0
        %2671 = vmatpush1.msra.mxu0 %v2659
        %2672 = vmatprep.subr.mxu0 0.0
        %2673 = vmatpush1.msra.mxu0 %v2660
        %2674 = vmatprep.subr.mxu0 0.0
        %2675 = vmatpush1.msra.mxu0 %v2661
        %2676 = vmatprep.subr.mxu0 0.0
        %2677 = vmatpush1.msra.mxu0 0.0
        %2678 = vmatprep.subr.mxu0 0.0
        %2679 = vmatpush1.msra.mxu0 0.0
        %2680 = vmatprep.subr.mxu0 0.0
        %2681 = vmatpush1.msra.mxu0 0.0
        %2682 = vmatprep.subr.mxu0 0.0
        %2683 = vmatpush1.msra.mxu0 0.0
        %2684 = vmatprep.subr.mxu0 0.0
        %2685 = vmatpush1.msra.mxu0 0.0
        %2686 = vmatprep.subr.mxu0 0.0
        %2687 = vmatpush1.msra.mxu0 0.0
        %2688 = vmatprep.subr.mxu0 0.0
        %2689 = vmatpush1.msra.mxu0 0.0
        %2690 = vmatprep.subr.mxu0 0.0
        %2691 = vmatpush1.msra.mxu0 0.0
        %2692 = vmatprep.subr.mxu0 0.0
        %2693 = vmatpush1.msra.mxu0 0.0
        %2694 = vmatprep.subr.mxu0 0.0
        %2695 = vmatpush1.msra.mxu0 0.0
        %2696 = vmatprep.subr.mxu0 0.0
        %2697 = vmatpush1.msra.mxu0 0.0
        %2698 = vmatprep.subr.mxu0 0.0
        %2699 = vmatpush1.msra.mxu0 0.0
        %2700 = vmatprep.subr.mxu0 0.0
        %2701 = vmatpush1.msra.mxu0 0.0
        %2702 = vmatprep.subr.mxu0 0.0
        %2703 = vmatpush1.msra.mxu0 0.0
        %2704 = vmatprep.subr.mxu0 0.0
        %2705 = vmatpush1.msra.mxu0 0.0
        %2706 = vmatprep.subr.mxu0 0.0
        %2707 = vmatpush1.msra.mxu0 0.0
        %2708 = vmatprep.subr.mxu0 0.0
        %2709 = vmatpush1.msra.mxu0 0.0
        %2710 = vmatprep.subr.mxu0 0.0
        %2711 = vmatpush1.msra.mxu0 0.0
        %2712 = vmatprep.subr.mxu0 0.0
        %2713 = vmatpush1.msra.mxu0 0.0
        %2714 = vmatprep.subr.mxu0 0.0
        %2715 = vmatpush1.msra.mxu0 0.0
        %2716 = vmatprep.subr.mxu0 0.0
        %2717 = vmatpush1.msra.mxu0 0.0
        %2718 = vmatprep.subr.mxu0 0.0
        %2719 = vmatpush1.msra.mxu0 0.0
        %2720 = vmatprep.subr.mxu0 0.0
        %2721 = vmatpush1.msra.mxu0 0.0
        %2722 = vmatprep.subr.mxu0 0.0
        %2723 = vmatpush1.msra.mxu0 0.0
        %2724 = vmatprep.subr.mxu0 0.0
        %2725 = vmatpush1.msra.mxu0 0.0
        %2726 = vmatprep.subr.mxu0 0.0
        %2727 = vmatpush1.msra.mxu0 0.0
        %2728 = vmatprep.subr.mxu0 0.0
        %2729 = vmatpush1.msra.mxu0 0.0
        %2730 = vmatprep.subr.mxu0 0.0
        %2731 = vmatpush1.msra.mxu0 0.0
        %2732 = vmatprep.mubr.f32.mxu0 0.0
        %2733 = vmatmul.mubr.f32.gmra.mrb[0].mxu0 %v2663
        %v2734 = vpop.f32.mrb[0].mxu0
        %v2735 = vadd.f32 0.0, %v2734
        %v2736 = vpop.f32.mrb[0].mxu0
        %2737 = vmatprep.mubr.f32.mxu0 0.0
        %2738 = vmatmul.mubr.f32.gmra.mrb[0].mxu0 %v2666
        %v2739 = vpop.f32.mrb[0].mxu0
        %v2740 = vadd.f32 0.0, %v2739
        %v2741 = vpop.f32.mrb[0].mxu0
        %2742 = vdwg.mxu0
        %v2743 = vadd.f32 %v2568, %v2735
        %v2744 = vadd.f32 %v2569, %v2740
        %s2745 = scalar_lea.vmem %s601, 192 [#allocation2]
        %v2746 = vld [vmem:[%s2745] sm:$0xff]
        %v2747 = vld [vmem:[%s2745 + $0x8] sm:$0xff]
        %2748 = vset.pattern.permute.xlu0 0
        %2749 = vperm.xlu0 %2748, %v2746
        %v2750 = vpop.permute.xlu0 %2749
        %2751 = vset.pattern.permute.xlu0 0
        %2752 = vperm.xlu0 %2751, %v2747
        %v2753 = vpop.permute.xlu0 %2752
        %vm2754 = vcmp.eq.s32.totalorder %v2750, %v648
        %vm2755 = vcmp.eq.s32.totalorder %v2753, %v648
        %v2756 = vsel %vm2754, 1.0, 0.0
        %v2757 = vsel %vm2755, 1.0, 0.0
        %2758 = vmatprep.subr.mxu0 0.0
        %2759 = vmatpush1.msra.mxu0 %v631
        %2760 = vmatprep.subr.mxu0 0.0
        %2761 = vmatpush1.msra.mxu0 %v632
        %2762 = vmatprep.subr.mxu0 0.0
        %2763 = vmatpush1.msra.mxu0 %v633
        %2764 = vmatprep.subr.mxu0 0.0
        %2765 = vmatpush1.msra.mxu0 %v634
        %2766 = vmatprep.subr.mxu0 0.0
        %2767 = vmatpush1.msra.mxu0 %v635
        %2768 = vmatprep.subr.mxu0 0.0
        %2769 = vmatpush1.msra.mxu0 %v636
        %2770 = vmatprep.subr.mxu0 0.0
        %2771 = vmatpush1.msra.mxu0 %v637
        %2772 = vmatprep.subr.mxu0 0.0
        %2773 = vmatpush1.msra.mxu0 %v638
        %2774 = vmatprep.subr.mxu0 0.0
        %2775 = vmatpush1.msra.mxu0 %v639
        %2776 = vmatprep.subr.mxu0 0.0
        %2777 = vmatpush1.msra.mxu0 %v640
        %2778 = vmatprep.subr.mxu0 0.0
        %2779 = vmatpush1.msra.mxu0 %v641
        %2780 = vmatprep.subr.mxu0 0.0
        %2781 = vmatpush1.msra.mxu0 %v642
        %2782 = vmatprep.subr.mxu0 0.0
        %2783 = vmatpush1.msra.mxu0 %v643
        %2784 = vmatprep.subr.mxu0 0.0
        %2785 = vmatpush1.msra.mxu0 %v644
        %2786 = vmatprep.subr.mxu0 0.0
        %2787 = vmatpush1.msra.mxu0 %v645
        %2788 = vmatprep.subr.mxu0 0.0
        %2789 = vmatpush1.msra.mxu0 %v646
        %2790 = vmatprep.subr.mxu0 0.0
        %2791 = vmatpush1.msra.mxu0 0.0
        %2792 = vmatprep.subr.mxu0 0.0
        %2793 = vmatpush1.msra.mxu0 0.0
        %2794 = vmatprep.subr.mxu0 0.0
        %2795 = vmatpush1.msra.mxu0 0.0
        %2796 = vmatprep.subr.mxu0 0.0
        %2797 = vmatpush1.msra.mxu0 0.0
        %2798 = vmatprep.subr.mxu0 0.0
        %2799 = vmatpush1.msra.mxu0 0.0
        %2800 = vmatprep.subr.mxu0 0.0
        %2801 = vmatpush1.msra.mxu0 0.0
        %2802 = vmatprep.subr.mxu0 0.0
        %2803 = vmatpush1.msra.mxu0 0.0
        %2804 = vmatprep.subr.mxu0 0.0
        %2805 = vmatpush1.msra.mxu0 0.0
        %2806 = vmatprep.subr.mxu0 0.0
        %2807 = vmatpush1.msra.mxu0 0.0
        %2808 = vmatprep.subr.mxu0 0.0
        %2809 = vmatpush1.msra.mxu0 0.0
        %2810 = vmatprep.subr.mxu0 0.0
        %2811 = vmatpush1.msra.mxu0 0.0
        %2812 = vmatprep.subr.mxu0 0.0
        %2813 = vmatpush1.msra.mxu0 0.0
        %2814 = vmatprep.subr.mxu0 0.0
        %2815 = vmatpush1.msra.mxu0 0.0
        %2816 = vmatprep.subr.mxu0 0.0
        %2817 = vmatpush1.msra.mxu0 0.0
        %2818 = vmatprep.subr.mxu0 0.0
        %2819 = vmatpush1.msra.mxu0 0.0
        %2820 = vmatprep.subr.mxu0 0.0
        %2821 = vmatpush1.msra.mxu0 0.0
        %2822 = vmatprep.mubr.f32.mxu0 0.0
        %2823 = vmatmul.mubr.f32.gmra.mrb[0].mxu0 %v2756
        %v2824 = vpop.f32.mrb[0].mxu0
        %v2825 = vadd.f32 0.0, %v2824
        %v2826 = vpop.f32.mrb[0].mxu0
        %2827 = vmatprep.mubr.f32.mxu0 0.0
        %2828 = vmatmul.mubr.f32.gmra.mrb[0].mxu0 %v2757
        %v2829 = vpop.f32.mrb[0].mxu0
        %v2830 = vadd.f32 0.0, %v2829
        %v2831 = vpop.f32.mrb[0].mxu0
        %2832 = vdwg.mxu0
        %v2833 = vld [vmem:[%s2 + $0x180] sm:$0xff]
        %v2834 = vld [vmem:[%s2 + $0x188] sm:$0xff]
        %v2835 = vld [vmem:[%s2 + $0x190] sm:$0xff]
        %v2836 = vld [vmem:[%s2 + $0x198] sm:$0xff]
        %v2838 = vsel %vm832, %v2825, 0
        %v2841 = vsel %vm832, %v2830, 0
        %2843 = vmatprep.subr.mxu0 0.0
        %2844 = vmatpush1.msra.mxu0 %v2833
        %2845 = vmatprep.subr.mxu0 0.0
        %2846 = vmatpush1.msra.mxu0 %v2834
        %2847 = vmatprep.subr.mxu0 0.0
        %2848 = vmatpush1.msra.mxu0 %v2835
        %2849 = vmatprep.subr.mxu0 0.0
        %2850 = vmatpush1.msra.mxu0 %v2836
        %2851 = vmatprep.subr.mxu0 0.0
        %2852 = vmatpush1.msra.mxu0 0.0
        %2853 = vmatprep.subr.mxu0 0.0
        %2854 = vmatpush1.msra.mxu0 0.0
        %2855 = vmatprep.subr.mxu0 0.0
        %2856 = vmatpush1.msra.mxu0 0.0
        %2857 = vmatprep.subr.mxu0 0.0
        %2858 = vmatpush1.msra.mxu0 0.0
        %2859 = vmatprep.subr.mxu0 0.0
        %2860 = vmatpush1.msra.mxu0 0.0
        %2861 = vmatprep.subr.mxu0 0.0
        %2862 = vmatpush1.msra.mxu0 0.0
        %2863 = vmatprep.subr.mxu0 0.0
        %2864 = vmatpush1.msra.mxu0 0.0
        %2865 = vmatprep.subr.mxu0 0.0
        %2866 = vmatpush1.msra.mxu0 0.0
        %2867 = vmatprep.subr.mxu0 0.0
        %2868 = vmatpush1.msra.mxu0 0.0
        %2869 = vmatprep.subr.mxu0 0.0
        %2870 = vmatpush1.msra.mxu0 0.0
        %2871 = vmatprep.subr.mxu0 0.0
        %2872 = vmatpush1.msra.mxu0 0.0
        %2873 = vmatprep.subr.mxu0 0.0
        %2874 = vmatpush1.msra.mxu0 0.0
        %2875 = vmatprep.subr.mxu0 0.0
        %2876 = vmatpush1.msra.mxu0 0.0
        %2877 = vmatprep.subr.mxu0 0.0
        %2878 = vmatpush1.msra.mxu0 0.0
        %2879 = vmatprep.subr.mxu0 0.0
        %2880 = vmatpush1.msra.mxu0 0.0
        %2881 = vmatprep.subr.mxu0 0.0
        %2882 = vmatpush1.msra.mxu0 0.0
        %2883 = vmatprep.subr.mxu0 0.0
        %2884 = vmatpush1.msra.mxu0 0.0
        %2885 = vmatprep.subr.mxu0 0.0
        %2886 = vmatpush1.msra.mxu0 0.0
        %2887 = vmatprep.subr.mxu0 0.0
        %2888 = vmatpush1.msra.mxu0 0.0
        %2889 = vmatprep.subr.mxu0 0.0
        %2890 = vmatpush1.msra.mxu0 0.0
        %2891 = vmatprep.subr.mxu0 0.0
        %2892 = vmatpush1.msra.mxu0 0.0
        %2893 = vmatprep.subr.mxu0 0.0
        %2894 = vmatpush1.msra.mxu0 0.0
        %2895 = vmatprep.subr.mxu0 0.0
        %2896 = vmatpush1.msra.mxu0 0.0
        %2897 = vmatprep.subr.mxu0 0.0
        %2898 = vmatpush1.msra.mxu0 0.0
        %2899 = vmatprep.subr.mxu0 0.0
        %2900 = vmatpush1.msra.mxu0 0.0
        %2901 = vmatprep.subr.mxu0 0.0
        %2902 = vmatpush1.msra.mxu0 0.0
        %2903 = vmatprep.subr.mxu0 0.0
        %2904 = vmatpush1.msra.mxu0 0.0
        %2905 = vmatprep.subr.mxu0 0.0
        %2906 = vmatpush1.msra.mxu0 0.0
        %2907 = vmatprep.mubr.f32.mxu0 0.0
        %2908 = vmatmul.mubr.f32.gmra.mrb[0].mxu0 %v2838
        %v2909 = vpop.f32.mrb[0].mxu0
        %v2910 = vadd.f32 0.0, %v2909
        %v2911 = vpop.f32.mrb[0].mxu0
        %2912 = vmatprep.mubr.f32.mxu0 0.0
        %2913 = vmatmul.mubr.f32.gmra.mrb[0].mxu0 %v2841
        %v2914 = vpop.f32.mrb[0].mxu0
        %v2915 = vadd.f32 0.0, %v2914
        %v2916 = vpop.f32.mrb[0].mxu0
        %2917 = vdwg.mxu0
        %v2918 = vadd.f32 %v2743, %v2910
        %v2919 = vadd.f32 %v2744, %v2915
        %s2920 = scalar_lea.vmem %s601, 208 [#allocation2]
        %v2921 = vld [vmem:[%s2920] sm:$0xff]
        %v2922 = vld [vmem:[%s2920 + $0x8] sm:$0xff]
        %2923 = vset.pattern.permute.xlu0 0
        %2924 = vperm.xlu0 %2923, %v2921
        %v2925 = vpop.permute.xlu0 %2924
        %2926 = vset.pattern.permute.xlu0 0
        %2927 = vperm.xlu0 %2926, %v2922
        %v2928 = vpop.permute.xlu0 %2927
        %vm2929 = vcmp.eq.s32.totalorder %v2925, %v648
        %vm2930 = vcmp.eq.s32.totalorder %v2928, %v648
        %v2931 = vsel %vm2929, 1.0, 0.0
        %v2932 = vsel %vm2930, 1.0, 0.0
        %2933 = vmatprep.subr.mxu0 0.0
        %2934 = vmatpush1.msra.mxu0 %v631
        %2935 = vmatprep.subr.mxu0 0.0
        %2936 = vmatpush1.msra.mxu0 %v632
        %2937 = vmatprep.subr.mxu0 0.0
        %2938 = vmatpush1.msra.mxu0 %v633
        %2939 = vmatprep.subr.mxu0 0.0
        %2940 = vmatpush1.msra.mxu0 %v634
        %2941 = vmatprep.subr.mxu0 0.0
        %2942 = vmatpush1.msra.mxu0 %v635
        %2943 = vmatprep.subr.mxu0 0.0
        %2944 = vmatpush1.msra.mxu0 %v636
        %2945 = vmatprep.subr.mxu0 0.0
        %2946 = vmatpush1.msra.mxu0 %v637
        %2947 = vmatprep.subr.mxu0 0.0
        %2948 = vmatpush1.msra.mxu0 %v638
        %2949 = vmatprep.subr.mxu0 0.0
        %2950 = vmatpush1.msra.mxu0 %v639
        %2951 = vmatprep.subr.mxu0 0.0
        %2952 = vmatpush1.msra.mxu0 %v640
        %2953 = vmatprep.subr.mxu0 0.0
        %2954 = vmatpush1.msra.mxu0 %v641
        %2955 = vmatprep.subr.mxu0 0.0
        %2956 = vmatpush1.msra.mxu0 %v642
        %2957 = vmatprep.subr.mxu0 0.0
        %2958 = vmatpush1.msra.mxu0 %v643
        %2959 = vmatprep.subr.mxu0 0.0
        %2960 = vmatpush1.msra.mxu0 %v644
        %2961 = vmatprep.subr.mxu0 0.0
        %2962 = vmatpush1.msra.mxu0 %v645
        %2963 = vmatprep.subr.mxu0 0.0
        %2964 = vmatpush1.msra.mxu0 %v646
        %2965 = vmatprep.subr.mxu0 0.0
        %2966 = vmatpush1.msra.mxu0 0.0
        %2967 = vmatprep.subr.mxu0 0.0
        %2968 = vmatpush1.msra.mxu0 0.0
        %2969 = vmatprep.subr.mxu0 0.0
        %2970 = vmatpush1.msra.mxu0 0.0
        %2971 = vmatprep.subr.mxu0 0.0
        %2972 = vmatpush1.msra.mxu0 0.0
        %2973 = vmatprep.subr.mxu0 0.0
        %2974 = vmatpush1.msra.mxu0 0.0
        %2975 = vmatprep.subr.mxu0 0.0
        %2976 = vmatpush1.msra.mxu0 0.0
        %2977 = vmatprep.subr.mxu0 0.0
        %2978 = vmatpush1.msra.mxu0 0.0
        %2979 = vmatprep.subr.mxu0 0.0
        %2980 = vmatpush1.msra.mxu0 0.0
        %2981 = vmatprep.subr.mxu0 0.0
        %2982 = vmatpush1.msra.mxu0 0.0
        %2983 = vmatprep.subr.mxu0 0.0
        %2984 = vmatpush1.msra.mxu0 0.0
        %2985 = vmatprep.subr.mxu0 0.0
        %2986 = vmatpush1.msra.mxu0 0.0
        %2987 = vmatprep.subr.mxu0 0.0
        %2988 = vmatpush1.msra.mxu0 0.0
        %2989 = vmatprep.subr.mxu0 0.0
        %2990 = vmatpush1.msra.mxu0 0.0
        %2991 = vmatprep.subr.mxu0 0.0
        %2992 = vmatpush1.msra.mxu0 0.0
        %2993 = vmatprep.subr.mxu0 0.0
        %2994 = vmatpush1.msra.mxu0 0.0
        %2995 = vmatprep.subr.mxu0 0.0
        %2996 = vmatpush1.msra.mxu0 0.0
        %2997 = vmatprep.mubr.f32.mxu0 0.0
        %2998 = vmatmul.mubr.f32.gmra.mrb[0].mxu0 %v2931
        %v2999 = vpop.f32.mrb[0].mxu0
        %v3000 = vadd.f32 0.0, %v2999
        %v3001 = vpop.f32.mrb[0].mxu0
        %3002 = vmatprep.mubr.f32.mxu0 0.0
        %3003 = vmatmul.mubr.f32.gmra.mrb[0].mxu0 %v2932
        %v3004 = vpop.f32.mrb[0].mxu0
        %v3005 = vadd.f32 0.0, %v3004
        %v3006 = vpop.f32.mrb[0].mxu0
        %3007 = vdwg.mxu0
        %v3008 = vld [vmem:[%s2 + $0x1a0] sm:$0xff]
        %v3009 = vld [vmem:[%s2 + $0x1a8] sm:$0xff]
        %v3010 = vld [vmem:[%s2 + $0x1b0] sm:$0xff]
        %v3011 = vld [vmem:[%s2 + $0x1b8] sm:$0xff]
        %v3013 = vsel %vm832, %v3000, 0
        %v3016 = vsel %vm832, %v3005, 0
        %3018 = vmatprep.subr.mxu0 0.0
        %3019 = vmatpush1.msra.mxu0 %v3008
        %3020 = vmatprep.subr.mxu0 0.0
        %3021 = vmatpush1.msra.mxu0 %v3009
        %3022 = vmatprep.subr.mxu0 0.0
        %3023 = vmatpush1.msra.mxu0 %v3010
        %3024 = vmatprep.subr.mxu0 0.0
        %3025 = vmatpush1.msra.mxu0 %v3011
        %3026 = vmatprep.subr.mxu0 0.0
        %3027 = vmatpush1.msra.mxu0 0.0
        %3028 = vmatprep.subr.mxu0 0.0
        %3029 = vmatpush1.msra.mxu0 0.0
        %3030 = vmatprep.subr.mxu0 0.0
        %3031 = vmatpush1.msra.mxu0 0.0
        %3032 = vmatprep.subr.mxu0 0.0
        %3033 = vmatpush1.msra.mxu0 0.0
        %3034 = vmatprep.subr.mxu0 0.0
        %3035 = vmatpush1.msra.mxu0 0.0
        %3036 = vmatprep.subr.mxu0 0.0
        %3037 = vmatpush1.msra.mxu0 0.0
        %3038 = vmatprep.subr.mxu0 0.0
        %3039 = vmatpush1.msra.mxu0 0.0
        %3040 = vmatprep.subr.mxu0 0.0
        %3041 = vmatpush1.msra.mxu0 0.0
        %3042 = vmatprep.subr.mxu0 0.0
        %3043 = vmatpush1.msra.mxu0 0.0
        %3044 = vmatprep.subr.mxu0 0.0
        %3045 = vmatpush1.msra.mxu0 0.0
        %3046 = vmatprep.subr.mxu0 0.0
        %3047 = vmatpush1.msra.mxu0 0.0
        %3048 = vmatprep.subr.mxu0 0.0
        %3049 = vmatpush1.msra.mxu0 0.0
        %3050 = vmatprep.subr.mxu0 0.0
        %3051 = vmatpush1.msra.mxu0 0.0
        %3052 = vmatprep.subr.mxu0 0.0
        %3053 = vmatpush1.msra.mxu0 0.0
        %3054 = vmatprep.subr.mxu0 0.0
        %3055 = vmatpush1.msra.mxu0 0.0
        %3056 = vmatprep.subr.mxu0 0.0
        %3057 = vmatpush1.msra.mxu0 0.0
        %3058 = vmatprep.subr.mxu0 0.0
        %3059 = vmatpush1.msra.mxu0 0.0
        %3060 = vmatprep.subr.mxu0 0.0
        %3061 = vmatpush1.msra.mxu0 0.0
        %3062 = vmatprep.subr.mxu0 0.0
        %3063 = vmatpush1.msra.mxu0 0.0
        %3064 = vmatprep.subr.mxu0 0.0
        %3065 = vmatpush1.msra.mxu0 0.0
        %3066 = vmatprep.subr.mxu0 0.0
        %3067 = vmatpush1.msra.mxu0 0.0
        %3068 = vmatprep.subr.mxu0 0.0
        %3069 = vmatpush1.msra.mxu0 0.0
        %3070 = vmatprep.subr.mxu0 0.0
        %3071 = vmatpush1.msra.mxu0 0.0
        %3072 = vmatprep.subr.mxu0 0.0
        %3073 = vmatpush1.msra.mxu0 0.0
        %3074 = vmatprep.subr.mxu0 0.0
        %3075 = vmatpush1.msra.mxu0 0.0
        %3076 = vmatprep.subr.mxu0 0.0
        %3077 = vmatpush1.msra.mxu0 0.0
        %3078 = vmatprep.subr.mxu0 0.0
        %3079 = vmatpush1.msra.mxu0 0.0
        %3080 = vmatprep.subr.mxu0 0.0
        %3081 = vmatpush1.msra.mxu0 0.0
        %3082 = vmatprep.mubr.f32.mxu0 0.0
        %3083 = vmatmul.mubr.f32.gmra.mrb[0].mxu0 %v3013
        %v3084 = vpop.f32.mrb[0].mxu0
        %v3085 = vadd.f32 0.0, %v3084
        %v3086 = vpop.f32.mrb[0].mxu0
        %3087 = vmatprep.mubr.f32.mxu0 0.0
        %3088 = vmatmul.mubr.f32.gmra.mrb[0].mxu0 %v3016
        %v3089 = vpop.f32.mrb[0].mxu0
        %v3090 = vadd.f32 0.0, %v3089
        %v3091 = vpop.f32.mrb[0].mxu0
        %3092 = vdwg.mxu0
        %v3093 = vadd.f32 %v2918, %v3085
        %v3094 = vadd.f32 %v2919, %v3090
        %s3095 = scalar_lea.vmem %s601, 224 [#allocation2]
        %v3096 = vld [vmem:[%s3095] sm:$0xff]
        %v3097 = vld [vmem:[%s3095 + $0x8] sm:$0xff]
        %3098 = vset.pattern.permute.xlu0 0
        %3099 = vperm.xlu0 %3098, %v3096
        %v3100 = vpop.permute.xlu0 %3099
        %3101 = vset.pattern.permute.xlu0 0
        %3102 = vperm.xlu0 %3101, %v3097
        %v3103 = vpop.permute.xlu0 %3102
        %vm3104 = vcmp.eq.s32.totalorder %v3100, %v648
        %vm3105 = vcmp.eq.s32.totalorder %v3103, %v648
        %v3106 = vsel %vm3104, 1.0, 0.0
        %v3107 = vsel %vm3105, 1.0, 0.0
        %3108 = vmatprep.subr.mxu0 0.0
        %3109 = vmatpush1.msra.mxu0 %v631
        %3110 = vmatprep.subr.mxu0 0.0
        %3111 = vmatpush1.msra.mxu0 %v632
        %3112 = vmatprep.subr.mxu0 0.0
        %3113 = vmatpush1.msra.mxu0 %v633
        %3114 = vmatprep.subr.mxu0 0.0
        %3115 = vmatpush1.msra.mxu0 %v634
        %3116 = vmatprep.subr.mxu0 0.0
        %3117 = vmatpush1.msra.mxu0 %v635
        %3118 = vmatprep.subr.mxu0 0.0
        %3119 = vmatpush1.msra.mxu0 %v636
        %3120 = vmatprep.subr.mxu0 0.0
        %3121 = vmatpush1.msra.mxu0 %v637
        %3122 = vmatprep.subr.mxu0 0.0
        %3123 = vmatpush1.msra.mxu0 %v638
        %3124 = vmatprep.subr.mxu0 0.0
        %3125 = vmatpush1.msra.mxu0 %v639
        %3126 = vmatprep.subr.mxu0 0.0
        %3127 = vmatpush1.msra.mxu0 %v640
        %3128 = vmatprep.subr.mxu0 0.0
        %3129 = vmatpush1.msra.mxu0 %v641
        %3130 = vmatprep.subr.mxu0 0.0
        %3131 = vmatpush1.msra.mxu0 %v642
        %3132 = vmatprep.subr.mxu0 0.0
        %3133 = vmatpush1.msra.mxu0 %v643
        %3134 = vmatprep.subr.mxu0 0.0
        %3135 = vmatpush1.msra.mxu0 %v644
        %3136 = vmatprep.subr.mxu0 0.0
        %3137 = vmatpush1.msra.mxu0 %v645
        %3138 = vmatprep.subr.mxu0 0.0
        %3139 = vmatpush1.msra.mxu0 %v646
        %3140 = vmatprep.subr.mxu0 0.0
        %3141 = vmatpush1.msra.mxu0 0.0
        %3142 = vmatprep.subr.mxu0 0.0
        %3143 = vmatpush1.msra.mxu0 0.0
        %3144 = vmatprep.subr.mxu0 0.0
        %3145 = vmatpush1.msra.mxu0 0.0
        %3146 = vmatprep.subr.mxu0 0.0
        %3147 = vmatpush1.msra.mxu0 0.0
        %3148 = vmatprep.subr.mxu0 0.0
        %3149 = vmatpush1.msra.mxu0 0.0
        %3150 = vmatprep.subr.mxu0 0.0
        %3151 = vmatpush1.msra.mxu0 0.0
        %3152 = vmatprep.subr.mxu0 0.0
        %3153 = vmatpush1.msra.mxu0 0.0
        %3154 = vmatprep.subr.mxu0 0.0
        %3155 = vmatpush1.msra.mxu0 0.0
        %3156 = vmatprep.subr.mxu0 0.0
        %3157 = vmatpush1.msra.mxu0 0.0
        %3158 = vmatprep.subr.mxu0 0.0
        %3159 = vmatpush1.msra.mxu0 0.0
        %3160 = vmatprep.subr.mxu0 0.0
        %3161 = vmatpush1.msra.mxu0 0.0
        %3162 = vmatprep.subr.mxu0 0.0
        %3163 = vmatpush1.msra.mxu0 0.0
        %3164 = vmatprep.subr.mxu0 0.0
        %3165 = vmatpush1.msra.mxu0 0.0
        %3166 = vmatprep.subr.mxu0 0.0
        %3167 = vmatpush1.msra.mxu0 0.0
        %3168 = vmatprep.subr.mxu0 0.0
        %3169 = vmatpush1.msra.mxu0 0.0
        %3170 = vmatprep.subr.mxu0 0.0
        %3171 = vmatpush1.msra.mxu0 0.0
        %3172 = vmatprep.mubr.f32.mxu0 0.0
        %3173 = vmatmul.mubr.f32.gmra.mrb[0].mxu0 %v3106
        %v3174 = vpop.f32.mrb[0].mxu0
        %v3175 = vadd.f32 0.0, %v3174
        %v3176 = vpop.f32.mrb[0].mxu0
        %3177 = vmatprep.mubr.f32.mxu0 0.0
        %3178 = vmatmul.mubr.f32.gmra.mrb[0].mxu0 %v3107
        %v3179 = vpop.f32.mrb[0].mxu0
        %v3180 = vadd.f32 0.0, %v3179
        %v3181 = vpop.f32.mrb[0].mxu0
        %3182 = vdwg.mxu0
        %v3183 = vld [vmem:[%s2 + $0x1c0] sm:$0xff]
        %v3184 = vld [vmem:[%s2 + $0x1c8] sm:$0xff]
        %v3185 = vld [vmem:[%s2 + $0x1d0] sm:$0xff]
        %v3186 = vld [vmem:[%s2 + $0x1d8] sm:$0xff]
        %v3188 = vsel %vm832, %v3175, 0
        %v3191 = vsel %vm832, %v3180, 0
        %3193 = vmatprep.subr.mxu0 0.0
        %3194 = vmatpush1.msra.mxu0 %v3183
        %3195 = vmatprep.subr.mxu0 0.0
        %3196 = vmatpush1.msra.mxu0 %v3184
        %3197 = vmatprep.subr.mxu0 0.0
        %3198 = vmatpush1.msra.mxu0 %v3185
        %3199 = vmatprep.subr.mxu0 0.0
        %3200 = vmatpush1.msra.mxu0 %v3186
        %3201 = vmatprep.subr.mxu0 0.0
        %3202 = vmatpush1.msra.mxu0 0.0
        %3203 = vmatprep.subr.mxu0 0.0
        %3204 = vmatpush1.msra.mxu0 0.0
        %3205 = vmatprep.subr.mxu0 0.0
        %3206 = vmatpush1.msra.mxu0 0.0
        %3207 = vmatprep.subr.mxu0 0.0
        %3208 = vmatpush1.msra.mxu0 0.0
        %3209 = vmatprep.subr.mxu0 0.0
        %3210 = vmatpush1.msra.mxu0 0.0
        %3211 = vmatprep.subr.mxu0 0.0
        %3212 = vmatpush1.msra.mxu0 0.0
        %3213 = vmatprep.subr.mxu0 0.0
        %3214 = vmatpush1.msra.mxu0 0.0
        %3215 = vmatprep.subr.mxu0 0.0
        %3216 = vmatpush1.msra.mxu0 0.0
        %3217 = vmatprep.subr.mxu0 0.0
        %3218 = vmatpush1.msra.mxu0 0.0
        %3219 = vmatprep.subr.mxu0 0.0
        %3220 = vmatpush1.msra.mxu0 0.0
        %3221 = vmatprep.subr.mxu0 0.0
        %3222 = vmatpush1.msra.mxu0 0.0
        %3223 = vmatprep.subr.mxu0 0.0
        %3224 = vmatpush1.msra.mxu0 0.0
        %3225 = vmatprep.subr.mxu0 0.0
        %3226 = vmatpush1.msra.mxu0 0.0
        %3227 = vmatprep.subr.mxu0 0.0
        %3228 = vmatpush1.msra.mxu0 0.0
        %3229 = vmatprep.subr.mxu0 0.0
        %3230 = vmatpush1.msra.mxu0 0.0
        %3231 = vmatprep.subr.mxu0 0.0
        %3232 = vmatpush1.msra.mxu0 0.0
        %3233 = vmatprep.subr.mxu0 0.0
        %3234 = vmatpush1.msra.mxu0 0.0
        %3235 = vmatprep.subr.mxu0 0.0
        %3236 = vmatpush1.msra.mxu0 0.0
        %3237 = vmatprep.subr.mxu0 0.0
        %3238 = vmatpush1.msra.mxu0 0.0
        %3239 = vmatprep.subr.mxu0 0.0
        %3240 = vmatpush1.msra.mxu0 0.0
        %3241 = vmatprep.subr.mxu0 0.0
        %3242 = vmatpush1.msra.mxu0 0.0
        %3243 = vmatprep.subr.mxu0 0.0
        %3244 = vmatpush1.msra.mxu0 0.0
        %3245 = vmatprep.subr.mxu0 0.0
        %3246 = vmatpush1.msra.mxu0 0.0
        %3247 = vmatprep.subr.mxu0 0.0
        %3248 = vmatpush1.msra.mxu0 0.0
        %3249 = vmatprep.subr.mxu0 0.0
        %3250 = vmatpush1.msra.mxu0 0.0
        %3251 = vmatprep.subr.mxu0 0.0
        %3252 = vmatpush1.msra.mxu0 0.0
        %3253 = vmatprep.subr.mxu0 0.0
        %3254 = vmatpush1.msra.mxu0 0.0
        %3255 = vmatprep.subr.mxu0 0.0
        %3256 = vmatpush1.msra.mxu0 0.0
        %3257 = vmatprep.mubr.f32.mxu0 0.0
        %3258 = vmatmul.mubr.f32.gmra.mrb[0].mxu0 %v3188
        %v3259 = vpop.f32.mrb[0].mxu0
        %v3260 = vadd.f32 0.0, %v3259
        %v3261 = vpop.f32.mrb[0].mxu0
        %3262 = vmatprep.mubr.f32.mxu0 0.0
        %3263 = vmatmul.mubr.f32.gmra.mrb[0].mxu0 %v3191
        %v3264 = vpop.f32.mrb[0].mxu0
        %v3265 = vadd.f32 0.0, %v3264
        %v3266 = vpop.f32.mrb[0].mxu0
        %3267 = vdwg.mxu0
        %v3268 = vadd.f32 %v3093, %v3260
        %v3269 = vadd.f32 %v3094, %v3265
        %s3270 = scalar_lea.vmem %s601, 240 [#allocation2]
        %v3271 = vld [vmem:[%s3270] sm:$0xff]
        %v3272 = vld [vmem:[%s3270 + $0x8] sm:$0xff]
        %3273 = vset.pattern.permute.xlu0 0
        %3274 = vperm.xlu0 %3273, %v3271
        %v3275 = vpop.permute.xlu0 %3274
        %3276 = vset.pattern.permute.xlu0 0
        %3277 = vperm.xlu0 %3276, %v3272
        %v3278 = vpop.permute.xlu0 %3277
        %vm3279 = vcmp.eq.s32.totalorder %v3275, %v648
        %vm3280 = vcmp.eq.s32.totalorder %v3278, %v648
        %v3281 = vsel %vm3279, 1.0, 0.0
        %v3282 = vsel %vm3280, 1.0, 0.0
        %3283 = vmatprep.subr.mxu0 0.0
        %3284 = vmatpush1.msra.mxu0 %v631
        %3285 = vmatprep.subr.mxu0 0.0
        %3286 = vmatpush1.msra.mxu0 %v632
        %3287 = vmatprep.subr.mxu0 0.0
        %3288 = vmatpush1.msra.mxu0 %v633
        %3289 = vmatprep.subr.mxu0 0.0
        %3290 = vmatpush1.msra.mxu0 %v634
        %3291 = vmatprep.subr.mxu0 0.0
        %3292 = vmatpush1.msra.mxu0 %v635
        %3293 = vmatprep.subr.mxu0 0.0
        %3294 = vmatpush1.msra.mxu0 %v636
        %3295 = vmatprep.subr.mxu0 0.0
        %3296 = vmatpush1.msra.mxu0 %v637
        %3297 = vmatprep.subr.mxu0 0.0
        %3298 = vmatpush1.msra.mxu0 %v638
        %3299 = vmatprep.subr.mxu0 0.0
        %3300 = vmatpush1.msra.mxu0 %v639
        %3301 = vmatprep.subr.mxu0 0.0
        %3302 = vmatpush1.msra.mxu0 %v640
        %3303 = vmatprep.subr.mxu0 0.0
        %3304 = vmatpush1.msra.mxu0 %v641
        %3305 = vmatprep.subr.mxu0 0.0
        %3306 = vmatpush1.msra.mxu0 %v642
        %3307 = vmatprep.subr.mxu0 0.0
        %3308 = vmatpush1.msra.mxu0 %v643
        %3309 = vmatprep.subr.mxu0 0.0
        %3310 = vmatpush1.msra.mxu0 %v644
        %3311 = vmatprep.subr.mxu0 0.0
        %3312 = vmatpush1.msra.mxu0 %v645
        %3313 = vmatprep.subr.mxu0 0.0
        %3314 = vmatpush1.msra.mxu0 %v646
        %3315 = vmatprep.subr.mxu0 0.0
        %3316 = vmatpush1.msra.mxu0 0.0
        %3317 = vmatprep.subr.mxu0 0.0
        %3318 = vmatpush1.msra.mxu0 0.0
        %3319 = vmatprep.subr.mxu0 0.0
        %3320 = vmatpush1.msra.mxu0 0.0
        %3321 = vmatprep.subr.mxu0 0.0
        %3322 = vmatpush1.msra.mxu0 0.0
        %3323 = vmatprep.subr.mxu0 0.0
        %3324 = vmatpush1.msra.mxu0 0.0
        %3325 = vmatprep.subr.mxu0 0.0
        %3326 = vmatpush1.msra.mxu0 0.0
        %3327 = vmatprep.subr.mxu0 0.0
        %3328 = vmatpush1.msra.mxu0 0.0
        %3329 = vmatprep.subr.mxu0 0.0
        %3330 = vmatpush1.msra.mxu0 0.0
        %3331 = vmatprep.subr.mxu0 0.0
        %3332 = vmatpush1.msra.mxu0 0.0
        %3333 = vmatprep.subr.mxu0 0.0
        %3334 = vmatpush1.msra.mxu0 0.0
        %3335 = vmatprep.subr.mxu0 0.0
        %3336 = vmatpush1.msra.mxu0 0.0
        %3337 = vmatprep.subr.mxu0 0.0
        %3338 = vmatpush1.msra.mxu0 0.0
        %3339 = vmatprep.subr.mxu0 0.0
        %3340 = vmatpush1.msra.mxu0 0.0
        %3341 = vmatprep.subr.mxu0 0.0
        %3342 = vmatpush1.msra.mxu0 0.0
        %3343 = vmatprep.subr.mxu0 0.0
        %3344 = vmatpush1.msra.mxu0 0.0
        %3345 = vmatprep.subr.mxu0 0.0
        %3346 = vmatpush1.msra.mxu0 0.0
        %3347 = vmatprep.mubr.f32.mxu0 0.0
        %3348 = vmatmul.mubr.f32.gmra.mrb[0].mxu0 %v3281
        %v3349 = vpop.f32.mrb[0].mxu0
        %v3350 = vadd.f32 0.0, %v3349
        %v3351 = vpop.f32.mrb[0].mxu0
        %3352 = vmatprep.mubr.f32.mxu0 0.0
        %3353 = vmatmul.mubr.f32.gmra.mrb[0].mxu0 %v3282
        %v3354 = vpop.f32.mrb[0].mxu0
        %v3355 = vadd.f32 0.0, %v3354
        %v3356 = vpop.f32.mrb[0].mxu0
        %3357 = vdwg.mxu0
        %v3358 = vld [vmem:[%s2 + $0x1e0] sm:$0xff]
        %v3359 = vld [vmem:[%s2 + $0x1e8] sm:$0xff]
        %v3360 = vld [vmem:[%s2 + $0x1f0] sm:$0xff]
        %v3361 = vld [vmem:[%s2 + $0x1f8] sm:$0xff]
        %v3363 = vsel %vm832, %v3350, 0
        %v3366 = vsel %vm832, %v3355, 0
        %3368 = vmatprep.subr.mxu0 0.0
        %3369 = vmatpush1.msra.mxu0 %v3358
        %3370 = vmatprep.subr.mxu0 0.0
        %3371 = vmatpush1.msra.mxu0 %v3359
        %3372 = vmatprep.subr.mxu0 0.0
        %3373 = vmatpush1.msra.mxu0 %v3360
        %3374 = vmatprep.subr.mxu0 0.0
        %3375 = vmatpush1.msra.mxu0 %v3361
        %3376 = vmatprep.subr.mxu0 0.0
        %3377 = vmatpush1.msra.mxu0 0.0
        %3378 = vmatprep.subr.mxu0 0.0
        %3379 = vmatpush1.msra.mxu0 0.0
        %3380 = vmatprep.subr.mxu0 0.0
        %3381 = vmatpush1.msra.mxu0 0.0
        %3382 = vmatprep.subr.mxu0 0.0
        %3383 = vmatpush1.msra.mxu0 0.0
        %3384 = vmatprep.subr.mxu0 0.0
        %3385 = vmatpush1.msra.mxu0 0.0
        %3386 = vmatprep.subr.mxu0 0.0
        %3387 = vmatpush1.msra.mxu0 0.0
        %3388 = vmatprep.subr.mxu0 0.0
        %3389 = vmatpush1.msra.mxu0 0.0
        %3390 = vmatprep.subr.mxu0 0.0
        %3391 = vmatpush1.msra.mxu0 0.0
        %3392 = vmatprep.subr.mxu0 0.0
        %3393 = vmatpush1.msra.mxu0 0.0
        %3394 = vmatprep.subr.mxu0 0.0
        %3395 = vmatpush1.msra.mxu0 0.0
        %3396 = vmatprep.subr.mxu0 0.0
        %3397 = vmatpush1.msra.mxu0 0.0
        %3398 = vmatprep.subr.mxu0 0.0
        %3399 = vmatpush1.msra.mxu0 0.0
        %3400 = vmatprep.subr.mxu0 0.0
        %3401 = vmatpush1.msra.mxu0 0.0
        %3402 = vmatprep.subr.mxu0 0.0
        %3403 = vmatpush1.msra.mxu0 0.0
        %3404 = vmatprep.subr.mxu0 0.0
        %3405 = vmatpush1.msra.mxu0 0.0
        %3406 = vmatprep.subr.mxu0 0.0
        %3407 = vmatpush1.msra.mxu0 0.0
        %3408 = vmatprep.subr.mxu0 0.0
        %3409 = vmatpush1.msra.mxu0 0.0
        %3410 = vmatprep.subr.mxu0 0.0
        %3411 = vmatpush1.msra.mxu0 0.0
        %3412 = vmatprep.subr.mxu0 0.0
        %3413 = vmatpush1.msra.mxu0 0.0
        %3414 = vmatprep.subr.mxu0 0.0
        %3415 = vmatpush1.msra.mxu0 0.0
        %3416 = vmatprep.subr.mxu0 0.0
        %3417 = vmatpush1.msra.mxu0 0.0
        %3418 = vmatprep.subr.mxu0 0.0
        %3419 = vmatpush1.msra.mxu0 0.0
        %3420 = vmatprep.subr.mxu0 0.0
        %3421 = vmatpush1.msra.mxu0 0.0
        %3422 = vmatprep.subr.mxu0 0.0
        %3423 = vmatpush1.msra.mxu0 0.0
        %3424 = vmatprep.subr.mxu0 0.0
        %3425 = vmatpush1.msra.mxu0 0.0
        %3426 = vmatprep.subr.mxu0 0.0
        %3427 = vmatpush1.msra.mxu0 0.0
        %3428 = vmatprep.subr.mxu0 0.0
        %3429 = vmatpush1.msra.mxu0 0.0
        %3430 = vmatprep.subr.mxu0 0.0
        %3431 = vmatpush1.msra.mxu0 0.0
        %3432 = vmatprep.mubr.f32.mxu0 0.0
        %3433 = vmatmul.mubr.f32.gmra.mrb[0].mxu0 %v3363
        %v3434 = vpop.f32.mrb[0].mxu0
        %v3435 = vadd.f32 0.0, %v3434
        %v3436 = vpop.f32.mrb[0].mxu0
        %3437 = vmatprep.mubr.f32.mxu0 0.0
        %3438 = vmatmul.mubr.f32.gmra.mrb[0].mxu0 %v3366
        %v3439 = vpop.f32.mrb[0].mxu0
        %v3440 = vadd.f32 0.0, %v3439
        %v3441 = vpop.f32.mrb[0].mxu0
        %3442 = vdwg.mxu0
        %v3443 = vadd.f32 %v3268, %v3435
        %v3444 = vadd.f32 %v3269, %v3440
        %s3445 = scalar_lea.vmem %s601, 256 [#allocation2]
        %v3446 = vld [vmem:[%s3445] sm:$0xff]
        %v3447 = vld [vmem:[%s3445 + $0x8] sm:$0xff]
        %3448 = vset.pattern.permute.xlu0 0
        %3449 = vperm.xlu0 %3448, %v3446
        %v3450 = vpop.permute.xlu0 %3449
        %3451 = vset.pattern.permute.xlu0 0
        %3452 = vperm.xlu0 %3451, %v3447
        %v3453 = vpop.permute.xlu0 %3452
        %vm3454 = vcmp.eq.s32.totalorder %v3450, %v648
        %vm3455 = vcmp.eq.s32.totalorder %v3453, %v648
        %v3456 = vsel %vm3454, 1.0, 0.0
        %v3457 = vsel %vm3455, 1.0, 0.0
        %3458 = vmatprep.subr.mxu0 0.0
        %3459 = vmatpush1.msra.mxu0 %v631
        %3460 = vmatprep.subr.mxu0 0.0
        %3461 = vmatpush1.msra.mxu0 %v632
        %3462 = vmatprep.subr.mxu0 0.0
        %3463 = vmatpush1.msra.mxu0 %v633
        %3464 = vmatprep.subr.mxu0 0.0
        %3465 = vmatpush1.msra.mxu0 %v634
        %3466 = vmatprep.subr.mxu0 0.0
        %3467 = vmatpush1.msra.mxu0 %v635
        %3468 = vmatprep.subr.mxu0 0.0
        %3469 = vmatpush1.msra.mxu0 %v636
        %3470 = vmatprep.subr.mxu0 0.0
        %3471 = vmatpush1.msra.mxu0 %v637
        %3472 = vmatprep.subr.mxu0 0.0
        %3473 = vmatpush1.msra.mxu0 %v638
        %3474 = vmatprep.subr.mxu0 0.0
        %3475 = vmatpush1.msra.mxu0 %v639
        %3476 = vmatprep.subr.mxu0 0.0
        %3477 = vmatpush1.msra.mxu0 %v640
        %3478 = vmatprep.subr.mxu0 0.0
        %3479 = vmatpush1.msra.mxu0 %v641
        %3480 = vmatprep.subr.mxu0 0.0
        %3481 = vmatpush1.msra.mxu0 %v642
        %3482 = vmatprep.subr.mxu0 0.0
        %3483 = vmatpush1.msra.mxu0 %v643
        %3484 = vmatprep.subr.mxu0 0.0
        %3485 = vmatpush1.msra.mxu0 %v644
        %3486 = vmatprep.subr.mxu0 0.0
        %3487 = vmatpush1.msra.mxu0 %v645
        %3488 = vmatprep.subr.mxu0 0.0
        %3489 = vmatpush1.msra.mxu0 %v646
        %3490 = vmatprep.subr.mxu0 0.0
        %3491 = vmatpush1.msra.mxu0 0.0
        %3492 = vmatprep.subr.mxu0 0.0
        %3493 = vmatpush1.msra.mxu0 0.0
        %3494 = vmatprep.subr.mxu0 0.0
        %3495 = vmatpush1.msra.mxu0 0.0
        %3496 = vmatprep.subr.mxu0 0.0
        %3497 = vmatpush1.msra.mxu0 0.0
        %3498 = vmatprep.subr.mxu0 0.0
        %3499 = vmatpush1.msra.mxu0 0.0
        %3500 = vmatprep.subr.mxu0 0.0
        %3501 = vmatpush1.msra.mxu0 0.0
        %3502 = vmatprep.subr.mxu0 0.0
        %3503 = vmatpush1.msra.mxu0 0.0
        %3504 = vmatprep.subr.mxu0 0.0
        %3505 = vmatpush1.msra.mxu0 0.0
        %3506 = vmatprep.subr.mxu0 0.0
        %3507 = vmatpush1.msra.mxu0 0.0
        %3508 = vmatprep.subr.mxu0 0.0
        %3509 = vmatpush1.msra.mxu0 0.0
        %3510 = vmatprep.subr.mxu0 0.0
        %3511 = vmatpush1.msra.mxu0 0.0
        %3512 = vmatprep.subr.mxu0 0.0
        %3513 = vmatpush1.msra.mxu0 0.0
        %3514 = vmatprep.subr.mxu0 0.0
        %3515 = vmatpush1.msra.mxu0 0.0
        %3516 = vmatprep.subr.mxu0 0.0
        %3517 = vmatpush1.msra.mxu0 0.0
        %3518 = vmatprep.subr.mxu0 0.0
        %3519 = vmatpush1.msra.mxu0 0.0
        %3520 = vmatprep.subr.mxu0 0.0
        %3521 = vmatpush1.msra.mxu0 0.0
        %3522 = vmatprep.mubr.f32.mxu0 0.0
        %3523 = vmatmul.mubr.f32.gmra.mrb[0].mxu0 %v3456
        %v3524 = vpop.f32.mrb[0].mxu0
        %v3525 = vadd.f32 0.0, %v3524
        %v3526 = vpop.f32.mrb[0].mxu0
        %3527 = vmatprep.mubr.f32.mxu0 0.0
        %3528 = vmatmul.mubr.f32.gmra.mrb[0].mxu0 %v3457
        %v3529 = vpop.f32.mrb[0].mxu0
        %v3530 = vadd.f32 0.0, %v3529
        %v3531 = vpop.f32.mrb[0].mxu0
        %3532 = vdwg.mxu0
        %v3533 = vld [vmem:[%s2 + $0x200] sm:$0xff]
        %v3534 = vld [vmem:[%s2 + $0x208] sm:$0xff]
        %v3535 = vld [vmem:[%s2 + $0x210] sm:$0xff]
        %v3536 = vld [vmem:[%s2 + $0x218] sm:$0xff]
        %v3538 = vsel %vm832, %v3525, 0
        %v3541 = vsel %vm832, %v3530, 0
        %3543 = vmatprep.subr.mxu0 0.0
        %3544 = vmatpush1.msra.mxu0 %v3533
        %3545 = vmatprep.subr.mxu0 0.0
        %3546 = vmatpush1.msra.mxu0 %v3534
        %3547 = vmatprep.subr.mxu0 0.0
        %3548 = vmatpush1.msra.mxu0 %v3535
        %3549 = vmatprep.subr.mxu0 0.0
        %3550 = vmatpush1.msra.mxu0 %v3536
        %3551 = vmatprep.subr.mxu0 0.0
        %3552 = vmatpush1.msra.mxu0 0.0
        %3553 = vmatprep.subr.mxu0 0.0
        %3554 = vmatpush1.msra.mxu0 0.0
        %3555 = vmatprep.subr.mxu0 0.0
        %3556 = vmatpush1.msra.mxu0 0.0
        %3557 = vmatprep.subr.mxu0 0.0
        %3558 = vmatpush1.msra.mxu0 0.0
        %3559 = vmatprep.subr.mxu0 0.0
        %3560 = vmatpush1.msra.mxu0 0.0
        %3561 = vmatprep.subr.mxu0 0.0
        %3562 = vmatpush1.msra.mxu0 0.0
        %3563 = vmatprep.subr.mxu0 0.0
        %3564 = vmatpush1.msra.mxu0 0.0
        %3565 = vmatprep.subr.mxu0 0.0
        %3566 = vmatpush1.msra.mxu0 0.0
        %3567 = vmatprep.subr.mxu0 0.0
        %3568 = vmatpush1.msra.mxu0 0.0
        %3569 = vmatprep.subr.mxu0 0.0
        %3570 = vmatpush1.msra.mxu0 0.0
        %3571 = vmatprep.subr.mxu0 0.0
        %3572 = vmatpush1.msra.mxu0 0.0
        %3573 = vmatprep.subr.mxu0 0.0
        %3574 = vmatpush1.msra.mxu0 0.0
        %3575 = vmatprep.subr.mxu0 0.0
        %3576 = vmatpush1.msra.mxu0 0.0
        %3577 = vmatprep.subr.mxu0 0.0
        %3578 = vmatpush1.msra.mxu0 0.0
        %3579 = vmatprep.subr.mxu0 0.0
        %3580 = vmatpush1.msra.mxu0 0.0
        %3581 = vmatprep.subr.mxu0 0.0
        %3582 = vmatpush1.msra.mxu0 0.0
        %3583 = vmatprep.subr.mxu0 0.0
        %3584 = vmatpush1.msra.mxu0 0.0
        %3585 = vmatprep.subr.mxu0 0.0
        %3586 = vmatpush1.msra.mxu0 0.0
        %3587 = vmatprep.subr.mxu0 0.0
        %3588 = vmatpush1.msra.mxu0 0.0
        %3589 = vmatprep.subr.mxu0 0.0
        %3590 = vmatpush1.msra.mxu0 0.0
        %3591 = vmatprep.subr.mxu0 0.0
        %3592 = vmatpush1.msra.mxu0 0.0
        %3593 = vmatprep.subr.mxu0 0.0
        %3594 = vmatpush1.msra.mxu0 0.0
        %3595 = vmatprep.subr.mxu0 0.0
        %3596 = vmatpush1.msra.mxu0 0.0
        %3597 = vmatprep.subr.mxu0 0.0
        %3598 = vmatpush1.msra.mxu0 0.0
        %3599 = vmatprep.subr.mxu0 0.0
        %3600 = vmatpush1.msra.mxu0 0.0
        %3601 = vmatprep.subr.mxu0 0.0
        %3602 = vmatpush1.msra.mxu0 0.0
        %3603 = vmatprep.subr.mxu0 0.0
        %3604 = vmatpush1.msra.mxu0 0.0
        %3605 = vmatprep.subr.mxu0 0.0
        %3606 = vmatpush1.msra.mxu0 0.0
        %3607 = vmatprep.mubr.f32.mxu0 0.0
        %3608 = vmatmul.mubr.f32.gmra.mrb[0].mxu0 %v3538
        %v3609 = vpop.f32.mrb[0].mxu0
        %v3610 = vadd.f32 0.0, %v3609
        %v3611 = vpop.f32.mrb[0].mxu0
        %3612 = vmatprep.mubr.f32.mxu0 0.0
        %3613 = vmatmul.mubr.f32.gmra.mrb[0].mxu0 %v3541
        %v3614 = vpop.f32.mrb[0].mxu0
        %v3615 = vadd.f32 0.0, %v3614
        %v3616 = vpop.f32.mrb[0].mxu0
        %3617 = vdwg.mxu0
        %v3618 = vadd.f32 %v3443, %v3610
        %v3619 = vadd.f32 %v3444, %v3615
        %s3620 = scalar_lea.vmem %s601, 272 [#allocation2]
        %v3621 = vld [vmem:[%s3620] sm:$0xff]
        %v3622 = vld [vmem:[%s3620 + $0x8] sm:$0xff]
        %3623 = vset.pattern.permute.xlu0 0
        %3624 = vperm.xlu0 %3623, %v3621
        %v3625 = vpop.permute.xlu0 %3624
        %3626 = vset.pattern.permute.xlu0 0
        %3627 = vperm.xlu0 %3626, %v3622
        %v3628 = vpop.permute.xlu0 %3627
        %vm3629 = vcmp.eq.s32.totalorder %v3625, %v648
        %vm3630 = vcmp.eq.s32.totalorder %v3628, %v648
        %v3631 = vsel %vm3629, 1.0, 0.0
        %v3632 = vsel %vm3630, 1.0, 0.0
        %3633 = vmatprep.subr.mxu0 0.0
        %3634 = vmatpush1.msra.mxu0 %v631
        %3635 = vmatprep.subr.mxu0 0.0
        %3636 = vmatpush1.msra.mxu0 %v632
        %3637 = vmatprep.subr.mxu0 0.0
        %3638 = vmatpush1.msra.mxu0 %v633
        %3639 = vmatprep.subr.mxu0 0.0
        %3640 = vmatpush1.msra.mxu0 %v634
        %3641 = vmatprep.subr.mxu0 0.0
        %3642 = vmatpush1.msra.mxu0 %v635
        %3643 = vmatprep.subr.mxu0 0.0
        %3644 = vmatpush1.msra.mxu0 %v636
        %3645 = vmatprep.subr.mxu0 0.0
        %3646 = vmatpush1.msra.mxu0 %v637
        %3647 = vmatprep.subr.mxu0 0.0
        %3648 = vmatpush1.msra.mxu0 %v638
        %3649 = vmatprep.subr.mxu0 0.0
        %3650 = vmatpush1.msra.mxu0 %v639
        %3651 = vmatprep.subr.mxu0 0.0
        %3652 = vmatpush1.msra.mxu0 %v640
        %3653 = vmatprep.subr.mxu0 0.0
        %3654 = vmatpush1.msra.mxu0 %v641
        %3655 = vmatprep.subr.mxu0 0.0
        %3656 = vmatpush1.msra.mxu0 %v642
        %3657 = vmatprep.subr.mxu0 0.0
        %3658 = vmatpush1.msra.mxu0 %v643
        %3659 = vmatprep.subr.mxu0 0.0
        %3660 = vmatpush1.msra.mxu0 %v644
        %3661 = vmatprep.subr.mxu0 0.0
        %3662 = vmatpush1.msra.mxu0 %v645
        %3663 = vmatprep.subr.mxu0 0.0
        %3664 = vmatpush1.msra.mxu0 %v646
        %3665 = vmatprep.subr.mxu0 0.0
        %3666 = vmatpush1.msra.mxu0 0.0
        %3667 = vmatprep.subr.mxu0 0.0
        %3668 = vmatpush1.msra.mxu0 0.0
        %3669 = vmatprep.subr.mxu0 0.0
        %3670 = vmatpush1.msra.mxu0 0.0
        %3671 = vmatprep.subr.mxu0 0.0
        %3672 = vmatpush1.msra.mxu0 0.0
        %3673 = vmatprep.subr.mxu0 0.0
        %3674 = vmatpush1.msra.mxu0 0.0
        %3675 = vmatprep.subr.mxu0 0.0
        %3676 = vmatpush1.msra.mxu0 0.0
        %3677 = vmatprep.subr.mxu0 0.0
        %3678 = vmatpush1.msra.mxu0 0.0
        %3679 = vmatprep.subr.mxu0 0.0
        %3680 = vmatpush1.msra.mxu0 0.0
        %3681 = vmatprep.subr.mxu0 0.0
        %3682 = vmatpush1.msra.mxu0 0.0
        %3683 = vmatprep.subr.mxu0 0.0
        %3684 = vmatpush1.msra.mxu0 0.0
        %3685 = vmatprep.subr.mxu0 0.0
        %3686 = vmatpush1.msra.mxu0 0.0
        %3687 = vmatprep.subr.mxu0 0.0
        %3688 = vmatpush1.msra.mxu0 0.0
        %3689 = vmatprep.subr.mxu0 0.0
        %3690 = vmatpush1.msra.mxu0 0.0
        %3691 = vmatprep.subr.mxu0 0.0
        %3692 = vmatpush1.msra.mxu0 0.0
        %3693 = vmatprep.subr.mxu0 0.0
        %3694 = vmatpush1.msra.mxu0 0.0
        %3695 = vmatprep.subr.mxu0 0.0
        %3696 = vmatpush1.msra.mxu0 0.0
        %3697 = vmatprep.mubr.f32.mxu0 0.0
        %3698 = vmatmul.mubr.f32.gmra.mrb[0].mxu0 %v3631
        %v3699 = vpop.f32.mrb[0].mxu0
        %v3700 = vadd.f32 0.0, %v3699
        %v3701 = vpop.f32.mrb[0].mxu0
        %3702 = vmatprep.mubr.f32.mxu0 0.0
        %3703 = vmatmul.mubr.f32.gmra.mrb[0].mxu0 %v3632
        %v3704 = vpop.f32.mrb[0].mxu0
        %v3705 = vadd.f32 0.0, %v3704
        %v3706 = vpop.f32.mrb[0].mxu0
        %3707 = vdwg.mxu0
        %v3708 = vld [vmem:[%s2 + $0x220] sm:$0xff]
        %v3709 = vld [vmem:[%s2 + $0x228] sm:$0xff]
        %v3710 = vld [vmem:[%s2 + $0x230] sm:$0xff]
        %v3711 = vld [vmem:[%s2 + $0x238] sm:$0xff]
        %v3713 = vsel %vm832, %v3700, 0
        %v3716 = vsel %vm832, %v3705, 0
        %3718 = vmatprep.subr.mxu0 0.0
        %3719 = vmatpush1.msra.mxu0 %v3708
        %3720 = vmatprep.subr.mxu0 0.0
        %3721 = vmatpush1.msra.mxu0 %v3709
        %3722 = vmatprep.subr.mxu0 0.0
        %3723 = vmatpush1.msra.mxu0 %v3710
        %3724 = vmatprep.subr.mxu0 0.0
        %3725 = vmatpush1.msra.mxu0 %v3711
        %3726 = vmatprep.subr.mxu0 0.0
        %3727 = vmatpush1.msra.mxu0 0.0
        %3728 = vmatprep.subr.mxu0 0.0
        %3729 = vmatpush1.msra.mxu0 0.0
        %3730 = vmatprep.subr.mxu0 0.0
        %3731 = vmatpush1.msra.mxu0 0.0
        %3732 = vmatprep.subr.mxu0 0.0
        %3733 = vmatpush1.msra.mxu0 0.0
        %3734 = vmatprep.subr.mxu0 0.0
        %3735 = vmatpush1.msra.mxu0 0.0
        %3736 = vmatprep.subr.mxu0 0.0
        %3737 = vmatpush1.msra.mxu0 0.0
        %3738 = vmatprep.subr.mxu0 0.0
        %3739 = vmatpush1.msra.mxu0 0.0
        %3740 = vmatprep.subr.mxu0 0.0
        %3741 = vmatpush1.msra.mxu0 0.0
        %3742 = vmatprep.subr.mxu0 0.0
        %3743 = vmatpush1.msra.mxu0 0.0
        %3744 = vmatprep.subr.mxu0 0.0
        %3745 = vmatpush1.msra.mxu0 0.0
        %3746 = vmatprep.subr.mxu0 0.0
        %3747 = vmatpush1.msra.mxu0 0.0
        %3748 = vmatprep.subr.mxu0 0.0
        %3749 = vmatpush1.msra.mxu0 0.0
        %3750 = vmatprep.subr.mxu0 0.0
        %3751 = vmatpush1.msra.mxu0 0.0
        %3752 = vmatprep.subr.mxu0 0.0
        %3753 = vmatpush1.msra.mxu0 0.0
        %3754 = vmatprep.subr.mxu0 0.0
        %3755 = vmatpush1.msra.mxu0 0.0
        %3756 = vmatprep.subr.mxu0 0.0
        %3757 = vmatpush1.msra.mxu0 0.0
        %3758 = vmatprep.subr.mxu0 0.0
        %3759 = vmatpush1.msra.mxu0 0.0
        %3760 = vmatprep.subr.mxu0 0.0
        %3761 = vmatpush1.msra.mxu0 0.0
        %3762 = vmatprep.subr.mxu0 0.0
        %3763 = vmatpush1.msra.mxu0 0.0
        %3764 = vmatprep.subr.mxu0 0.0
        %3765 = vmatpush1.msra.mxu0 0.0
        %3766 = vmatprep.subr.mxu0 0.0
        %3767 = vmatpush1.msra.mxu0 0.0
        %3768 = vmatprep.subr.mxu0 0.0
        %3769 = vmatpush1.msra.mxu0 0.0
        %3770 = vmatprep.subr.mxu0 0.0
        %3771 = vmatpush1.msra.mxu0 0.0
        %3772 = vmatprep.subr.mxu0 0.0
        %3773 = vmatpush1.msra.mxu0 0.0
        %3774 = vmatprep.subr.mxu0 0.0
        %3775 = vmatpush1.msra.mxu0 0.0
        %3776 = vmatprep.subr.mxu0 0.0
        %3777 = vmatpush1.msra.mxu0 0.0
        %3778 = vmatprep.subr.mxu0 0.0
        %3779 = vmatpush1.msra.mxu0 0.0
        %3780 = vmatprep.subr.mxu0 0.0
        %3781 = vmatpush1.msra.mxu0 0.0
        %3782 = vmatprep.mubr.f32.mxu0 0.0
        %3783 = vmatmul.mubr.f32.gmra.mrb[0].mxu0 %v3713
        %v3784 = vpop.f32.mrb[0].mxu0
        %v3785 = vadd.f32 0.0, %v3784
        %v3786 = vpop.f32.mrb[0].mxu0
        %3787 = vmatprep.mubr.f32.mxu0 0.0
        %3788 = vmatmul.mubr.f32.gmra.mrb[0].mxu0 %v3716
        %v3789 = vpop.f32.mrb[0].mxu0
        %v3790 = vadd.f32 0.0, %v3789
        %v3791 = vpop.f32.mrb[0].mxu0
        %3792 = vdwg.mxu0
        %v3793 = vadd.f32 %v3618, %v3785
        %v3794 = vadd.f32 %v3619, %v3790
        %s3795 = scalar_lea.vmem %s601, 288 [#allocation2]
        %v3796 = vld [vmem:[%s3795] sm:$0xff]
        %v3797 = vld [vmem:[%s3795 + $0x8] sm:$0xff]
        %3798 = vset.pattern.permute.xlu0 0
        %3799 = vperm.xlu0 %3798, %v3796
        %v3800 = vpop.permute.xlu0 %3799
        %3801 = vset.pattern.permute.xlu0 0
        %3802 = vperm.xlu0 %3801, %v3797
        %v3803 = vpop.permute.xlu0 %3802
        %vm3804 = vcmp.eq.s32.totalorder %v3800, %v648
        %vm3805 = vcmp.eq.s32.totalorder %v3803, %v648
        %v3806 = vsel %vm3804, 1.0, 0.0
        %v3807 = vsel %vm3805, 1.0, 0.0
        %3808 = vmatprep.subr.mxu0 0.0
        %3809 = vmatpush1.msra.mxu0 %v631
        %3810 = vmatprep.subr.mxu0 0.0
        %3811 = vmatpush1.msra.mxu0 %v632
        %3812 = vmatprep.subr.mxu0 0.0
        %3813 = vmatpush1.msra.mxu0 %v633
        %3814 = vmatprep.subr.mxu0 0.0
        %3815 = vmatpush1.msra.mxu0 %v634
        %3816 = vmatprep.subr.mxu0 0.0
        %3817 = vmatpush1.msra.mxu0 %v635
        %3818 = vmatprep.subr.mxu0 0.0
        %3819 = vmatpush1.msra.mxu0 %v636
        %3820 = vmatprep.subr.mxu0 0.0
        %3821 = vmatpush1.msra.mxu0 %v637
        %3822 = vmatprep.subr.mxu0 0.0
        %3823 = vmatpush1.msra.mxu0 %v638
        %3824 = vmatprep.subr.mxu0 0.0
        %3825 = vmatpush1.msra.mxu0 %v639
        %3826 = vmatprep.subr.mxu0 0.0
        %3827 = vmatpush1.msra.mxu0 %v640
        %3828 = vmatprep.subr.mxu0 0.0
        %3829 = vmatpush1.msra.mxu0 %v641
        %3830 = vmatprep.subr.mxu0 0.0
        %3831 = vmatpush1.msra.mxu0 %v642
        %3832 = vmatprep.subr.mxu0 0.0
        %3833 = vmatpush1.msra.mxu0 %v643
        %3834 = vmatprep.subr.mxu0 0.0
        %3835 = vmatpush1.msra.mxu0 %v644
        %3836 = vmatprep.subr.mxu0 0.0
        %3837 = vmatpush1.msra.mxu0 %v645
        %3838 = vmatprep.subr.mxu0 0.0
        %3839 = vmatpush1.msra.mxu0 %v646
        %3840 = vmatprep.subr.mxu0 0.0
        %3841 = vmatpush1.msra.mxu0 0.0
        %3842 = vmatprep.subr.mxu0 0.0
        %3843 = vmatpush1.msra.mxu0 0.0
        %3844 = vmatprep.subr.mxu0 0.0
        %3845 = vmatpush1.msra.mxu0 0.0
        %3846 = vmatprep.subr.mxu0 0.0
        %3847 = vmatpush1.msra.mxu0 0.0
        %3848 = vmatprep.subr.mxu0 0.0
        %3849 = vmatpush1.msra.mxu0 0.0
        %3850 = vmatprep.subr.mxu0 0.0
        %3851 = vmatpush1.msra.mxu0 0.0
        %3852 = vmatprep.subr.mxu0 0.0
        %3853 = vmatpush1.msra.mxu0 0.0
        %3854 = vmatprep.subr.mxu0 0.0
        %3855 = vmatpush1.msra.mxu0 0.0
        %3856 = vmatprep.subr.mxu0 0.0
        %3857 = vmatpush1.msra.mxu0 0.0
        %3858 = vmatprep.subr.mxu0 0.0
        %3859 = vmatpush1.msra.mxu0 0.0
        %3860 = vmatprep.subr.mxu0 0.0
        %3861 = vmatpush1.msra.mxu0 0.0
        %3862 = vmatprep.subr.mxu0 0.0
        %3863 = vmatpush1.msra.mxu0 0.0
        %3864 = vmatprep.subr.mxu0 0.0
        %3865 = vmatpush1.msra.mxu0 0.0
        %3866 = vmatprep.subr.mxu0 0.0
        %3867 = vmatpush1.msra.mxu0 0.0
        %3868 = vmatprep.subr.mxu0 0.0
        %3869 = vmatpush1.msra.mxu0 0.0
        %3870 = vmatprep.subr.mxu0 0.0
        %3871 = vmatpush1.msra.mxu0 0.0
        %3872 = vmatprep.mubr.f32.mxu0 0.0
        %3873 = vmatmul.mubr.f32.gmra.mrb[0].mxu0 %v3806
        %v3874 = vpop.f32.mrb[0].mxu0
        %v3875 = vadd.f32 0.0, %v3874
        %v3876 = vpop.f32.mrb[0].mxu0
        %3877 = vmatprep.mubr.f32.mxu0 0.0
        %3878 = vmatmul.mubr.f32.gmra.mrb[0].mxu0 %v3807
        %v3879 = vpop.f32.mrb[0].mxu0
        %v3880 = vadd.f32 0.0, %v3879
        %v3881 = vpop.f32.mrb[0].mxu0
        %3882 = vdwg.mxu0
        %v3883 = vld [vmem:[%s2 + $0x240] sm:$0xff]
        %v3884 = vld [vmem:[%s2 + $0x248] sm:$0xff]
        %v3885 = vld [vmem:[%s2 + $0x250] sm:$0xff]
        %v3886 = vld [vmem:[%s2 + $0x258] sm:$0xff]
        %v3888 = vsel %vm832, %v3875, 0
        %v3891 = vsel %vm832, %v3880, 0
        %3893 = vmatprep.subr.mxu0 0.0
        %3894 = vmatpush1.msra.mxu0 %v3883
        %3895 = vmatprep.subr.mxu0 0.0
        %3896 = vmatpush1.msra.mxu0 %v3884
        %3897 = vmatprep.subr.mxu0 0.0
        %3898 = vmatpush1.msra.mxu0 %v3885
        %3899 = vmatprep.subr.mxu0 0.0
        %3900 = vmatpush1.msra.mxu0 %v3886
        %3901 = vmatprep.subr.mxu0 0.0
        %3902 = vmatpush1.msra.mxu0 0.0
        %3903 = vmatprep.subr.mxu0 0.0
        %3904 = vmatpush1.msra.mxu0 0.0
        %3905 = vmatprep.subr.mxu0 0.0
        %3906 = vmatpush1.msra.mxu0 0.0
        %3907 = vmatprep.subr.mxu0 0.0
        %3908 = vmatpush1.msra.mxu0 0.0
        %3909 = vmatprep.subr.mxu0 0.0
        %3910 = vmatpush1.msra.mxu0 0.0
        %3911 = vmatprep.subr.mxu0 0.0
        %3912 = vmatpush1.msra.mxu0 0.0
        %3913 = vmatprep.subr.mxu0 0.0
        %3914 = vmatpush1.msra.mxu0 0.0
        %3915 = vmatprep.subr.mxu0 0.0
        %3916 = vmatpush1.msra.mxu0 0.0
        %3917 = vmatprep.subr.mxu0 0.0
        %3918 = vmatpush1.msra.mxu0 0.0
        %3919 = vmatprep.subr.mxu0 0.0
        %3920 = vmatpush1.msra.mxu0 0.0
        %3921 = vmatprep.subr.mxu0 0.0
        %3922 = vmatpush1.msra.mxu0 0.0
        %3923 = vmatprep.subr.mxu0 0.0
        %3924 = vmatpush1.msra.mxu0 0.0
        %3925 = vmatprep.subr.mxu0 0.0
        %3926 = vmatpush1.msra.mxu0 0.0
        %3927 = vmatprep.subr.mxu0 0.0
        %3928 = vmatpush1.msra.mxu0 0.0
        %3929 = vmatprep.subr.mxu0 0.0
        %3930 = vmatpush1.msra.mxu0 0.0
        %3931 = vmatprep.subr.mxu0 0.0
        %3932 = vmatpush1.msra.mxu0 0.0
        %3933 = vmatprep.subr.mxu0 0.0
        %3934 = vmatpush1.msra.mxu0 0.0
        %3935 = vmatprep.subr.mxu0 0.0
        %3936 = vmatpush1.msra.mxu0 0.0
        %3937 = vmatprep.subr.mxu0 0.0
        %3938 = vmatpush1.msra.mxu0 0.0
        %3939 = vmatprep.subr.mxu0 0.0
        %3940 = vmatpush1.msra.mxu0 0.0
        %3941 = vmatprep.subr.mxu0 0.0
        %3942 = vmatpush1.msra.mxu0 0.0
        %3943 = vmatprep.subr.mxu0 0.0
        %3944 = vmatpush1.msra.mxu0 0.0
        %3945 = vmatprep.subr.mxu0 0.0
        %3946 = vmatpush1.msra.mxu0 0.0
        %3947 = vmatprep.subr.mxu0 0.0
        %3948 = vmatpush1.msra.mxu0 0.0
        %3949 = vmatprep.subr.mxu0 0.0
        %3950 = vmatpush1.msra.mxu0 0.0
        %3951 = vmatprep.subr.mxu0 0.0
        %3952 = vmatpush1.msra.mxu0 0.0
        %3953 = vmatprep.subr.mxu0 0.0
        %3954 = vmatpush1.msra.mxu0 0.0
        %3955 = vmatprep.subr.mxu0 0.0
        %3956 = vmatpush1.msra.mxu0 0.0
        %3957 = vmatprep.mubr.f32.mxu0 0.0
        %3958 = vmatmul.mubr.f32.gmra.mrb[0].mxu0 %v3888
        %v3959 = vpop.f32.mrb[0].mxu0
        %v3960 = vadd.f32 0.0, %v3959
        %v3961 = vpop.f32.mrb[0].mxu0
        %3962 = vmatprep.mubr.f32.mxu0 0.0
        %3963 = vmatmul.mubr.f32.gmra.mrb[0].mxu0 %v3891
        %v3964 = vpop.f32.mrb[0].mxu0
        %v3965 = vadd.f32 0.0, %v3964
        %v3966 = vpop.f32.mrb[0].mxu0
        %3967 = vdwg.mxu0
        %v3968 = vadd.f32 %v3793, %v3960
        %v3969 = vadd.f32 %v3794, %v3965
        %s3970 = scalar_lea.vmem %s601, 304 [#allocation2]
        %v3971 = vld [vmem:[%s3970] sm:$0xff]
        %v3972 = vld [vmem:[%s3970 + $0x8] sm:$0xff]
        %3973 = vset.pattern.permute.xlu0 0
        %3974 = vperm.xlu0 %3973, %v3971
        %v3975 = vpop.permute.xlu0 %3974
        %3976 = vset.pattern.permute.xlu0 0
        %3977 = vperm.xlu0 %3976, %v3972
        %v3978 = vpop.permute.xlu0 %3977
        %vm3979 = vcmp.eq.s32.totalorder %v3975, %v648
        %vm3980 = vcmp.eq.s32.totalorder %v3978, %v648
        %v3981 = vsel %vm3979, 1.0, 0.0
        %v3982 = vsel %vm3980, 1.0, 0.0
        %3983 = vmatprep.subr.mxu0 0.0
        %3984 = vmatpush1.msra.mxu0 %v631
        %3985 = vmatprep.subr.mxu0 0.0
        %3986 = vmatpush1.msra.mxu0 %v632
        %3987 = vmatprep.subr.mxu0 0.0
        %3988 = vmatpush1.msra.mxu0 %v633
        %3989 = vmatprep.subr.mxu0 0.0
        %3990 = vmatpush1.msra.mxu0 %v634
        %3991 = vmatprep.subr.mxu0 0.0
        %3992 = vmatpush1.msra.mxu0 %v635
        %3993 = vmatprep.subr.mxu0 0.0
        %3994 = vmatpush1.msra.mxu0 %v636
        %3995 = vmatprep.subr.mxu0 0.0
        %3996 = vmatpush1.msra.mxu0 %v637
        %3997 = vmatprep.subr.mxu0 0.0
        %3998 = vmatpush1.msra.mxu0 %v638
        %3999 = vmatprep.subr.mxu0 0.0
        %4000 = vmatpush1.msra.mxu0 %v639
        %4001 = vmatprep.subr.mxu0 0.0
        %4002 = vmatpush1.msra.mxu0 %v640
        %4003 = vmatprep.subr.mxu0 0.0
        %4004 = vmatpush1.msra.mxu0 %v641
        %4005 = vmatprep.subr.mxu0 0.0
        %4006 = vmatpush1.msra.mxu0 %v642
        %4007 = vmatprep.subr.mxu0 0.0
        %4008 = vmatpush1.msra.mxu0 %v643
        %4009 = vmatprep.subr.mxu0 0.0
        %4010 = vmatpush1.msra.mxu0 %v644
        %4011 = vmatprep.subr.mxu0 0.0
        %4012 = vmatpush1.msra.mxu0 %v645
        %4013 = vmatprep.subr.mxu0 0.0
        %4014 = vmatpush1.msra.mxu0 %v646
        %4015 = vmatprep.subr.mxu0 0.0
        %4016 = vmatpush1.msra.mxu0 0.0
        %4017 = vmatprep.subr.mxu0 0.0
        %4018 = vmatpush1.msra.mxu0 0.0
        %4019 = vmatprep.subr.mxu0 0.0
        %4020 = vmatpush1.msra.mxu0 0.0
        %4021 = vmatprep.subr.mxu0 0.0
        %4022 = vmatpush1.msra.mxu0 0.0
        %4023 = vmatprep.subr.mxu0 0.0
        %4024 = vmatpush1.msra.mxu0 0.0
        %4025 = vmatprep.subr.mxu0 0.0
        %4026 = vmatpush1.msra.mxu0 0.0
        %4027 = vmatprep.subr.mxu0 0.0
        %4028 = vmatpush1.msra.mxu0 0.0
        %4029 = vmatprep.subr.mxu0 0.0
        %4030 = vmatpush1.msra.mxu0 0.0
        %4031 = vmatprep.subr.mxu0 0.0
        %4032 = vmatpush1.msra.mxu0 0.0
        %4033 = vmatprep.subr.mxu0 0.0
        %4034 = vmatpush1.msra.mxu0 0.0
        %4035 = vmatprep.subr.mxu0 0.0
        %4036 = vmatpush1.msra.mxu0 0.0
        %4037 = vmatprep.subr.mxu0 0.0
        %4038 = vmatpush1.msra.mxu0 0.0
        %4039 = vmatprep.subr.mxu0 0.0
        %4040 = vmatpush1.msra.mxu0 0.0
        %4041 = vmatprep.subr.mxu0 0.0
        %4042 = vmatpush1.msra.mxu0 0.0
        %4043 = vmatprep.subr.mxu0 0.0
        %4044 = vmatpush1.msra.mxu0 0.0
        %4045 = vmatprep.subr.mxu0 0.0
        %4046 = vmatpush1.msra.mxu0 0.0
        %4047 = vmatprep.mubr.f32.mxu0 0.0
        %4048 = vmatmul.mubr.f32.gmra.mrb[0].mxu0 %v3981
        %v4049 = vpop.f32.mrb[0].mxu0
        %v4050 = vadd.f32 0.0, %v4049
        %v4051 = vpop.f32.mrb[0].mxu0
        %4052 = vmatprep.mubr.f32.mxu0 0.0
        %4053 = vmatmul.mubr.f32.gmra.mrb[0].mxu0 %v3982
        %v4054 = vpop.f32.mrb[0].mxu0
        %v4055 = vadd.f32 0.0, %v4054
        %v4056 = vpop.f32.mrb[0].mxu0
        %4057 = vdwg.mxu0
        %v4058 = vld [vmem:[%s2 + $0x260] sm:$0xff]
        %v4059 = vld [vmem:[%s2 + $0x268] sm:$0xff]
        %v4060 = vld [vmem:[%s2 + $0x270] sm:$0xff]
        %v4061 = vld [vmem:[%s2 + $0x278] sm:$0xff]
        %v4063 = vsel %vm832, %v4050, 0
        %v4066 = vsel %vm832, %v4055, 0
        %4068 = vmatprep.subr.mxu0 0.0
        %4069 = vmatpush1.msra.mxu0 %v4058
        %4070 = vmatprep.subr.mxu0 0.0
        %4071 = vmatpush1.msra.mxu0 %v4059
        %4072 = vmatprep.subr.mxu0 0.0
        %4073 = vmatpush1.msra.mxu0 %v4060
        %4074 = vmatprep.subr.mxu0 0.0
        %4075 = vmatpush1.msra.mxu0 %v4061
        %4076 = vmatprep.subr.mxu0 0.0
        %4077 = vmatpush1.msra.mxu0 0.0
        %4078 = vmatprep.subr.mxu0 0.0
        %4079 = vmatpush1.msra.mxu0 0.0
        %4080 = vmatprep.subr.mxu0 0.0
        %4081 = vmatpush1.msra.mxu0 0.0
        %4082 = vmatprep.subr.mxu0 0.0
        %4083 = vmatpush1.msra.mxu0 0.0
        %4084 = vmatprep.subr.mxu0 0.0
        %4085 = vmatpush1.msra.mxu0 0.0
        %4086 = vmatprep.subr.mxu0 0.0
        %4087 = vmatpush1.msra.mxu0 0.0
        %4088 = vmatprep.subr.mxu0 0.0
        %4089 = vmatpush1.msra.mxu0 0.0
        %4090 = vmatprep.subr.mxu0 0.0
        %4091 = vmatpush1.msra.mxu0 0.0
        %4092 = vmatprep.subr.mxu0 0.0
        %4093 = vmatpush1.msra.mxu0 0.0
        %4094 = vmatprep.subr.mxu0 0.0
        %4095 = vmatpush1.msra.mxu0 0.0
        %4096 = vmatprep.subr.mxu0 0.0
        %4097 = vmatpush1.msra.mxu0 0.0
        %4098 = vmatprep.subr.mxu0 0.0
        %4099 = vmatpush1.msra.mxu0 0.0
        %4100 = vmatprep.subr.mxu0 0.0
        %4101 = vmatpush1.msra.mxu0 0.0
        %4102 = vmatprep.subr.mxu0 0.0
        %4103 = vmatpush1.msra.mxu0 0.0
        %4104 = vmatprep.subr.mxu0 0.0
        %4105 = vmatpush1.msra.mxu0 0.0
        %4106 = vmatprep.subr.mxu0 0.0
        %4107 = vmatpush1.msra.mxu0 0.0
        %4108 = vmatprep.subr.mxu0 0.0
        %4109 = vmatpush1.msra.mxu0 0.0
        %4110 = vmatprep.subr.mxu0 0.0
        %4111 = vmatpush1.msra.mxu0 0.0
        %4112 = vmatprep.subr.mxu0 0.0
        %4113 = vmatpush1.msra.mxu0 0.0
        %4114 = vmatprep.subr.mxu0 0.0
        %4115 = vmatpush1.msra.mxu0 0.0
        %4116 = vmatprep.subr.mxu0 0.0
        %4117 = vmatpush1.msra.mxu0 0.0
        %4118 = vmatprep.subr.mxu0 0.0
        %4119 = vmatpush1.msra.mxu0 0.0
        %4120 = vmatprep.subr.mxu0 0.0
        %4121 = vmatpush1.msra.mxu0 0.0
        %4122 = vmatprep.subr.mxu0 0.0
        %4123 = vmatpush1.msra.mxu0 0.0
        %4124 = vmatprep.subr.mxu0 0.0
        %4125 = vmatpush1.msra.mxu0 0.0
        %4126 = vmatprep.subr.mxu0 0.0
        %4127 = vmatpush1.msra.mxu0 0.0
        %4128 = vmatprep.subr.mxu0 0.0
        %4129 = vmatpush1.msra.mxu0 0.0
        %4130 = vmatprep.subr.mxu0 0.0
        %4131 = vmatpush1.msra.mxu0 0.0
        %4132 = vmatprep.mubr.f32.mxu0 0.0
        %4133 = vmatmul.mubr.f32.gmra.mrb[0].mxu0 %v4063
        %v4134 = vpop.f32.mrb[0].mxu0
        %v4135 = vadd.f32 0.0, %v4134
        %v4136 = vpop.f32.mrb[0].mxu0
        %4137 = vmatprep.mubr.f32.mxu0 0.0
        %4138 = vmatmul.mubr.f32.gmra.mrb[0].mxu0 %v4066
        %v4139 = vpop.f32.mrb[0].mxu0
        %v4140 = vadd.f32 0.0, %v4139
        %v4141 = vpop.f32.mrb[0].mxu0
        %4142 = vdwg.mxu0
        %v4143 = vadd.f32 %v3968, %v4135
        %v4144 = vadd.f32 %v3969, %v4140
        %s4145 = scalar_lea.vmem %s601, 320 [#allocation2]
        %v4146 = vld [vmem:[%s4145] sm:$0xff]
        %v4147 = vld [vmem:[%s4145 + $0x8] sm:$0xff]
        %4148 = vset.pattern.permute.xlu0 0
        %4149 = vperm.xlu0 %4148, %v4146
        %v4150 = vpop.permute.xlu0 %4149
        %4151 = vset.pattern.permute.xlu0 0
        %4152 = vperm.xlu0 %4151, %v4147
        %v4153 = vpop.permute.xlu0 %4152
        %vm4154 = vcmp.eq.s32.totalorder %v4150, %v648
        %vm4155 = vcmp.eq.s32.totalorder %v4153, %v648
        %v4156 = vsel %vm4154, 1.0, 0.0
        %v4157 = vsel %vm4155, 1.0, 0.0
        %4158 = vmatprep.subr.mxu0 0.0
        %4159 = vmatpush1.msra.mxu0 %v631
        %4160 = vmatprep.subr.mxu0 0.0
        %4161 = vmatpush1.msra.mxu0 %v632
        %4162 = vmatprep.subr.mxu0 0.0
        %4163 = vmatpush1.msra.mxu0 %v633
        %4164 = vmatprep.subr.mxu0 0.0
        %4165 = vmatpush1.msra.mxu0 %v634
        %4166 = vmatprep.subr.mxu0 0.0
        %4167 = vmatpush1.msra.mxu0 %v635
        %4168 = vmatprep.subr.mxu0 0.0
        %4169 = vmatpush1.msra.mxu0 %v636
        %4170 = vmatprep.subr.mxu0 0.0
        %4171 = vmatpush1.msra.mxu0 %v637
        %4172 = vmatprep.subr.mxu0 0.0
        %4173 = vmatpush1.msra.mxu0 %v638
        %4174 = vmatprep.subr.mxu0 0.0
        %4175 = vmatpush1.msra.mxu0 %v639
        %4176 = vmatprep.subr.mxu0 0.0
        %4177 = vmatpush1.msra.mxu0 %v640
        %4178 = vmatprep.subr.mxu0 0.0
        %4179 = vmatpush1.msra.mxu0 %v641
        %4180 = vmatprep.subr.mxu0 0.0
        %4181 = vmatpush1.msra.mxu0 %v642
        %4182 = vmatprep.subr.mxu0 0.0
        %4183 = vmatpush1.msra.mxu0 %v643
        %4184 = vmatprep.subr.mxu0 0.0
        %4185 = vmatpush1.msra.mxu0 %v644
        %4186 = vmatprep.subr.mxu0 0.0
        %4187 = vmatpush1.msra.mxu0 %v645
        %4188 = vmatprep.subr.mxu0 0.0
        %4189 = vmatpush1.msra.mxu0 %v646
        %4190 = vmatprep.subr.mxu0 0.0
        %4191 = vmatpush1.msra.mxu0 0.0
        %4192 = vmatprep.subr.mxu0 0.0
        %4193 = vmatpush1.msra.mxu0 0.0
        %4194 = vmatprep.subr.mxu0 0.0
        %4195 = vmatpush1.msra.mxu0 0.0
        %4196 = vmatprep.subr.mxu0 0.0
        %4197 = vmatpush1.msra.mxu0 0.0
        %4198 = vmatprep.subr.mxu0 0.0
        %4199 = vmatpush1.msra.mxu0 0.0
        %4200 = vmatprep.subr.mxu0 0.0
        %4201 = vmatpush1.msra.mxu0 0.0
        %4202 = vmatprep.subr.mxu0 0.0
        %4203 = vmatpush1.msra.mxu0 0.0
        %4204 = vmatprep.subr.mxu0 0.0
        %4205 = vmatpush1.msra.mxu0 0.0
        %4206 = vmatprep.subr.mxu0 0.0
        %4207 = vmatpush1.msra.mxu0 0.0
        %4208 = vmatprep.subr.mxu0 0.0
        %4209 = vmatpush1.msra.mxu0 0.0
        %4210 = vmatprep.subr.mxu0 0.0
        %4211 = vmatpush1.msra.mxu0 0.0
        %4212 = vmatprep.subr.mxu0 0.0
        %4213 = vmatpush1.msra.mxu0 0.0
        %4214 = vmatprep.subr.mxu0 0.0
        %4215 = vmatpush1.msra.mxu0 0.0
        %4216 = vmatprep.subr.mxu0 0.0
        %4217 = vmatpush1.msra.mxu0 0.0
        %4218 = vmatprep.subr.mxu0 0.0
        %4219 = vmatpush1.msra.mxu0 0.0
        %4220 = vmatprep.subr.mxu0 0.0
        %4221 = vmatpush1.msra.mxu0 0.0
        %4222 = vmatprep.mubr.f32.mxu0 0.0
        %4223 = vmatmul.mubr.f32.gmra.mrb[0].mxu0 %v4156
        %v4224 = vpop.f32.mrb[0].mxu0
        %v4225 = vadd.f32 0.0, %v4224
        %v4226 = vpop.f32.mrb[0].mxu0
        %4227 = vmatprep.mubr.f32.mxu0 0.0
        %4228 = vmatmul.mubr.f32.gmra.mrb[0].mxu0 %v4157
        %v4229 = vpop.f32.mrb[0].mxu0
        %v4230 = vadd.f32 0.0, %v4229
        %v4231 = vpop.f32.mrb[0].mxu0
        %4232 = vdwg.mxu0
        %v4233 = vld [vmem:[%s2 + $0x280] sm:$0xff]
        %v4234 = vld [vmem:[%s2 + $0x288] sm:$0xff]
        %v4235 = vld [vmem:[%s2 + $0x290] sm:$0xff]
        %v4236 = vld [vmem:[%s2 + $0x298] sm:$0xff]
        %v4238 = vsel %vm832, %v4225, 0
        %v4241 = vsel %vm832, %v4230, 0
        %4243 = vmatprep.subr.mxu0 0.0
        %4244 = vmatpush1.msra.mxu0 %v4233
        %4245 = vmatprep.subr.mxu0 0.0
        %4246 = vmatpush1.msra.mxu0 %v4234
        %4247 = vmatprep.subr.mxu0 0.0
        %4248 = vmatpush1.msra.mxu0 %v4235
        %4249 = vmatprep.subr.mxu0 0.0
        %4250 = vmatpush1.msra.mxu0 %v4236
        %4251 = vmatprep.subr.mxu0 0.0
        %4252 = vmatpush1.msra.mxu0 0.0
        %4253 = vmatprep.subr.mxu0 0.0
        %4254 = vmatpush1.msra.mxu0 0.0
        %4255 = vmatprep.subr.mxu0 0.0
        %4256 = vmatpush1.msra.mxu0 0.0
        %4257 = vmatprep.subr.mxu0 0.0
        %4258 = vmatpush1.msra.mxu0 0.0
        %4259 = vmatprep.subr.mxu0 0.0
        %4260 = vmatpush1.msra.mxu0 0.0
        %4261 = vmatprep.subr.mxu0 0.0
        %4262 = vmatpush1.msra.mxu0 0.0
        %4263 = vmatprep.subr.mxu0 0.0
        %4264 = vmatpush1.msra.mxu0 0.0
        %4265 = vmatprep.subr.mxu0 0.0
        %4266 = vmatpush1.msra.mxu0 0.0
        %4267 = vmatprep.subr.mxu0 0.0
        %4268 = vmatpush1.msra.mxu0 0.0
        %4269 = vmatprep.subr.mxu0 0.0
        %4270 = vmatpush1.msra.mxu0 0.0
        %4271 = vmatprep.subr.mxu0 0.0
        %4272 = vmatpush1.msra.mxu0 0.0
        %4273 = vmatprep.subr.mxu0 0.0
        %4274 = vmatpush1.msra.mxu0 0.0
        %4275 = vmatprep.subr.mxu0 0.0
        %4276 = vmatpush1.msra.mxu0 0.0
        %4277 = vmatprep.subr.mxu0 0.0
        %4278 = vmatpush1.msra.mxu0 0.0
        %4279 = vmatprep.subr.mxu0 0.0
        %4280 = vmatpush1.msra.mxu0 0.0
        %4281 = vmatprep.subr.mxu0 0.0
        %4282 = vmatpush1.msra.mxu0 0.0
        %4283 = vmatprep.subr.mxu0 0.0
        %4284 = vmatpush1.msra.mxu0 0.0
        %4285 = vmatprep.subr.mxu0 0.0
        %4286 = vmatpush1.msra.mxu0 0.0
        %4287 = vmatprep.subr.mxu0 0.0
        %4288 = vmatpush1.msra.mxu0 0.0
        %4289 = vmatprep.subr.mxu0 0.0
        %4290 = vmatpush1.msra.mxu0 0.0
        %4291 = vmatprep.subr.mxu0 0.0
        %4292 = vmatpush1.msra.mxu0 0.0
        %4293 = vmatprep.subr.mxu0 0.0
        %4294 = vmatpush1.msra.mxu0 0.0
        %4295 = vmatprep.subr.mxu0 0.0
        %4296 = vmatpush1.msra.mxu0 0.0
        %4297 = vmatprep.subr.mxu0 0.0
        %4298 = vmatpush1.msra.mxu0 0.0
        %4299 = vmatprep.subr.mxu0 0.0
        %4300 = vmatpush1.msra.mxu0 0.0
        %4301 = vmatprep.subr.mxu0 0.0
        %4302 = vmatpush1.msra.mxu0 0.0
        %4303 = vmatprep.subr.mxu0 0.0
        %4304 = vmatpush1.msra.mxu0 0.0
        %4305 = vmatprep.subr.mxu0 0.0
        %4306 = vmatpush1.msra.mxu0 0.0
        %4307 = vmatprep.mubr.f32.mxu0 0.0
        %4308 = vmatmul.mubr.f32.gmra.mrb[0].mxu0 %v4238
        %v4309 = vpop.f32.mrb[0].mxu0
        %v4310 = vadd.f32 0.0, %v4309
        %v4311 = vpop.f32.mrb[0].mxu0
        %4312 = vmatprep.mubr.f32.mxu0 0.0
        %4313 = vmatmul.mubr.f32.gmra.mrb[0].mxu0 %v4241
        %v4314 = vpop.f32.mrb[0].mxu0
        %v4315 = vadd.f32 0.0, %v4314
        %v4316 = vpop.f32.mrb[0].mxu0
        %4317 = vdwg.mxu0
        %v4318 = vadd.f32 %v4143, %v4310
        %v4319 = vadd.f32 %v4144, %v4315
        %s4320 = scalar_lea.vmem %s601, 336 [#allocation2]
        %v4321 = vld [vmem:[%s4320] sm:$0xff]
        %v4322 = vld [vmem:[%s4320 + $0x8] sm:$0xff]
        %4323 = vset.pattern.permute.xlu0 0
        %4324 = vperm.xlu0 %4323, %v4321
        %v4325 = vpop.permute.xlu0 %4324
        %4326 = vset.pattern.permute.xlu0 0
        %4327 = vperm.xlu0 %4326, %v4322
        %v4328 = vpop.permute.xlu0 %4327
        %vm4329 = vcmp.eq.s32.totalorder %v4325, %v648
        %vm4330 = vcmp.eq.s32.totalorder %v4328, %v648
        %v4331 = vsel %vm4329, 1.0, 0.0
        %v4332 = vsel %vm4330, 1.0, 0.0
        %4333 = vmatprep.subr.mxu0 0.0
        %4334 = vmatpush1.msra.mxu0 %v631
        %4335 = vmatprep.subr.mxu0 0.0
        %4336 = vmatpush1.msra.mxu0 %v632
        %4337 = vmatprep.subr.mxu0 0.0
        %4338 = vmatpush1.msra.mxu0 %v633
        %4339 = vmatprep.subr.mxu0 0.0
        %4340 = vmatpush1.msra.mxu0 %v634
        %4341 = vmatprep.subr.mxu0 0.0
        %4342 = vmatpush1.msra.mxu0 %v635
        %4343 = vmatprep.subr.mxu0 0.0
        %4344 = vmatpush1.msra.mxu0 %v636
        %4345 = vmatprep.subr.mxu0 0.0
        %4346 = vmatpush1.msra.mxu0 %v637
        %4347 = vmatprep.subr.mxu0 0.0
        %4348 = vmatpush1.msra.mxu0 %v638
        %4349 = vmatprep.subr.mxu0 0.0
        %4350 = vmatpush1.msra.mxu0 %v639
        %4351 = vmatprep.subr.mxu0 0.0
        %4352 = vmatpush1.msra.mxu0 %v640
        %4353 = vmatprep.subr.mxu0 0.0
        %4354 = vmatpush1.msra.mxu0 %v641
        %4355 = vmatprep.subr.mxu0 0.0
        %4356 = vmatpush1.msra.mxu0 %v642
        %4357 = vmatprep.subr.mxu0 0.0
        %4358 = vmatpush1.msra.mxu0 %v643
        %4359 = vmatprep.subr.mxu0 0.0
        %4360 = vmatpush1.msra.mxu0 %v644
        %4361 = vmatprep.subr.mxu0 0.0
        %4362 = vmatpush1.msra.mxu0 %v645
        %4363 = vmatprep.subr.mxu0 0.0
        %4364 = vmatpush1.msra.mxu0 %v646
        %4365 = vmatprep.subr.mxu0 0.0
        %4366 = vmatpush1.msra.mxu0 0.0
        %4367 = vmatprep.subr.mxu0 0.0
        %4368 = vmatpush1.msra.mxu0 0.0
        %4369 = vmatprep.subr.mxu0 0.0
        %4370 = vmatpush1.msra.mxu0 0.0
        %4371 = vmatprep.subr.mxu0 0.0
        %4372 = vmatpush1.msra.mxu0 0.0
        %4373 = vmatprep.subr.mxu0 0.0
        %4374 = vmatpush1.msra.mxu0 0.0
        %4375 = vmatprep.subr.mxu0 0.0
        %4376 = vmatpush1.msra.mxu0 0.0
        %4377 = vmatprep.subr.mxu0 0.0
        %4378 = vmatpush1.msra.mxu0 0.0
        %4379 = vmatprep.subr.mxu0 0.0
        %4380 = vmatpush1.msra.mxu0 0.0
        %4381 = vmatprep.subr.mxu0 0.0
        %4382 = vmatpush1.msra.mxu0 0.0
        %4383 = vmatprep.subr.mxu0 0.0
        %4384 = vmatpush1.msra.mxu0 0.0
        %4385 = vmatprep.subr.mxu0 0.0
        %4386 = vmatpush1.msra.mxu0 0.0
        %4387 = vmatprep.subr.mxu0 0.0
        %4388 = vmatpush1.msra.mxu0 0.0
        %4389 = vmatprep.subr.mxu0 0.0
        %4390 = vmatpush1.msra.mxu0 0.0
        %4391 = vmatprep.subr.mxu0 0.0
        %4392 = vmatpush1.msra.mxu0 0.0
        %4393 = vmatprep.subr.mxu0 0.0
        %4394 = vmatpush1.msra.mxu0 0.0
        %4395 = vmatprep.subr.mxu0 0.0
        %4396 = vmatpush1.msra.mxu0 0.0
        %4397 = vmatprep.mubr.f32.mxu0 0.0
        %4398 = vmatmul.mubr.f32.gmra.mrb[0].mxu0 %v4331
        %v4399 = vpop.f32.mrb[0].mxu0
        %v4400 = vadd.f32 0.0, %v4399
        %v4401 = vpop.f32.mrb[0].mxu0
        %4402 = vmatprep.mubr.f32.mxu0 0.0
        %4403 = vmatmul.mubr.f32.gmra.mrb[0].mxu0 %v4332
        %v4404 = vpop.f32.mrb[0].mxu0
        %v4405 = vadd.f32 0.0, %v4404
        %v4406 = vpop.f32.mrb[0].mxu0
        %4407 = vdwg.mxu0
        %v4408 = vld [vmem:[%s2 + $0x2a0] sm:$0xff]
        %v4409 = vld [vmem:[%s2 + $0x2a8] sm:$0xff]
        %v4410 = vld [vmem:[%s2 + $0x2b0] sm:$0xff]
        %v4411 = vld [vmem:[%s2 + $0x2b8] sm:$0xff]
        %v4413 = vsel %vm832, %v4400, 0
        %v4416 = vsel %vm832, %v4405, 0
        %4418 = vmatprep.subr.mxu0 0.0
        %4419 = vmatpush1.msra.mxu0 %v4408
        %4420 = vmatprep.subr.mxu0 0.0
        %4421 = vmatpush1.msra.mxu0 %v4409
        %4422 = vmatprep.subr.mxu0 0.0
        %4423 = vmatpush1.msra.mxu0 %v4410
        %4424 = vmatprep.subr.mxu0 0.0
        %4425 = vmatpush1.msra.mxu0 %v4411
        %4426 = vmatprep.subr.mxu0 0.0
        %4427 = vmatpush1.msra.mxu0 0.0
        %4428 = vmatprep.subr.mxu0 0.0
        %4429 = vmatpush1.msra.mxu0 0.0
        %4430 = vmatprep.subr.mxu0 0.0
        %4431 = vmatpush1.msra.mxu0 0.0
        %4432 = vmatprep.subr.mxu0 0.0
        %4433 = vmatpush1.msra.mxu0 0.0
        %4434 = vmatprep.subr.mxu0 0.0
        %4435 = vmatpush1.msra.mxu0 0.0
        %4436 = vmatprep.subr.mxu0 0.0
        %4437 = vmatpush1.msra.mxu0 0.0
        %4438 = vmatprep.subr.mxu0 0.0
        %4439 = vmatpush1.msra.mxu0 0.0
        %4440 = vmatprep.subr.mxu0 0.0
        %4441 = vmatpush1.msra.mxu0 0.0
        %4442 = vmatprep.subr.mxu0 0.0
        %4443 = vmatpush1.msra.mxu0 0.0
        %4444 = vmatprep.subr.mxu0 0.0
        %4445 = vmatpush1.msra.mxu0 0.0
        %4446 = vmatprep.subr.mxu0 0.0
        %4447 = vmatpush1.msra.mxu0 0.0
        %4448 = vmatprep.subr.mxu0 0.0
        %4449 = vmatpush1.msra.mxu0 0.0
        %4450 = vmatprep.subr.mxu0 0.0
        %4451 = vmatpush1.msra.mxu0 0.0
        %4452 = vmatprep.subr.mxu0 0.0
        %4453 = vmatpush1.msra.mxu0 0.0
        %4454 = vmatprep.subr.mxu0 0.0
        %4455 = vmatpush1.msra.mxu0 0.0
        %4456 = vmatprep.subr.mxu0 0.0
        %4457 = vmatpush1.msra.mxu0 0.0
        %4458 = vmatprep.subr.mxu0 0.0
        %4459 = vmatpush1.msra.mxu0 0.0
        %4460 = vmatprep.subr.mxu0 0.0
        %4461 = vmatpush1.msra.mxu0 0.0
        %4462 = vmatprep.subr.mxu0 0.0
        %4463 = vmatpush1.msra.mxu0 0.0
        %4464 = vmatprep.subr.mxu0 0.0
        %4465 = vmatpush1.msra.mxu0 0.0
        %4466 = vmatprep.subr.mxu0 0.0
        %4467 = vmatpush1.msra.mxu0 0.0
        %4468 = vmatprep.subr.mxu0 0.0
        %4469 = vmatpush1.msra.mxu0 0.0
        %4470 = vmatprep.subr.mxu0 0.0
        %4471 = vmatpush1.msra.mxu0 0.0
        %4472 = vmatprep.subr.mxu0 0.0
        %4473 = vmatpush1.msra.mxu0 0.0
        %4474 = vmatprep.subr.mxu0 0.0
        %4475 = vmatpush1.msra.mxu0 0.0
        %4476 = vmatprep.subr.mxu0 0.0
        %4477 = vmatpush1.msra.mxu0 0.0
        %4478 = vmatprep.subr.mxu0 0.0
        %4479 = vmatpush1.msra.mxu0 0.0
        %4480 = vmatprep.subr.mxu0 0.0
        %4481 = vmatpush1.msra.mxu0 0.0
        %4482 = vmatprep.mubr.f32.mxu0 0.0
        %4483 = vmatmul.mubr.f32.gmra.mrb[0].mxu0 %v4413
        %v4484 = vpop.f32.mrb[0].mxu0
        %v4485 = vadd.f32 0.0, %v4484
        %v4486 = vpop.f32.mrb[0].mxu0
        %4487 = vmatprep.mubr.f32.mxu0 0.0
        %4488 = vmatmul.mubr.f32.gmra.mrb[0].mxu0 %v4416
        %v4489 = vpop.f32.mrb[0].mxu0
        %v4490 = vadd.f32 0.0, %v4489
        %v4491 = vpop.f32.mrb[0].mxu0
        %4492 = vdwg.mxu0
        %v4493 = vadd.f32 %v4318, %v4485
        %v4494 = vadd.f32 %v4319, %v4490
        %s4495 = scalar_lea.vmem %s601, 352 [#allocation2]
        %v4496 = vld [vmem:[%s4495] sm:$0xff]
        %v4497 = vld [vmem:[%s4495 + $0x8] sm:$0xff]
        %4498 = vset.pattern.permute.xlu0 0
        %4499 = vperm.xlu0 %4498, %v4496
        %v4500 = vpop.permute.xlu0 %4499
        %4501 = vset.pattern.permute.xlu0 0
        %4502 = vperm.xlu0 %4501, %v4497
        %v4503 = vpop.permute.xlu0 %4502
        %vm4504 = vcmp.eq.s32.totalorder %v4500, %v648
        %vm4505 = vcmp.eq.s32.totalorder %v4503, %v648
        %v4506 = vsel %vm4504, 1.0, 0.0
        %v4507 = vsel %vm4505, 1.0, 0.0
        %4508 = vmatprep.subr.mxu0 0.0
        %4509 = vmatpush1.msra.mxu0 %v631
        %4510 = vmatprep.subr.mxu0 0.0
        %4511 = vmatpush1.msra.mxu0 %v632
        %4512 = vmatprep.subr.mxu0 0.0
        %4513 = vmatpush1.msra.mxu0 %v633
        %4514 = vmatprep.subr.mxu0 0.0
        %4515 = vmatpush1.msra.mxu0 %v634
        %4516 = vmatprep.subr.mxu0 0.0
        %4517 = vmatpush1.msra.mxu0 %v635
        %4518 = vmatprep.subr.mxu0 0.0
        %4519 = vmatpush1.msra.mxu0 %v636
        %4520 = vmatprep.subr.mxu0 0.0
        %4521 = vmatpush1.msra.mxu0 %v637
        %4522 = vmatprep.subr.mxu0 0.0
        %4523 = vmatpush1.msra.mxu0 %v638
        %4524 = vmatprep.subr.mxu0 0.0
        %4525 = vmatpush1.msra.mxu0 %v639
        %4526 = vmatprep.subr.mxu0 0.0
        %4527 = vmatpush1.msra.mxu0 %v640
        %4528 = vmatprep.subr.mxu0 0.0
        %4529 = vmatpush1.msra.mxu0 %v641
        %4530 = vmatprep.subr.mxu0 0.0
        %4531 = vmatpush1.msra.mxu0 %v642
        %4532 = vmatprep.subr.mxu0 0.0
        %4533 = vmatpush1.msra.mxu0 %v643
        %4534 = vmatprep.subr.mxu0 0.0
        %4535 = vmatpush1.msra.mxu0 %v644
        %4536 = vmatprep.subr.mxu0 0.0
        %4537 = vmatpush1.msra.mxu0 %v645
        %4538 = vmatprep.subr.mxu0 0.0
        %4539 = vmatpush1.msra.mxu0 %v646
        %4540 = vmatprep.subr.mxu0 0.0
        %4541 = vmatpush1.msra.mxu0 0.0
        %4542 = vmatprep.subr.mxu0 0.0
        %4543 = vmatpush1.msra.mxu0 0.0
        %4544 = vmatprep.subr.mxu0 0.0
        %4545 = vmatpush1.msra.mxu0 0.0
        %4546 = vmatprep.subr.mxu0 0.0
        %4547 = vmatpush1.msra.mxu0 0.0
        %4548 = vmatprep.subr.mxu0 0.0
        %4549 = vmatpush1.msra.mxu0 0.0
        %4550 = vmatprep.subr.mxu0 0.0
        %4551 = vmatpush1.msra.mxu0 0.0
        %4552 = vmatprep.subr.mxu0 0.0
        %4553 = vmatpush1.msra.mxu0 0.0
        %4554 = vmatprep.subr.mxu0 0.0
        %4555 = vmatpush1.msra.mxu0 0.0
        %4556 = vmatprep.subr.mxu0 0.0
        %4557 = vmatpush1.msra.mxu0 0.0
        %4558 = vmatprep.subr.mxu0 0.0
        %4559 = vmatpush1.msra.mxu0 0.0
        %4560 = vmatprep.subr.mxu0 0.0
        %4561 = vmatpush1.msra.mxu0 0.0
        %4562 = vmatprep.subr.mxu0 0.0
        %4563 = vmatpush1.msra.mxu0 0.0
        %4564 = vmatprep.subr.mxu0 0.0
        %4565 = vmatpush1.msra.mxu0 0.0
        %4566 = vmatprep.subr.mxu0 0.0
        %4567 = vmatpush1.msra.mxu0 0.0
        %4568 = vmatprep.subr.mxu0 0.0
        %4569 = vmatpush1.msra.mxu0 0.0
        %4570 = vmatprep.subr.mxu0 0.0
        %4571 = vmatpush1.msra.mxu0 0.0
        %4572 = vmatprep.mubr.f32.mxu0 0.0
        %4573 = vmatmul.mubr.f32.gmra.mrb[0].mxu0 %v4506
        %v4574 = vpop.f32.mrb[0].mxu0
        %v4575 = vadd.f32 0.0, %v4574
        %v4576 = vpop.f32.mrb[0].mxu0
        %4577 = vmatprep.mubr.f32.mxu0 0.0
        %4578 = vmatmul.mubr.f32.gmra.mrb[0].mxu0 %v4507
        %v4579 = vpop.f32.mrb[0].mxu0
        %v4580 = vadd.f32 0.0, %v4579
        %v4581 = vpop.f32.mrb[0].mxu0
        %4582 = vdwg.mxu0
        %v4583 = vld [vmem:[%s2 + $0x2c0] sm:$0xff]
        %v4584 = vld [vmem:[%s2 + $0x2c8] sm:$0xff]
        %v4585 = vld [vmem:[%s2 + $0x2d0] sm:$0xff]
        %v4586 = vld [vmem:[%s2 + $0x2d8] sm:$0xff]
        %v4588 = vsel %vm832, %v4575, 0
        %v4591 = vsel %vm832, %v4580, 0
        %4593 = vmatprep.subr.mxu0 0.0
        %4594 = vmatpush1.msra.mxu0 %v4583
        %4595 = vmatprep.subr.mxu0 0.0
        %4596 = vmatpush1.msra.mxu0 %v4584
        %4597 = vmatprep.subr.mxu0 0.0
        %4598 = vmatpush1.msra.mxu0 %v4585
        %4599 = vmatprep.subr.mxu0 0.0
        %4600 = vmatpush1.msra.mxu0 %v4586
        %4601 = vmatprep.subr.mxu0 0.0
        %4602 = vmatpush1.msra.mxu0 0.0
        %4603 = vmatprep.subr.mxu0 0.0
        %4604 = vmatpush1.msra.mxu0 0.0
        %4605 = vmatprep.subr.mxu0 0.0
        %4606 = vmatpush1.msra.mxu0 0.0
        %4607 = vmatprep.subr.mxu0 0.0
        %4608 = vmatpush1.msra.mxu0 0.0
        %4609 = vmatprep.subr.mxu0 0.0
        %4610 = vmatpush1.msra.mxu0 0.0
        %4611 = vmatprep.subr.mxu0 0.0
        %4612 = vmatpush1.msra.mxu0 0.0
        %4613 = vmatprep.subr.mxu0 0.0
        %4614 = vmatpush1.msra.mxu0 0.0
        %4615 = vmatprep.subr.mxu0 0.0
        %4616 = vmatpush1.msra.mxu0 0.0
        %4617 = vmatprep.subr.mxu0 0.0
        %4618 = vmatpush1.msra.mxu0 0.0
        %4619 = vmatprep.subr.mxu0 0.0
        %4620 = vmatpush1.msra.mxu0 0.0
        %4621 = vmatprep.subr.mxu0 0.0
        %4622 = vmatpush1.msra.mxu0 0.0
        %4623 = vmatprep.subr.mxu0 0.0
        %4624 = vmatpush1.msra.mxu0 0.0
        %4625 = vmatprep.subr.mxu0 0.0
        %4626 = vmatpush1.msra.mxu0 0.0
        %4627 = vmatprep.subr.mxu0 0.0
        %4628 = vmatpush1.msra.mxu0 0.0
        %4629 = vmatprep.subr.mxu0 0.0
        %4630 = vmatpush1.msra.mxu0 0.0
        %4631 = vmatprep.subr.mxu0 0.0
        %4632 = vmatpush1.msra.mxu0 0.0
        %4633 = vmatprep.subr.mxu0 0.0
        %4634 = vmatpush1.msra.mxu0 0.0
        %4635 = vmatprep.subr.mxu0 0.0
        %4636 = vmatpush1.msra.mxu0 0.0
        %4637 = vmatprep.subr.mxu0 0.0
        %4638 = vmatpush1.msra.mxu0 0.0
        %4639 = vmatprep.subr.mxu0 0.0
        %4640 = vmatpush1.msra.mxu0 0.0
        %4641 = vmatprep.subr.mxu0 0.0
        %4642 = vmatpush1.msra.mxu0 0.0
        %4643 = vmatprep.subr.mxu0 0.0
        %4644 = vmatpush1.msra.mxu0 0.0
        %4645 = vmatprep.subr.mxu0 0.0
        %4646 = vmatpush1.msra.mxu0 0.0
        %4647 = vmatprep.subr.mxu0 0.0
        %4648 = vmatpush1.msra.mxu0 0.0
        %4649 = vmatprep.subr.mxu0 0.0
        %4650 = vmatpush1.msra.mxu0 0.0
        %4651 = vmatprep.subr.mxu0 0.0
        %4652 = vmatpush1.msra.mxu0 0.0
        %4653 = vmatprep.subr.mxu0 0.0
        %4654 = vmatpush1.msra.mxu0 0.0
        %4655 = vmatprep.subr.mxu0 0.0
        %4656 = vmatpush1.msra.mxu0 0.0
        %4657 = vmatprep.mubr.f32.mxu0 0.0
        %4658 = vmatmul.mubr.f32.gmra.mrb[0].mxu0 %v4588
        %v4659 = vpop.f32.mrb[0].mxu0
        %v4660 = vadd.f32 0.0, %v4659
        %v4661 = vpop.f32.mrb[0].mxu0
        %4662 = vmatprep.mubr.f32.mxu0 0.0
        %4663 = vmatmul.mubr.f32.gmra.mrb[0].mxu0 %v4591
        %v4664 = vpop.f32.mrb[0].mxu0
        %v4665 = vadd.f32 0.0, %v4664
        %v4666 = vpop.f32.mrb[0].mxu0
        %4667 = vdwg.mxu0
        %v4668 = vadd.f32 %v4493, %v4660
        %v4669 = vadd.f32 %v4494, %v4665
        %s4670 = scalar_lea.vmem %s601, 368 [#allocation2]
        %v4671 = vld [vmem:[%s4670] sm:$0xff]
        %v4672 = vld [vmem:[%s4670 + $0x8] sm:$0xff]
        %4673 = vset.pattern.permute.xlu0 0
        %4674 = vperm.xlu0 %4673, %v4671
        %v4675 = vpop.permute.xlu0 %4674
        %4676 = vset.pattern.permute.xlu0 0
        %4677 = vperm.xlu0 %4676, %v4672
        %v4678 = vpop.permute.xlu0 %4677
        %vm4679 = vcmp.eq.s32.totalorder %v4675, %v648
        %vm4680 = vcmp.eq.s32.totalorder %v4678, %v648
        %v4681 = vsel %vm4679, 1.0, 0.0
        %v4682 = vsel %vm4680, 1.0, 0.0
        %4683 = vmatprep.subr.mxu0 0.0
        %4684 = vmatpush1.msra.mxu0 %v631
        %4685 = vmatprep.subr.mxu0 0.0
        %4686 = vmatpush1.msra.mxu0 %v632
        %4687 = vmatprep.subr.mxu0 0.0
        %4688 = vmatpush1.msra.mxu0 %v633
        %4689 = vmatprep.subr.mxu0 0.0
        %4690 = vmatpush1.msra.mxu0 %v634
        %4691 = vmatprep.subr.mxu0 0.0
        %4692 = vmatpush1.msra.mxu0 %v635
        %4693 = vmatprep.subr.mxu0 0.0
        %4694 = vmatpush1.msra.mxu0 %v636
        %4695 = vmatprep.subr.mxu0 0.0
        %4696 = vmatpush1.msra.mxu0 %v637
        %4697 = vmatprep.subr.mxu0 0.0
        %4698 = vmatpush1.msra.mxu0 %v638
        %4699 = vmatprep.subr.mxu0 0.0
        %4700 = vmatpush1.msra.mxu0 %v639
        %4701 = vmatprep.subr.mxu0 0.0
        %4702 = vmatpush1.msra.mxu0 %v640
        %4703 = vmatprep.subr.mxu0 0.0
        %4704 = vmatpush1.msra.mxu0 %v641
        %4705 = vmatprep.subr.mxu0 0.0
        %4706 = vmatpush1.msra.mxu0 %v642
        %4707 = vmatprep.subr.mxu0 0.0
        %4708 = vmatpush1.msra.mxu0 %v643
        %4709 = vmatprep.subr.mxu0 0.0
        %4710 = vmatpush1.msra.mxu0 %v644
        %4711 = vmatprep.subr.mxu0 0.0
        %4712 = vmatpush1.msra.mxu0 %v645
        %4713 = vmatprep.subr.mxu0 0.0
        %4714 = vmatpush1.msra.mxu0 %v646
        %4715 = vmatprep.subr.mxu0 0.0
        %4716 = vmatpush1.msra.mxu0 0.0
        %4717 = vmatprep.subr.mxu0 0.0
        %4718 = vmatpush1.msra.mxu0 0.0
        %4719 = vmatprep.subr.mxu0 0.0
        %4720 = vmatpush1.msra.mxu0 0.0
        %4721 = vmatprep.subr.mxu0 0.0
        %4722 = vmatpush1.msra.mxu0 0.0
        %4723 = vmatprep.subr.mxu0 0.0
        %4724 = vmatpush1.msra.mxu0 0.0
        %4725 = vmatprep.subr.mxu0 0.0
        %4726 = vmatpush1.msra.mxu0 0.0
        %4727 = vmatprep.subr.mxu0 0.0
        %4728 = vmatpush1.msra.mxu0 0.0
        %4729 = vmatprep.subr.mxu0 0.0
        %4730 = vmatpush1.msra.mxu0 0.0
        %4731 = vmatprep.subr.mxu0 0.0
        %4732 = vmatpush1.msra.mxu0 0.0
        %4733 = vmatprep.subr.mxu0 0.0
        %4734 = vmatpush1.msra.mxu0 0.0
        %4735 = vmatprep.subr.mxu0 0.0
        %4736 = vmatpush1.msra.mxu0 0.0
        %4737 = vmatprep.subr.mxu0 0.0
        %4738 = vmatpush1.msra.mxu0 0.0
        %4739 = vmatprep.subr.mxu0 0.0
        %4740 = vmatpush1.msra.mxu0 0.0
        %4741 = vmatprep.subr.mxu0 0.0
        %4742 = vmatpush1.msra.mxu0 0.0
        %4743 = vmatprep.subr.mxu0 0.0
        %4744 = vmatpush1.msra.mxu0 0.0
        %4745 = vmatprep.subr.mxu0 0.0
        %4746 = vmatpush1.msra.mxu0 0.0
        %4747 = vmatprep.mubr.f32.mxu0 0.0
        %4748 = vmatmul.mubr.f32.gmra.mrb[0].mxu0 %v4681
        %v4749 = vpop.f32.mrb[0].mxu0
        %v4750 = vadd.f32 0.0, %v4749
        %v4751 = vpop.f32.mrb[0].mxu0
        %4752 = vmatprep.mubr.f32.mxu0 0.0
        %4753 = vmatmul.mubr.f32.gmra.mrb[0].mxu0 %v4682
        %v4754 = vpop.f32.mrb[0].mxu0
        %v4755 = vadd.f32 0.0, %v4754
        %v4756 = vpop.f32.mrb[0].mxu0
        %4757 = vdwg.mxu0
        %v4758 = vld [vmem:[%s2 + $0x2e0] sm:$0xff]
        %v4759 = vld [vmem:[%s2 + $0x2e8] sm:$0xff]
        %v4760 = vld [vmem:[%s2 + $0x2f0] sm:$0xff]
        %v4761 = vld [vmem:[%s2 + $0x2f8] sm:$0xff]
        %v4763 = vsel %vm832, %v4750, 0
        %v4766 = vsel %vm832, %v4755, 0
        %4768 = vmatprep.subr.mxu0 0.0
        %4769 = vmatpush1.msra.mxu0 %v4758
        %4770 = vmatprep.subr.mxu0 0.0
        %4771 = vmatpush1.msra.mxu0 %v4759
        %4772 = vmatprep.subr.mxu0 0.0
        %4773 = vmatpush1.msra.mxu0 %v4760
        %4774 = vmatprep.subr.mxu0 0.0
        %4775 = vmatpush1.msra.mxu0 %v4761
        %4776 = vmatprep.subr.mxu0 0.0
        %4777 = vmatpush1.msra.mxu0 0.0
        %4778 = vmatprep.subr.mxu0 0.0
        %4779 = vmatpush1.msra.mxu0 0.0
        %4780 = vmatprep.subr.mxu0 0.0
        %4781 = vmatpush1.msra.mxu0 0.0
        %4782 = vmatprep.subr.mxu0 0.0
        %4783 = vmatpush1.msra.mxu0 0.0
        %4784 = vmatprep.subr.mxu0 0.0
        %4785 = vmatpush1.msra.mxu0 0.0
        %4786 = vmatprep.subr.mxu0 0.0
        %4787 = vmatpush1.msra.mxu0 0.0
        %4788 = vmatprep.subr.mxu0 0.0
        %4789 = vmatpush1.msra.mxu0 0.0
        %4790 = vmatprep.subr.mxu0 0.0
        %4791 = vmatpush1.msra.mxu0 0.0
        %4792 = vmatprep.subr.mxu0 0.0
        %4793 = vmatpush1.msra.mxu0 0.0
        %4794 = vmatprep.subr.mxu0 0.0
        %4795 = vmatpush1.msra.mxu0 0.0
        %4796 = vmatprep.subr.mxu0 0.0
        %4797 = vmatpush1.msra.mxu0 0.0
        %4798 = vmatprep.subr.mxu0 0.0
        %4799 = vmatpush1.msra.mxu0 0.0
        %4800 = vmatprep.subr.mxu0 0.0
        %4801 = vmatpush1.msra.mxu0 0.0
        %4802 = vmatprep.subr.mxu0 0.0
        %4803 = vmatpush1.msra.mxu0 0.0
        %4804 = vmatprep.subr.mxu0 0.0
        %4805 = vmatpush1.msra.mxu0 0.0
        %4806 = vmatprep.subr.mxu0 0.0
        %4807 = vmatpush1.msra.mxu0 0.0
        %4808 = vmatprep.subr.mxu0 0.0
        %4809 = vmatpush1.msra.mxu0 0.0
        %4810 = vmatprep.subr.mxu0 0.0
        %4811 = vmatpush1.msra.mxu0 0.0
        %4812 = vmatprep.subr.mxu0 0.0
        %4813 = vmatpush1.msra.mxu0 0.0
        %4814 = vmatprep.subr.mxu0 0.0
        %4815 = vmatpush1.msra.mxu0 0.0
        %4816 = vmatprep.subr.mxu0 0.0
        %4817 = vmatpush1.msra.mxu0 0.0
        %4818 = vmatprep.subr.mxu0 0.0
        %4819 = vmatpush1.msra.mxu0 0.0
        %4820 = vmatprep.subr.mxu0 0.0
        %4821 = vmatpush1.msra.mxu0 0.0
        %4822 = vmatprep.subr.mxu0 0.0
        %4823 = vmatpush1.msra.mxu0 0.0
        %4824 = vmatprep.subr.mxu0 0.0
        %4825 = vmatpush1.msra.mxu0 0.0
        %4826 = vmatprep.subr.mxu0 0.0
        %4827 = vmatpush1.msra.mxu0 0.0
        %4828 = vmatprep.subr.mxu0 0.0
        %4829 = vmatpush1.msra.mxu0 0.0
        %4830 = vmatprep.subr.mxu0 0.0
        %4831 = vmatpush1.msra.mxu0 0.0
        %4832 = vmatprep.mubr.f32.mxu0 0.0
        %4833 = vmatmul.mubr.f32.gmra.mrb[0].mxu0 %v4763
        %v4834 = vpop.f32.mrb[0].mxu0
        %v4835 = vadd.f32 0.0, %v4834
        %v4836 = vpop.f32.mrb[0].mxu0
        %4837 = vmatprep.mubr.f32.mxu0 0.0
        %4838 = vmatmul.mubr.f32.gmra.mrb[0].mxu0 %v4766
        %v4839 = vpop.f32.mrb[0].mxu0
        %v4840 = vadd.f32 0.0, %v4839
        %v4841 = vpop.f32.mrb[0].mxu0
        %4842 = vdwg.mxu0
        %v4843 = vadd.f32 %v4668, %v4835
        %v4844 = vadd.f32 %v4669, %v4840
        %s4845 = scalar_lea.vmem %s601, 384 [#allocation2]
        %v4846 = vld [vmem:[%s4845] sm:$0xff]
        %v4847 = vld [vmem:[%s4845 + $0x8] sm:$0xff]
        %4848 = vset.pattern.permute.xlu0 0
        %4849 = vperm.xlu0 %4848, %v4846
        %v4850 = vpop.permute.xlu0 %4849
        %4851 = vset.pattern.permute.xlu0 0
        %4852 = vperm.xlu0 %4851, %v4847
        %v4853 = vpop.permute.xlu0 %4852
        %vm4854 = vcmp.eq.s32.totalorder %v4850, %v648
        %vm4855 = vcmp.eq.s32.totalorder %v4853, %v648
        %v4856 = vsel %vm4854, 1.0, 0.0
        %v4857 = vsel %vm4855, 1.0, 0.0
        %4858 = vmatprep.subr.mxu0 0.0
        %4859 = vmatpush1.msra.mxu0 %v631
        %4860 = vmatprep.subr.mxu0 0.0
        %4861 = vmatpush1.msra.mxu0 %v632
        %4862 = vmatprep.subr.mxu0 0.0
        %4863 = vmatpush1.msra.mxu0 %v633
        %4864 = vmatprep.subr.mxu0 0.0
        %4865 = vmatpush1.msra.mxu0 %v634
        %4866 = vmatprep.subr.mxu0 0.0
        %4867 = vmatpush1.msra.mxu0 %v635
        %4868 = vmatprep.subr.mxu0 0.0
        %4869 = vmatpush1.msra.mxu0 %v636
        %4870 = vmatprep.subr.mxu0 0.0
        %4871 = vmatpush1.msra.mxu0 %v637
        %4872 = vmatprep.subr.mxu0 0.0
        %4873 = vmatpush1.msra.mxu0 %v638
        %4874 = vmatprep.subr.mxu0 0.0
        %4875 = vmatpush1.msra.mxu0 %v639
        %4876 = vmatprep.subr.mxu0 0.0
        %4877 = vmatpush1.msra.mxu0 %v640
        %4878 = vmatprep.subr.mxu0 0.0
        %4879 = vmatpush1.msra.mxu0 %v641
        %4880 = vmatprep.subr.mxu0 0.0
        %4881 = vmatpush1.msra.mxu0 %v642
        %4882 = vmatprep.subr.mxu0 0.0
        %4883 = vmatpush1.msra.mxu0 %v643
        %4884 = vmatprep.subr.mxu0 0.0
        %4885 = vmatpush1.msra.mxu0 %v644
        %4886 = vmatprep.subr.mxu0 0.0
        %4887 = vmatpush1.msra.mxu0 %v645
        %4888 = vmatprep.subr.mxu0 0.0
        %4889 = vmatpush1.msra.mxu0 %v646
        %4890 = vmatprep.subr.mxu0 0.0
        %4891 = vmatpush1.msra.mxu0 0.0
        %4892 = vmatprep.subr.mxu0 0.0
        %4893 = vmatpush1.msra.mxu0 0.0
        %4894 = vmatprep.subr.mxu0 0.0
        %4895 = vmatpush1.msra.mxu0 0.0
        %4896 = vmatprep.subr.mxu0 0.0
        %4897 = vmatpush1.msra.mxu0 0.0
        %4898 = vmatprep.subr.mxu0 0.0
        %4899 = vmatpush1.msra.mxu0 0.0
        %4900 = vmatprep.subr.mxu0 0.0
        %4901 = vmatpush1.msra.mxu0 0.0
        %4902 = vmatprep.subr.mxu0 0.0
        %4903 = vmatpush1.msra.mxu0 0.0
        %4904 = vmatprep.subr.mxu0 0.0
        %4905 = vmatpush1.msra.mxu0 0.0
        %4906 = vmatprep.subr.mxu0 0.0
        %4907 = vmatpush1.msra.mxu0 0.0
        %4908 = vmatprep.subr.mxu0 0.0
        %4909 = vmatpush1.msra.mxu0 0.0
        %4910 = vmatprep.subr.mxu0 0.0
        %4911 = vmatpush1.msra.mxu0 0.0
        %4912 = vmatprep.subr.mxu0 0.0
        %4913 = vmatpush1.msra.mxu0 0.0
        %4914 = vmatprep.subr.mxu0 0.0
        %4915 = vmatpush1.msra.mxu0 0.0
        %4916 = vmatprep.subr.mxu0 0.0
        %4917 = vmatpush1.msra.mxu0 0.0
        %4918 = vmatprep.subr.mxu0 0.0
        %4919 = vmatpush1.msra.mxu0 0.0
        %4920 = vmatprep.subr.mxu0 0.0
        %4921 = vmatpush1.msra.mxu0 0.0
        %4922 = vmatprep.mubr.f32.mxu0 0.0
        %4923 = vmatmul.mubr.f32.gmra.mrb[0].mxu0 %v4856
        %v4924 = vpop.f32.mrb[0].mxu0
        %v4925 = vadd.f32 0.0, %v4924
        %v4926 = vpop.f32.mrb[0].mxu0
        %4927 = vmatprep.mubr.f32.mxu0 0.0
        %4928 = vmatmul.mubr.f32.gmra.mrb[0].mxu0 %v4857
        %v4929 = vpop.f32.mrb[0].mxu0
        %v4930 = vadd.f32 0.0, %v4929
        %v4931 = vpop.f32.mrb[0].mxu0
        %4932 = vdwg.mxu0
        %v4933 = vld [vmem:[%s2 + $0x300] sm:$0xff]
        %v4934 = vld [vmem:[%s2 + $0x308] sm:$0xff]
        %v4935 = vld [vmem:[%s2 + $0x310] sm:$0xff]
        %v4936 = vld [vmem:[%s2 + $0x318] sm:$0xff]
        %v4938 = vsel %vm832, %v4925, 0
        %v4941 = vsel %vm832, %v4930, 0
        %4943 = vmatprep.subr.mxu0 0.0
        %4944 = vmatpush1.msra.mxu0 %v4933
        %4945 = vmatprep.subr.mxu0 0.0
        %4946 = vmatpush1.msra.mxu0 %v4934
        %4947 = vmatprep.subr.mxu0 0.0
        %4948 = vmatpush1.msra.mxu0 %v4935
        %4949 = vmatprep.subr.mxu0 0.0
        %4950 = vmatpush1.msra.mxu0 %v4936
        %4951 = vmatprep.subr.mxu0 0.0
        %4952 = vmatpush1.msra.mxu0 0.0
        %4953 = vmatprep.subr.mxu0 0.0
        %4954 = vmatpush1.msra.mxu0 0.0
        %4955 = vmatprep.subr.mxu0 0.0
        %4956 = vmatpush1.msra.mxu0 0.0
        %4957 = vmatprep.subr.mxu0 0.0
        %4958 = vmatpush1.msra.mxu0 0.0
        %4959 = vmatprep.subr.mxu0 0.0
        %4960 = vmatpush1.msra.mxu0 0.0
        %4961 = vmatprep.subr.mxu0 0.0
        %4962 = vmatpush1.msra.mxu0 0.0
        %4963 = vmatprep.subr.mxu0 0.0
        %4964 = vmatpush1.msra.mxu0 0.0
        %4965 = vmatprep.subr.mxu0 0.0
        %4966 = vmatpush1.msra.mxu0 0.0
        %4967 = vmatprep.subr.mxu0 0.0
        %4968 = vmatpush1.msra.mxu0 0.0
        %4969 = vmatprep.subr.mxu0 0.0
        %4970 = vmatpush1.msra.mxu0 0.0
        %4971 = vmatprep.subr.mxu0 0.0
        %4972 = vmatpush1.msra.mxu0 0.0
        %4973 = vmatprep.subr.mxu0 0.0
        %4974 = vmatpush1.msra.mxu0 0.0
        %4975 = vmatprep.subr.mxu0 0.0
        %4976 = vmatpush1.msra.mxu0 0.0
        %4977 = vmatprep.subr.mxu0 0.0
        %4978 = vmatpush1.msra.mxu0 0.0
        %4979 = vmatprep.subr.mxu0 0.0
        %4980 = vmatpush1.msra.mxu0 0.0
        %4981 = vmatprep.subr.mxu0 0.0
        %4982 = vmatpush1.msra.mxu0 0.0
        %4983 = vmatprep.subr.mxu0 0.0
        %4984 = vmatpush1.msra.mxu0 0.0
        %4985 = vmatprep.subr.mxu0 0.0
        %4986 = vmatpush1.msra.mxu0 0.0
        %4987 = vmatprep.subr.mxu0 0.0
        %4988 = vmatpush1.msra.mxu0 0.0
        %4989 = vmatprep.subr.mxu0 0.0
        %4990 = vmatpush1.msra.mxu0 0.0
        %4991 = vmatprep.subr.mxu0 0.0
        %4992 = vmatpush1.msra.mxu0 0.0
        %4993 = vmatprep.subr.mxu0 0.0
        %4994 = vmatpush1.msra.mxu0 0.0
        %4995 = vmatprep.subr.mxu0 0.0
        %4996 = vmatpush1.msra.mxu0 0.0
        %4997 = vmatprep.subr.mxu0 0.0
        %4998 = vmatpush1.msra.mxu0 0.0
        %4999 = vmatprep.subr.mxu0 0.0
        %5000 = vmatpush1.msra.mxu0 0.0
        %5001 = vmatprep.subr.mxu0 0.0
        %5002 = vmatpush1.msra.mxu0 0.0
        %5003 = vmatprep.subr.mxu0 0.0
        %5004 = vmatpush1.msra.mxu0 0.0
        %5005 = vmatprep.subr.mxu0 0.0
        %5006 = vmatpush1.msra.mxu0 0.0
        %5007 = vmatprep.mubr.f32.mxu0 0.0
        %5008 = vmatmul.mubr.f32.gmra.mrb[0].mxu0 %v4938
        %v5009 = vpop.f32.mrb[0].mxu0
        %v5010 = vadd.f32 0.0, %v5009
        %v5011 = vpop.f32.mrb[0].mxu0
        %5012 = vmatprep.mubr.f32.mxu0 0.0
        %5013 = vmatmul.mubr.f32.gmra.mrb[0].mxu0 %v4941
        %v5014 = vpop.f32.mrb[0].mxu0
        %v5015 = vadd.f32 0.0, %v5014
        %v5016 = vpop.f32.mrb[0].mxu0
        %5017 = vdwg.mxu0
        %v5018 = vadd.f32 %v4843, %v5010
        %v5019 = vadd.f32 %v4844, %v5015
        %s5020 = scalar_lea.vmem %s601, 400 [#allocation2]
        %v5021 = vld [vmem:[%s5020] sm:$0xff]
        %v5022 = vld [vmem:[%s5020 + $0x8] sm:$0xff]
        %5023 = vset.pattern.permute.xlu0 0
        %5024 = vperm.xlu0 %5023, %v5021
        %v5025 = vpop.permute.xlu0 %5024
        %5026 = vset.pattern.permute.xlu0 0
        %5027 = vperm.xlu0 %5026, %v5022
        %v5028 = vpop.permute.xlu0 %5027
        %vm5029 = vcmp.eq.s32.totalorder %v5025, %v648
        %vm5030 = vcmp.eq.s32.totalorder %v5028, %v648
        %v5031 = vsel %vm5029, 1.0, 0.0
        %v5032 = vsel %vm5030, 1.0, 0.0
        %5033 = vmatprep.subr.mxu0 0.0
        %5034 = vmatpush1.msra.mxu0 %v631
        %5035 = vmatprep.subr.mxu0 0.0
        %5036 = vmatpush1.msra.mxu0 %v632
        %5037 = vmatprep.subr.mxu0 0.0
        %5038 = vmatpush1.msra.mxu0 %v633
        %5039 = vmatprep.subr.mxu0 0.0
        %5040 = vmatpush1.msra.mxu0 %v634
        %5041 = vmatprep.subr.mxu0 0.0
        %5042 = vmatpush1.msra.mxu0 %v635
        %5043 = vmatprep.subr.mxu0 0.0
        %5044 = vmatpush1.msra.mxu0 %v636
        %5045 = vmatprep.subr.mxu0 0.0
        %5046 = vmatpush1.msra.mxu0 %v637
        %5047 = vmatprep.subr.mxu0 0.0
        %5048 = vmatpush1.msra.mxu0 %v638
        %5049 = vmatprep.subr.mxu0 0.0
        %5050 = vmatpush1.msra.mxu0 %v639
        %5051 = vmatprep.subr.mxu0 0.0
        %5052 = vmatpush1.msra.mxu0 %v640
        %5053 = vmatprep.subr.mxu0 0.0
        %5054 = vmatpush1.msra.mxu0 %v641
        %5055 = vmatprep.subr.mxu0 0.0
        %5056 = vmatpush1.msra.mxu0 %v642
        %5057 = vmatprep.subr.mxu0 0.0
        %5058 = vmatpush1.msra.mxu0 %v643
        %5059 = vmatprep.subr.mxu0 0.0
        %5060 = vmatpush1.msra.mxu0 %v644
        %5061 = vmatprep.subr.mxu0 0.0
        %5062 = vmatpush1.msra.mxu0 %v645
        %5063 = vmatprep.subr.mxu0 0.0
        %5064 = vmatpush1.msra.mxu0 %v646
        %5065 = vmatprep.subr.mxu0 0.0
        %5066 = vmatpush1.msra.mxu0 0.0
        %5067 = vmatprep.subr.mxu0 0.0
        %5068 = vmatpush1.msra.mxu0 0.0
        %5069 = vmatprep.subr.mxu0 0.0
        %5070 = vmatpush1.msra.mxu0 0.0
        %5071 = vmatprep.subr.mxu0 0.0
        %5072 = vmatpush1.msra.mxu0 0.0
        %5073 = vmatprep.subr.mxu0 0.0
        %5074 = vmatpush1.msra.mxu0 0.0
        %5075 = vmatprep.subr.mxu0 0.0
        %5076 = vmatpush1.msra.mxu0 0.0
        %5077 = vmatprep.subr.mxu0 0.0
        %5078 = vmatpush1.msra.mxu0 0.0
        %5079 = vmatprep.subr.mxu0 0.0
        %5080 = vmatpush1.msra.mxu0 0.0
        %5081 = vmatprep.subr.mxu0 0.0
        %5082 = vmatpush1.msra.mxu0 0.0
        %5083 = vmatprep.subr.mxu0 0.0
        %5084 = vmatpush1.msra.mxu0 0.0
        %5085 = vmatprep.subr.mxu0 0.0
        %5086 = vmatpush1.msra.mxu0 0.0
        %5087 = vmatprep.subr.mxu0 0.0
        %5088 = vmatpush1.msra.mxu0 0.0
        %5089 = vmatprep.subr.mxu0 0.0
        %5090 = vmatpush1.msra.mxu0 0.0
        %5091 = vmatprep.subr.mxu0 0.0
        %5092 = vmatpush1.msra.mxu0 0.0
        %5093 = vmatprep.subr.mxu0 0.0
        %5094 = vmatpush1.msra.mxu0 0.0
        %5095 = vmatprep.subr.mxu0 0.0
        %5096 = vmatpush1.msra.mxu0 0.0
        %5097 = vmatprep.mubr.f32.mxu0 0.0
        %5098 = vmatmul.mubr.f32.gmra.mrb[0].mxu0 %v5031
        %v5099 = vpop.f32.mrb[0].mxu0
        %v5100 = vadd.f32 0.0, %v5099
        %v5101 = vpop.f32.mrb[0].mxu0
        %5102 = vmatprep.mubr.f32.mxu0 0.0
        %5103 = vmatmul.mubr.f32.gmra.mrb[0].mxu0 %v5032
        %v5104 = vpop.f32.mrb[0].mxu0
        %v5105 = vadd.f32 0.0, %v5104
        %v5106 = vpop.f32.mrb[0].mxu0
        %5107 = vdwg.mxu0
        %v5108 = vld [vmem:[%s2 + $0x320] sm:$0xff]
        %v5109 = vld [vmem:[%s2 + $0x328] sm:$0xff]
        %v5110 = vld [vmem:[%s2 + $0x330] sm:$0xff]
        %v5111 = vld [vmem:[%s2 + $0x338] sm:$0xff]
        %v5113 = vsel %vm832, %v5100, 0
        %v5116 = vsel %vm832, %v5105, 0
        %5118 = vmatprep.subr.mxu0 0.0
        %5119 = vmatpush1.msra.mxu0 %v5108
        %5120 = vmatprep.subr.mxu0 0.0
        %5121 = vmatpush1.msra.mxu0 %v5109
        %5122 = vmatprep.subr.mxu0 0.0
        %5123 = vmatpush1.msra.mxu0 %v5110
        %5124 = vmatprep.subr.mxu0 0.0
        %5125 = vmatpush1.msra.mxu0 %v5111
        %5126 = vmatprep.subr.mxu0 0.0
        %5127 = vmatpush1.msra.mxu0 0.0
        %5128 = vmatprep.subr.mxu0 0.0
        %5129 = vmatpush1.msra.mxu0 0.0
        %5130 = vmatprep.subr.mxu0 0.0
        %5131 = vmatpush1.msra.mxu0 0.0
        %5132 = vmatprep.subr.mxu0 0.0
        %5133 = vmatpush1.msra.mxu0 0.0
        %5134 = vmatprep.subr.mxu0 0.0
        %5135 = vmatpush1.msra.mxu0 0.0
        %5136 = vmatprep.subr.mxu0 0.0
        %5137 = vmatpush1.msra.mxu0 0.0
        %5138 = vmatprep.subr.mxu0 0.0
        %5139 = vmatpush1.msra.mxu0 0.0
        %5140 = vmatprep.subr.mxu0 0.0
        %5141 = vmatpush1.msra.mxu0 0.0
        %5142 = vmatprep.subr.mxu0 0.0
        %5143 = vmatpush1.msra.mxu0 0.0
        %5144 = vmatprep.subr.mxu0 0.0
        %5145 = vmatpush1.msra.mxu0 0.0
        %5146 = vmatprep.subr.mxu0 0.0
        %5147 = vmatpush1.msra.mxu0 0.0
        %5148 = vmatprep.subr.mxu0 0.0
        %5149 = vmatpush1.msra.mxu0 0.0
        %5150 = vmatprep.subr.mxu0 0.0
        %5151 = vmatpush1.msra.mxu0 0.0
        %5152 = vmatprep.subr.mxu0 0.0
        %5153 = vmatpush1.msra.mxu0 0.0
        %5154 = vmatprep.subr.mxu0 0.0
        %5155 = vmatpush1.msra.mxu0 0.0
        %5156 = vmatprep.subr.mxu0 0.0
        %5157 = vmatpush1.msra.mxu0 0.0
        %5158 = vmatprep.subr.mxu0 0.0
        %5159 = vmatpush1.msra.mxu0 0.0
        %5160 = vmatprep.subr.mxu0 0.0
        %5161 = vmatpush1.msra.mxu0 0.0
        %5162 = vmatprep.subr.mxu0 0.0
        %5163 = vmatpush1.msra.mxu0 0.0
        %5164 = vmatprep.subr.mxu0 0.0
        %5165 = vmatpush1.msra.mxu0 0.0
        %5166 = vmatprep.subr.mxu0 0.0
        %5167 = vmatpush1.msra.mxu0 0.0
        %5168 = vmatprep.subr.mxu0 0.0
        %5169 = vmatpush1.msra.mxu0 0.0
        %5170 = vmatprep.subr.mxu0 0.0
        %5171 = vmatpush1.msra.mxu0 0.0
        %5172 = vmatprep.subr.mxu0 0.0
        %5173 = vmatpush1.msra.mxu0 0.0
        %5174 = vmatprep.subr.mxu0 0.0
        %5175 = vmatpush1.msra.mxu0 0.0
        %5176 = vmatprep.subr.mxu0 0.0
        %5177 = vmatpush1.msra.mxu0 0.0
        %5178 = vmatprep.subr.mxu0 0.0
        %5179 = vmatpush1.msra.mxu0 0.0
        %5180 = vmatprep.subr.mxu0 0.0
        %5181 = vmatpush1.msra.mxu0 0.0
        %5182 = vmatprep.mubr.f32.mxu0 0.0
        %5183 = vmatmul.mubr.f32.gmra.mrb[0].mxu0 %v5113
        %v5184 = vpop.f32.mrb[0].mxu0
        %v5185 = vadd.f32 0.0, %v5184
        %v5186 = vpop.f32.mrb[0].mxu0
        %5187 = vmatprep.mubr.f32.mxu0 0.0
        %5188 = vmatmul.mubr.f32.gmra.mrb[0].mxu0 %v5116
        %v5189 = vpop.f32.mrb[0].mxu0
        %v5190 = vadd.f32 0.0, %v5189
        %v5191 = vpop.f32.mrb[0].mxu0
        %5192 = vdwg.mxu0
        %v5193 = vadd.f32 %v5018, %v5185
        %v5194 = vadd.f32 %v5019, %v5190
        %s5195 = scalar_lea.vmem %s601, 416 [#allocation2]
        %v5196 = vld [vmem:[%s5195] sm:$0xff]
        %v5197 = vld [vmem:[%s5195 + $0x8] sm:$0xff]
        %5198 = vset.pattern.permute.xlu0 0
        %5199 = vperm.xlu0 %5198, %v5196
        %v5200 = vpop.permute.xlu0 %5199
        %5201 = vset.pattern.permute.xlu0 0
        %5202 = vperm.xlu0 %5201, %v5197
        %v5203 = vpop.permute.xlu0 %5202
        %vm5204 = vcmp.eq.s32.totalorder %v5200, %v648
        %vm5205 = vcmp.eq.s32.totalorder %v5203, %v648
        %v5206 = vsel %vm5204, 1.0, 0.0
        %v5207 = vsel %vm5205, 1.0, 0.0
        %5208 = vmatprep.subr.mxu0 0.0
        %5209 = vmatpush1.msra.mxu0 %v631
        %5210 = vmatprep.subr.mxu0 0.0
        %5211 = vmatpush1.msra.mxu0 %v632
        %5212 = vmatprep.subr.mxu0 0.0
        %5213 = vmatpush1.msra.mxu0 %v633
        %5214 = vmatprep.subr.mxu0 0.0
        %5215 = vmatpush1.msra.mxu0 %v634
        %5216 = vmatprep.subr.mxu0 0.0
        %5217 = vmatpush1.msra.mxu0 %v635
        %5218 = vmatprep.subr.mxu0 0.0
        %5219 = vmatpush1.msra.mxu0 %v636
        %5220 = vmatprep.subr.mxu0 0.0
        %5221 = vmatpush1.msra.mxu0 %v637
        %5222 = vmatprep.subr.mxu0 0.0
        %5223 = vmatpush1.msra.mxu0 %v638
        %5224 = vmatprep.subr.mxu0 0.0
        %5225 = vmatpush1.msra.mxu0 %v639
        %5226 = vmatprep.subr.mxu0 0.0
        %5227 = vmatpush1.msra.mxu0 %v640
        %5228 = vmatprep.subr.mxu0 0.0
        %5229 = vmatpush1.msra.mxu0 %v641
        %5230 = vmatprep.subr.mxu0 0.0
        %5231 = vmatpush1.msra.mxu0 %v642
        %5232 = vmatprep.subr.mxu0 0.0
        %5233 = vmatpush1.msra.mxu0 %v643
        %5234 = vmatprep.subr.mxu0 0.0
        %5235 = vmatpush1.msra.mxu0 %v644
        %5236 = vmatprep.subr.mxu0 0.0
        %5237 = vmatpush1.msra.mxu0 %v645
        %5238 = vmatprep.subr.mxu0 0.0
        %5239 = vmatpush1.msra.mxu0 %v646
        %5240 = vmatprep.subr.mxu0 0.0
        %5241 = vmatpush1.msra.mxu0 0.0
        %5242 = vmatprep.subr.mxu0 0.0
        %5243 = vmatpush1.msra.mxu0 0.0
        %5244 = vmatprep.subr.mxu0 0.0
        %5245 = vmatpush1.msra.mxu0 0.0
        %5246 = vmatprep.subr.mxu0 0.0
        %5247 = vmatpush1.msra.mxu0 0.0
        %5248 = vmatprep.subr.mxu0 0.0
        %5249 = vmatpush1.msra.mxu0 0.0
        %5250 = vmatprep.subr.mxu0 0.0
        %5251 = vmatpush1.msra.mxu0 0.0
        %5252 = vmatprep.subr.mxu0 0.0
        %5253 = vmatpush1.msra.mxu0 0.0
        %5254 = vmatprep.subr.mxu0 0.0
        %5255 = vmatpush1.msra.mxu0 0.0
        %5256 = vmatprep.subr.mxu0 0.0
        %5257 = vmatpush1.msra.mxu0 0.0
        %5258 = vmatprep.subr.mxu0 0.0
        %5259 = vmatpush1.msra.mxu0 0.0
        %5260 = vmatprep.subr.mxu0 0.0
        %5261 = vmatpush1.msra.mxu0 0.0
        %5262 = vmatprep.subr.mxu0 0.0
        %5263 = vmatpush1.msra.mxu0 0.0
        %5264 = vmatprep.subr.mxu0 0.0
        %5265 = vmatpush1.msra.mxu0 0.0
        %5266 = vmatprep.subr.mxu0 0.0
        %5267 = vmatpush1.msra.mxu0 0.0
        %5268 = vmatprep.subr.mxu0 0.0
        %5269 = vmatpush1.msra.mxu0 0.0
        %5270 = vmatprep.subr.mxu0 0.0
        %5271 = vmatpush1.msra.mxu0 0.0
        %5272 = vmatprep.mubr.f32.mxu0 0.0
        %5273 = vmatmul.mubr.f32.gmra.mrb[0].mxu0 %v5206
        %v5274 = vpop.f32.mrb[0].mxu0
        %v5275 = vadd.f32 0.0, %v5274
        %v5276 = vpop.f32.mrb[0].mxu0
        %5277 = vmatprep.mubr.f32.mxu0 0.0
        %5278 = vmatmul.mubr.f32.gmra.mrb[0].mxu0 %v5207
        %v5279 = vpop.f32.mrb[0].mxu0
        %v5280 = vadd.f32 0.0, %v5279
        %v5281 = vpop.f32.mrb[0].mxu0
        %5282 = vdwg.mxu0
        %v5283 = vld [vmem:[%s2 + $0x340] sm:$0xff]
        %v5284 = vld [vmem:[%s2 + $0x348] sm:$0xff]
        %v5285 = vld [vmem:[%s2 + $0x350] sm:$0xff]
        %v5286 = vld [vmem:[%s2 + $0x358] sm:$0xff]
        %v5288 = vsel %vm832, %v5275, 0
        %v5291 = vsel %vm832, %v5280, 0
        %5293 = vmatprep.subr.mxu0 0.0
        %5294 = vmatpush1.msra.mxu0 %v5283
        %5295 = vmatprep.subr.mxu0 0.0
        %5296 = vmatpush1.msra.mxu0 %v5284
        %5297 = vmatprep.subr.mxu0 0.0
        %5298 = vmatpush1.msra.mxu0 %v5285
        %5299 = vmatprep.subr.mxu0 0.0
        %5300 = vmatpush1.msra.mxu0 %v5286
        %5301 = vmatprep.subr.mxu0 0.0
        %5302 = vmatpush1.msra.mxu0 0.0
        %5303 = vmatprep.subr.mxu0 0.0
        %5304 = vmatpush1.msra.mxu0 0.0
        %5305 = vmatprep.subr.mxu0 0.0
        %5306 = vmatpush1.msra.mxu0 0.0
        %5307 = vmatprep.subr.mxu0 0.0
        %5308 = vmatpush1.msra.mxu0 0.0
        %5309 = vmatprep.subr.mxu0 0.0
        %5310 = vmatpush1.msra.mxu0 0.0
        %5311 = vmatprep.subr.mxu0 0.0
        %5312 = vmatpush1.msra.mxu0 0.0
        %5313 = vmatprep.subr.mxu0 0.0
        %5314 = vmatpush1.msra.mxu0 0.0
        %5315 = vmatprep.subr.mxu0 0.0
        %5316 = vmatpush1.msra.mxu0 0.0
        %5317 = vmatprep.subr.mxu0 0.0
        %5318 = vmatpush1.msra.mxu0 0.0
        %5319 = vmatprep.subr.mxu0 0.0
        %5320 = vmatpush1.msra.mxu0 0.0
        %5321 = vmatprep.subr.mxu0 0.0
        %5322 = vmatpush1.msra.mxu0 0.0
        %5323 = vmatprep.subr.mxu0 0.0
        %5324 = vmatpush1.msra.mxu0 0.0
        %5325 = vmatprep.subr.mxu0 0.0
        %5326 = vmatpush1.msra.mxu0 0.0
        %5327 = vmatprep.subr.mxu0 0.0
        %5328 = vmatpush1.msra.mxu0 0.0
        %5329 = vmatprep.subr.mxu0 0.0
        %5330 = vmatpush1.msra.mxu0 0.0
        %5331 = vmatprep.subr.mxu0 0.0
        %5332 = vmatpush1.msra.mxu0 0.0
        %5333 = vmatprep.subr.mxu0 0.0
        %5334 = vmatpush1.msra.mxu0 0.0
        %5335 = vmatprep.subr.mxu0 0.0
        %5336 = vmatpush1.msra.mxu0 0.0
        %5337 = vmatprep.subr.mxu0 0.0
        %5338 = vmatpush1.msra.mxu0 0.0
        %5339 = vmatprep.subr.mxu0 0.0
        %5340 = vmatpush1.msra.mxu0 0.0
        %5341 = vmatprep.subr.mxu0 0.0
        %5342 = vmatpush1.msra.mxu0 0.0
        %5343 = vmatprep.subr.mxu0 0.0
        %5344 = vmatpush1.msra.mxu0 0.0
        %5345 = vmatprep.subr.mxu0 0.0
        %5346 = vmatpush1.msra.mxu0 0.0
        %5347 = vmatprep.subr.mxu0 0.0
        %5348 = vmatpush1.msra.mxu0 0.0
        %5349 = vmatprep.subr.mxu0 0.0
        %5350 = vmatpush1.msra.mxu0 0.0
        %5351 = vmatprep.subr.mxu0 0.0
        %5352 = vmatpush1.msra.mxu0 0.0
        %5353 = vmatprep.subr.mxu0 0.0
        %5354 = vmatpush1.msra.mxu0 0.0
        %5355 = vmatprep.subr.mxu0 0.0
        %5356 = vmatpush1.msra.mxu0 0.0
        %5357 = vmatprep.mubr.f32.mxu0 0.0
        %5358 = vmatmul.mubr.f32.gmra.mrb[0].mxu0 %v5288
        %v5359 = vpop.f32.mrb[0].mxu0
        %v5360 = vadd.f32 0.0, %v5359
        %v5361 = vpop.f32.mrb[0].mxu0
        %5362 = vmatprep.mubr.f32.mxu0 0.0
        %5363 = vmatmul.mubr.f32.gmra.mrb[0].mxu0 %v5291
        %v5364 = vpop.f32.mrb[0].mxu0
        %v5365 = vadd.f32 0.0, %v5364
        %v5366 = vpop.f32.mrb[0].mxu0
        %5367 = vdwg.mxu0
        %v5368 = vadd.f32 %v5193, %v5360
        %v5369 = vadd.f32 %v5194, %v5365
        %s5370 = scalar_lea.vmem %s601, 432 [#allocation2]
        %v5371 = vld [vmem:[%s5370] sm:$0xff]
        %v5372 = vld [vmem:[%s5370 + $0x8] sm:$0xff]
        %5373 = vset.pattern.permute.xlu0 0
        %5374 = vperm.xlu0 %5373, %v5371
        %v5375 = vpop.permute.xlu0 %5374
        %5376 = vset.pattern.permute.xlu0 0
        %5377 = vperm.xlu0 %5376, %v5372
        %v5378 = vpop.permute.xlu0 %5377
        %vm5379 = vcmp.eq.s32.totalorder %v5375, %v648
        %vm5380 = vcmp.eq.s32.totalorder %v5378, %v648
        %v5381 = vsel %vm5379, 1.0, 0.0
        %v5382 = vsel %vm5380, 1.0, 0.0
        %5383 = vmatprep.subr.mxu0 0.0
        %5384 = vmatpush1.msra.mxu0 %v631
        %5385 = vmatprep.subr.mxu0 0.0
        %5386 = vmatpush1.msra.mxu0 %v632
        %5387 = vmatprep.subr.mxu0 0.0
        %5388 = vmatpush1.msra.mxu0 %v633
        %5389 = vmatprep.subr.mxu0 0.0
        %5390 = vmatpush1.msra.mxu0 %v634
        %5391 = vmatprep.subr.mxu0 0.0
        %5392 = vmatpush1.msra.mxu0 %v635
        %5393 = vmatprep.subr.mxu0 0.0
        %5394 = vmatpush1.msra.mxu0 %v636
        %5395 = vmatprep.subr.mxu0 0.0
        %5396 = vmatpush1.msra.mxu0 %v637
        %5397 = vmatprep.subr.mxu0 0.0
        %5398 = vmatpush1.msra.mxu0 %v638
        %5399 = vmatprep.subr.mxu0 0.0
        %5400 = vmatpush1.msra.mxu0 %v639
        %5401 = vmatprep.subr.mxu0 0.0
        %5402 = vmatpush1.msra.mxu0 %v640
        %5403 = vmatprep.subr.mxu0 0.0
        %5404 = vmatpush1.msra.mxu0 %v641
        %5405 = vmatprep.subr.mxu0 0.0
        %5406 = vmatpush1.msra.mxu0 %v642
        %5407 = vmatprep.subr.mxu0 0.0
        %5408 = vmatpush1.msra.mxu0 %v643
        %5409 = vmatprep.subr.mxu0 0.0
        %5410 = vmatpush1.msra.mxu0 %v644
        %5411 = vmatprep.subr.mxu0 0.0
        %5412 = vmatpush1.msra.mxu0 %v645
        %5413 = vmatprep.subr.mxu0 0.0
        %5414 = vmatpush1.msra.mxu0 %v646
        %5415 = vmatprep.subr.mxu0 0.0
        %5416 = vmatpush1.msra.mxu0 0.0
        %5417 = vmatprep.subr.mxu0 0.0
        %5418 = vmatpush1.msra.mxu0 0.0
        %5419 = vmatprep.subr.mxu0 0.0
        %5420 = vmatpush1.msra.mxu0 0.0
        %5421 = vmatprep.subr.mxu0 0.0
        %5422 = vmatpush1.msra.mxu0 0.0
        %5423 = vmatprep.subr.mxu0 0.0
        %5424 = vmatpush1.msra.mxu0 0.0
        %5425 = vmatprep.subr.mxu0 0.0
        %5426 = vmatpush1.msra.mxu0 0.0
        %5427 = vmatprep.subr.mxu0 0.0
        %5428 = vmatpush1.msra.mxu0 0.0
        %5429 = vmatprep.subr.mxu0 0.0
        %5430 = vmatpush1.msra.mxu0 0.0
        %5431 = vmatprep.subr.mxu0 0.0
        %5432 = vmatpush1.msra.mxu0 0.0
        %5433 = vmatprep.subr.mxu0 0.0
        %5434 = vmatpush1.msra.mxu0 0.0
        %5435 = vmatprep.subr.mxu0 0.0
        %5436 = vmatpush1.msra.mxu0 0.0
        %5437 = vmatprep.subr.mxu0 0.0
        %5438 = vmatpush1.msra.mxu0 0.0
        %5439 = vmatprep.subr.mxu0 0.0
        %5440 = vmatpush1.msra.mxu0 0.0
        %5441 = vmatprep.subr.mxu0 0.0
        %5442 = vmatpush1.msra.mxu0 0.0
        %5443 = vmatprep.subr.mxu0 0.0
        %5444 = vmatpush1.msra.mxu0 0.0
        %5445 = vmatprep.subr.mxu0 0.0
        %5446 = vmatpush1.msra.mxu0 0.0
        %5447 = vmatprep.mubr.f32.mxu0 0.0
        %5448 = vmatmul.mubr.f32.gmra.mrb[0].mxu0 %v5381
        %v5449 = vpop.f32.mrb[0].mxu0
        %v5450 = vadd.f32 0.0, %v5449
        %v5451 = vpop.f32.mrb[0].mxu0
        %5452 = vmatprep.mubr.f32.mxu0 0.0
        %5453 = vmatmul.mubr.f32.gmra.mrb[0].mxu0 %v5382
        %v5454 = vpop.f32.mrb[0].mxu0
        %v5455 = vadd.f32 0.0, %v5454
        %v5456 = vpop.f32.mrb[0].mxu0
        %5457 = vdwg.mxu0
        %v5458 = vld [vmem:[%s2 + $0x360] sm:$0xff]
        %v5459 = vld [vmem:[%s2 + $0x368] sm:$0xff]
        %v5460 = vld [vmem:[%s2 + $0x370] sm:$0xff]
        %v5461 = vld [vmem:[%s2 + $0x378] sm:$0xff]
        %v5463 = vsel %vm832, %v5450, 0
        %v5466 = vsel %vm832, %v5455, 0
        %5468 = vmatprep.subr.mxu0 0.0
        %5469 = vmatpush1.msra.mxu0 %v5458
        %5470 = vmatprep.subr.mxu0 0.0
        %5471 = vmatpush1.msra.mxu0 %v5459
        %5472 = vmatprep.subr.mxu0 0.0
        %5473 = vmatpush1.msra.mxu0 %v5460
        %5474 = vmatprep.subr.mxu0 0.0
        %5475 = vmatpush1.msra.mxu0 %v5461
        %5476 = vmatprep.subr.mxu0 0.0
        %5477 = vmatpush1.msra.mxu0 0.0
        %5478 = vmatprep.subr.mxu0 0.0
        %5479 = vmatpush1.msra.mxu0 0.0
        %5480 = vmatprep.subr.mxu0 0.0
        %5481 = vmatpush1.msra.mxu0 0.0
        %5482 = vmatprep.subr.mxu0 0.0
        %5483 = vmatpush1.msra.mxu0 0.0
        %5484 = vmatprep.subr.mxu0 0.0
        %5485 = vmatpush1.msra.mxu0 0.0
        %5486 = vmatprep.subr.mxu0 0.0
        %5487 = vmatpush1.msra.mxu0 0.0
        %5488 = vmatprep.subr.mxu0 0.0
        %5489 = vmatpush1.msra.mxu0 0.0
        %5490 = vmatprep.subr.mxu0 0.0
        %5491 = vmatpush1.msra.mxu0 0.0
        %5492 = vmatprep.subr.mxu0 0.0
        %5493 = vmatpush1.msra.mxu0 0.0
        %5494 = vmatprep.subr.mxu0 0.0
        %5495 = vmatpush1.msra.mxu0 0.0
        %5496 = vmatprep.subr.mxu0 0.0
        %5497 = vmatpush1.msra.mxu0 0.0
        %5498 = vmatprep.subr.mxu0 0.0
        %5499 = vmatpush1.msra.mxu0 0.0
        %5500 = vmatprep.subr.mxu0 0.0
        %5501 = vmatpush1.msra.mxu0 0.0
        %5502 = vmatprep.subr.mxu0 0.0
        %5503 = vmatpush1.msra.mxu0 0.0
        %5504 = vmatprep.subr.mxu0 0.0
        %5505 = vmatpush1.msra.mxu0 0.0
        %5506 = vmatprep.subr.mxu0 0.0
        %5507 = vmatpush1.msra.mxu0 0.0
        %5508 = vmatprep.subr.mxu0 0.0
        %5509 = vmatpush1.msra.mxu0 0.0
        %5510 = vmatprep.subr.mxu0 0.0
        %5511 = vmatpush1.msra.mxu0 0.0
        %5512 = vmatprep.subr.mxu0 0.0
        %5513 = vmatpush1.msra.mxu0 0.0
        %5514 = vmatprep.subr.mxu0 0.0
        %5515 = vmatpush1.msra.mxu0 0.0
        %5516 = vmatprep.subr.mxu0 0.0
        %5517 = vmatpush1.msra.mxu0 0.0
        %5518 = vmatprep.subr.mxu0 0.0
        %5519 = vmatpush1.msra.mxu0 0.0
        %5520 = vmatprep.subr.mxu0 0.0
        %5521 = vmatpush1.msra.mxu0 0.0
        %5522 = vmatprep.subr.mxu0 0.0
        %5523 = vmatpush1.msra.mxu0 0.0
        %5524 = vmatprep.subr.mxu0 0.0
        %5525 = vmatpush1.msra.mxu0 0.0
        %5526 = vmatprep.subr.mxu0 0.0
        %5527 = vmatpush1.msra.mxu0 0.0
        %5528 = vmatprep.subr.mxu0 0.0
        %5529 = vmatpush1.msra.mxu0 0.0
        %5530 = vmatprep.subr.mxu0 0.0
        %5531 = vmatpush1.msra.mxu0 0.0
        %5532 = vmatprep.mubr.f32.mxu0 0.0
        %5533 = vmatmul.mubr.f32.gmra.mrb[0].mxu0 %v5463
        %v5534 = vpop.f32.mrb[0].mxu0
        %v5535 = vadd.f32 0.0, %v5534
        %v5536 = vpop.f32.mrb[0].mxu0
        %5537 = vmatprep.mubr.f32.mxu0 0.0
        %5538 = vmatmul.mubr.f32.gmra.mrb[0].mxu0 %v5466
        %v5539 = vpop.f32.mrb[0].mxu0
        %v5540 = vadd.f32 0.0, %v5539
        %v5541 = vpop.f32.mrb[0].mxu0
        %5542 = vdwg.mxu0
        %v5543 = vadd.f32 %v5368, %v5535
        %v5544 = vadd.f32 %v5369, %v5540
        %s5545 = scalar_lea.vmem %s601, 448 [#allocation2]
        %v5546 = vld [vmem:[%s5545] sm:$0xff]
        %v5547 = vld [vmem:[%s5545 + $0x8] sm:$0xff]
        %5548 = vset.pattern.permute.xlu0 0
        %5549 = vperm.xlu0 %5548, %v5546
        %v5550 = vpop.permute.xlu0 %5549
        %5551 = vset.pattern.permute.xlu0 0
        %5552 = vperm.xlu0 %5551, %v5547
        %v5553 = vpop.permute.xlu0 %5552
        %vm5554 = vcmp.eq.s32.totalorder %v5550, %v648
        %vm5555 = vcmp.eq.s32.totalorder %v5553, %v648
        %v5556 = vsel %vm5554, 1.0, 0.0
        %v5557 = vsel %vm5555, 1.0, 0.0
        %5558 = vmatprep.subr.mxu0 0.0
        %5559 = vmatpush1.msra.mxu0 %v631
        %5560 = vmatprep.subr.mxu0 0.0
        %5561 = vmatpush1.msra.mxu0 %v632
        %5562 = vmatprep.subr.mxu0 0.0
        %5563 = vmatpush1.msra.mxu0 %v633
        %5564 = vmatprep.subr.mxu0 0.0
        %5565 = vmatpush1.msra.mxu0 %v634
        %5566 = vmatprep.subr.mxu0 0.0
        %5567 = vmatpush1.msra.mxu0 %v635
        %5568 = vmatprep.subr.mxu0 0.0
        %5569 = vmatpush1.msra.mxu0 %v636
        %5570 = vmatprep.subr.mxu0 0.0
        %5571 = vmatpush1.msra.mxu0 %v637
        %5572 = vmatprep.subr.mxu0 0.0
        %5573 = vmatpush1.msra.mxu0 %v638
        %5574 = vmatprep.subr.mxu0 0.0
        %5575 = vmatpush1.msra.mxu0 %v639
        %5576 = vmatprep.subr.mxu0 0.0
        %5577 = vmatpush1.msra.mxu0 %v640
        %5578 = vmatprep.subr.mxu0 0.0
        %5579 = vmatpush1.msra.mxu0 %v641
        %5580 = vmatprep.subr.mxu0 0.0
        %5581 = vmatpush1.msra.mxu0 %v642
        %5582 = vmatprep.subr.mxu0 0.0
        %5583 = vmatpush1.msra.mxu0 %v643
        %5584 = vmatprep.subr.mxu0 0.0
        %5585 = vmatpush1.msra.mxu0 %v644
        %5586 = vmatprep.subr.mxu0 0.0
        %5587 = vmatpush1.msra.mxu0 %v645
        %5588 = vmatprep.subr.mxu0 0.0
        %5589 = vmatpush1.msra.mxu0 %v646
        %5590 = vmatprep.subr.mxu0 0.0
        %5591 = vmatpush1.msra.mxu0 0.0
        %5592 = vmatprep.subr.mxu0 0.0
        %5593 = vmatpush1.msra.mxu0 0.0
        %5594 = vmatprep.subr.mxu0 0.0
        %5595 = vmatpush1.msra.mxu0 0.0
        %5596 = vmatprep.subr.mxu0 0.0
        %5597 = vmatpush1.msra.mxu0 0.0
        %5598 = vmatprep.subr.mxu0 0.0
        %5599 = vmatpush1.msra.mxu0 0.0
        %5600 = vmatprep.subr.mxu0 0.0
        %5601 = vmatpush1.msra.mxu0 0.0
        %5602 = vmatprep.subr.mxu0 0.0
        %5603 = vmatpush1.msra.mxu0 0.0
        %5604 = vmatprep.subr.mxu0 0.0
        %5605 = vmatpush1.msra.mxu0 0.0
        %5606 = vmatprep.subr.mxu0 0.0
        %5607 = vmatpush1.msra.mxu0 0.0
        %5608 = vmatprep.subr.mxu0 0.0
        %5609 = vmatpush1.msra.mxu0 0.0
        %5610 = vmatprep.subr.mxu0 0.0
        %5611 = vmatpush1.msra.mxu0 0.0
        %5612 = vmatprep.subr.mxu0 0.0
        %5613 = vmatpush1.msra.mxu0 0.0
        %5614 = vmatprep.subr.mxu0 0.0
        %5615 = vmatpush1.msra.mxu0 0.0
        %5616 = vmatprep.subr.mxu0 0.0
        %5617 = vmatpush1.msra.mxu0 0.0
        %5618 = vmatprep.subr.mxu0 0.0
        %5619 = vmatpush1.msra.mxu0 0.0
        %5620 = vmatprep.subr.mxu0 0.0
        %5621 = vmatpush1.msra.mxu0 0.0
        %5622 = vmatprep.mubr.f32.mxu0 0.0
        %5623 = vmatmul.mubr.f32.gmra.mrb[0].mxu0 %v5556
        %v5624 = vpop.f32.mrb[0].mxu0
        %v5625 = vadd.f32 0.0, %v5624
        %v5626 = vpop.f32.mrb[0].mxu0
        %5627 = vmatprep.mubr.f32.mxu0 0.0
        %5628 = vmatmul.mubr.f32.gmra.mrb[0].mxu0 %v5557
        %v5629 = vpop.f32.mrb[0].mxu0
        %v5630 = vadd.f32 0.0, %v5629
        %v5631 = vpop.f32.mrb[0].mxu0
        %5632 = vdwg.mxu0
        %v5633 = vld [vmem:[%s2 + $0x380] sm:$0xff]
        %v5634 = vld [vmem:[%s2 + $0x388] sm:$0xff]
        %v5635 = vld [vmem:[%s2 + $0x390] sm:$0xff]
        %v5636 = vld [vmem:[%s2 + $0x398] sm:$0xff]
        %v5638 = vsel %vm832, %v5625, 0
        %v5641 = vsel %vm832, %v5630, 0
        %5643 = vmatprep.subr.mxu0 0.0
        %5644 = vmatpush1.msra.mxu0 %v5633
        %5645 = vmatprep.subr.mxu0 0.0
        %5646 = vmatpush1.msra.mxu0 %v5634
        %5647 = vmatprep.subr.mxu0 0.0
        %5648 = vmatpush1.msra.mxu0 %v5635
        %5649 = vmatprep.subr.mxu0 0.0
        %5650 = vmatpush1.msra.mxu0 %v5636
        %5651 = vmatprep.subr.mxu0 0.0
        %5652 = vmatpush1.msra.mxu0 0.0
        %5653 = vmatprep.subr.mxu0 0.0
        %5654 = vmatpush1.msra.mxu0 0.0
        %5655 = vmatprep.subr.mxu0 0.0
        %5656 = vmatpush1.msra.mxu0 0.0
        %5657 = vmatprep.subr.mxu0 0.0
        %5658 = vmatpush1.msra.mxu0 0.0
        %5659 = vmatprep.subr.mxu0 0.0
        %5660 = vmatpush1.msra.mxu0 0.0
        %5661 = vmatprep.subr.mxu0 0.0
        %5662 = vmatpush1.msra.mxu0 0.0
        %5663 = vmatprep.subr.mxu0 0.0
        %5664 = vmatpush1.msra.mxu0 0.0
        %5665 = vmatprep.subr.mxu0 0.0
        %5666 = vmatpush1.msra.mxu0 0.0
        %5667 = vmatprep.subr.mxu0 0.0
        %5668 = vmatpush1.msra.mxu0 0.0
        %5669 = vmatprep.subr.mxu0 0.0
        %5670 = vmatpush1.msra.mxu0 0.0
        %5671 = vmatprep.subr.mxu0 0.0
        %5672 = vmatpush1.msra.mxu0 0.0
        %5673 = vmatprep.subr.mxu0 0.0
        %5674 = vmatpush1.msra.mxu0 0.0
        %5675 = vmatprep.subr.mxu0 0.0
        %5676 = vmatpush1.msra.mxu0 0.0
        %5677 = vmatprep.subr.mxu0 0.0
        %5678 = vmatpush1.msra.mxu0 0.0
        %5679 = vmatprep.subr.mxu0 0.0
        %5680 = vmatpush1.msra.mxu0 0.0
        %5681 = vmatprep.subr.mxu0 0.0
        %5682 = vmatpush1.msra.mxu0 0.0
        %5683 = vmatprep.subr.mxu0 0.0
        %5684 = vmatpush1.msra.mxu0 0.0
        %5685 = vmatprep.subr.mxu0 0.0
        %5686 = vmatpush1.msra.mxu0 0.0
        %5687 = vmatprep.subr.mxu0 0.0
        %5688 = vmatpush1.msra.mxu0 0.0
        %5689 = vmatprep.subr.mxu0 0.0
        %5690 = vmatpush1.msra.mxu0 0.0
        %5691 = vmatprep.subr.mxu0 0.0
        %5692 = vmatpush1.msra.mxu0 0.0
        %5693 = vmatprep.subr.mxu0 0.0
        %5694 = vmatpush1.msra.mxu0 0.0
        %5695 = vmatprep.subr.mxu0 0.0
        %5696 = vmatpush1.msra.mxu0 0.0
        %5697 = vmatprep.subr.mxu0 0.0
        %5698 = vmatpush1.msra.mxu0 0.0
        %5699 = vmatprep.subr.mxu0 0.0
        %5700 = vmatpush1.msra.mxu0 0.0
        %5701 = vmatprep.subr.mxu0 0.0
        %5702 = vmatpush1.msra.mxu0 0.0
        %5703 = vmatprep.subr.mxu0 0.0
        %5704 = vmatpush1.msra.mxu0 0.0
        %5705 = vmatprep.subr.mxu0 0.0
        %5706 = vmatpush1.msra.mxu0 0.0
        %5707 = vmatprep.mubr.f32.mxu0 0.0
        %5708 = vmatmul.mubr.f32.gmra.mrb[0].mxu0 %v5638
        %v5709 = vpop.f32.mrb[0].mxu0
        %v5710 = vadd.f32 0.0, %v5709
        %v5711 = vpop.f32.mrb[0].mxu0
        %5712 = vmatprep.mubr.f32.mxu0 0.0
        %5713 = vmatmul.mubr.f32.gmra.mrb[0].mxu0 %v5641
        %v5714 = vpop.f32.mrb[0].mxu0
        %v5715 = vadd.f32 0.0, %v5714
        %v5716 = vpop.f32.mrb[0].mxu0
        %5717 = vdwg.mxu0
        %v5718 = vadd.f32 %v5543, %v5710
        %v5719 = vadd.f32 %v5544, %v5715
        %s5720 = scalar_lea.vmem %s601, 464 [#allocation2]
        %v5721 = vld [vmem:[%s5720] sm:$0xff]
        %v5722 = vld [vmem:[%s5720 + $0x8] sm:$0xff]
        %5723 = vset.pattern.permute.xlu0 0
        %5724 = vperm.xlu0 %5723, %v5721
        %v5725 = vpop.permute.xlu0 %5724
        %5726 = vset.pattern.permute.xlu0 0
        %5727 = vperm.xlu0 %5726, %v5722
        %v5728 = vpop.permute.xlu0 %5727
        %vm5729 = vcmp.eq.s32.totalorder %v5725, %v648
        %vm5730 = vcmp.eq.s32.totalorder %v5728, %v648
        %v5731 = vsel %vm5729, 1.0, 0.0
        %v5732 = vsel %vm5730, 1.0, 0.0
        %5733 = vmatprep.subr.mxu0 0.0
        %5734 = vmatpush1.msra.mxu0 %v631
        %5735 = vmatprep.subr.mxu0 0.0
        %5736 = vmatpush1.msra.mxu0 %v632
        %5737 = vmatprep.subr.mxu0 0.0
        %5738 = vmatpush1.msra.mxu0 %v633
        %5739 = vmatprep.subr.mxu0 0.0
        %5740 = vmatpush1.msra.mxu0 %v634
        %5741 = vmatprep.subr.mxu0 0.0
        %5742 = vmatpush1.msra.mxu0 %v635
        %5743 = vmatprep.subr.mxu0 0.0
        %5744 = vmatpush1.msra.mxu0 %v636
        %5745 = vmatprep.subr.mxu0 0.0
        %5746 = vmatpush1.msra.mxu0 %v637
        %5747 = vmatprep.subr.mxu0 0.0
        %5748 = vmatpush1.msra.mxu0 %v638
        %5749 = vmatprep.subr.mxu0 0.0
        %5750 = vmatpush1.msra.mxu0 %v639
        %5751 = vmatprep.subr.mxu0 0.0
        %5752 = vmatpush1.msra.mxu0 %v640
        %5753 = vmatprep.subr.mxu0 0.0
        %5754 = vmatpush1.msra.mxu0 %v641
        %5755 = vmatprep.subr.mxu0 0.0
        %5756 = vmatpush1.msra.mxu0 %v642
        %5757 = vmatprep.subr.mxu0 0.0
        %5758 = vmatpush1.msra.mxu0 %v643
        %5759 = vmatprep.subr.mxu0 0.0
        %5760 = vmatpush1.msra.mxu0 %v644
        %5761 = vmatprep.subr.mxu0 0.0
        %5762 = vmatpush1.msra.mxu0 %v645
        %5763 = vmatprep.subr.mxu0 0.0
        %5764 = vmatpush1.msra.mxu0 %v646
        %5765 = vmatprep.subr.mxu0 0.0
        %5766 = vmatpush1.msra.mxu0 0.0
        %5767 = vmatprep.subr.mxu0 0.0
        %5768 = vmatpush1.msra.mxu0 0.0
        %5769 = vmatprep.subr.mxu0 0.0
        %5770 = vmatpush1.msra.mxu0 0.0
        %5771 = vmatprep.subr.mxu0 0.0
        %5772 = vmatpush1.msra.mxu0 0.0
        %5773 = vmatprep.subr.mxu0 0.0
        %5774 = vmatpush1.msra.mxu0 0.0
        %5775 = vmatprep.subr.mxu0 0.0
        %5776 = vmatpush1.msra.mxu0 0.0
        %5777 = vmatprep.subr.mxu0 0.0
        %5778 = vmatpush1.msra.mxu0 0.0
        %5779 = vmatprep.subr.mxu0 0.0
        %5780 = vmatpush1.msra.mxu0 0.0
        %5781 = vmatprep.subr.mxu0 0.0
        %5782 = vmatpush1.msra.mxu0 0.0
        %5783 = vmatprep.subr.mxu0 0.0
        %5784 = vmatpush1.msra.mxu0 0.0
        %5785 = vmatprep.subr.mxu0 0.0
        %5786 = vmatpush1.msra.mxu0 0.0
        %5787 = vmatprep.subr.mxu0 0.0
        %5788 = vmatpush1.msra.mxu0 0.0
        %5789 = vmatprep.subr.mxu0 0.0
        %5790 = vmatpush1.msra.mxu0 0.0
        %5791 = vmatprep.subr.mxu0 0.0
        %5792 = vmatpush1.msra.mxu0 0.0
        %5793 = vmatprep.subr.mxu0 0.0
        %5794 = vmatpush1.msra.mxu0 0.0
        %5795 = vmatprep.subr.mxu0 0.0
        %5796 = vmatpush1.msra.mxu0 0.0
        %5797 = vmatprep.mubr.f32.mxu0 0.0
        %5798 = vmatmul.mubr.f32.gmra.mrb[0].mxu0 %v5731
        %v5799 = vpop.f32.mrb[0].mxu0
        %v5800 = vadd.f32 0.0, %v5799
        %v5801 = vpop.f32.mrb[0].mxu0
        %5802 = vmatprep.mubr.f32.mxu0 0.0
        %5803 = vmatmul.mubr.f32.gmra.mrb[0].mxu0 %v5732
        %v5804 = vpop.f32.mrb[0].mxu0
        %v5805 = vadd.f32 0.0, %v5804
        %v5806 = vpop.f32.mrb[0].mxu0
        %5807 = vdwg.mxu0
        %v5808 = vld [vmem:[%s2 + $0x3a0] sm:$0xff]
        %v5809 = vld [vmem:[%s2 + $0x3a8] sm:$0xff]
        %v5810 = vld [vmem:[%s2 + $0x3b0] sm:$0xff]
        %v5811 = vld [vmem:[%s2 + $0x3b8] sm:$0xff]
        %v5813 = vsel %vm832, %v5800, 0
        %v5816 = vsel %vm832, %v5805, 0
        %5818 = vmatprep.subr.mxu0 0.0
        %5819 = vmatpush1.msra.mxu0 %v5808
        %5820 = vmatprep.subr.mxu0 0.0
        %5821 = vmatpush1.msra.mxu0 %v5809
        %5822 = vmatprep.subr.mxu0 0.0
        %5823 = vmatpush1.msra.mxu0 %v5810
        %5824 = vmatprep.subr.mxu0 0.0
        %5825 = vmatpush1.msra.mxu0 %v5811
        %5826 = vmatprep.subr.mxu0 0.0
        %5827 = vmatpush1.msra.mxu0 0.0
        %5828 = vmatprep.subr.mxu0 0.0
        %5829 = vmatpush1.msra.mxu0 0.0
        %5830 = vmatprep.subr.mxu0 0.0
        %5831 = vmatpush1.msra.mxu0 0.0
        %5832 = vmatprep.subr.mxu0 0.0
        %5833 = vmatpush1.msra.mxu0 0.0
        %5834 = vmatprep.subr.mxu0 0.0
        %5835 = vmatpush1.msra.mxu0 0.0
        %5836 = vmatprep.subr.mxu0 0.0
        %5837 = vmatpush1.msra.mxu0 0.0
        %5838 = vmatprep.subr.mxu0 0.0
        %5839 = vmatpush1.msra.mxu0 0.0
        %5840 = vmatprep.subr.mxu0 0.0
        %5841 = vmatpush1.msra.mxu0 0.0
        %5842 = vmatprep.subr.mxu0 0.0
        %5843 = vmatpush1.msra.mxu0 0.0
        %5844 = vmatprep.subr.mxu0 0.0
        %5845 = vmatpush1.msra.mxu0 0.0
        %5846 = vmatprep.subr.mxu0 0.0
        %5847 = vmatpush1.msra.mxu0 0.0
        %5848 = vmatprep.subr.mxu0 0.0
        %5849 = vmatpush1.msra.mxu0 0.0
        %5850 = vmatprep.subr.mxu0 0.0
        %5851 = vmatpush1.msra.mxu0 0.0
        %5852 = vmatprep.subr.mxu0 0.0
        %5853 = vmatpush1.msra.mxu0 0.0
        %5854 = vmatprep.subr.mxu0 0.0
        %5855 = vmatpush1.msra.mxu0 0.0
        %5856 = vmatprep.subr.mxu0 0.0
        %5857 = vmatpush1.msra.mxu0 0.0
        %5858 = vmatprep.subr.mxu0 0.0
        %5859 = vmatpush1.msra.mxu0 0.0
        %5860 = vmatprep.subr.mxu0 0.0
        %5861 = vmatpush1.msra.mxu0 0.0
        %5862 = vmatprep.subr.mxu0 0.0
        %5863 = vmatpush1.msra.mxu0 0.0
        %5864 = vmatprep.subr.mxu0 0.0
        %5865 = vmatpush1.msra.mxu0 0.0
        %5866 = vmatprep.subr.mxu0 0.0
        %5867 = vmatpush1.msra.mxu0 0.0
        %5868 = vmatprep.subr.mxu0 0.0
        %5869 = vmatpush1.msra.mxu0 0.0
        %5870 = vmatprep.subr.mxu0 0.0
        %5871 = vmatpush1.msra.mxu0 0.0
        %5872 = vmatprep.subr.mxu0 0.0
        %5873 = vmatpush1.msra.mxu0 0.0
        %5874 = vmatprep.subr.mxu0 0.0
        %5875 = vmatpush1.msra.mxu0 0.0
        %5876 = vmatprep.subr.mxu0 0.0
        %5877 = vmatpush1.msra.mxu0 0.0
        %5878 = vmatprep.subr.mxu0 0.0
        %5879 = vmatpush1.msra.mxu0 0.0
        %5880 = vmatprep.subr.mxu0 0.0
        %5881 = vmatpush1.msra.mxu0 0.0
        %5882 = vmatprep.mubr.f32.mxu0 0.0
        %5883 = vmatmul.mubr.f32.gmra.mrb[0].mxu0 %v5813
        %v5884 = vpop.f32.mrb[0].mxu0
        %v5885 = vadd.f32 0.0, %v5884
        %v5886 = vpop.f32.mrb[0].mxu0
        %5887 = vmatprep.mubr.f32.mxu0 0.0
        %5888 = vmatmul.mubr.f32.gmra.mrb[0].mxu0 %v5816
        %v5889 = vpop.f32.mrb[0].mxu0
        %v5890 = vadd.f32 0.0, %v5889
        %v5891 = vpop.f32.mrb[0].mxu0
        %5892 = vdwg.mxu0
        %v5893 = vadd.f32 %v5718, %v5885
        %v5894 = vadd.f32 %v5719, %v5890
        %s5895 = scalar_lea.vmem %s601, 480 [#allocation2]
        %v5896 = vld [vmem:[%s5895] sm:$0xff]
        %v5897 = vld [vmem:[%s5895 + $0x8] sm:$0xff]
        %5898 = vset.pattern.permute.xlu0 0
        %5899 = vperm.xlu0 %5898, %v5896
        %v5900 = vpop.permute.xlu0 %5899
        %5901 = vset.pattern.permute.xlu0 0
        %5902 = vperm.xlu0 %5901, %v5897
        %v5903 = vpop.permute.xlu0 %5902
        %vm5904 = vcmp.eq.s32.totalorder %v5900, %v648
        %vm5905 = vcmp.eq.s32.totalorder %v5903, %v648
        %v5906 = vsel %vm5904, 1.0, 0.0
        %v5907 = vsel %vm5905, 1.0, 0.0
        %5908 = vmatprep.subr.mxu0 0.0
        %5909 = vmatpush1.msra.mxu0 %v631
        %5910 = vmatprep.subr.mxu0 0.0
        %5911 = vmatpush1.msra.mxu0 %v632
        %5912 = vmatprep.subr.mxu0 0.0
        %5913 = vmatpush1.msra.mxu0 %v633
        %5914 = vmatprep.subr.mxu0 0.0
        %5915 = vmatpush1.msra.mxu0 %v634
        %5916 = vmatprep.subr.mxu0 0.0
        %5917 = vmatpush1.msra.mxu0 %v635
        %5918 = vmatprep.subr.mxu0 0.0
        %5919 = vmatpush1.msra.mxu0 %v636
        %5920 = vmatprep.subr.mxu0 0.0
        %5921 = vmatpush1.msra.mxu0 %v637
        %5922 = vmatprep.subr.mxu0 0.0
        %5923 = vmatpush1.msra.mxu0 %v638
        %5924 = vmatprep.subr.mxu0 0.0
        %5925 = vmatpush1.msra.mxu0 %v639
        %5926 = vmatprep.subr.mxu0 0.0
        %5927 = vmatpush1.msra.mxu0 %v640
        %5928 = vmatprep.subr.mxu0 0.0
        %5929 = vmatpush1.msra.mxu0 %v641
        %5930 = vmatprep.subr.mxu0 0.0
        %5931 = vmatpush1.msra.mxu0 %v642
        %5932 = vmatprep.subr.mxu0 0.0
        %5933 = vmatpush1.msra.mxu0 %v643
        %5934 = vmatprep.subr.mxu0 0.0
        %5935 = vmatpush1.msra.mxu0 %v644
        %5936 = vmatprep.subr.mxu0 0.0
        %5937 = vmatpush1.msra.mxu0 %v645
        %5938 = vmatprep.subr.mxu0 0.0
        %5939 = vmatpush1.msra.mxu0 %v646
        %5940 = vmatprep.subr.mxu0 0.0
        %5941 = vmatpush1.msra.mxu0 0.0
        %5942 = vmatprep.subr.mxu0 0.0
        %5943 = vmatpush1.msra.mxu0 0.0
        %5944 = vmatprep.subr.mxu0 0.0
        %5945 = vmatpush1.msra.mxu0 0.0
        %5946 = vmatprep.subr.mxu0 0.0
        %5947 = vmatpush1.msra.mxu0 0.0
        %5948 = vmatprep.subr.mxu0 0.0
        %5949 = vmatpush1.msra.mxu0 0.0
        %5950 = vmatprep.subr.mxu0 0.0
        %5951 = vmatpush1.msra.mxu0 0.0
        %5952 = vmatprep.subr.mxu0 0.0
        %5953 = vmatpush1.msra.mxu0 0.0
        %5954 = vmatprep.subr.mxu0 0.0
        %5955 = vmatpush1.msra.mxu0 0.0
        %5956 = vmatprep.subr.mxu0 0.0
        %5957 = vmatpush1.msra.mxu0 0.0
        %5958 = vmatprep.subr.mxu0 0.0
        %5959 = vmatpush1.msra.mxu0 0.0
        %5960 = vmatprep.subr.mxu0 0.0
        %5961 = vmatpush1.msra.mxu0 0.0
        %5962 = vmatprep.subr.mxu0 0.0
        %5963 = vmatpush1.msra.mxu0 0.0
        %5964 = vmatprep.subr.mxu0 0.0
        %5965 = vmatpush1.msra.mxu0 0.0
        %5966 = vmatprep.subr.mxu0 0.0
        %5967 = vmatpush1.msra.mxu0 0.0
        %5968 = vmatprep.subr.mxu0 0.0
        %5969 = vmatpush1.msra.mxu0 0.0
        %5970 = vmatprep.subr.mxu0 0.0
        %5971 = vmatpush1.msra.mxu0 0.0
        %5972 = vmatprep.mubr.f32.mxu0 0.0
        %5973 = vmatmul.mubr.f32.gmra.mrb[0].mxu0 %v5906
        %v5974 = vpop.f32.mrb[0].mxu0
        %v5975 = vadd.f32 0.0, %v5974
        %v5976 = vpop.f32.mrb[0].mxu0
        %5977 = vmatprep.mubr.f32.mxu0 0.0
        %5978 = vmatmul.mubr.f32.gmra.mrb[0].mxu0 %v5907
        %v5979 = vpop.f32.mrb[0].mxu0
        %v5980 = vadd.f32 0.0, %v5979
        %v5981 = vpop.f32.mrb[0].mxu0
        %5982 = vdwg.mxu0
        %v5983 = vld [vmem:[%s2 + $0x3c0] sm:$0xff]
        %v5984 = vld [vmem:[%s2 + $0x3c8] sm:$0xff]
        %v5985 = vld [vmem:[%s2 + $0x3d0] sm:$0xff]
        %v5986 = vld [vmem:[%s2 + $0x3d8] sm:$0xff]
        %v5988 = vsel %vm832, %v5975, 0
        %v5991 = vsel %vm832, %v5980, 0
        %5993 = vmatprep.subr.mxu0 0.0
        %5994 = vmatpush1.msra.mxu0 %v5983
        %5995 = vmatprep.subr.mxu0 0.0
        %5996 = vmatpush1.msra.mxu0 %v5984
        %5997 = vmatprep.subr.mxu0 0.0
        %5998 = vmatpush1.msra.mxu0 %v5985
        %5999 = vmatprep.subr.mxu0 0.0
        %6000 = vmatpush1.msra.mxu0 %v5986
        %6001 = vmatprep.subr.mxu0 0.0
        %6002 = vmatpush1.msra.mxu0 0.0
        %6003 = vmatprep.subr.mxu0 0.0
        %6004 = vmatpush1.msra.mxu0 0.0
        %6005 = vmatprep.subr.mxu0 0.0
        %6006 = vmatpush1.msra.mxu0 0.0
        %6007 = vmatprep.subr.mxu0 0.0
        %6008 = vmatpush1.msra.mxu0 0.0
        %6009 = vmatprep.subr.mxu0 0.0
        %6010 = vmatpush1.msra.mxu0 0.0
        %6011 = vmatprep.subr.mxu0 0.0
        %6012 = vmatpush1.msra.mxu0 0.0
        %6013 = vmatprep.subr.mxu0 0.0
        %6014 = vmatpush1.msra.mxu0 0.0
        %6015 = vmatprep.subr.mxu0 0.0
        %6016 = vmatpush1.msra.mxu0 0.0
        %6017 = vmatprep.subr.mxu0 0.0
        %6018 = vmatpush1.msra.mxu0 0.0
        %6019 = vmatprep.subr.mxu0 0.0
        %6020 = vmatpush1.msra.mxu0 0.0
        %6021 = vmatprep.subr.mxu0 0.0
        %6022 = vmatpush1.msra.mxu0 0.0
        %6023 = vmatprep.subr.mxu0 0.0
        %6024 = vmatpush1.msra.mxu0 0.0
        %6025 = vmatprep.subr.mxu0 0.0
        %6026 = vmatpush1.msra.mxu0 0.0
        %6027 = vmatprep.subr.mxu0 0.0
        %6028 = vmatpush1.msra.mxu0 0.0
        %6029 = vmatprep.subr.mxu0 0.0
        %6030 = vmatpush1.msra.mxu0 0.0
        %6031 = vmatprep.subr.mxu0 0.0
        %6032 = vmatpush1.msra.mxu0 0.0
        %6033 = vmatprep.subr.mxu0 0.0
        %6034 = vmatpush1.msra.mxu0 0.0
        %6035 = vmatprep.subr.mxu0 0.0
        %6036 = vmatpush1.msra.mxu0 0.0
        %6037 = vmatprep.subr.mxu0 0.0
        %6038 = vmatpush1.msra.mxu0 0.0
        %6039 = vmatprep.subr.mxu0 0.0
        %6040 = vmatpush1.msra.mxu0 0.0
        %6041 = vmatprep.subr.mxu0 0.0
        %6042 = vmatpush1.msra.mxu0 0.0
        %6043 = vmatprep.subr.mxu0 0.0
        %6044 = vmatpush1.msra.mxu0 0.0
        %6045 = vmatprep.subr.mxu0 0.0
        %6046 = vmatpush1.msra.mxu0 0.0
        %6047 = vmatprep.subr.mxu0 0.0
        %6048 = vmatpush1.msra.mxu0 0.0
        %6049 = vmatprep.subr.mxu0 0.0
        %6050 = vmatpush1.msra.mxu0 0.0
        %6051 = vmatprep.subr.mxu0 0.0
        %6052 = vmatpush1.msra.mxu0 0.0
        %6053 = vmatprep.subr.mxu0 0.0
        %6054 = vmatpush1.msra.mxu0 0.0
        %6055 = vmatprep.subr.mxu0 0.0
        %6056 = vmatpush1.msra.mxu0 0.0
        %6057 = vmatprep.mubr.f32.mxu0 0.0
        %6058 = vmatmul.mubr.f32.gmra.mrb[0].mxu0 %v5988
        %v6059 = vpop.f32.mrb[0].mxu0
        %v6060 = vadd.f32 0.0, %v6059
        %v6061 = vpop.f32.mrb[0].mxu0
        %6062 = vmatprep.mubr.f32.mxu0 0.0
        %6063 = vmatmul.mubr.f32.gmra.mrb[0].mxu0 %v5991
        %v6064 = vpop.f32.mrb[0].mxu0
        %v6065 = vadd.f32 0.0, %v6064
        %v6066 = vpop.f32.mrb[0].mxu0
        %6067 = vdwg.mxu0
        %v6068 = vadd.f32 %v5893, %v6060
        %v6069 = vadd.f32 %v5894, %v6065
        %s6070 = scalar_lea.vmem %s601, 496 [#allocation2]
        %v6071 = vld [vmem:[%s6070] sm:$0xff]
        %v6072 = vld [vmem:[%s6070 + $0x8] sm:$0xff]
        %6073 = vset.pattern.permute.xlu0 0
        %6074 = vperm.xlu0 %6073, %v6071
        %v6075 = vpop.permute.xlu0 %6074
        %6076 = vset.pattern.permute.xlu0 0
        %6077 = vperm.xlu0 %6076, %v6072
        %v6078 = vpop.permute.xlu0 %6077
        %vm6079 = vcmp.eq.s32.totalorder %v6075, %v648
        %vm6080 = vcmp.eq.s32.totalorder %v6078, %v648
        %v6081 = vsel %vm6079, 1.0, 0.0
        %v6082 = vsel %vm6080, 1.0, 0.0
        %6083 = vmatprep.subr.mxu0 0.0
        %6084 = vmatpush1.msra.mxu0 %v631
        %6085 = vmatprep.subr.mxu0 0.0
        %6086 = vmatpush1.msra.mxu0 %v632
        %6087 = vmatprep.subr.mxu0 0.0
        %6088 = vmatpush1.msra.mxu0 %v633
        %6089 = vmatprep.subr.mxu0 0.0
        %6090 = vmatpush1.msra.mxu0 %v634
        %6091 = vmatprep.subr.mxu0 0.0
        %6092 = vmatpush1.msra.mxu0 %v635
        %6093 = vmatprep.subr.mxu0 0.0
        %6094 = vmatpush1.msra.mxu0 %v636
        %6095 = vmatprep.subr.mxu0 0.0
        %6096 = vmatpush1.msra.mxu0 %v637
        %6097 = vmatprep.subr.mxu0 0.0
        %6098 = vmatpush1.msra.mxu0 %v638
        %6099 = vmatprep.subr.mxu0 0.0
        %6100 = vmatpush1.msra.mxu0 %v639
        %6101 = vmatprep.subr.mxu0 0.0
        %6102 = vmatpush1.msra.mxu0 %v640
        %6103 = vmatprep.subr.mxu0 0.0
        %6104 = vmatpush1.msra.mxu0 %v641
        %6105 = vmatprep.subr.mxu0 0.0
        %6106 = vmatpush1.msra.mxu0 %v642
        %6107 = vmatprep.subr.mxu0 0.0
        %6108 = vmatpush1.msra.mxu0 %v643
        %6109 = vmatprep.subr.mxu0 0.0
        %6110 = vmatpush1.msra.mxu0 %v644
        %6111 = vmatprep.subr.mxu0 0.0
        %6112 = vmatpush1.msra.mxu0 %v645
        %6113 = vmatprep.subr.mxu0 0.0
        %6114 = vmatpush1.msra.mxu0 %v646
        %6115 = vmatprep.subr.mxu0 0.0
        %6116 = vmatpush1.msra.mxu0 0.0
        %6117 = vmatprep.subr.mxu0 0.0
        %6118 = vmatpush1.msra.mxu0 0.0
        %6119 = vmatprep.subr.mxu0 0.0
        %6120 = vmatpush1.msra.mxu0 0.0
        %6121 = vmatprep.subr.mxu0 0.0
        %6122 = vmatpush1.msra.mxu0 0.0
        %6123 = vmatprep.subr.mxu0 0.0
        %6124 = vmatpush1.msra.mxu0 0.0
        %6125 = vmatprep.subr.mxu0 0.0
        %6126 = vmatpush1.msra.mxu0 0.0
        %6127 = vmatprep.subr.mxu0 0.0
        %6128 = vmatpush1.msra.mxu0 0.0
        %6129 = vmatprep.subr.mxu0 0.0
        %6130 = vmatpush1.msra.mxu0 0.0
        %6131 = vmatprep.subr.mxu0 0.0
        %6132 = vmatpush1.msra.mxu0 0.0
        %6133 = vmatprep.subr.mxu0 0.0
        %6134 = vmatpush1.msra.mxu0 0.0
        %6135 = vmatprep.subr.mxu0 0.0
        %6136 = vmatpush1.msra.mxu0 0.0
        %6137 = vmatprep.subr.mxu0 0.0
        %6138 = vmatpush1.msra.mxu0 0.0
        %6139 = vmatprep.subr.mxu0 0.0
        %6140 = vmatpush1.msra.mxu0 0.0
        %6141 = vmatprep.subr.mxu0 0.0
        %6142 = vmatpush1.msra.mxu0 0.0
        %6143 = vmatprep.subr.mxu0 0.0
        %6144 = vmatpush1.msra.mxu0 0.0
        %6145 = vmatprep.subr.mxu0 0.0
        %6146 = vmatpush1.msra.mxu0 0.0
        %6147 = vmatprep.mubr.f32.mxu0 0.0
        %6148 = vmatmul.mubr.f32.gmra.mrb[0].mxu0 %v6081
        %v6149 = vpop.f32.mrb[0].mxu0
        %v6150 = vadd.f32 0.0, %v6149
        %v6151 = vpop.f32.mrb[0].mxu0
        %6152 = vmatprep.mubr.f32.mxu0 0.0
        %6153 = vmatmul.mubr.f32.gmra.mrb[0].mxu0 %v6082
        %v6154 = vpop.f32.mrb[0].mxu0
        %v6155 = vadd.f32 0.0, %v6154
        %v6156 = vpop.f32.mrb[0].mxu0
        %6157 = vdwg.mxu0
        %v6158 = vld [vmem:[%s2 + $0x3e0] sm:$0xff]
        %v6159 = vld [vmem:[%s2 + $0x3e8] sm:$0xff]
        %v6160 = vld [vmem:[%s2 + $0x3f0] sm:$0xff]
        %v6161 = vld [vmem:[%s2 + $0x3f8] sm:$0xff]
        %v6163 = vsel %vm832, %v6150, 0
        %v6166 = vsel %vm832, %v6155, 0
        %6168 = vmatprep.subr.mxu0 0.0
        %6169 = vmatpush1.msra.mxu0 %v6158
        %6170 = vmatprep.subr.mxu0 0.0
        %6171 = vmatpush1.msra.mxu0 %v6159
        %6172 = vmatprep.subr.mxu0 0.0
        %6173 = vmatpush1.msra.mxu0 %v6160
        %6174 = vmatprep.subr.mxu0 0.0
        %6175 = vmatpush1.msra.mxu0 %v6161
        %6176 = vmatprep.subr.mxu0 0.0
        %6177 = vmatpush1.msra.mxu0 0.0
        %6178 = vmatprep.subr.mxu0 0.0
        %6179 = vmatpush1.msra.mxu0 0.0
        %6180 = vmatprep.subr.mxu0 0.0
        %6181 = vmatpush1.msra.mxu0 0.0
        %6182 = vmatprep.subr.mxu0 0.0
        %6183 = vmatpush1.msra.mxu0 0.0
        %6184 = vmatprep.subr.mxu0 0.0
        %6185 = vmatpush1.msra.mxu0 0.0
        %6186 = vmatprep.subr.mxu0 0.0
        %6187 = vmatpush1.msra.mxu0 0.0
        %6188 = vmatprep.subr.mxu0 0.0
        %6189 = vmatpush1.msra.mxu0 0.0
        %6190 = vmatprep.subr.mxu0 0.0
        %6191 = vmatpush1.msra.mxu0 0.0
        %6192 = vmatprep.subr.mxu0 0.0
        %6193 = vmatpush1.msra.mxu0 0.0
        %6194 = vmatprep.subr.mxu0 0.0
        %6195 = vmatpush1.msra.mxu0 0.0
        %6196 = vmatprep.subr.mxu0 0.0
        %6197 = vmatpush1.msra.mxu0 0.0
        %6198 = vmatprep.subr.mxu0 0.0
        %6199 = vmatpush1.msra.mxu0 0.0
        %6200 = vmatprep.subr.mxu0 0.0
        %6201 = vmatpush1.msra.mxu0 0.0
        %6202 = vmatprep.subr.mxu0 0.0
        %6203 = vmatpush1.msra.mxu0 0.0
        %6204 = vmatprep.subr.mxu0 0.0
        %6205 = vmatpush1.msra.mxu0 0.0
        %6206 = vmatprep.subr.mxu0 0.0
        %6207 = vmatpush1.msra.mxu0 0.0
        %6208 = vmatprep.subr.mxu0 0.0
        %6209 = vmatpush1.msra.mxu0 0.0
        %6210 = vmatprep.subr.mxu0 0.0
        %6211 = vmatpush1.msra.mxu0 0.0
        %6212 = vmatprep.subr.mxu0 0.0
        %6213 = vmatpush1.msra.mxu0 0.0
        %6214 = vmatprep.subr.mxu0 0.0
        %6215 = vmatpush1.msra.mxu0 0.0
        %6216 = vmatprep.subr.mxu0 0.0
        %6217 = vmatpush1.msra.mxu0 0.0
        %6218 = vmatprep.subr.mxu0 0.0
        %6219 = vmatpush1.msra.mxu0 0.0
        %6220 = vmatprep.subr.mxu0 0.0
        %6221 = vmatpush1.msra.mxu0 0.0
        %6222 = vmatprep.subr.mxu0 0.0
        %6223 = vmatpush1.msra.mxu0 0.0
        %6224 = vmatprep.subr.mxu0 0.0
        %6225 = vmatpush1.msra.mxu0 0.0
        %6226 = vmatprep.subr.mxu0 0.0
        %6227 = vmatpush1.msra.mxu0 0.0
        %6228 = vmatprep.subr.mxu0 0.0
        %6229 = vmatpush1.msra.mxu0 0.0
        %6230 = vmatprep.subr.mxu0 0.0
        %6231 = vmatpush1.msra.mxu0 0.0
        %6232 = vmatprep.mubr.f32.mxu0 0.0
        %6233 = vmatmul.mubr.f32.gmra.mrb[0].mxu0 %v6163
        %v6234 = vpop.f32.mrb[0].mxu0
        %v6235 = vadd.f32 0.0, %v6234
        %v6236 = vpop.f32.mrb[0].mxu0
        %6237 = vmatprep.mubr.f32.mxu0 0.0
        %6238 = vmatmul.mubr.f32.gmra.mrb[0].mxu0 %v6166
        %v6239 = vpop.f32.mrb[0].mxu0
        %v6240 = vadd.f32 0.0, %v6239
        %v6241 = vpop.f32.mrb[0].mxu0
        %6242 = vdwg.mxu0
        %v6243 = vadd.f32 %v6068, %v6235
        %v6244 = vadd.f32 %v6069, %v6240
        %s6245 = scalar_lea.vmem %s601, 512 [#allocation2]
        %v6246 = vld [vmem:[%s6245] sm:$0xff]
        %v6247 = vld [vmem:[%s6245 + $0x8] sm:$0xff]
        %6248 = vset.pattern.permute.xlu0 0
        %6249 = vperm.xlu0 %6248, %v6246
        %v6250 = vpop.permute.xlu0 %6249
        %6251 = vset.pattern.permute.xlu0 0
        %6252 = vperm.xlu0 %6251, %v6247
        %v6253 = vpop.permute.xlu0 %6252
        %vm6254 = vcmp.eq.s32.totalorder %v6250, %v648
        %vm6255 = vcmp.eq.s32.totalorder %v6253, %v648
        %v6256 = vsel %vm6254, 1.0, 0.0
        %v6257 = vsel %vm6255, 1.0, 0.0
        %6258 = vmatprep.subr.mxu0 0.0
        %6259 = vmatpush1.msra.mxu0 %v631
        %6260 = vmatprep.subr.mxu0 0.0
        %6261 = vmatpush1.msra.mxu0 %v632
        %6262 = vmatprep.subr.mxu0 0.0
        %6263 = vmatpush1.msra.mxu0 %v633
        %6264 = vmatprep.subr.mxu0 0.0
        %6265 = vmatpush1.msra.mxu0 %v634
        %6266 = vmatprep.subr.mxu0 0.0
        %6267 = vmatpush1.msra.mxu0 %v635
        %6268 = vmatprep.subr.mxu0 0.0
        %6269 = vmatpush1.msra.mxu0 %v636
        %6270 = vmatprep.subr.mxu0 0.0
        %6271 = vmatpush1.msra.mxu0 %v637
        %6272 = vmatprep.subr.mxu0 0.0
        %6273 = vmatpush1.msra.mxu0 %v638
        %6274 = vmatprep.subr.mxu0 0.0
        %6275 = vmatpush1.msra.mxu0 %v639
        %6276 = vmatprep.subr.mxu0 0.0
        %6277 = vmatpush1.msra.mxu0 %v640
        %6278 = vmatprep.subr.mxu0 0.0
        %6279 = vmatpush1.msra.mxu0 %v641
        %6280 = vmatprep.subr.mxu0 0.0
        %6281 = vmatpush1.msra.mxu0 %v642
        %6282 = vmatprep.subr.mxu0 0.0
        %6283 = vmatpush1.msra.mxu0 %v643
        %6284 = vmatprep.subr.mxu0 0.0
        %6285 = vmatpush1.msra.mxu0 %v644
        %6286 = vmatprep.subr.mxu0 0.0
        %6287 = vmatpush1.msra.mxu0 %v645
        %6288 = vmatprep.subr.mxu0 0.0
        %6289 = vmatpush1.msra.mxu0 %v646
        %6290 = vmatprep.subr.mxu0 0.0
        %6291 = vmatpush1.msra.mxu0 0.0
        %6292 = vmatprep.subr.mxu0 0.0
        %6293 = vmatpush1.msra.mxu0 0.0
        %6294 = vmatprep.subr.mxu0 0.0
        %6295 = vmatpush1.msra.mxu0 0.0
        %6296 = vmatprep.subr.mxu0 0.0
        %6297 = vmatpush1.msra.mxu0 0.0
        %6298 = vmatprep.subr.mxu0 0.0
        %6299 = vmatpush1.msra.mxu0 0.0
        %6300 = vmatprep.subr.mxu0 0.0
        %6301 = vmatpush1.msra.mxu0 0.0
        %6302 = vmatprep.subr.mxu0 0.0
        %6303 = vmatpush1.msra.mxu0 0.0
        %6304 = vmatprep.subr.mxu0 0.0
        %6305 = vmatpush1.msra.mxu0 0.0
        %6306 = vmatprep.subr.mxu0 0.0
        %6307 = vmatpush1.msra.mxu0 0.0
        %6308 = vmatprep.subr.mxu0 0.0
        %6309 = vmatpush1.msra.mxu0 0.0
        %6310 = vmatprep.subr.mxu0 0.0
        %6311 = vmatpush1.msra.mxu0 0.0
        %6312 = vmatprep.subr.mxu0 0.0
        %6313 = vmatpush1.msra.mxu0 0.0
        %6314 = vmatprep.subr.mxu0 0.0
        %6315 = vmatpush1.msra.mxu0 0.0
        %6316 = vmatprep.subr.mxu0 0.0
        %6317 = vmatpush1.msra.mxu0 0.0
        %6318 = vmatprep.subr.mxu0 0.0
        %6319 = vmatpush1.msra.mxu0 0.0
        %6320 = vmatprep.subr.mxu0 0.0
        %6321 = vmatpush1.msra.mxu0 0.0
        %6322 = vmatprep.mubr.f32.mxu0 0.0
        %6323 = vmatmul.mubr.f32.gmra.mrb[0].mxu0 %v6256
        %v6324 = vpop.f32.mrb[0].mxu0
        %v6325 = vadd.f32 0.0, %v6324
        %v6326 = vpop.f32.mrb[0].mxu0
        %6327 = vmatprep.mubr.f32.mxu0 0.0
        %6328 = vmatmul.mubr.f32.gmra.mrb[0].mxu0 %v6257
        %v6329 = vpop.f32.mrb[0].mxu0
        %v6330 = vadd.f32 0.0, %v6329
        %v6331 = vpop.f32.mrb[0].mxu0
        %6332 = vdwg.mxu0
        %v6333 = vld [vmem:[%s2 + $0x400] sm:$0xff]
        %v6334 = vld [vmem:[%s2 + $0x408] sm:$0xff]
        %v6335 = vld [vmem:[%s2 + $0x410] sm:$0xff]
        %v6336 = vld [vmem:[%s2 + $0x418] sm:$0xff]
        %v6338 = vsel %vm832, %v6325, 0
        %v6341 = vsel %vm832, %v6330, 0
        %6343 = vmatprep.subr.mxu0 0.0
        %6344 = vmatpush1.msra.mxu0 %v6333
        %6345 = vmatprep.subr.mxu0 0.0
        %6346 = vmatpush1.msra.mxu0 %v6334
        %6347 = vmatprep.subr.mxu0 0.0
        %6348 = vmatpush1.msra.mxu0 %v6335
        %6349 = vmatprep.subr.mxu0 0.0
        %6350 = vmatpush1.msra.mxu0 %v6336
        %6351 = vmatprep.subr.mxu0 0.0
        %6352 = vmatpush1.msra.mxu0 0.0
        %6353 = vmatprep.subr.mxu0 0.0
        %6354 = vmatpush1.msra.mxu0 0.0
        %6355 = vmatprep.subr.mxu0 0.0
        %6356 = vmatpush1.msra.mxu0 0.0
        %6357 = vmatprep.subr.mxu0 0.0
        %6358 = vmatpush1.msra.mxu0 0.0
        %6359 = vmatprep.subr.mxu0 0.0
        %6360 = vmatpush1.msra.mxu0 0.0
        %6361 = vmatprep.subr.mxu0 0.0
        %6362 = vmatpush1.msra.mxu0 0.0
        %6363 = vmatprep.subr.mxu0 0.0
        %6364 = vmatpush1.msra.mxu0 0.0
        %6365 = vmatprep.subr.mxu0 0.0
        %6366 = vmatpush1.msra.mxu0 0.0
        %6367 = vmatprep.subr.mxu0 0.0
        %6368 = vmatpush1.msra.mxu0 0.0
        %6369 = vmatprep.subr.mxu0 0.0
        %6370 = vmatpush1.msra.mxu0 0.0
        %6371 = vmatprep.subr.mxu0 0.0
        %6372 = vmatpush1.msra.mxu0 0.0
        %6373 = vmatprep.subr.mxu0 0.0
        %6374 = vmatpush1.msra.mxu0 0.0
        %6375 = vmatprep.subr.mxu0 0.0
        %6376 = vmatpush1.msra.mxu0 0.0
        %6377 = vmatprep.subr.mxu0 0.0
        %6378 = vmatpush1.msra.mxu0 0.0
        %6379 = vmatprep.subr.mxu0 0.0
        %6380 = vmatpush1.msra.mxu0 0.0
        %6381 = vmatprep.subr.mxu0 0.0
        %6382 = vmatpush1.msra.mxu0 0.0
        %6383 = vmatprep.subr.mxu0 0.0
        %6384 = vmatpush1.msra.mxu0 0.0
        %6385 = vmatprep.subr.mxu0 0.0
        %6386 = vmatpush1.msra.mxu0 0.0
        %6387 = vmatprep.subr.mxu0 0.0
        %6388 = vmatpush1.msra.mxu0 0.0
        %6389 = vmatprep.subr.mxu0 0.0
        %6390 = vmatpush1.msra.mxu0 0.0
        %6391 = vmatprep.subr.mxu0 0.0
        %6392 = vmatpush1.msra.mxu0 0.0
        %6393 = vmatprep.subr.mxu0 0.0
        %6394 = vmatpush1.msra.mxu0 0.0
        %6395 = vmatprep.subr.mxu0 0.0
        %6396 = vmatpush1.msra.mxu0 0.0
        %6397 = vmatprep.subr.mxu0 0.0
        %6398 = vmatpush1.msra.mxu0 0.0
        %6399 = vmatprep.subr.mxu0 0.0
        %6400 = vmatpush1.msra.mxu0 0.0
        %6401 = vmatprep.subr.mxu0 0.0
        %6402 = vmatpush1.msra.mxu0 0.0
        %6403 = vmatprep.subr.mxu0 0.0
        %6404 = vmatpush1.msra.mxu0 0.0
        %6405 = vmatprep.subr.mxu0 0.0
        %6406 = vmatpush1.msra.mxu0 0.0
        %6407 = vmatprep.mubr.f32.mxu0 0.0
        %6408 = vmatmul.mubr.f32.gmra.mrb[0].mxu0 %v6338
        %v6409 = vpop.f32.mrb[0].mxu0
        %v6410 = vadd.f32 0.0, %v6409
        %v6411 = vpop.f32.mrb[0].mxu0
        %6412 = vmatprep.mubr.f32.mxu0 0.0
        %6413 = vmatmul.mubr.f32.gmra.mrb[0].mxu0 %v6341
        %v6414 = vpop.f32.mrb[0].mxu0
        %v6415 = vadd.f32 0.0, %v6414
        %v6416 = vpop.f32.mrb[0].mxu0
        %6417 = vdwg.mxu0
        %v6418 = vadd.f32 %v6243, %v6410
        %v6419 = vadd.f32 %v6244, %v6415
        %s6420 = scalar_lea.vmem %s601, 528 [#allocation2]
        %v6421 = vld [vmem:[%s6420] sm:$0xff]
        %v6422 = vld [vmem:[%s6420 + $0x8] sm:$0xff]
        %6423 = vset.pattern.permute.xlu0 0
        %6424 = vperm.xlu0 %6423, %v6421
        %v6425 = vpop.permute.xlu0 %6424
        %6426 = vset.pattern.permute.xlu0 0
        %6427 = vperm.xlu0 %6426, %v6422
        %v6428 = vpop.permute.xlu0 %6427
        %vm6429 = vcmp.eq.s32.totalorder %v6425, %v648
        %vm6430 = vcmp.eq.s32.totalorder %v6428, %v648
        %v6431 = vsel %vm6429, 1.0, 0.0
        %v6432 = vsel %vm6430, 1.0, 0.0
        %6433 = vmatprep.subr.mxu0 0.0
        %6434 = vmatpush1.msra.mxu0 %v631
        %6435 = vmatprep.subr.mxu0 0.0
        %6436 = vmatpush1.msra.mxu0 %v632
        %6437 = vmatprep.subr.mxu0 0.0
        %6438 = vmatpush1.msra.mxu0 %v633
        %6439 = vmatprep.subr.mxu0 0.0
        %6440 = vmatpush1.msra.mxu0 %v634
        %6441 = vmatprep.subr.mxu0 0.0
        %6442 = vmatpush1.msra.mxu0 %v635
        %6443 = vmatprep.subr.mxu0 0.0
        %6444 = vmatpush1.msra.mxu0 %v636
        %6445 = vmatprep.subr.mxu0 0.0
        %6446 = vmatpush1.msra.mxu0 %v637
        %6447 = vmatprep.subr.mxu0 0.0
        %6448 = vmatpush1.msra.mxu0 %v638
        %6449 = vmatprep.subr.mxu0 0.0
        %6450 = vmatpush1.msra.mxu0 %v639
        %6451 = vmatprep.subr.mxu0 0.0
        %6452 = vmatpush1.msra.mxu0 %v640
        %6453 = vmatprep.subr.mxu0 0.0
        %6454 = vmatpush1.msra.mxu0 %v641
        %6455 = vmatprep.subr.mxu0 0.0
        %6456 = vmatpush1.msra.mxu0 %v642
        %6457 = vmatprep.subr.mxu0 0.0
        %6458 = vmatpush1.msra.mxu0 %v643
        %6459 = vmatprep.subr.mxu0 0.0
        %6460 = vmatpush1.msra.mxu0 %v644
        %6461 = vmatprep.subr.mxu0 0.0
        %6462 = vmatpush1.msra.mxu0 %v645
        %6463 = vmatprep.subr.mxu0 0.0
        %6464 = vmatpush1.msra.mxu0 %v646
        %6465 = vmatprep.subr.mxu0 0.0
        %6466 = vmatpush1.msra.mxu0 0.0
        %6467 = vmatprep.subr.mxu0 0.0
        %6468 = vmatpush1.msra.mxu0 0.0
        %6469 = vmatprep.subr.mxu0 0.0
        %6470 = vmatpush1.msra.mxu0 0.0
        %6471 = vmatprep.subr.mxu0 0.0
        %6472 = vmatpush1.msra.mxu0 0.0
        %6473 = vmatprep.subr.mxu0 0.0
        %6474 = vmatpush1.msra.mxu0 0.0
        %6475 = vmatprep.subr.mxu0 0.0
        %6476 = vmatpush1.msra.mxu0 0.0
        %6477 = vmatprep.subr.mxu0 0.0
        %6478 = vmatpush1.msra.mxu0 0.0
        %6479 = vmatprep.subr.mxu0 0.0
        %6480 = vmatpush1.msra.mxu0 0.0
        %6481 = vmatprep.subr.mxu0 0.0
        %6482 = vmatpush1.msra.mxu0 0.0
        %6483 = vmatprep.subr.mxu0 0.0
        %6484 = vmatpush1.msra.mxu0 0.0
        %6485 = vmatprep.subr.mxu0 0.0
        %6486 = vmatpush1.msra.mxu0 0.0
        %6487 = vmatprep.subr.mxu0 0.0
        %6488 = vmatpush1.msra.mxu0 0.0
        %6489 = vmatprep.subr.mxu0 0.0
        %6490 = vmatpush1.msra.mxu0 0.0
        %6491 = vmatprep.subr.mxu0 0.0
        %6492 = vmatpush1.msra.mxu0 0.0
        %6493 = vmatprep.subr.mxu0 0.0
        %6494 = vmatpush1.msra.mxu0 0.0
        %6495 = vmatprep.subr.mxu0 0.0
        %6496 = vmatpush1.msra.mxu0 0.0
        %6497 = vmatprep.mubr.f32.mxu0 0.0
        %6498 = vmatmul.mubr.f32.gmra.mrb[0].mxu0 %v6431
        %v6499 = vpop.f32.mrb[0].mxu0
        %v6500 = vadd.f32 0.0, %v6499
        %v6501 = vpop.f32.mrb[0].mxu0
        %6502 = vmatprep.mubr.f32.mxu0 0.0
        %6503 = vmatmul.mubr.f32.gmra.mrb[0].mxu0 %v6432
        %v6504 = vpop.f32.mrb[0].mxu0
        %v6505 = vadd.f32 0.0, %v6504
        %v6506 = vpop.f32.mrb[0].mxu0
        %6507 = vdwg.mxu0
        %v6508 = vld [vmem:[%s2 + $0x420] sm:$0xff]
        %v6509 = vld [vmem:[%s2 + $0x428] sm:$0xff]
        %v6510 = vld [vmem:[%s2 + $0x430] sm:$0xff]
        %v6511 = vld [vmem:[%s2 + $0x438] sm:$0xff]
        %v6513 = vsel %vm832, %v6500, 0
        %v6516 = vsel %vm832, %v6505, 0
        %6518 = vmatprep.subr.mxu0 0.0
        %6519 = vmatpush1.msra.mxu0 %v6508
        %6520 = vmatprep.subr.mxu0 0.0
        %6521 = vmatpush1.msra.mxu0 %v6509
        %6522 = vmatprep.subr.mxu0 0.0
        %6523 = vmatpush1.msra.mxu0 %v6510
        %6524 = vmatprep.subr.mxu0 0.0
        %6525 = vmatpush1.msra.mxu0 %v6511
        %6526 = vmatprep.subr.mxu0 0.0
        %6527 = vmatpush1.msra.mxu0 0.0
        %6528 = vmatprep.subr.mxu0 0.0
        %6529 = vmatpush1.msra.mxu0 0.0
        %6530 = vmatprep.subr.mxu0 0.0
        %6531 = vmatpush1.msra.mxu0 0.0
        %6532 = vmatprep.subr.mxu0 0.0
        %6533 = vmatpush1.msra.mxu0 0.0
        %6534 = vmatprep.subr.mxu0 0.0
        %6535 = vmatpush1.msra.mxu0 0.0
        %6536 = vmatprep.subr.mxu0 0.0
        %6537 = vmatpush1.msra.mxu0 0.0
        %6538 = vmatprep.subr.mxu0 0.0
        %6539 = vmatpush1.msra.mxu0 0.0
        %6540 = vmatprep.subr.mxu0 0.0
        %6541 = vmatpush1.msra.mxu0 0.0
        %6542 = vmatprep.subr.mxu0 0.0
        %6543 = vmatpush1.msra.mxu0 0.0
        %6544 = vmatprep.subr.mxu0 0.0
        %6545 = vmatpush1.msra.mxu0 0.0
        %6546 = vmatprep.subr.mxu0 0.0
        %6547 = vmatpush1.msra.mxu0 0.0
        %6548 = vmatprep.subr.mxu0 0.0
        %6549 = vmatpush1.msra.mxu0 0.0
        %6550 = vmatprep.subr.mxu0 0.0
        %6551 = vmatpush1.msra.mxu0 0.0
        %6552 = vmatprep.subr.mxu0 0.0
        %6553 = vmatpush1.msra.mxu0 0.0
        %6554 = vmatprep.subr.mxu0 0.0
        %6555 = vmatpush1.msra.mxu0 0.0
        %6556 = vmatprep.subr.mxu0 0.0
        %6557 = vmatpush1.msra.mxu0 0.0
        %6558 = vmatprep.subr.mxu0 0.0
        %6559 = vmatpush1.msra.mxu0 0.0
        %6560 = vmatprep.subr.mxu0 0.0
        %6561 = vmatpush1.msra.mxu0 0.0
        %6562 = vmatprep.subr.mxu0 0.0
        %6563 = vmatpush1.msra.mxu0 0.0
        %6564 = vmatprep.subr.mxu0 0.0
        %6565 = vmatpush1.msra.mxu0 0.0
        %6566 = vmatprep.subr.mxu0 0.0
        %6567 = vmatpush1.msra.mxu0 0.0
        %6568 = vmatprep.subr.mxu0 0.0
        %6569 = vmatpush1.msra.mxu0 0.0
        %6570 = vmatprep.subr.mxu0 0.0
        %6571 = vmatpush1.msra.mxu0 0.0
        %6572 = vmatprep.subr.mxu0 0.0
        %6573 = vmatpush1.msra.mxu0 0.0
        %6574 = vmatprep.subr.mxu0 0.0
        %6575 = vmatpush1.msra.mxu0 0.0
        %6576 = vmatprep.subr.mxu0 0.0
        %6577 = vmatpush1.msra.mxu0 0.0
        %6578 = vmatprep.subr.mxu0 0.0
        %6579 = vmatpush1.msra.mxu0 0.0
        %6580 = vmatprep.subr.mxu0 0.0
        %6581 = vmatpush1.msra.mxu0 0.0
        %6582 = vmatprep.mubr.f32.mxu0 0.0
        %6583 = vmatmul.mubr.f32.gmra.mrb[0].mxu0 %v6513
        %v6584 = vpop.f32.mrb[0].mxu0
        %v6585 = vadd.f32 0.0, %v6584
        %v6586 = vpop.f32.mrb[0].mxu0
        %6587 = vmatprep.mubr.f32.mxu0 0.0
        %6588 = vmatmul.mubr.f32.gmra.mrb[0].mxu0 %v6516
        %v6589 = vpop.f32.mrb[0].mxu0
        %v6590 = vadd.f32 0.0, %v6589
        %v6591 = vpop.f32.mrb[0].mxu0
        %6592 = vdwg.mxu0
        %v6593 = vadd.f32 %v6418, %v6585
        %v6594 = vadd.f32 %v6419, %v6590
        %s6595 = scalar_lea.vmem %s601, 544 [#allocation2]
        %v6596 = vld [vmem:[%s6595] sm:$0xff]
        %v6597 = vld [vmem:[%s6595 + $0x8] sm:$0xff]
        %6598 = vset.pattern.permute.xlu0 0
        %6599 = vperm.xlu0 %6598, %v6596
        %v6600 = vpop.permute.xlu0 %6599
        %6601 = vset.pattern.permute.xlu0 0
        %6602 = vperm.xlu0 %6601, %v6597
        %v6603 = vpop.permute.xlu0 %6602
        %vm6604 = vcmp.eq.s32.totalorder %v6600, %v648
        %vm6605 = vcmp.eq.s32.totalorder %v6603, %v648
        %v6606 = vsel %vm6604, 1.0, 0.0
        %v6607 = vsel %vm6605, 1.0, 0.0
        %6608 = vmatprep.subr.mxu0 0.0
        %6609 = vmatpush1.msra.mxu0 %v631
        %6610 = vmatprep.subr.mxu0 0.0
        %6611 = vmatpush1.msra.mxu0 %v632
        %6612 = vmatprep.subr.mxu0 0.0
        %6613 = vmatpush1.msra.mxu0 %v633
        %6614 = vmatprep.subr.mxu0 0.0
        %6615 = vmatpush1.msra.mxu0 %v634
        %6616 = vmatprep.subr.mxu0 0.0
        %6617 = vmatpush1.msra.mxu0 %v635
        %6618 = vmatprep.subr.mxu0 0.0
        %6619 = vmatpush1.msra.mxu0 %v636
        %6620 = vmatprep.subr.mxu0 0.0
        %6621 = vmatpush1.msra.mxu0 %v637
        %6622 = vmatprep.subr.mxu0 0.0
        %6623 = vmatpush1.msra.mxu0 %v638
        %6624 = vmatprep.subr.mxu0 0.0
        %6625 = vmatpush1.msra.mxu0 %v639
        %6626 = vmatprep.subr.mxu0 0.0
        %6627 = vmatpush1.msra.mxu0 %v640
        %6628 = vmatprep.subr.mxu0 0.0
        %6629 = vmatpush1.msra.mxu0 %v641
        %6630 = vmatprep.subr.mxu0 0.0
        %6631 = vmatpush1.msra.mxu0 %v642
        %6632 = vmatprep.subr.mxu0 0.0
        %6633 = vmatpush1.msra.mxu0 %v643
        %6634 = vmatprep.subr.mxu0 0.0
        %6635 = vmatpush1.msra.mxu0 %v644
        %6636 = vmatprep.subr.mxu0 0.0
        %6637 = vmatpush1.msra.mxu0 %v645
        %6638 = vmatprep.subr.mxu0 0.0
        %6639 = vmatpush1.msra.mxu0 %v646
        %6640 = vmatprep.subr.mxu0 0.0
        %6641 = vmatpush1.msra.mxu0 0.0
        %6642 = vmatprep.subr.mxu0 0.0
        %6643 = vmatpush1.msra.mxu0 0.0
        %6644 = vmatprep.subr.mxu0 0.0
        %6645 = vmatpush1.msra.mxu0 0.0
        %6646 = vmatprep.subr.mxu0 0.0
        %6647 = vmatpush1.msra.mxu0 0.0
        %6648 = vmatprep.subr.mxu0 0.0
        %6649 = vmatpush1.msra.mxu0 0.0
        %6650 = vmatprep.subr.mxu0 0.0
        %6651 = vmatpush1.msra.mxu0 0.0
        %6652 = vmatprep.subr.mxu0 0.0
        %6653 = vmatpush1.msra.mxu0 0.0
        %6654 = vmatprep.subr.mxu0 0.0
        %6655 = vmatpush1.msra.mxu0 0.0
        %6656 = vmatprep.subr.mxu0 0.0
        %6657 = vmatpush1.msra.mxu0 0.0
        %6658 = vmatprep.subr.mxu0 0.0
        %6659 = vmatpush1.msra.mxu0 0.0
        %6660 = vmatprep.subr.mxu0 0.0
        %6661 = vmatpush1.msra.mxu0 0.0
        %6662 = vmatprep.subr.mxu0 0.0
        %6663 = vmatpush1.msra.mxu0 0.0
        %6664 = vmatprep.subr.mxu0 0.0
        %6665 = vmatpush1.msra.mxu0 0.0
        %6666 = vmatprep.subr.mxu0 0.0
        %6667 = vmatpush1.msra.mxu0 0.0
        %6668 = vmatprep.subr.mxu0 0.0
        %6669 = vmatpush1.msra.mxu0 0.0
        %6670 = vmatprep.subr.mxu0 0.0
        %6671 = vmatpush1.msra.mxu0 0.0
        %6672 = vmatprep.mubr.f32.mxu0 0.0
        %6673 = vmatmul.mubr.f32.gmra.mrb[0].mxu0 %v6606
        %v6674 = vpop.f32.mrb[0].mxu0
        %v6675 = vadd.f32 0.0, %v6674
        %v6676 = vpop.f32.mrb[0].mxu0
        %6677 = vmatprep.mubr.f32.mxu0 0.0
        %6678 = vmatmul.mubr.f32.gmra.mrb[0].mxu0 %v6607
        %v6679 = vpop.f32.mrb[0].mxu0
        %v6680 = vadd.f32 0.0, %v6679
        %v6681 = vpop.f32.mrb[0].mxu0
        %6682 = vdwg.mxu0
        %v6683 = vld [vmem:[%s2 + $0x440] sm:$0xff]
        %v6684 = vld [vmem:[%s2 + $0x448] sm:$0xff]
        %v6685 = vld [vmem:[%s2 + $0x450] sm:$0xff]
        %v6686 = vld [vmem:[%s2 + $0x458] sm:$0xff]
        %v6688 = vsel %vm832, %v6675, 0
        %v6691 = vsel %vm832, %v6680, 0
        %6693 = vmatprep.subr.mxu0 0.0
        %6694 = vmatpush1.msra.mxu0 %v6683
        %6695 = vmatprep.subr.mxu0 0.0
        %6696 = vmatpush1.msra.mxu0 %v6684
        %6697 = vmatprep.subr.mxu0 0.0
        %6698 = vmatpush1.msra.mxu0 %v6685
        %6699 = vmatprep.subr.mxu0 0.0
        %6700 = vmatpush1.msra.mxu0 %v6686
        %6701 = vmatprep.subr.mxu0 0.0
        %6702 = vmatpush1.msra.mxu0 0.0
        %6703 = vmatprep.subr.mxu0 0.0
        %6704 = vmatpush1.msra.mxu0 0.0
        %6705 = vmatprep.subr.mxu0 0.0
        %6706 = vmatpush1.msra.mxu0 0.0
        %6707 = vmatprep.subr.mxu0 0.0
        %6708 = vmatpush1.msra.mxu0 0.0
        %6709 = vmatprep.subr.mxu0 0.0
        %6710 = vmatpush1.msra.mxu0 0.0
        %6711 = vmatprep.subr.mxu0 0.0
        %6712 = vmatpush1.msra.mxu0 0.0
        %6713 = vmatprep.subr.mxu0 0.0
        %6714 = vmatpush1.msra.mxu0 0.0
        %6715 = vmatprep.subr.mxu0 0.0
        %6716 = vmatpush1.msra.mxu0 0.0
        %6717 = vmatprep.subr.mxu0 0.0
        %6718 = vmatpush1.msra.mxu0 0.0
        %6719 = vmatprep.subr.mxu0 0.0
        %6720 = vmatpush1.msra.mxu0 0.0
        %6721 = vmatprep.subr.mxu0 0.0
        %6722 = vmatpush1.msra.mxu0 0.0
        %6723 = vmatprep.subr.mxu0 0.0
        %6724 = vmatpush1.msra.mxu0 0.0
        %6725 = vmatprep.subr.mxu0 0.0
        %6726 = vmatpush1.msra.mxu0 0.0
        %6727 = vmatprep.subr.mxu0 0.0
        %6728 = vmatpush1.msra.mxu0 0.0
        %6729 = vmatprep.subr.mxu0 0.0
        %6730 = vmatpush1.msra.mxu0 0.0
        %6731 = vmatprep.subr.mxu0 0.0
        %6732 = vmatpush1.msra.mxu0 0.0
        %6733 = vmatprep.subr.mxu0 0.0
        %6734 = vmatpush1.msra.mxu0 0.0
        %6735 = vmatprep.subr.mxu0 0.0
        %6736 = vmatpush1.msra.mxu0 0.0
        %6737 = vmatprep.subr.mxu0 0.0
        %6738 = vmatpush1.msra.mxu0 0.0
        %6739 = vmatprep.subr.mxu0 0.0
        %6740 = vmatpush1.msra.mxu0 0.0
        %6741 = vmatprep.subr.mxu0 0.0
        %6742 = vmatpush1.msra.mxu0 0.0
        %6743 = vmatprep.subr.mxu0 0.0
        %6744 = vmatpush1.msra.mxu0 0.0
        %6745 = vmatprep.subr.mxu0 0.0
        %6746 = vmatpush1.msra.mxu0 0.0
        %6747 = vmatprep.subr.mxu0 0.0
        %6748 = vmatpush1.msra.mxu0 0.0
        %6749 = vmatprep.subr.mxu0 0.0
        %6750 = vmatpush1.msra.mxu0 0.0
        %6751 = vmatprep.subr.mxu0 0.0
        %6752 = vmatpush1.msra.mxu0 0.0
        %6753 = vmatprep.subr.mxu0 0.0
        %6754 = vmatpush1.msra.mxu0 0.0
        %6755 = vmatprep.subr.mxu0 0.0
        %6756 = vmatpush1.msra.mxu0 0.0
        %6757 = vmatprep.mubr.f32.mxu0 0.0
        %6758 = vmatmul.mubr.f32.gmra.mrb[0].mxu0 %v6688
        %v6759 = vpop.f32.mrb[0].mxu0
        %v6760 = vadd.f32 0.0, %v6759
        %v6761 = vpop.f32.mrb[0].mxu0
        %6762 = vmatprep.mubr.f32.mxu0 0.0
        %6763 = vmatmul.mubr.f32.gmra.mrb[0].mxu0 %v6691
        %v6764 = vpop.f32.mrb[0].mxu0
        %v6765 = vadd.f32 0.0, %v6764
        %v6766 = vpop.f32.mrb[0].mxu0
        %6767 = vdwg.mxu0
        %v6768 = vadd.f32 %v6593, %v6760
        %v6769 = vadd.f32 %v6594, %v6765
        %s6770 = scalar_lea.vmem %s601, 560 [#allocation2]
        %v6771 = vld [vmem:[%s6770] sm:$0xff]
        %v6772 = vld [vmem:[%s6770 + $0x8] sm:$0xff]
        %6773 = vset.pattern.permute.xlu0 0
        %6774 = vperm.xlu0 %6773, %v6771
        %v6775 = vpop.permute.xlu0 %6774
        %6776 = vset.pattern.permute.xlu0 0
        %6777 = vperm.xlu0 %6776, %v6772
        %v6778 = vpop.permute.xlu0 %6777
        %vm6779 = vcmp.eq.s32.totalorder %v6775, %v648
        %vm6780 = vcmp.eq.s32.totalorder %v6778, %v648
        %v6781 = vsel %vm6779, 1.0, 0.0
        %v6782 = vsel %vm6780, 1.0, 0.0
        %6783 = vmatprep.subr.mxu0 0.0
        %6784 = vmatpush1.msra.mxu0 %v631
        %6785 = vmatprep.subr.mxu0 0.0
        %6786 = vmatpush1.msra.mxu0 %v632
        %6787 = vmatprep.subr.mxu0 0.0
        %6788 = vmatpush1.msra.mxu0 %v633
        %6789 = vmatprep.subr.mxu0 0.0
        %6790 = vmatpush1.msra.mxu0 %v634
        %6791 = vmatprep.subr.mxu0 0.0
        %6792 = vmatpush1.msra.mxu0 %v635
        %6793 = vmatprep.subr.mxu0 0.0
        %6794 = vmatpush1.msra.mxu0 %v636
        %6795 = vmatprep.subr.mxu0 0.0
        %6796 = vmatpush1.msra.mxu0 %v637
        %6797 = vmatprep.subr.mxu0 0.0
        %6798 = vmatpush1.msra.mxu0 %v638
        %6799 = vmatprep.subr.mxu0 0.0
        %6800 = vmatpush1.msra.mxu0 %v639
        %6801 = vmatprep.subr.mxu0 0.0
        %6802 = vmatpush1.msra.mxu0 %v640
        %6803 = vmatprep.subr.mxu0 0.0
        %6804 = vmatpush1.msra.mxu0 %v641
        %6805 = vmatprep.subr.mxu0 0.0
        %6806 = vmatpush1.msra.mxu0 %v642
        %6807 = vmatprep.subr.mxu0 0.0
        %6808 = vmatpush1.msra.mxu0 %v643
        %6809 = vmatprep.subr.mxu0 0.0
        %6810 = vmatpush1.msra.mxu0 %v644
        %6811 = vmatprep.subr.mxu0 0.0
        %6812 = vmatpush1.msra.mxu0 %v645
        %6813 = vmatprep.subr.mxu0 0.0
        %6814 = vmatpush1.msra.mxu0 %v646
        %6815 = vmatprep.subr.mxu0 0.0
        %6816 = vmatpush1.msra.mxu0 0.0
        %6817 = vmatprep.subr.mxu0 0.0
        %6818 = vmatpush1.msra.mxu0 0.0
        %6819 = vmatprep.subr.mxu0 0.0
        %6820 = vmatpush1.msra.mxu0 0.0
        %6821 = vmatprep.subr.mxu0 0.0
        %6822 = vmatpush1.msra.mxu0 0.0
        %6823 = vmatprep.subr.mxu0 0.0
        %6824 = vmatpush1.msra.mxu0 0.0
        %6825 = vmatprep.subr.mxu0 0.0
        %6826 = vmatpush1.msra.mxu0 0.0
        %6827 = vmatprep.subr.mxu0 0.0
        %6828 = vmatpush1.msra.mxu0 0.0
        %6829 = vmatprep.subr.mxu0 0.0
        %6830 = vmatpush1.msra.mxu0 0.0
        %6831 = vmatprep.subr.mxu0 0.0
        %6832 = vmatpush1.msra.mxu0 0.0
        %6833 = vmatprep.subr.mxu0 0.0
        %6834 = vmatpush1.msra.mxu0 0.0
        %6835 = vmatprep.subr.mxu0 0.0
        %6836 = vmatpush1.msra.mxu0 0.0
        %6837 = vmatprep.subr.mxu0 0.0
        %6838 = vmatpush1.msra.mxu0 0.0
        %6839 = vmatprep.subr.mxu0 0.0
        %6840 = vmatpush1.msra.mxu0 0.0
        %6841 = vmatprep.subr.mxu0 0.0
        %6842 = vmatpush1.msra.mxu0 0.0
        %6843 = vmatprep.subr.mxu0 0.0
        %6844 = vmatpush1.msra.mxu0 0.0
        %6845 = vmatprep.subr.mxu0 0.0
        %6846 = vmatpush1.msra.mxu0 0.0
        %6847 = vmatprep.mubr.f32.mxu0 0.0
        %6848 = vmatmul.mubr.f32.gmra.mrb[0].mxu0 %v6781
        %v6849 = vpop.f32.mrb[0].mxu0
        %v6850 = vadd.f32 0.0, %v6849
        %v6851 = vpop.f32.mrb[0].mxu0
        %6852 = vmatprep.mubr.f32.mxu0 0.0
        %6853 = vmatmul.mubr.f32.gmra.mrb[0].mxu0 %v6782
        %v6854 = vpop.f32.mrb[0].mxu0
        %v6855 = vadd.f32 0.0, %v6854
        %v6856 = vpop.f32.mrb[0].mxu0
        %6857 = vdwg.mxu0
        %v6858 = vld [vmem:[%s2 + $0x460] sm:$0xff]
        %v6859 = vld [vmem:[%s2 + $0x468] sm:$0xff]
        %v6860 = vld [vmem:[%s2 + $0x470] sm:$0xff]
        %v6861 = vld [vmem:[%s2 + $0x478] sm:$0xff]
        %v6863 = vsel %vm832, %v6850, 0
        %v6866 = vsel %vm832, %v6855, 0
        %6868 = vmatprep.subr.mxu0 0.0
        %6869 = vmatpush1.msra.mxu0 %v6858
        %6870 = vmatprep.subr.mxu0 0.0
        %6871 = vmatpush1.msra.mxu0 %v6859
        %6872 = vmatprep.subr.mxu0 0.0
        %6873 = vmatpush1.msra.mxu0 %v6860
        %6874 = vmatprep.subr.mxu0 0.0
        %6875 = vmatpush1.msra.mxu0 %v6861
        %6876 = vmatprep.subr.mxu0 0.0
        %6877 = vmatpush1.msra.mxu0 0.0
        %6878 = vmatprep.subr.mxu0 0.0
        %6879 = vmatpush1.msra.mxu0 0.0
        %6880 = vmatprep.subr.mxu0 0.0
        %6881 = vmatpush1.msra.mxu0 0.0
        %6882 = vmatprep.subr.mxu0 0.0
        %6883 = vmatpush1.msra.mxu0 0.0
        %6884 = vmatprep.subr.mxu0 0.0
        %6885 = vmatpush1.msra.mxu0 0.0
        %6886 = vmatprep.subr.mxu0 0.0
        %6887 = vmatpush1.msra.mxu0 0.0
        %6888 = vmatprep.subr.mxu0 0.0
        %6889 = vmatpush1.msra.mxu0 0.0
        %6890 = vmatprep.subr.mxu0 0.0
        %6891 = vmatpush1.msra.mxu0 0.0
        %6892 = vmatprep.subr.mxu0 0.0
        %6893 = vmatpush1.msra.mxu0 0.0
        %6894 = vmatprep.subr.mxu0 0.0
        %6895 = vmatpush1.msra.mxu0 0.0
        %6896 = vmatprep.subr.mxu0 0.0
        %6897 = vmatpush1.msra.mxu0 0.0
        %6898 = vmatprep.subr.mxu0 0.0
        %6899 = vmatpush1.msra.mxu0 0.0
        %6900 = vmatprep.subr.mxu0 0.0
        %6901 = vmatpush1.msra.mxu0 0.0
        %6902 = vmatprep.subr.mxu0 0.0
        %6903 = vmatpush1.msra.mxu0 0.0
        %6904 = vmatprep.subr.mxu0 0.0
        %6905 = vmatpush1.msra.mxu0 0.0
        %6906 = vmatprep.subr.mxu0 0.0
        %6907 = vmatpush1.msra.mxu0 0.0
        %6908 = vmatprep.subr.mxu0 0.0
        %6909 = vmatpush1.msra.mxu0 0.0
        %6910 = vmatprep.subr.mxu0 0.0
        %6911 = vmatpush1.msra.mxu0 0.0
        %6912 = vmatprep.subr.mxu0 0.0
        %6913 = vmatpush1.msra.mxu0 0.0
        %6914 = vmatprep.subr.mxu0 0.0
        %6915 = vmatpush1.msra.mxu0 0.0
        %6916 = vmatprep.subr.mxu0 0.0
        %6917 = vmatpush1.msra.mxu0 0.0
        %6918 = vmatprep.subr.mxu0 0.0
        %6919 = vmatpush1.msra.mxu0 0.0
        %6920 = vmatprep.subr.mxu0 0.0
        %6921 = vmatpush1.msra.mxu0 0.0
        %6922 = vmatprep.subr.mxu0 0.0
        %6923 = vmatpush1.msra.mxu0 0.0
        %6924 = vmatprep.subr.mxu0 0.0
        %6925 = vmatpush1.msra.mxu0 0.0
        %6926 = vmatprep.subr.mxu0 0.0
        %6927 = vmatpush1.msra.mxu0 0.0
        %6928 = vmatprep.subr.mxu0 0.0
        %6929 = vmatpush1.msra.mxu0 0.0
        %6930 = vmatprep.subr.mxu0 0.0
        %6931 = vmatpush1.msra.mxu0 0.0
        %6932 = vmatprep.mubr.f32.mxu0 0.0
        %6933 = vmatmul.mubr.f32.gmra.mrb[0].mxu0 %v6863
        %v6934 = vpop.f32.mrb[0].mxu0
        %v6935 = vadd.f32 0.0, %v6934
        %v6936 = vpop.f32.mrb[0].mxu0
        %6937 = vmatprep.mubr.f32.mxu0 0.0
        %6938 = vmatmul.mubr.f32.gmra.mrb[0].mxu0 %v6866
        %v6939 = vpop.f32.mrb[0].mxu0
        %v6940 = vadd.f32 0.0, %v6939
        %v6941 = vpop.f32.mrb[0].mxu0
        %6942 = vdwg.mxu0
        %v6943 = vadd.f32 %v6768, %v6935
        %v6944 = vadd.f32 %v6769, %v6940
        %s6945 = scalar_lea.vmem %s601, 576 [#allocation2]
        %v6946 = vld [vmem:[%s6945] sm:$0xff]
        %v6947 = vld [vmem:[%s6945 + $0x8] sm:$0xff]
        %6948 = vset.pattern.permute.xlu0 0
        %6949 = vperm.xlu0 %6948, %v6946
        %v6950 = vpop.permute.xlu0 %6949
        %6951 = vset.pattern.permute.xlu0 0
        %6952 = vperm.xlu0 %6951, %v6947
        %v6953 = vpop.permute.xlu0 %6952
        %vm6954 = vcmp.eq.s32.totalorder %v6950, %v648
        %vm6955 = vcmp.eq.s32.totalorder %v6953, %v648
        %v6956 = vsel %vm6954, 1.0, 0.0
        %v6957 = vsel %vm6955, 1.0, 0.0
        %6958 = vmatprep.subr.mxu0 0.0
        %6959 = vmatpush1.msra.mxu0 %v631
        %6960 = vmatprep.subr.mxu0 0.0
        %6961 = vmatpush1.msra.mxu0 %v632
        %6962 = vmatprep.subr.mxu0 0.0
        %6963 = vmatpush1.msra.mxu0 %v633
        %6964 = vmatprep.subr.mxu0 0.0
        %6965 = vmatpush1.msra.mxu0 %v634
        %6966 = vmatprep.subr.mxu0 0.0
        %6967 = vmatpush1.msra.mxu0 %v635
        %6968 = vmatprep.subr.mxu0 0.0
        %6969 = vmatpush1.msra.mxu0 %v636
        %6970 = vmatprep.subr.mxu0 0.0
        %6971 = vmatpush1.msra.mxu0 %v637
        %6972 = vmatprep.subr.mxu0 0.0
        %6973 = vmatpush1.msra.mxu0 %v638
        %6974 = vmatprep.subr.mxu0 0.0
        %6975 = vmatpush1.msra.mxu0 %v639
        %6976 = vmatprep.subr.mxu0 0.0
        %6977 = vmatpush1.msra.mxu0 %v640
        %6978 = vmatprep.subr.mxu0 0.0
        %6979 = vmatpush1.msra.mxu0 %v641
        %6980 = vmatprep.subr.mxu0 0.0
        %6981 = vmatpush1.msra.mxu0 %v642
        %6982 = vmatprep.subr.mxu0 0.0
        %6983 = vmatpush1.msra.mxu0 %v643
        %6984 = vmatprep.subr.mxu0 0.0
        %6985 = vmatpush1.msra.mxu0 %v644
        %6986 = vmatprep.subr.mxu0 0.0
        %6987 = vmatpush1.msra.mxu0 %v645
        %6988 = vmatprep.subr.mxu0 0.0
        %6989 = vmatpush1.msra.mxu0 %v646
        %6990 = vmatprep.subr.mxu0 0.0
        %6991 = vmatpush1.msra.mxu0 0.0
        %6992 = vmatprep.subr.mxu0 0.0
        %6993 = vmatpush1.msra.mxu0 0.0
        %6994 = vmatprep.subr.mxu0 0.0
        %6995 = vmatpush1.msra.mxu0 0.0
        %6996 = vmatprep.subr.mxu0 0.0
        %6997 = vmatpush1.msra.mxu0 0.0
        %6998 = vmatprep.subr.mxu0 0.0
        %6999 = vmatpush1.msra.mxu0 0.0
        %7000 = vmatprep.subr.mxu0 0.0
        %7001 = vmatpush1.msra.mxu0 0.0
        %7002 = vmatprep.subr.mxu0 0.0
        %7003 = vmatpush1.msra.mxu0 0.0
        %7004 = vmatprep.subr.mxu0 0.0
        %7005 = vmatpush1.msra.mxu0 0.0
        %7006 = vmatprep.subr.mxu0 0.0
        %7007 = vmatpush1.msra.mxu0 0.0
        %7008 = vmatprep.subr.mxu0 0.0
        %7009 = vmatpush1.msra.mxu0 0.0
        %7010 = vmatprep.subr.mxu0 0.0
        %7011 = vmatpush1.msra.mxu0 0.0
        %7012 = vmatprep.subr.mxu0 0.0
        %7013 = vmatpush1.msra.mxu0 0.0
        %7014 = vmatprep.subr.mxu0 0.0
        %7015 = vmatpush1.msra.mxu0 0.0
        %7016 = vmatprep.subr.mxu0 0.0
        %7017 = vmatpush1.msra.mxu0 0.0
        %7018 = vmatprep.subr.mxu0 0.0
        %7019 = vmatpush1.msra.mxu0 0.0
        %7020 = vmatprep.subr.mxu0 0.0
        %7021 = vmatpush1.msra.mxu0 0.0
        %7022 = vmatprep.mubr.f32.mxu0 0.0
        %7023 = vmatmul.mubr.f32.gmra.mrb[0].mxu0 %v6956
        %v7024 = vpop.f32.mrb[0].mxu0
        %v7025 = vadd.f32 0.0, %v7024
        %v7026 = vpop.f32.mrb[0].mxu0
        %7027 = vmatprep.mubr.f32.mxu0 0.0
        %7028 = vmatmul.mubr.f32.gmra.mrb[0].mxu0 %v6957
        %v7029 = vpop.f32.mrb[0].mxu0
        %v7030 = vadd.f32 0.0, %v7029
        %v7031 = vpop.f32.mrb[0].mxu0
        %7032 = vdwg.mxu0
        %v7033 = vld [vmem:[%s2 + $0x480] sm:$0xff]
        %v7034 = vld [vmem:[%s2 + $0x488] sm:$0xff]
        %v7035 = vld [vmem:[%s2 + $0x490] sm:$0xff]
        %v7036 = vld [vmem:[%s2 + $0x498] sm:$0xff]
        %v7038 = vsel %vm832, %v7025, 0
        %v7041 = vsel %vm832, %v7030, 0
        %7043 = vmatprep.subr.mxu0 0.0
        %7044 = vmatpush1.msra.mxu0 %v7033
        %7045 = vmatprep.subr.mxu0 0.0
        %7046 = vmatpush1.msra.mxu0 %v7034
        %7047 = vmatprep.subr.mxu0 0.0
        %7048 = vmatpush1.msra.mxu0 %v7035
        %7049 = vmatprep.subr.mxu0 0.0
        %7050 = vmatpush1.msra.mxu0 %v7036
        %7051 = vmatprep.subr.mxu0 0.0
        %7052 = vmatpush1.msra.mxu0 0.0
        %7053 = vmatprep.subr.mxu0 0.0
        %7054 = vmatpush1.msra.mxu0 0.0
        %7055 = vmatprep.subr.mxu0 0.0
        %7056 = vmatpush1.msra.mxu0 0.0
        %7057 = vmatprep.subr.mxu0 0.0
        %7058 = vmatpush1.msra.mxu0 0.0
        %7059 = vmatprep.subr.mxu0 0.0
        %7060 = vmatpush1.msra.mxu0 0.0
        %7061 = vmatprep.subr.mxu0 0.0
        %7062 = vmatpush1.msra.mxu0 0.0
        %7063 = vmatprep.subr.mxu0 0.0
        %7064 = vmatpush1.msra.mxu0 0.0
        %7065 = vmatprep.subr.mxu0 0.0
        %7066 = vmatpush1.msra.mxu0 0.0
        %7067 = vmatprep.subr.mxu0 0.0
        %7068 = vmatpush1.msra.mxu0 0.0
        %7069 = vmatprep.subr.mxu0 0.0
        %7070 = vmatpush1.msra.mxu0 0.0
        %7071 = vmatprep.subr.mxu0 0.0
        %7072 = vmatpush1.msra.mxu0 0.0
        %7073 = vmatprep.subr.mxu0 0.0
        %7074 = vmatpush1.msra.mxu0 0.0
        %7075 = vmatprep.subr.mxu0 0.0
        %7076 = vmatpush1.msra.mxu0 0.0
        %7077 = vmatprep.subr.mxu0 0.0
        %7078 = vmatpush1.msra.mxu0 0.0
        %7079 = vmatprep.subr.mxu0 0.0
        %7080 = vmatpush1.msra.mxu0 0.0
        %7081 = vmatprep.subr.mxu0 0.0
        %7082 = vmatpush1.msra.mxu0 0.0
        %7083 = vmatprep.subr.mxu0 0.0
        %7084 = vmatpush1.msra.mxu0 0.0
        %7085 = vmatprep.subr.mxu0 0.0
        %7086 = vmatpush1.msra.mxu0 0.0
        %7087 = vmatprep.subr.mxu0 0.0
        %7088 = vmatpush1.msra.mxu0 0.0
        %7089 = vmatprep.subr.mxu0 0.0
        %7090 = vmatpush1.msra.mxu0 0.0
        %7091 = vmatprep.subr.mxu0 0.0
        %7092 = vmatpush1.msra.mxu0 0.0
        %7093 = vmatprep.subr.mxu0 0.0
        %7094 = vmatpush1.msra.mxu0 0.0
        %7095 = vmatprep.subr.mxu0 0.0
        %7096 = vmatpush1.msra.mxu0 0.0
        %7097 = vmatprep.subr.mxu0 0.0
        %7098 = vmatpush1.msra.mxu0 0.0
        %7099 = vmatprep.subr.mxu0 0.0
        %7100 = vmatpush1.msra.mxu0 0.0
        %7101 = vmatprep.subr.mxu0 0.0
        %7102 = vmatpush1.msra.mxu0 0.0
        %7103 = vmatprep.subr.mxu0 0.0
        %7104 = vmatpush1.msra.mxu0 0.0
        %7105 = vmatprep.subr.mxu0 0.0
        %7106 = vmatpush1.msra.mxu0 0.0
        %7107 = vmatprep.mubr.f32.mxu0 0.0
        %7108 = vmatmul.mubr.f32.gmra.mrb[0].mxu0 %v7038
        %v7109 = vpop.f32.mrb[0].mxu0
        %v7110 = vadd.f32 0.0, %v7109
        %v7111 = vpop.f32.mrb[0].mxu0
        %7112 = vmatprep.mubr.f32.mxu0 0.0
        %7113 = vmatmul.mubr.f32.gmra.mrb[0].mxu0 %v7041
        %v7114 = vpop.f32.mrb[0].mxu0
        %v7115 = vadd.f32 0.0, %v7114
        %v7116 = vpop.f32.mrb[0].mxu0
        %7117 = vdwg.mxu0
        %v7118 = vadd.f32 %v6943, %v7110
        %v7119 = vadd.f32 %v6944, %v7115
        %s7120 = scalar_lea.vmem %s601, 592 [#allocation2]
        %v7121 = vld [vmem:[%s7120] sm:$0xff]
        %v7122 = vld [vmem:[%s7120 + $0x8] sm:$0xff]
        %7123 = vset.pattern.permute.xlu0 0
        %7124 = vperm.xlu0 %7123, %v7121
        %v7125 = vpop.permute.xlu0 %7124
        %7126 = vset.pattern.permute.xlu0 0
        %7127 = vperm.xlu0 %7126, %v7122
        %v7128 = vpop.permute.xlu0 %7127
        %vm7129 = vcmp.eq.s32.totalorder %v7125, %v648
        %vm7130 = vcmp.eq.s32.totalorder %v7128, %v648
        %v7131 = vsel %vm7129, 1.0, 0.0
        %v7132 = vsel %vm7130, 1.0, 0.0
        %7133 = vmatprep.subr.mxu0 0.0
        %7134 = vmatpush1.msra.mxu0 %v631
        %7135 = vmatprep.subr.mxu0 0.0
        %7136 = vmatpush1.msra.mxu0 %v632
        %7137 = vmatprep.subr.mxu0 0.0
        %7138 = vmatpush1.msra.mxu0 %v633
        %7139 = vmatprep.subr.mxu0 0.0
        %7140 = vmatpush1.msra.mxu0 %v634
        %7141 = vmatprep.subr.mxu0 0.0
        %7142 = vmatpush1.msra.mxu0 %v635
        %7143 = vmatprep.subr.mxu0 0.0
        %7144 = vmatpush1.msra.mxu0 %v636
        %7145 = vmatprep.subr.mxu0 0.0
        %7146 = vmatpush1.msra.mxu0 %v637
        %7147 = vmatprep.subr.mxu0 0.0
        %7148 = vmatpush1.msra.mxu0 %v638
        %7149 = vmatprep.subr.mxu0 0.0
        %7150 = vmatpush1.msra.mxu0 %v639
        %7151 = vmatprep.subr.mxu0 0.0
        %7152 = vmatpush1.msra.mxu0 %v640
        %7153 = vmatprep.subr.mxu0 0.0
        %7154 = vmatpush1.msra.mxu0 %v641
        %7155 = vmatprep.subr.mxu0 0.0
        %7156 = vmatpush1.msra.mxu0 %v642
        %7157 = vmatprep.subr.mxu0 0.0
        %7158 = vmatpush1.msra.mxu0 %v643
        %7159 = vmatprep.subr.mxu0 0.0
        %7160 = vmatpush1.msra.mxu0 %v644
        %7161 = vmatprep.subr.mxu0 0.0
        %7162 = vmatpush1.msra.mxu0 %v645
        %7163 = vmatprep.subr.mxu0 0.0
        %7164 = vmatpush1.msra.mxu0 %v646
        %7165 = vmatprep.subr.mxu0 0.0
        %7166 = vmatpush1.msra.mxu0 0.0
        %7167 = vmatprep.subr.mxu0 0.0
        %7168 = vmatpush1.msra.mxu0 0.0
        %7169 = vmatprep.subr.mxu0 0.0
        %7170 = vmatpush1.msra.mxu0 0.0
        %7171 = vmatprep.subr.mxu0 0.0
        %7172 = vmatpush1.msra.mxu0 0.0
        %7173 = vmatprep.subr.mxu0 0.0
        %7174 = vmatpush1.msra.mxu0 0.0
        %7175 = vmatprep.subr.mxu0 0.0
        %7176 = vmatpush1.msra.mxu0 0.0
        %7177 = vmatprep.subr.mxu0 0.0
        %7178 = vmatpush1.msra.mxu0 0.0
        %7179 = vmatprep.subr.mxu0 0.0
        %7180 = vmatpush1.msra.mxu0 0.0
        %7181 = vmatprep.subr.mxu0 0.0
        %7182 = vmatpush1.msra.mxu0 0.0
        %7183 = vmatprep.subr.mxu0 0.0
        %7184 = vmatpush1.msra.mxu0 0.0
        %7185 = vmatprep.subr.mxu0 0.0
        %7186 = vmatpush1.msra.mxu0 0.0
        %7187 = vmatprep.subr.mxu0 0.0
        %7188 = vmatpush1.msra.mxu0 0.0
        %7189 = vmatprep.subr.mxu0 0.0
        %7190 = vmatpush1.msra.mxu0 0.0
        %7191 = vmatprep.subr.mxu0 0.0
        %7192 = vmatpush1.msra.mxu0 0.0
        %7193 = vmatprep.subr.mxu0 0.0
        %7194 = vmatpush1.msra.mxu0 0.0
        %7195 = vmatprep.subr.mxu0 0.0
        %7196 = vmatpush1.msra.mxu0 0.0
        %7197 = vmatprep.mubr.f32.mxu0 0.0
        %7198 = vmatmul.mubr.f32.gmra.mrb[0].mxu0 %v7131
        %v7199 = vpop.f32.mrb[0].mxu0
        %v7200 = vadd.f32 0.0, %v7199
        %v7201 = vpop.f32.mrb[0].mxu0
        %7202 = vmatprep.mubr.f32.mxu0 0.0
        %7203 = vmatmul.mubr.f32.gmra.mrb[0].mxu0 %v7132
        %v7204 = vpop.f32.mrb[0].mxu0
        %v7205 = vadd.f32 0.0, %v7204
        %v7206 = vpop.f32.mrb[0].mxu0
        %7207 = vdwg.mxu0
        %v7208 = vld [vmem:[%s2 + $0x4a0] sm:$0xff]
        %v7209 = vld [vmem:[%s2 + $0x4a8] sm:$0xff]
        %v7210 = vld [vmem:[%s2 + $0x4b0] sm:$0xff]
        %v7211 = vld [vmem:[%s2 + $0x4b8] sm:$0xff]
        %v7213 = vsel %vm832, %v7200, 0
        %v7216 = vsel %vm832, %v7205, 0
        %7218 = vmatprep.subr.mxu0 0.0
        %7219 = vmatpush1.msra.mxu0 %v7208
        %7220 = vmatprep.subr.mxu0 0.0
        %7221 = vmatpush1.msra.mxu0 %v7209
        %7222 = vmatprep.subr.mxu0 0.0
        %7223 = vmatpush1.msra.mxu0 %v7210
        %7224 = vmatprep.subr.mxu0 0.0
        %7225 = vmatpush1.msra.mxu0 %v7211
        %7226 = vmatprep.subr.mxu0 0.0
        %7227 = vmatpush1.msra.mxu0 0.0
        %7228 = vmatprep.subr.mxu0 0.0
        %7229 = vmatpush1.msra.mxu0 0.0
        %7230 = vmatprep.subr.mxu0 0.0
        %7231 = vmatpush1.msra.mxu0 0.0
        %7232 = vmatprep.subr.mxu0 0.0
        %7233 = vmatpush1.msra.mxu0 0.0
        %7234 = vmatprep.subr.mxu0 0.0
        %7235 = vmatpush1.msra.mxu0 0.0
        %7236 = vmatprep.subr.mxu0 0.0
        %7237 = vmatpush1.msra.mxu0 0.0
        %7238 = vmatprep.subr.mxu0 0.0
        %7239 = vmatpush1.msra.mxu0 0.0
        %7240 = vmatprep.subr.mxu0 0.0
        %7241 = vmatpush1.msra.mxu0 0.0
        %7242 = vmatprep.subr.mxu0 0.0
        %7243 = vmatpush1.msra.mxu0 0.0
        %7244 = vmatprep.subr.mxu0 0.0
        %7245 = vmatpush1.msra.mxu0 0.0
        %7246 = vmatprep.subr.mxu0 0.0
        %7247 = vmatpush1.msra.mxu0 0.0
        %7248 = vmatprep.subr.mxu0 0.0
        %7249 = vmatpush1.msra.mxu0 0.0
        %7250 = vmatprep.subr.mxu0 0.0
        %7251 = vmatpush1.msra.mxu0 0.0
        %7252 = vmatprep.subr.mxu0 0.0
        %7253 = vmatpush1.msra.mxu0 0.0
        %7254 = vmatprep.subr.mxu0 0.0
        %7255 = vmatpush1.msra.mxu0 0.0
        %7256 = vmatprep.subr.mxu0 0.0
        %7257 = vmatpush1.msra.mxu0 0.0
        %7258 = vmatprep.subr.mxu0 0.0
        %7259 = vmatpush1.msra.mxu0 0.0
        %7260 = vmatprep.subr.mxu0 0.0
        %7261 = vmatpush1.msra.mxu0 0.0
        %7262 = vmatprep.subr.mxu0 0.0
        %7263 = vmatpush1.msra.mxu0 0.0
        %7264 = vmatprep.subr.mxu0 0.0
        %7265 = vmatpush1.msra.mxu0 0.0
        %7266 = vmatprep.subr.mxu0 0.0
        %7267 = vmatpush1.msra.mxu0 0.0
        %7268 = vmatprep.subr.mxu0 0.0
        %7269 = vmatpush1.msra.mxu0 0.0
        %7270 = vmatprep.subr.mxu0 0.0
        %7271 = vmatpush1.msra.mxu0 0.0
        %7272 = vmatprep.subr.mxu0 0.0
        %7273 = vmatpush1.msra.mxu0 0.0
        %7274 = vmatprep.subr.mxu0 0.0
        %7275 = vmatpush1.msra.mxu0 0.0
        %7276 = vmatprep.subr.mxu0 0.0
        %7277 = vmatpush1.msra.mxu0 0.0
        %7278 = vmatprep.subr.mxu0 0.0
        %7279 = vmatpush1.msra.mxu0 0.0
        %7280 = vmatprep.subr.mxu0 0.0
        %7281 = vmatpush1.msra.mxu0 0.0
        %7282 = vmatprep.mubr.f32.mxu0 0.0
        %7283 = vmatmul.mubr.f32.gmra.mrb[0].mxu0 %v7213
        %v7284 = vpop.f32.mrb[0].mxu0
        %v7285 = vadd.f32 0.0, %v7284
        %v7286 = vpop.f32.mrb[0].mxu0
        %7287 = vmatprep.mubr.f32.mxu0 0.0
        %7288 = vmatmul.mubr.f32.gmra.mrb[0].mxu0 %v7216
        %v7289 = vpop.f32.mrb[0].mxu0
        %v7290 = vadd.f32 0.0, %v7289
        %v7291 = vpop.f32.mrb[0].mxu0
        %7292 = vdwg.mxu0
        %v7293 = vadd.f32 %v7118, %v7285
        %v7294 = vadd.f32 %v7119, %v7290
        %s7295 = scalar_lea.vmem %s601, 608 [#allocation2]
        %v7296 = vld [vmem:[%s7295] sm:$0xff]
        %v7297 = vld [vmem:[%s7295 + $0x8] sm:$0xff]
        %7298 = vset.pattern.permute.xlu0 0
        %7299 = vperm.xlu0 %7298, %v7296
        %v7300 = vpop.permute.xlu0 %7299
        %7301 = vset.pattern.permute.xlu0 0
        %7302 = vperm.xlu0 %7301, %v7297
        %v7303 = vpop.permute.xlu0 %7302
        %vm7304 = vcmp.eq.s32.totalorder %v7300, %v648
        %vm7305 = vcmp.eq.s32.totalorder %v7303, %v648
        %v7306 = vsel %vm7304, 1.0, 0.0
        %v7307 = vsel %vm7305, 1.0, 0.0
        %7308 = vmatprep.subr.mxu0 0.0
        %7309 = vmatpush1.msra.mxu0 %v631
        %7310 = vmatprep.subr.mxu0 0.0
        %7311 = vmatpush1.msra.mxu0 %v632
        %7312 = vmatprep.subr.mxu0 0.0
        %7313 = vmatpush1.msra.mxu0 %v633
        %7314 = vmatprep.subr.mxu0 0.0
        %7315 = vmatpush1.msra.mxu0 %v634
        %7316 = vmatprep.subr.mxu0 0.0
        %7317 = vmatpush1.msra.mxu0 %v635
        %7318 = vmatprep.subr.mxu0 0.0
        %7319 = vmatpush1.msra.mxu0 %v636
        %7320 = vmatprep.subr.mxu0 0.0
        %7321 = vmatpush1.msra.mxu0 %v637
        %7322 = vmatprep.subr.mxu0 0.0
        %7323 = vmatpush1.msra.mxu0 %v638
        %7324 = vmatprep.subr.mxu0 0.0
        %7325 = vmatpush1.msra.mxu0 %v639
        %7326 = vmatprep.subr.mxu0 0.0
        %7327 = vmatpush1.msra.mxu0 %v640
        %7328 = vmatprep.subr.mxu0 0.0
        %7329 = vmatpush1.msra.mxu0 %v641
        %7330 = vmatprep.subr.mxu0 0.0
        %7331 = vmatpush1.msra.mxu0 %v642
        %7332 = vmatprep.subr.mxu0 0.0
        %7333 = vmatpush1.msra.mxu0 %v643
        %7334 = vmatprep.subr.mxu0 0.0
        %7335 = vmatpush1.msra.mxu0 %v644
        %7336 = vmatprep.subr.mxu0 0.0
        %7337 = vmatpush1.msra.mxu0 %v645
        %7338 = vmatprep.subr.mxu0 0.0
        %7339 = vmatpush1.msra.mxu0 %v646
        %7340 = vmatprep.subr.mxu0 0.0
        %7341 = vmatpush1.msra.mxu0 0.0
        %7342 = vmatprep.subr.mxu0 0.0
        %7343 = vmatpush1.msra.mxu0 0.0
        %7344 = vmatprep.subr.mxu0 0.0
        %7345 = vmatpush1.msra.mxu0 0.0
        %7346 = vmatprep.subr.mxu0 0.0
        %7347 = vmatpush1.msra.mxu0 0.0
        %7348 = vmatprep.subr.mxu0 0.0
        %7349 = vmatpush1.msra.mxu0 0.0
        %7350 = vmatprep.subr.mxu0 0.0
        %7351 = vmatpush1.msra.mxu0 0.0
        %7352 = vmatprep.subr.mxu0 0.0
        %7353 = vmatpush1.msra.mxu0 0.0
        %7354 = vmatprep.subr.mxu0 0.0
        %7355 = vmatpush1.msra.mxu0 0.0
        %7356 = vmatprep.subr.mxu0 0.0
        %7357 = vmatpush1.msra.mxu0 0.0
        %7358 = vmatprep.subr.mxu0 0.0
        %7359 = vmatpush1.msra.mxu0 0.0
        %7360 = vmatprep.subr.mxu0 0.0
        %7361 = vmatpush1.msra.mxu0 0.0
        %7362 = vmatprep.subr.mxu0 0.0
        %7363 = vmatpush1.msra.mxu0 0.0
        %7364 = vmatprep.subr.mxu0 0.0
        %7365 = vmatpush1.msra.mxu0 0.0
        %7366 = vmatprep.subr.mxu0 0.0
        %7367 = vmatpush1.msra.mxu0 0.0
        %7368 = vmatprep.subr.mxu0 0.0
        %7369 = vmatpush1.msra.mxu0 0.0
        %7370 = vmatprep.subr.mxu0 0.0
        %7371 = vmatpush1.msra.mxu0 0.0
        %7372 = vmatprep.mubr.f32.mxu0 0.0
        %7373 = vmatmul.mubr.f32.gmra.mrb[0].mxu0 %v7306
        %v7374 = vpop.f32.mrb[0].mxu0
        %v7375 = vadd.f32 0.0, %v7374
        %v7376 = vpop.f32.mrb[0].mxu0
        %7377 = vmatprep.mubr.f32.mxu0 0.0
        %7378 = vmatmul.mubr.f32.gmra.mrb[0].mxu0 %v7307
        %v7379 = vpop.f32.mrb[0].mxu0
        %v7380 = vadd.f32 0.0, %v7379
        %v7381 = vpop.f32.mrb[0].mxu0
        %7382 = vdwg.mxu0
        %v7383 = vld [vmem:[%s2 + $0x4c0] sm:$0xff]
        %v7384 = vld [vmem:[%s2 + $0x4c8] sm:$0xff]
        %v7385 = vld [vmem:[%s2 + $0x4d0] sm:$0xff]
        %v7386 = vld [vmem:[%s2 + $0x4d8] sm:$0xff]
        %v7388 = vsel %vm832, %v7375, 0
        %v7391 = vsel %vm832, %v7380, 0
        %7393 = vmatprep.subr.mxu0 0.0
        %7394 = vmatpush1.msra.mxu0 %v7383
        %7395 = vmatprep.subr.mxu0 0.0
        %7396 = vmatpush1.msra.mxu0 %v7384
        %7397 = vmatprep.subr.mxu0 0.0
        %7398 = vmatpush1.msra.mxu0 %v7385
        %7399 = vmatprep.subr.mxu0 0.0
        %7400 = vmatpush1.msra.mxu0 %v7386
        %7401 = vmatprep.subr.mxu0 0.0
        %7402 = vmatpush1.msra.mxu0 0.0
        %7403 = vmatprep.subr.mxu0 0.0
        %7404 = vmatpush1.msra.mxu0 0.0
        %7405 = vmatprep.subr.mxu0 0.0
        %7406 = vmatpush1.msra.mxu0 0.0
        %7407 = vmatprep.subr.mxu0 0.0
        %7408 = vmatpush1.msra.mxu0 0.0
        %7409 = vmatprep.subr.mxu0 0.0
        %7410 = vmatpush1.msra.mxu0 0.0
        %7411 = vmatprep.subr.mxu0 0.0
        %7412 = vmatpush1.msra.mxu0 0.0
        %7413 = vmatprep.subr.mxu0 0.0
        %7414 = vmatpush1.msra.mxu0 0.0
        %7415 = vmatprep.subr.mxu0 0.0
        %7416 = vmatpush1.msra.mxu0 0.0
        %7417 = vmatprep.subr.mxu0 0.0
        %7418 = vmatpush1.msra.mxu0 0.0
        %7419 = vmatprep.subr.mxu0 0.0
        %7420 = vmatpush1.msra.mxu0 0.0
        %7421 = vmatprep.subr.mxu0 0.0
        %7422 = vmatpush1.msra.mxu0 0.0
        %7423 = vmatprep.subr.mxu0 0.0
        %7424 = vmatpush1.msra.mxu0 0.0
        %7425 = vmatprep.subr.mxu0 0.0
        %7426 = vmatpush1.msra.mxu0 0.0
        %7427 = vmatprep.subr.mxu0 0.0
        %7428 = vmatpush1.msra.mxu0 0.0
        %7429 = vmatprep.subr.mxu0 0.0
        %7430 = vmatpush1.msra.mxu0 0.0
        %7431 = vmatprep.subr.mxu0 0.0
        %7432 = vmatpush1.msra.mxu0 0.0
        %7433 = vmatprep.subr.mxu0 0.0
        %7434 = vmatpush1.msra.mxu0 0.0
        %7435 = vmatprep.subr.mxu0 0.0
        %7436 = vmatpush1.msra.mxu0 0.0
        %7437 = vmatprep.subr.mxu0 0.0
        %7438 = vmatpush1.msra.mxu0 0.0
        %7439 = vmatprep.subr.mxu0 0.0
        %7440 = vmatpush1.msra.mxu0 0.0
        %7441 = vmatprep.subr.mxu0 0.0
        %7442 = vmatpush1.msra.mxu0 0.0
        %7443 = vmatprep.subr.mxu0 0.0
        %7444 = vmatpush1.msra.mxu0 0.0
        %7445 = vmatprep.subr.mxu0 0.0
        %7446 = vmatpush1.msra.mxu0 0.0
        %7447 = vmatprep.subr.mxu0 0.0
        %7448 = vmatpush1.msra.mxu0 0.0
        %7449 = vmatprep.subr.mxu0 0.0
        %7450 = vmatpush1.msra.mxu0 0.0
        %7451 = vmatprep.subr.mxu0 0.0
        %7452 = vmatpush1.msra.mxu0 0.0
        %7453 = vmatprep.subr.mxu0 0.0
        %7454 = vmatpush1.msra.mxu0 0.0
        %7455 = vmatprep.subr.mxu0 0.0
        %7456 = vmatpush1.msra.mxu0 0.0
        %7457 = vmatprep.mubr.f32.mxu0 0.0
        %7458 = vmatmul.mubr.f32.gmra.mrb[0].mxu0 %v7388
        %v7459 = vpop.f32.mrb[0].mxu0
        %v7460 = vadd.f32 0.0, %v7459
        %v7461 = vpop.f32.mrb[0].mxu0
        %7462 = vmatprep.mubr.f32.mxu0 0.0
        %7463 = vmatmul.mubr.f32.gmra.mrb[0].mxu0 %v7391
        %v7464 = vpop.f32.mrb[0].mxu0
        %v7465 = vadd.f32 0.0, %v7464
        %v7466 = vpop.f32.mrb[0].mxu0
        %7467 = vdwg.mxu0
        %v7468 = vadd.f32 %v7293, %v7460
        %v7469 = vadd.f32 %v7294, %v7465
        %s7470 = scalar_lea.vmem %s601, 624 [#allocation2]
        %v7471 = vld [vmem:[%s7470] sm:$0xff]
        %v7472 = vld [vmem:[%s7470 + $0x8] sm:$0xff]
        %7473 = vset.pattern.permute.xlu0 0
        %7474 = vperm.xlu0 %7473, %v7471
        %v7475 = vpop.permute.xlu0 %7474
        %7476 = vset.pattern.permute.xlu0 0
        %7477 = vperm.xlu0 %7476, %v7472
        %v7478 = vpop.permute.xlu0 %7477
        %vm7479 = vcmp.eq.s32.totalorder %v7475, %v648
        %vm7480 = vcmp.eq.s32.totalorder %v7478, %v648
        %v7481 = vsel %vm7479, 1.0, 0.0
        %v7482 = vsel %vm7480, 1.0, 0.0
        %7483 = vmatprep.subr.mxu0 0.0
        %7484 = vmatpush1.msra.mxu0 %v631
        %7485 = vmatprep.subr.mxu0 0.0
        %7486 = vmatpush1.msra.mxu0 %v632
        %7487 = vmatprep.subr.mxu0 0.0
        %7488 = vmatpush1.msra.mxu0 %v633
        %7489 = vmatprep.subr.mxu0 0.0
        %7490 = vmatpush1.msra.mxu0 %v634
        %7491 = vmatprep.subr.mxu0 0.0
        %7492 = vmatpush1.msra.mxu0 %v635
        %7493 = vmatprep.subr.mxu0 0.0
        %7494 = vmatpush1.msra.mxu0 %v636
        %7495 = vmatprep.subr.mxu0 0.0
        %7496 = vmatpush1.msra.mxu0 %v637
        %7497 = vmatprep.subr.mxu0 0.0
        %7498 = vmatpush1.msra.mxu0 %v638
        %7499 = vmatprep.subr.mxu0 0.0
        %7500 = vmatpush1.msra.mxu0 %v639
        %7501 = vmatprep.subr.mxu0 0.0
        %7502 = vmatpush1.msra.mxu0 %v640
        %7503 = vmatprep.subr.mxu0 0.0
        %7504 = vmatpush1.msra.mxu0 %v641
        %7505 = vmatprep.subr.mxu0 0.0
        %7506 = vmatpush1.msra.mxu0 %v642
        %7507 = vmatprep.subr.mxu0 0.0
        %7508 = vmatpush1.msra.mxu0 %v643
        %7509 = vmatprep.subr.mxu0 0.0
        %7510 = vmatpush1.msra.mxu0 %v644
        %7511 = vmatprep.subr.mxu0 0.0
        %7512 = vmatpush1.msra.mxu0 %v645
        %7513 = vmatprep.subr.mxu0 0.0
        %7514 = vmatpush1.msra.mxu0 %v646
        %7515 = vmatprep.subr.mxu0 0.0
        %7516 = vmatpush1.msra.mxu0 0.0
        %7517 = vmatprep.subr.mxu0 0.0
        %7518 = vmatpush1.msra.mxu0 0.0
        %7519 = vmatprep.subr.mxu0 0.0
        %7520 = vmatpush1.msra.mxu0 0.0
        %7521 = vmatprep.subr.mxu0 0.0
        %7522 = vmatpush1.msra.mxu0 0.0
        %7523 = vmatprep.subr.mxu0 0.0
        %7524 = vmatpush1.msra.mxu0 0.0
        %7525 = vmatprep.subr.mxu0 0.0
        %7526 = vmatpush1.msra.mxu0 0.0
        %7527 = vmatprep.subr.mxu0 0.0
        %7528 = vmatpush1.msra.mxu0 0.0
        %7529 = vmatprep.subr.mxu0 0.0
        %7530 = vmatpush1.msra.mxu0 0.0
        %7531 = vmatprep.subr.mxu0 0.0
        %7532 = vmatpush1.msra.mxu0 0.0
        %7533 = vmatprep.subr.mxu0 0.0
        %7534 = vmatpush1.msra.mxu0 0.0
        %7535 = vmatprep.subr.mxu0 0.0
        %7536 = vmatpush1.msra.mxu0 0.0
        %7537 = vmatprep.subr.mxu0 0.0
        %7538 = vmatpush1.msra.mxu0 0.0
        %7539 = vmatprep.subr.mxu0 0.0
        %7540 = vmatpush1.msra.mxu0 0.0
        %7541 = vmatprep.subr.mxu0 0.0
        %7542 = vmatpush1.msra.mxu0 0.0
        %7543 = vmatprep.subr.mxu0 0.0
        %7544 = vmatpush1.msra.mxu0 0.0
        %7545 = vmatprep.subr.mxu0 0.0
        %7546 = vmatpush1.msra.mxu0 0.0
        %7547 = vmatprep.mubr.f32.mxu0 0.0
        %7548 = vmatmul.mubr.f32.gmra.mrb[0].mxu0 %v7481
        %v7549 = vpop.f32.mrb[0].mxu0
        %v7550 = vadd.f32 0.0, %v7549
        %v7551 = vpop.f32.mrb[0].mxu0
        %7552 = vmatprep.mubr.f32.mxu0 0.0
        %7553 = vmatmul.mubr.f32.gmra.mrb[0].mxu0 %v7482
        %v7554 = vpop.f32.mrb[0].mxu0
        %v7555 = vadd.f32 0.0, %v7554
        %v7556 = vpop.f32.mrb[0].mxu0
        %7557 = vdwg.mxu0
        %v7558 = vld [vmem:[%s2 + $0x4e0] sm:$0xff]
        %v7559 = vld [vmem:[%s2 + $0x4e8] sm:$0xff]
        %v7560 = vld [vmem:[%s2 + $0x4f0] sm:$0xff]
        %v7561 = vld [vmem:[%s2 + $0x4f8] sm:$0xff]
        %v7563 = vsel %vm832, %v7550, 0
        %v7566 = vsel %vm832, %v7555, 0
        %7568 = vmatprep.subr.mxu0 0.0
        %7569 = vmatpush1.msra.mxu0 %v7558
        %7570 = vmatprep.subr.mxu0 0.0
        %7571 = vmatpush1.msra.mxu0 %v7559
        %7572 = vmatprep.subr.mxu0 0.0
        %7573 = vmatpush1.msra.mxu0 %v7560
        %7574 = vmatprep.subr.mxu0 0.0
        %7575 = vmatpush1.msra.mxu0 %v7561
        %7576 = vmatprep.subr.mxu0 0.0
        %7577 = vmatpush1.msra.mxu0 0.0
        %7578 = vmatprep.subr.mxu0 0.0
        %7579 = vmatpush1.msra.mxu0 0.0
        %7580 = vmatprep.subr.mxu0 0.0
        %7581 = vmatpush1.msra.mxu0 0.0
        %7582 = vmatprep.subr.mxu0 0.0
        %7583 = vmatpush1.msra.mxu0 0.0
        %7584 = vmatprep.subr.mxu0 0.0
        %7585 = vmatpush1.msra.mxu0 0.0
        %7586 = vmatprep.subr.mxu0 0.0
        %7587 = vmatpush1.msra.mxu0 0.0
        %7588 = vmatprep.subr.mxu0 0.0
        %7589 = vmatpush1.msra.mxu0 0.0
        %7590 = vmatprep.subr.mxu0 0.0
        %7591 = vmatpush1.msra.mxu0 0.0
        %7592 = vmatprep.subr.mxu0 0.0
        %7593 = vmatpush1.msra.mxu0 0.0
        %7594 = vmatprep.subr.mxu0 0.0
        %7595 = vmatpush1.msra.mxu0 0.0
        %7596 = vmatprep.subr.mxu0 0.0
        %7597 = vmatpush1.msra.mxu0 0.0
        %7598 = vmatprep.subr.mxu0 0.0
        %7599 = vmatpush1.msra.mxu0 0.0
        %7600 = vmatprep.subr.mxu0 0.0
        %7601 = vmatpush1.msra.mxu0 0.0
        %7602 = vmatprep.subr.mxu0 0.0
        %7603 = vmatpush1.msra.mxu0 0.0
        %7604 = vmatprep.subr.mxu0 0.0
        %7605 = vmatpush1.msra.mxu0 0.0
        %7606 = vmatprep.subr.mxu0 0.0
        %7607 = vmatpush1.msra.mxu0 0.0
        %7608 = vmatprep.subr.mxu0 0.0
        %7609 = vmatpush1.msra.mxu0 0.0
        %7610 = vmatprep.subr.mxu0 0.0
        %7611 = vmatpush1.msra.mxu0 0.0
        %7612 = vmatprep.subr.mxu0 0.0
        %7613 = vmatpush1.msra.mxu0 0.0
        %7614 = vmatprep.subr.mxu0 0.0
        %7615 = vmatpush1.msra.mxu0 0.0
        %7616 = vmatprep.subr.mxu0 0.0
        %7617 = vmatpush1.msra.mxu0 0.0
        %7618 = vmatprep.subr.mxu0 0.0
        %7619 = vmatpush1.msra.mxu0 0.0
        %7620 = vmatprep.subr.mxu0 0.0
        %7621 = vmatpush1.msra.mxu0 0.0
        %7622 = vmatprep.subr.mxu0 0.0
        %7623 = vmatpush1.msra.mxu0 0.0
        %7624 = vmatprep.subr.mxu0 0.0
        %7625 = vmatpush1.msra.mxu0 0.0
        %7626 = vmatprep.subr.mxu0 0.0
        %7627 = vmatpush1.msra.mxu0 0.0
        %7628 = vmatprep.subr.mxu0 0.0
        %7629 = vmatpush1.msra.mxu0 0.0
        %7630 = vmatprep.subr.mxu0 0.0
        %7631 = vmatpush1.msra.mxu0 0.0
        %7632 = vmatprep.mubr.f32.mxu0 0.0
        %7633 = vmatmul.mubr.f32.gmra.mrb[0].mxu0 %v7563
        %v7634 = vpop.f32.mrb[0].mxu0
        %v7635 = vadd.f32 0.0, %v7634
        %v7636 = vpop.f32.mrb[0].mxu0
        %7637 = vmatprep.mubr.f32.mxu0 0.0
        %7638 = vmatmul.mubr.f32.gmra.mrb[0].mxu0 %v7566
        %v7639 = vpop.f32.mrb[0].mxu0
        %v7640 = vadd.f32 0.0, %v7639
        %v7641 = vpop.f32.mrb[0].mxu0
        %7642 = vdwg.mxu0
        %v7643 = vadd.f32 %v7468, %v7635
        %v7644 = vadd.f32 %v7469, %v7640
        %s7645 = scalar_lea.vmem %s601, 640 [#allocation2]
        %v7646 = vld [vmem:[%s7645] sm:$0xff]
        %v7647 = vld [vmem:[%s7645 + $0x8] sm:$0xff]
        %7648 = vset.pattern.permute.xlu0 0
        %7649 = vperm.xlu0 %7648, %v7646
        %v7650 = vpop.permute.xlu0 %7649
        %7651 = vset.pattern.permute.xlu0 0
        %7652 = vperm.xlu0 %7651, %v7647
        %v7653 = vpop.permute.xlu0 %7652
        %vm7654 = vcmp.eq.s32.totalorder %v7650, %v648
        %vm7655 = vcmp.eq.s32.totalorder %v7653, %v648
        %v7656 = vsel %vm7654, 1.0, 0.0
        %v7657 = vsel %vm7655, 1.0, 0.0
        %7658 = vmatprep.subr.mxu0 0.0
        %7659 = vmatpush1.msra.mxu0 %v631
        %7660 = vmatprep.subr.mxu0 0.0
        %7661 = vmatpush1.msra.mxu0 %v632
        %7662 = vmatprep.subr.mxu0 0.0
        %7663 = vmatpush1.msra.mxu0 %v633
        %7664 = vmatprep.subr.mxu0 0.0
        %7665 = vmatpush1.msra.mxu0 %v634
        %7666 = vmatprep.subr.mxu0 0.0
        %7667 = vmatpush1.msra.mxu0 %v635
        %7668 = vmatprep.subr.mxu0 0.0
        %7669 = vmatpush1.msra.mxu0 %v636
        %7670 = vmatprep.subr.mxu0 0.0
        %7671 = vmatpush1.msra.mxu0 %v637
        %7672 = vmatprep.subr.mxu0 0.0
        %7673 = vmatpush1.msra.mxu0 %v638
        %7674 = vmatprep.subr.mxu0 0.0
        %7675 = vmatpush1.msra.mxu0 %v639
        %7676 = vmatprep.subr.mxu0 0.0
        %7677 = vmatpush1.msra.mxu0 %v640
        %7678 = vmatprep.subr.mxu0 0.0
        %7679 = vmatpush1.msra.mxu0 %v641
        %7680 = vmatprep.subr.mxu0 0.0
        %7681 = vmatpush1.msra.mxu0 %v642
        %7682 = vmatprep.subr.mxu0 0.0
        %7683 = vmatpush1.msra.mxu0 %v643
        %7684 = vmatprep.subr.mxu0 0.0
        %7685 = vmatpush1.msra.mxu0 %v644
        %7686 = vmatprep.subr.mxu0 0.0
        %7687 = vmatpush1.msra.mxu0 %v645
        %7688 = vmatprep.subr.mxu0 0.0
        %7689 = vmatpush1.msra.mxu0 %v646
        %7690 = vmatprep.subr.mxu0 0.0
        %7691 = vmatpush1.msra.mxu0 0.0
        %7692 = vmatprep.subr.mxu0 0.0
        %7693 = vmatpush1.msra.mxu0 0.0
        %7694 = vmatprep.subr.mxu0 0.0
        %7695 = vmatpush1.msra.mxu0 0.0
        %7696 = vmatprep.subr.mxu0 0.0
        %7697 = vmatpush1.msra.mxu0 0.0
        %7698 = vmatprep.subr.mxu0 0.0
        %7699 = vmatpush1.msra.mxu0 0.0
        %7700 = vmatprep.subr.mxu0 0.0
        %7701 = vmatpush1.msra.mxu0 0.0
        %7702 = vmatprep.subr.mxu0 0.0
        %7703 = vmatpush1.msra.mxu0 0.0
        %7704 = vmatprep.subr.mxu0 0.0
        %7705 = vmatpush1.msra.mxu0 0.0
        %7706 = vmatprep.subr.mxu0 0.0
        %7707 = vmatpush1.msra.mxu0 0.0
        %7708 = vmatprep.subr.mxu0 0.0
        %7709 = vmatpush1.msra.mxu0 0.0
        %7710 = vmatprep.subr.mxu0 0.0
        %7711 = vmatpush1.msra.mxu0 0.0
        %7712 = vmatprep.subr.mxu0 0.0
        %7713 = vmatpush1.msra.mxu0 0.0
        %7714 = vmatprep.subr.mxu0 0.0
        %7715 = vmatpush1.msra.mxu0 0.0
        %7716 = vmatprep.subr.mxu0 0.0
        %7717 = vmatpush1.msra.mxu0 0.0
        %7718 = vmatprep.subr.mxu0 0.0
        %7719 = vmatpush1.msra.mxu0 0.0
        %7720 = vmatprep.subr.mxu0 0.0
        %7721 = vmatpush1.msra.mxu0 0.0
        %7722 = vmatprep.mubr.f32.mxu0 0.0
        %7723 = vmatmul.mubr.f32.gmra.mrb[0].mxu0 %v7656
        %v7724 = vpop.f32.mrb[0].mxu0
        %v7725 = vadd.f32 0.0, %v7724
        %v7726 = vpop.f32.mrb[0].mxu0
        %7727 = vmatprep.mubr.f32.mxu0 0.0
        %7728 = vmatmul.mubr.f32.gmra.mrb[0].mxu0 %v7657
        %v7729 = vpop.f32.mrb[0].mxu0
        %v7730 = vadd.f32 0.0, %v7729
        %v7731 = vpop.f32.mrb[0].mxu0
        %7732 = vdwg.mxu0
        %v7733 = vld [vmem:[%s2 + $0x500] sm:$0xff]
        %v7734 = vld [vmem:[%s2 + $0x508] sm:$0xff]
        %v7735 = vld [vmem:[%s2 + $0x510] sm:$0xff]
        %v7736 = vld [vmem:[%s2 + $0x518] sm:$0xff]
        %v7738 = vsel %vm832, %v7725, 0
        %v7741 = vsel %vm832, %v7730, 0
        %7743 = vmatprep.subr.mxu0 0.0
        %7744 = vmatpush1.msra.mxu0 %v7733
        %7745 = vmatprep.subr.mxu0 0.0
        %7746 = vmatpush1.msra.mxu0 %v7734
        %7747 = vmatprep.subr.mxu0 0.0
        %7748 = vmatpush1.msra.mxu0 %v7735
        %7749 = vmatprep.subr.mxu0 0.0
        %7750 = vmatpush1.msra.mxu0 %v7736
        %7751 = vmatprep.subr.mxu0 0.0
        %7752 = vmatpush1.msra.mxu0 0.0
        %7753 = vmatprep.subr.mxu0 0.0
        %7754 = vmatpush1.msra.mxu0 0.0
        %7755 = vmatprep.subr.mxu0 0.0
        %7756 = vmatpush1.msra.mxu0 0.0
        %7757 = vmatprep.subr.mxu0 0.0
        %7758 = vmatpush1.msra.mxu0 0.0
        %7759 = vmatprep.subr.mxu0 0.0
        %7760 = vmatpush1.msra.mxu0 0.0
        %7761 = vmatprep.subr.mxu0 0.0
        %7762 = vmatpush1.msra.mxu0 0.0
        %7763 = vmatprep.subr.mxu0 0.0
        %7764 = vmatpush1.msra.mxu0 0.0
        %7765 = vmatprep.subr.mxu0 0.0
        %7766 = vmatpush1.msra.mxu0 0.0
        %7767 = vmatprep.subr.mxu0 0.0
        %7768 = vmatpush1.msra.mxu0 0.0
        %7769 = vmatprep.subr.mxu0 0.0
        %7770 = vmatpush1.msra.mxu0 0.0
        %7771 = vmatprep.subr.mxu0 0.0
        %7772 = vmatpush1.msra.mxu0 0.0
        %7773 = vmatprep.subr.mxu0 0.0
        %7774 = vmatpush1.msra.mxu0 0.0
        %7775 = vmatprep.subr.mxu0 0.0
        %7776 = vmatpush1.msra.mxu0 0.0
        %7777 = vmatprep.subr.mxu0 0.0
        %7778 = vmatpush1.msra.mxu0 0.0
        %7779 = vmatprep.subr.mxu0 0.0
        %7780 = vmatpush1.msra.mxu0 0.0
        %7781 = vmatprep.subr.mxu0 0.0
        %7782 = vmatpush1.msra.mxu0 0.0
        %7783 = vmatprep.subr.mxu0 0.0
        %7784 = vmatpush1.msra.mxu0 0.0
        %7785 = vmatprep.subr.mxu0 0.0
        %7786 = vmatpush1.msra.mxu0 0.0
        %7787 = vmatprep.subr.mxu0 0.0
        %7788 = vmatpush1.msra.mxu0 0.0
        %7789 = vmatprep.subr.mxu0 0.0
        %7790 = vmatpush1.msra.mxu0 0.0
        %7791 = vmatprep.subr.mxu0 0.0
        %7792 = vmatpush1.msra.mxu0 0.0
        %7793 = vmatprep.subr.mxu0 0.0
        %7794 = vmatpush1.msra.mxu0 0.0
        %7795 = vmatprep.subr.mxu0 0.0
        %7796 = vmatpush1.msra.mxu0 0.0
        %7797 = vmatprep.subr.mxu0 0.0
        %7798 = vmatpush1.msra.mxu0 0.0
        %7799 = vmatprep.subr.mxu0 0.0
        %7800 = vmatpush1.msra.mxu0 0.0
        %7801 = vmatprep.subr.mxu0 0.0
        %7802 = vmatpush1.msra.mxu0 0.0
        %7803 = vmatprep.subr.mxu0 0.0
        %7804 = vmatpush1.msra.mxu0 0.0
        %7805 = vmatprep.subr.mxu0 0.0
        %7806 = vmatpush1.msra.mxu0 0.0
        %7807 = vmatprep.mubr.f32.mxu0 0.0
        %7808 = vmatmul.mubr.f32.gmra.mrb[0].mxu0 %v7738
        %v7809 = vpop.f32.mrb[0].mxu0
        %v7810 = vadd.f32 0.0, %v7809
        %v7811 = vpop.f32.mrb[0].mxu0
        %7812 = vmatprep.mubr.f32.mxu0 0.0
        %7813 = vmatmul.mubr.f32.gmra.mrb[0].mxu0 %v7741
        %v7814 = vpop.f32.mrb[0].mxu0
        %v7815 = vadd.f32 0.0, %v7814
        %v7816 = vpop.f32.mrb[0].mxu0
        %7817 = vdwg.mxu0
        %v7818 = vadd.f32 %v7643, %v7810
        %v7819 = vadd.f32 %v7644, %v7815
        %s7820 = scalar_lea.vmem %s601, 656 [#allocation2]
        %v7821 = vld [vmem:[%s7820] sm:$0xff]
        %v7822 = vld [vmem:[%s7820 + $0x8] sm:$0xff]
        %7823 = vset.pattern.permute.xlu0 0
        %7824 = vperm.xlu0 %7823, %v7821
        %v7825 = vpop.permute.xlu0 %7824
        %7826 = vset.pattern.permute.xlu0 0
        %7827 = vperm.xlu0 %7826, %v7822
        %v7828 = vpop.permute.xlu0 %7827
        %vm7829 = vcmp.eq.s32.totalorder %v7825, %v648
        %vm7830 = vcmp.eq.s32.totalorder %v7828, %v648
        %v7831 = vsel %vm7829, 1.0, 0.0
        %v7832 = vsel %vm7830, 1.0, 0.0
        %7833 = vmatprep.subr.mxu0 0.0
        %7834 = vmatpush1.msra.mxu0 %v631
        %7835 = vmatprep.subr.mxu0 0.0
        %7836 = vmatpush1.msra.mxu0 %v632
        %7837 = vmatprep.subr.mxu0 0.0
        %7838 = vmatpush1.msra.mxu0 %v633
        %7839 = vmatprep.subr.mxu0 0.0
        %7840 = vmatpush1.msra.mxu0 %v634
        %7841 = vmatprep.subr.mxu0 0.0
        %7842 = vmatpush1.msra.mxu0 %v635
        %7843 = vmatprep.subr.mxu0 0.0
        %7844 = vmatpush1.msra.mxu0 %v636
        %7845 = vmatprep.subr.mxu0 0.0
        %7846 = vmatpush1.msra.mxu0 %v637
        %7847 = vmatprep.subr.mxu0 0.0
        %7848 = vmatpush1.msra.mxu0 %v638
        %7849 = vmatprep.subr.mxu0 0.0
        %7850 = vmatpush1.msra.mxu0 %v639
        %7851 = vmatprep.subr.mxu0 0.0
        %7852 = vmatpush1.msra.mxu0 %v640
        %7853 = vmatprep.subr.mxu0 0.0
        %7854 = vmatpush1.msra.mxu0 %v641
        %7855 = vmatprep.subr.mxu0 0.0
        %7856 = vmatpush1.msra.mxu0 %v642
        %7857 = vmatprep.subr.mxu0 0.0
        %7858 = vmatpush1.msra.mxu0 %v643
        %7859 = vmatprep.subr.mxu0 0.0
        %7860 = vmatpush1.msra.mxu0 %v644
        %7861 = vmatprep.subr.mxu0 0.0
        %7862 = vmatpush1.msra.mxu0 %v645
        %7863 = vmatprep.subr.mxu0 0.0
        %7864 = vmatpush1.msra.mxu0 %v646
        %7865 = vmatprep.subr.mxu0 0.0
        %7866 = vmatpush1.msra.mxu0 0.0
        %7867 = vmatprep.subr.mxu0 0.0
        %7868 = vmatpush1.msra.mxu0 0.0
        %7869 = vmatprep.subr.mxu0 0.0
        %7870 = vmatpush1.msra.mxu0 0.0
        %7871 = vmatprep.subr.mxu0 0.0
        %7872 = vmatpush1.msra.mxu0 0.0
        %7873 = vmatprep.subr.mxu0 0.0
        %7874 = vmatpush1.msra.mxu0 0.0
        %7875 = vmatprep.subr.mxu0 0.0
        %7876 = vmatpush1.msra.mxu0 0.0
        %7877 = vmatprep.subr.mxu0 0.0
        %7878 = vmatpush1.msra.mxu0 0.0
        %7879 = vmatprep.subr.mxu0 0.0
        %7880 = vmatpush1.msra.mxu0 0.0
        %7881 = vmatprep.subr.mxu0 0.0
        %7882 = vmatpush1.msra.mxu0 0.0
        %7883 = vmatprep.subr.mxu0 0.0
        %7884 = vmatpush1.msra.mxu0 0.0
        %7885 = vmatprep.subr.mxu0 0.0
        %7886 = vmatpush1.msra.mxu0 0.0
        %7887 = vmatprep.subr.mxu0 0.0
        %7888 = vmatpush1.msra.mxu0 0.0
        %7889 = vmatprep.subr.mxu0 0.0
        %7890 = vmatpush1.msra.mxu0 0.0
        %7891 = vmatprep.subr.mxu0 0.0
        %7892 = vmatpush1.msra.mxu0 0.0
        %7893 = vmatprep.subr.mxu0 0.0
        %7894 = vmatpush1.msra.mxu0 0.0
        %7895 = vmatprep.subr.mxu0 0.0
        %7896 = vmatpush1.msra.mxu0 0.0
        %7897 = vmatprep.mubr.f32.mxu0 0.0
        %7898 = vmatmul.mubr.f32.gmra.mrb[0].mxu0 %v7831
        %v7899 = vpop.f32.mrb[0].mxu0
        %v7900 = vadd.f32 0.0, %v7899
        %v7901 = vpop.f32.mrb[0].mxu0
        %7902 = vmatprep.mubr.f32.mxu0 0.0
        %7903 = vmatmul.mubr.f32.gmra.mrb[0].mxu0 %v7832
        %v7904 = vpop.f32.mrb[0].mxu0
        %v7905 = vadd.f32 0.0, %v7904
        %v7906 = vpop.f32.mrb[0].mxu0
        %7907 = vdwg.mxu0
        %v7908 = vld [vmem:[%s2 + $0x520] sm:$0xff]
        %v7909 = vld [vmem:[%s2 + $0x528] sm:$0xff]
        %v7910 = vld [vmem:[%s2 + $0x530] sm:$0xff]
        %v7911 = vld [vmem:[%s2 + $0x538] sm:$0xff]
        %v7913 = vsel %vm832, %v7900, 0
        %v7916 = vsel %vm832, %v7905, 0
        %7918 = vmatprep.subr.mxu0 0.0
        %7919 = vmatpush1.msra.mxu0 %v7908
        %7920 = vmatprep.subr.mxu0 0.0
        %7921 = vmatpush1.msra.mxu0 %v7909
        %7922 = vmatprep.subr.mxu0 0.0
        %7923 = vmatpush1.msra.mxu0 %v7910
        %7924 = vmatprep.subr.mxu0 0.0
        %7925 = vmatpush1.msra.mxu0 %v7911
        %7926 = vmatprep.subr.mxu0 0.0
        %7927 = vmatpush1.msra.mxu0 0.0
        %7928 = vmatprep.subr.mxu0 0.0
        %7929 = vmatpush1.msra.mxu0 0.0
        %7930 = vmatprep.subr.mxu0 0.0
        %7931 = vmatpush1.msra.mxu0 0.0
        %7932 = vmatprep.subr.mxu0 0.0
        %7933 = vmatpush1.msra.mxu0 0.0
        %7934 = vmatprep.subr.mxu0 0.0
        %7935 = vmatpush1.msra.mxu0 0.0
        %7936 = vmatprep.subr.mxu0 0.0
        %7937 = vmatpush1.msra.mxu0 0.0
        %7938 = vmatprep.subr.mxu0 0.0
        %7939 = vmatpush1.msra.mxu0 0.0
        %7940 = vmatprep.subr.mxu0 0.0
        %7941 = vmatpush1.msra.mxu0 0.0
        %7942 = vmatprep.subr.mxu0 0.0
        %7943 = vmatpush1.msra.mxu0 0.0
        %7944 = vmatprep.subr.mxu0 0.0
        %7945 = vmatpush1.msra.mxu0 0.0
        %7946 = vmatprep.subr.mxu0 0.0
        %7947 = vmatpush1.msra.mxu0 0.0
        %7948 = vmatprep.subr.mxu0 0.0
        %7949 = vmatpush1.msra.mxu0 0.0
        %7950 = vmatprep.subr.mxu0 0.0
        %7951 = vmatpush1.msra.mxu0 0.0
        %7952 = vmatprep.subr.mxu0 0.0
        %7953 = vmatpush1.msra.mxu0 0.0
        %7954 = vmatprep.subr.mxu0 0.0
        %7955 = vmatpush1.msra.mxu0 0.0
        %7956 = vmatprep.subr.mxu0 0.0
        %7957 = vmatpush1.msra.mxu0 0.0
        %7958 = vmatprep.subr.mxu0 0.0
        %7959 = vmatpush1.msra.mxu0 0.0
        %7960 = vmatprep.subr.mxu0 0.0
        %7961 = vmatpush1.msra.mxu0 0.0
        %7962 = vmatprep.subr.mxu0 0.0
        %7963 = vmatpush1.msra.mxu0 0.0
        %7964 = vmatprep.subr.mxu0 0.0
        %7965 = vmatpush1.msra.mxu0 0.0
        %7966 = vmatprep.subr.mxu0 0.0
        %7967 = vmatpush1.msra.mxu0 0.0
        %7968 = vmatprep.subr.mxu0 0.0
        %7969 = vmatpush1.msra.mxu0 0.0
        %7970 = vmatprep.subr.mxu0 0.0
        %7971 = vmatpush1.msra.mxu0 0.0
        %7972 = vmatprep.subr.mxu0 0.0
        %7973 = vmatpush1.msra.mxu0 0.0
        %7974 = vmatprep.subr.mxu0 0.0
        %7975 = vmatpush1.msra.mxu0 0.0
        %7976 = vmatprep.subr.mxu0 0.0
        %7977 = vmatpush1.msra.mxu0 0.0
        %7978 = vmatprep.subr.mxu0 0.0
        %7979 = vmatpush1.msra.mxu0 0.0
        %7980 = vmatprep.subr.mxu0 0.0
        %7981 = vmatpush1.msra.mxu0 0.0
        %7982 = vmatprep.mubr.f32.mxu0 0.0
        %7983 = vmatmul.mubr.f32.gmra.mrb[0].mxu0 %v7913
        %v7984 = vpop.f32.mrb[0].mxu0
        %v7985 = vadd.f32 0.0, %v7984
        %v7986 = vpop.f32.mrb[0].mxu0
        %7987 = vmatprep.mubr.f32.mxu0 0.0
        %7988 = vmatmul.mubr.f32.gmra.mrb[0].mxu0 %v7916
        %v7989 = vpop.f32.mrb[0].mxu0
        %v7990 = vadd.f32 0.0, %v7989
        %v7991 = vpop.f32.mrb[0].mxu0
        %7992 = vdwg.mxu0
        %v7993 = vadd.f32 %v7818, %v7985
        %v7994 = vadd.f32 %v7819, %v7990
        %s7995 = scalar_lea.vmem %s601, 672 [#allocation2]
        %v7996 = vld [vmem:[%s7995] sm:$0xff]
        %v7997 = vld [vmem:[%s7995 + $0x8] sm:$0xff]
        %7998 = vset.pattern.permute.xlu0 0
        %7999 = vperm.xlu0 %7998, %v7996
        %v8000 = vpop.permute.xlu0 %7999
        %8001 = vset.pattern.permute.xlu0 0
        %8002 = vperm.xlu0 %8001, %v7997
        %v8003 = vpop.permute.xlu0 %8002
        %vm8004 = vcmp.eq.s32.totalorder %v8000, %v648
        %vm8005 = vcmp.eq.s32.totalorder %v8003, %v648
        %v8006 = vsel %vm8004, 1.0, 0.0
        %v8007 = vsel %vm8005, 1.0, 0.0
        %8008 = vmatprep.subr.mxu0 0.0
        %8009 = vmatpush1.msra.mxu0 %v631
        %8010 = vmatprep.subr.mxu0 0.0
        %8011 = vmatpush1.msra.mxu0 %v632
        %8012 = vmatprep.subr.mxu0 0.0
        %8013 = vmatpush1.msra.mxu0 %v633
        %8014 = vmatprep.subr.mxu0 0.0
        %8015 = vmatpush1.msra.mxu0 %v634
        %8016 = vmatprep.subr.mxu0 0.0
        %8017 = vmatpush1.msra.mxu0 %v635
        %8018 = vmatprep.subr.mxu0 0.0
        %8019 = vmatpush1.msra.mxu0 %v636
        %8020 = vmatprep.subr.mxu0 0.0
        %8021 = vmatpush1.msra.mxu0 %v637
        %8022 = vmatprep.subr.mxu0 0.0
        %8023 = vmatpush1.msra.mxu0 %v638
        %8024 = vmatprep.subr.mxu0 0.0
        %8025 = vmatpush1.msra.mxu0 %v639
        %8026 = vmatprep.subr.mxu0 0.0
        %8027 = vmatpush1.msra.mxu0 %v640
        %8028 = vmatprep.subr.mxu0 0.0
        %8029 = vmatpush1.msra.mxu0 %v641
        %8030 = vmatprep.subr.mxu0 0.0
        %8031 = vmatpush1.msra.mxu0 %v642
        %8032 = vmatprep.subr.mxu0 0.0
        %8033 = vmatpush1.msra.mxu0 %v643
        %8034 = vmatprep.subr.mxu0 0.0
        %8035 = vmatpush1.msra.mxu0 %v644
        %8036 = vmatprep.subr.mxu0 0.0
        %8037 = vmatpush1.msra.mxu0 %v645
        %8038 = vmatprep.subr.mxu0 0.0
        %8039 = vmatpush1.msra.mxu0 %v646
        %8040 = vmatprep.subr.mxu0 0.0
        %8041 = vmatpush1.msra.mxu0 0.0
        %8042 = vmatprep.subr.mxu0 0.0
        %8043 = vmatpush1.msra.mxu0 0.0
        %8044 = vmatprep.subr.mxu0 0.0
        %8045 = vmatpush1.msra.mxu0 0.0
        %8046 = vmatprep.subr.mxu0 0.0
        %8047 = vmatpush1.msra.mxu0 0.0
        %8048 = vmatprep.subr.mxu0 0.0
        %8049 = vmatpush1.msra.mxu0 0.0
        %8050 = vmatprep.subr.mxu0 0.0
        %8051 = vmatpush1.msra.mxu0 0.0
        %8052 = vmatprep.subr.mxu0 0.0
        %8053 = vmatpush1.msra.mxu0 0.0
        %8054 = vmatprep.subr.mxu0 0.0
        %8055 = vmatpush1.msra.mxu0 0.0
        %8056 = vmatprep.subr.mxu0 0.0
        %8057 = vmatpush1.msra.mxu0 0.0
        %8058 = vmatprep.subr.mxu0 0.0
        %8059 = vmatpush1.msra.mxu0 0.0
        %8060 = vmatprep.subr.mxu0 0.0
        %8061 = vmatpush1.msra.mxu0 0.0
        %8062 = vmatprep.subr.mxu0 0.0
        %8063 = vmatpush1.msra.mxu0 0.0
        %8064 = vmatprep.subr.mxu0 0.0
        %8065 = vmatpush1.msra.mxu0 0.0
        %8066 = vmatprep.subr.mxu0 0.0
        %8067 = vmatpush1.msra.mxu0 0.0
        %8068 = vmatprep.subr.mxu0 0.0
        %8069 = vmatpush1.msra.mxu0 0.0
        %8070 = vmatprep.subr.mxu0 0.0
        %8071 = vmatpush1.msra.mxu0 0.0
        %8072 = vmatprep.mubr.f32.mxu0 0.0
        %8073 = vmatmul.mubr.f32.gmra.mrb[0].mxu0 %v8006
        %v8074 = vpop.f32.mrb[0].mxu0
        %v8075 = vadd.f32 0.0, %v8074
        %v8076 = vpop.f32.mrb[0].mxu0
        %8077 = vmatprep.mubr.f32.mxu0 0.0
        %8078 = vmatmul.mubr.f32.gmra.mrb[0].mxu0 %v8007
        %v8079 = vpop.f32.mrb[0].mxu0
        %v8080 = vadd.f32 0.0, %v8079
        %v8081 = vpop.f32.mrb[0].mxu0
        %8082 = vdwg.mxu0
        %v8083 = vld [vmem:[%s2 + $0x540] sm:$0xff]
        %v8084 = vld [vmem:[%s2 + $0x548] sm:$0xff]
        %v8085 = vld [vmem:[%s2 + $0x550] sm:$0xff]
        %v8086 = vld [vmem:[%s2 + $0x558] sm:$0xff]
        %v8088 = vsel %vm832, %v8075, 0
        %v8091 = vsel %vm832, %v8080, 0
        %8093 = vmatprep.subr.mxu0 0.0
        %8094 = vmatpush1.msra.mxu0 %v8083
        %8095 = vmatprep.subr.mxu0 0.0
        %8096 = vmatpush1.msra.mxu0 %v8084
        %8097 = vmatprep.subr.mxu0 0.0
        %8098 = vmatpush1.msra.mxu0 %v8085
        %8099 = vmatprep.subr.mxu0 0.0
        %8100 = vmatpush1.msra.mxu0 %v8086
        %8101 = vmatprep.subr.mxu0 0.0
        %8102 = vmatpush1.msra.mxu0 0.0
        %8103 = vmatprep.subr.mxu0 0.0
        %8104 = vmatpush1.msra.mxu0 0.0
        %8105 = vmatprep.subr.mxu0 0.0
        %8106 = vmatpush1.msra.mxu0 0.0
        %8107 = vmatprep.subr.mxu0 0.0
        %8108 = vmatpush1.msra.mxu0 0.0
        %8109 = vmatprep.subr.mxu0 0.0
        %8110 = vmatpush1.msra.mxu0 0.0
        %8111 = vmatprep.subr.mxu0 0.0
        %8112 = vmatpush1.msra.mxu0 0.0
        %8113 = vmatprep.subr.mxu0 0.0
        %8114 = vmatpush1.msra.mxu0 0.0
        %8115 = vmatprep.subr.mxu0 0.0
        %8116 = vmatpush1.msra.mxu0 0.0
        %8117 = vmatprep.subr.mxu0 0.0
        %8118 = vmatpush1.msra.mxu0 0.0
        %8119 = vmatprep.subr.mxu0 0.0
        %8120 = vmatpush1.msra.mxu0 0.0
        %8121 = vmatprep.subr.mxu0 0.0
        %8122 = vmatpush1.msra.mxu0 0.0
        %8123 = vmatprep.subr.mxu0 0.0
        %8124 = vmatpush1.msra.mxu0 0.0
        %8125 = vmatprep.subr.mxu0 0.0
        %8126 = vmatpush1.msra.mxu0 0.0
        %8127 = vmatprep.subr.mxu0 0.0
        %8128 = vmatpush1.msra.mxu0 0.0
        %8129 = vmatprep.subr.mxu0 0.0
        %8130 = vmatpush1.msra.mxu0 0.0
        %8131 = vmatprep.subr.mxu0 0.0
        %8132 = vmatpush1.msra.mxu0 0.0
        %8133 = vmatprep.subr.mxu0 0.0
        %8134 = vmatpush1.msra.mxu0 0.0
        %8135 = vmatprep.subr.mxu0 0.0
        %8136 = vmatpush1.msra.mxu0 0.0
        %8137 = vmatprep.subr.mxu0 0.0
        %8138 = vmatpush1.msra.mxu0 0.0
        %8139 = vmatprep.subr.mxu0 0.0
        %8140 = vmatpush1.msra.mxu0 0.0
        %8141 = vmatprep.subr.mxu0 0.0
        %8142 = vmatpush1.msra.mxu0 0.0
        %8143 = vmatprep.subr.mxu0 0.0
        %8144 = vmatpush1.msra.mxu0 0.0
        %8145 = vmatprep.subr.mxu0 0.0
        %8146 = vmatpush1.msra.mxu0 0.0
        %8147 = vmatprep.subr.mxu0 0.0
        %8148 = vmatpush1.msra.mxu0 0.0
        %8149 = vmatprep.subr.mxu0 0.0
        %8150 = vmatpush1.msra.mxu0 0.0
        %8151 = vmatprep.subr.mxu0 0.0
        %8152 = vmatpush1.msra.mxu0 0.0
        %8153 = vmatprep.subr.mxu0 0.0
        %8154 = vmatpush1.msra.mxu0 0.0
        %8155 = vmatprep.subr.mxu0 0.0
        %8156 = vmatpush1.msra.mxu0 0.0
        %8157 = vmatprep.mubr.f32.mxu0 0.0
        %8158 = vmatmul.mubr.f32.gmra.mrb[0].mxu0 %v8088
        %v8159 = vpop.f32.mrb[0].mxu0
        %v8160 = vadd.f32 0.0, %v8159
        %v8161 = vpop.f32.mrb[0].mxu0
        %8162 = vmatprep.mubr.f32.mxu0 0.0
        %8163 = vmatmul.mubr.f32.gmra.mrb[0].mxu0 %v8091
        %v8164 = vpop.f32.mrb[0].mxu0
        %v8165 = vadd.f32 0.0, %v8164
        %v8166 = vpop.f32.mrb[0].mxu0
        %8167 = vdwg.mxu0
        %v8168 = vadd.f32 %v7993, %v8160
        %v8169 = vadd.f32 %v7994, %v8165
        %s8170 = scalar_lea.vmem %s601, 688 [#allocation2]
        %v8171 = vld [vmem:[%s8170] sm:$0xff]
        %v8172 = vld [vmem:[%s8170 + $0x8] sm:$0xff]
        %8173 = vset.pattern.permute.xlu0 0
        %8174 = vperm.xlu0 %8173, %v8171
        %v8175 = vpop.permute.xlu0 %8174
        %8176 = vset.pattern.permute.xlu0 0
        %8177 = vperm.xlu0 %8176, %v8172
        %v8178 = vpop.permute.xlu0 %8177
        %vm8179 = vcmp.eq.s32.totalorder %v8175, %v648
        %vm8180 = vcmp.eq.s32.totalorder %v8178, %v648
        %v8181 = vsel %vm8179, 1.0, 0.0
        %v8182 = vsel %vm8180, 1.0, 0.0
        %8183 = vmatprep.subr.mxu0 0.0
        %8184 = vmatpush1.msra.mxu0 %v631
        %8185 = vmatprep.subr.mxu0 0.0
        %8186 = vmatpush1.msra.mxu0 %v632
        %8187 = vmatprep.subr.mxu0 0.0
        %8188 = vmatpush1.msra.mxu0 %v633
        %8189 = vmatprep.subr.mxu0 0.0
        %8190 = vmatpush1.msra.mxu0 %v634
        %8191 = vmatprep.subr.mxu0 0.0
        %8192 = vmatpush1.msra.mxu0 %v635
        %8193 = vmatprep.subr.mxu0 0.0
        %8194 = vmatpush1.msra.mxu0 %v636
        %8195 = vmatprep.subr.mxu0 0.0
        %8196 = vmatpush1.msra.mxu0 %v637
        %8197 = vmatprep.subr.mxu0 0.0
        %8198 = vmatpush1.msra.mxu0 %v638
        %8199 = vmatprep.subr.mxu0 0.0
        %8200 = vmatpush1.msra.mxu0 %v639
        %8201 = vmatprep.subr.mxu0 0.0
        %8202 = vmatpush1.msra.mxu0 %v640
        %8203 = vmatprep.subr.mxu0 0.0
        %8204 = vmatpush1.msra.mxu0 %v641
        %8205 = vmatprep.subr.mxu0 0.0
        %8206 = vmatpush1.msra.mxu0 %v642
        %8207 = vmatprep.subr.mxu0 0.0
        %8208 = vmatpush1.msra.mxu0 %v643
        %8209 = vmatprep.subr.mxu0 0.0
        %8210 = vmatpush1.msra.mxu0 %v644
        %8211 = vmatprep.subr.mxu0 0.0
        %8212 = vmatpush1.msra.mxu0 %v645
        %8213 = vmatprep.subr.mxu0 0.0
        %8214 = vmatpush1.msra.mxu0 %v646
        %8215 = vmatprep.subr.mxu0 0.0
        %8216 = vmatpush1.msra.mxu0 0.0
        %8217 = vmatprep.subr.mxu0 0.0
        %8218 = vmatpush1.msra.mxu0 0.0
        %8219 = vmatprep.subr.mxu0 0.0
        %8220 = vmatpush1.msra.mxu0 0.0
        %8221 = vmatprep.subr.mxu0 0.0
        %8222 = vmatpush1.msra.mxu0 0.0
        %8223 = vmatprep.subr.mxu0 0.0
        %8224 = vmatpush1.msra.mxu0 0.0
        %8225 = vmatprep.subr.mxu0 0.0
        %8226 = vmatpush1.msra.mxu0 0.0
        %8227 = vmatprep.subr.mxu0 0.0
        %8228 = vmatpush1.msra.mxu0 0.0
        %8229 = vmatprep.subr.mxu0 0.0
        %8230 = vmatpush1.msra.mxu0 0.0
        %8231 = vmatprep.subr.mxu0 0.0
        %8232 = vmatpush1.msra.mxu0 0.0
        %8233 = vmatprep.subr.mxu0 0.0
        %8234 = vmatpush1.msra.mxu0 0.0
        %8235 = vmatprep.subr.mxu0 0.0
        %8236 = vmatpush1.msra.mxu0 0.0
        %8237 = vmatprep.subr.mxu0 0.0
        %8238 = vmatpush1.msra.mxu0 0.0
        %8239 = vmatprep.subr.mxu0 0.0
        %8240 = vmatpush1.msra.mxu0 0.0
        %8241 = vmatprep.subr.mxu0 0.0
        %8242 = vmatpush1.msra.mxu0 0.0
        %8243 = vmatprep.subr.mxu0 0.0
        %8244 = vmatpush1.msra.mxu0 0.0
        %8245 = vmatprep.subr.mxu0 0.0
        %8246 = vmatpush1.msra.mxu0 0.0
        %8247 = vmatprep.mubr.f32.mxu0 0.0
        %8248 = vmatmul.mubr.f32.gmra.mrb[0].mxu0 %v8181
        %v8249 = vpop.f32.mrb[0].mxu0
        %v8250 = vadd.f32 0.0, %v8249
        %v8251 = vpop.f32.mrb[0].mxu0
        %8252 = vmatprep.mubr.f32.mxu0 0.0
        %8253 = vmatmul.mubr.f32.gmra.mrb[0].mxu0 %v8182
        %v8254 = vpop.f32.mrb[0].mxu0
        %v8255 = vadd.f32 0.0, %v8254
        %v8256 = vpop.f32.mrb[0].mxu0
        %8257 = vdwg.mxu0
        %v8258 = vld [vmem:[%s2 + $0x560] sm:$0xff]
        %v8259 = vld [vmem:[%s2 + $0x568] sm:$0xff]
        %v8260 = vld [vmem:[%s2 + $0x570] sm:$0xff]
        %v8261 = vld [vmem:[%s2 + $0x578] sm:$0xff]
        %v8263 = vsel %vm832, %v8250, 0
        %v8266 = vsel %vm832, %v8255, 0
        %8268 = vmatprep.subr.mxu0 0.0
        %8269 = vmatpush1.msra.mxu0 %v8258
        %8270 = vmatprep.subr.mxu0 0.0
        %8271 = vmatpush1.msra.mxu0 %v8259
        %8272 = vmatprep.subr.mxu0 0.0
        %8273 = vmatpush1.msra.mxu0 %v8260
        %8274 = vmatprep.subr.mxu0 0.0
        %8275 = vmatpush1.msra.mxu0 %v8261
        %8276 = vmatprep.subr.mxu0 0.0
        %8277 = vmatpush1.msra.mxu0 0.0
        %8278 = vmatprep.subr.mxu0 0.0
        %8279 = vmatpush1.msra.mxu0 0.0
        %8280 = vmatprep.subr.mxu0 0.0
        %8281 = vmatpush1.msra.mxu0 0.0
        %8282 = vmatprep.subr.mxu0 0.0
        %8283 = vmatpush1.msra.mxu0 0.0
        %8284 = vmatprep.subr.mxu0 0.0
        %8285 = vmatpush1.msra.mxu0 0.0
        %8286 = vmatprep.subr.mxu0 0.0
        %8287 = vmatpush1.msra.mxu0 0.0
        %8288 = vmatprep.subr.mxu0 0.0
        %8289 = vmatpush1.msra.mxu0 0.0
        %8290 = vmatprep.subr.mxu0 0.0
        %8291 = vmatpush1.msra.mxu0 0.0
        %8292 = vmatprep.subr.mxu0 0.0
        %8293 = vmatpush1.msra.mxu0 0.0
        %8294 = vmatprep.subr.mxu0 0.0
        %8295 = vmatpush1.msra.mxu0 0.0
        %8296 = vmatprep.subr.mxu0 0.0
        %8297 = vmatpush1.msra.mxu0 0.0
        %8298 = vmatprep.subr.mxu0 0.0
        %8299 = vmatpush1.msra.mxu0 0.0
        %8300 = vmatprep.subr.mxu0 0.0
        %8301 = vmatpush1.msra.mxu0 0.0
        %8302 = vmatprep.subr.mxu0 0.0
        %8303 = vmatpush1.msra.mxu0 0.0
        %8304 = vmatprep.subr.mxu0 0.0
        %8305 = vmatpush1.msra.mxu0 0.0
        %8306 = vmatprep.subr.mxu0 0.0
        %8307 = vmatpush1.msra.mxu0 0.0
        %8308 = vmatprep.subr.mxu0 0.0
        %8309 = vmatpush1.msra.mxu0 0.0
        %8310 = vmatprep.subr.mxu0 0.0
        %8311 = vmatpush1.msra.mxu0 0.0
        %8312 = vmatprep.subr.mxu0 0.0
        %8313 = vmatpush1.msra.mxu0 0.0
        %8314 = vmatprep.subr.mxu0 0.0
        %8315 = vmatpush1.msra.mxu0 0.0
        %8316 = vmatprep.subr.mxu0 0.0
        %8317 = vmatpush1.msra.mxu0 0.0
        %8318 = vmatprep.subr.mxu0 0.0
        %8319 = vmatpush1.msra.mxu0 0.0
        %8320 = vmatprep.subr.mxu0 0.0
        %8321 = vmatpush1.msra.mxu0 0.0
        %8322 = vmatprep.subr.mxu0 0.0
        %8323 = vmatpush1.msra.mxu0 0.0
        %8324 = vmatprep.subr.mxu0 0.0
        %8325 = vmatpush1.msra.mxu0 0.0
        %8326 = vmatprep.subr.mxu0 0.0
        %8327 = vmatpush1.msra.mxu0 0.0
        %8328 = vmatprep.subr.mxu0 0.0
        %8329 = vmatpush1.msra.mxu0 0.0
        %8330 = vmatprep.subr.mxu0 0.0
        %8331 = vmatpush1.msra.mxu0 0.0
        %8332 = vmatprep.mubr.f32.mxu0 0.0
        %8333 = vmatmul.mubr.f32.gmra.mrb[0].mxu0 %v8263
        %v8334 = vpop.f32.mrb[0].mxu0
        %v8335 = vadd.f32 0.0, %v8334
        %v8336 = vpop.f32.mrb[0].mxu0
        %8337 = vmatprep.mubr.f32.mxu0 0.0
        %8338 = vmatmul.mubr.f32.gmra.mrb[0].mxu0 %v8266
        %v8339 = vpop.f32.mrb[0].mxu0
        %v8340 = vadd.f32 0.0, %v8339
        %v8341 = vpop.f32.mrb[0].mxu0
        %8342 = vdwg.mxu0
        %v8343 = vadd.f32 %v8168, %v8335
        %v8344 = vadd.f32 %v8169, %v8340
        %s8345 = scalar_lea.vmem %s601, 704 [#allocation2]
        %v8346 = vld [vmem:[%s8345] sm:$0xff]
        %v8347 = vld [vmem:[%s8345 + $0x8] sm:$0xff]
        %8348 = vset.pattern.permute.xlu0 0
        %8349 = vperm.xlu0 %8348, %v8346
        %v8350 = vpop.permute.xlu0 %8349
        %8351 = vset.pattern.permute.xlu0 0
        %8352 = vperm.xlu0 %8351, %v8347
        %v8353 = vpop.permute.xlu0 %8352
        %vm8354 = vcmp.eq.s32.totalorder %v8350, %v648
        %vm8355 = vcmp.eq.s32.totalorder %v8353, %v648
        %v8356 = vsel %vm8354, 1.0, 0.0
        %v8357 = vsel %vm8355, 1.0, 0.0
        %8358 = vmatprep.subr.mxu0 0.0
        %8359 = vmatpush1.msra.mxu0 %v631
        %8360 = vmatprep.subr.mxu0 0.0
        %8361 = vmatpush1.msra.mxu0 %v632
        %8362 = vmatprep.subr.mxu0 0.0
        %8363 = vmatpush1.msra.mxu0 %v633
        %8364 = vmatprep.subr.mxu0 0.0
        %8365 = vmatpush1.msra.mxu0 %v634
        %8366 = vmatprep.subr.mxu0 0.0
        %8367 = vmatpush1.msra.mxu0 %v635
        %8368 = vmatprep.subr.mxu0 0.0
        %8369 = vmatpush1.msra.mxu0 %v636
        %8370 = vmatprep.subr.mxu0 0.0
        %8371 = vmatpush1.msra.mxu0 %v637
        %8372 = vmatprep.subr.mxu0 0.0
        %8373 = vmatpush1.msra.mxu0 %v638
        %8374 = vmatprep.subr.mxu0 0.0
        %8375 = vmatpush1.msra.mxu0 %v639
        %8376 = vmatprep.subr.mxu0 0.0
        %8377 = vmatpush1.msra.mxu0 %v640
        %8378 = vmatprep.subr.mxu0 0.0
        %8379 = vmatpush1.msra.mxu0 %v641
        %8380 = vmatprep.subr.mxu0 0.0
        %8381 = vmatpush1.msra.mxu0 %v642
        %8382 = vmatprep.subr.mxu0 0.0
        %8383 = vmatpush1.msra.mxu0 %v643
        %8384 = vmatprep.subr.mxu0 0.0
        %8385 = vmatpush1.msra.mxu0 %v644
        %8386 = vmatprep.subr.mxu0 0.0
        %8387 = vmatpush1.msra.mxu0 %v645
        %8388 = vmatprep.subr.mxu0 0.0
        %8389 = vmatpush1.msra.mxu0 %v646
        %8390 = vmatprep.subr.mxu0 0.0
        %8391 = vmatpush1.msra.mxu0 0.0
        %8392 = vmatprep.subr.mxu0 0.0
        %8393 = vmatpush1.msra.mxu0 0.0
        %8394 = vmatprep.subr.mxu0 0.0
        %8395 = vmatpush1.msra.mxu0 0.0
        %8396 = vmatprep.subr.mxu0 0.0
        %8397 = vmatpush1.msra.mxu0 0.0
        %8398 = vmatprep.subr.mxu0 0.0
        %8399 = vmatpush1.msra.mxu0 0.0
        %8400 = vmatprep.subr.mxu0 0.0
        %8401 = vmatpush1.msra.mxu0 0.0
        %8402 = vmatprep.subr.mxu0 0.0
        %8403 = vmatpush1.msra.mxu0 0.0
        %8404 = vmatprep.subr.mxu0 0.0
        %8405 = vmatpush1.msra.mxu0 0.0
        %8406 = vmatprep.subr.mxu0 0.0
        %8407 = vmatpush1.msra.mxu0 0.0
        %8408 = vmatprep.subr.mxu0 0.0
        %8409 = vmatpush1.msra.mxu0 0.0
        %8410 = vmatprep.subr.mxu0 0.0
        %8411 = vmatpush1.msra.mxu0 0.0
        %8412 = vmatprep.subr.mxu0 0.0
        %8413 = vmatpush1.msra.mxu0 0.0
        %8414 = vmatprep.subr.mxu0 0.0
        %8415 = vmatpush1.msra.mxu0 0.0
        %8416 = vmatprep.subr.mxu0 0.0
        %8417 = vmatpush1.msra.mxu0 0.0
        %8418 = vmatprep.subr.mxu0 0.0
        %8419 = vmatpush1.msra.mxu0 0.0
        %8420 = vmatprep.subr.mxu0 0.0
        %8421 = vmatpush1.msra.mxu0 0.0
        %8422 = vmatprep.mubr.f32.mxu0 0.0
        %8423 = vmatmul.mubr.f32.gmra.mrb[0].mxu0 %v8356
        %v8424 = vpop.f32.mrb[0].mxu0
        %v8425 = vadd.f32 0.0, %v8424
        %v8426 = vpop.f32.mrb[0].mxu0
        %8427 = vmatprep.mubr.f32.mxu0 0.0
        %8428 = vmatmul.mubr.f32.gmra.mrb[0].mxu0 %v8357
        %v8429 = vpop.f32.mrb[0].mxu0
        %v8430 = vadd.f32 0.0, %v8429
        %v8431 = vpop.f32.mrb[0].mxu0
        %8432 = vdwg.mxu0
        %v8433 = vld [vmem:[%s2 + $0x580] sm:$0xff]
        %v8434 = vld [vmem:[%s2 + $0x588] sm:$0xff]
        %v8435 = vld [vmem:[%s2 + $0x590] sm:$0xff]
        %v8436 = vld [vmem:[%s2 + $0x598] sm:$0xff]
        %v8438 = vsel %vm832, %v8425, 0
        %v8441 = vsel %vm832, %v8430, 0
        %8443 = vmatprep.subr.mxu0 0.0
        %8444 = vmatpush1.msra.mxu0 %v8433
        %8445 = vmatprep.subr.mxu0 0.0
        %8446 = vmatpush1.msra.mxu0 %v8434
        %8447 = vmatprep.subr.mxu0 0.0
        %8448 = vmatpush1.msra.mxu0 %v8435
        %8449 = vmatprep.subr.mxu0 0.0
        %8450 = vmatpush1.msra.mxu0 %v8436
        %8451 = vmatprep.subr.mxu0 0.0
        %8452 = vmatpush1.msra.mxu0 0.0
        %8453 = vmatprep.subr.mxu0 0.0
        %8454 = vmatpush1.msra.mxu0 0.0
        %8455 = vmatprep.subr.mxu0 0.0
        %8456 = vmatpush1.msra.mxu0 0.0
        %8457 = vmatprep.subr.mxu0 0.0
        %8458 = vmatpush1.msra.mxu0 0.0
        %8459 = vmatprep.subr.mxu0 0.0
        %8460 = vmatpush1.msra.mxu0 0.0
        %8461 = vmatprep.subr.mxu0 0.0
        %8462 = vmatpush1.msra.mxu0 0.0
        %8463 = vmatprep.subr.mxu0 0.0
        %8464 = vmatpush1.msra.mxu0 0.0
        %8465 = vmatprep.subr.mxu0 0.0
        %8466 = vmatpush1.msra.mxu0 0.0
        %8467 = vmatprep.subr.mxu0 0.0
        %8468 = vmatpush1.msra.mxu0 0.0
        %8469 = vmatprep.subr.mxu0 0.0
        %8470 = vmatpush1.msra.mxu0 0.0
        %8471 = vmatprep.subr.mxu0 0.0
        %8472 = vmatpush1.msra.mxu0 0.0
        %8473 = vmatprep.subr.mxu0 0.0
        %8474 = vmatpush1.msra.mxu0 0.0
        %8475 = vmatprep.subr.mxu0 0.0
        %8476 = vmatpush1.msra.mxu0 0.0
        %8477 = vmatprep.subr.mxu0 0.0
        %8478 = vmatpush1.msra.mxu0 0.0
        %8479 = vmatprep.subr.mxu0 0.0
        %8480 = vmatpush1.msra.mxu0 0.0
        %8481 = vmatprep.subr.mxu0 0.0
        %8482 = vmatpush1.msra.mxu0 0.0
        %8483 = vmatprep.subr.mxu0 0.0
        %8484 = vmatpush1.msra.mxu0 0.0
        %8485 = vmatprep.subr.mxu0 0.0
        %8486 = vmatpush1.msra.mxu0 0.0
        %8487 = vmatprep.subr.mxu0 0.0
        %8488 = vmatpush1.msra.mxu0 0.0
        %8489 = vmatprep.subr.mxu0 0.0
        %8490 = vmatpush1.msra.mxu0 0.0
        %8491 = vmatprep.subr.mxu0 0.0
        %8492 = vmatpush1.msra.mxu0 0.0
        %8493 = vmatprep.subr.mxu0 0.0
        %8494 = vmatpush1.msra.mxu0 0.0
        %8495 = vmatprep.subr.mxu0 0.0
        %8496 = vmatpush1.msra.mxu0 0.0
        %8497 = vmatprep.subr.mxu0 0.0
        %8498 = vmatpush1.msra.mxu0 0.0
        %8499 = vmatprep.subr.mxu0 0.0
        %8500 = vmatpush1.msra.mxu0 0.0
        %8501 = vmatprep.subr.mxu0 0.0
        %8502 = vmatpush1.msra.mxu0 0.0
        %8503 = vmatprep.subr.mxu0 0.0
        %8504 = vmatpush1.msra.mxu0 0.0
        %8505 = vmatprep.subr.mxu0 0.0
        %8506 = vmatpush1.msra.mxu0 0.0
        %8507 = vmatprep.mubr.f32.mxu0 0.0
        %8508 = vmatmul.mubr.f32.gmra.mrb[0].mxu0 %v8438
        %v8509 = vpop.f32.mrb[0].mxu0
        %v8510 = vadd.f32 0.0, %v8509
        %v8511 = vpop.f32.mrb[0].mxu0
        %8512 = vmatprep.mubr.f32.mxu0 0.0
        %8513 = vmatmul.mubr.f32.gmra.mrb[0].mxu0 %v8441
        %v8514 = vpop.f32.mrb[0].mxu0
        %v8515 = vadd.f32 0.0, %v8514
        %v8516 = vpop.f32.mrb[0].mxu0
        %8517 = vdwg.mxu0
        %v8518 = vadd.f32 %v8343, %v8510
        %v8519 = vadd.f32 %v8344, %v8515
        %s8520 = scalar_lea.vmem %s601, 720 [#allocation2]
        %v8521 = vld [vmem:[%s8520] sm:$0xff]
        %v8522 = vld [vmem:[%s8520 + $0x8] sm:$0xff]
        %8523 = vset.pattern.permute.xlu0 0
        %8524 = vperm.xlu0 %8523, %v8521
        %v8525 = vpop.permute.xlu0 %8524
        %8526 = vset.pattern.permute.xlu0 0
        %8527 = vperm.xlu0 %8526, %v8522
        %v8528 = vpop.permute.xlu0 %8527
        %vm8529 = vcmp.eq.s32.totalorder %v8525, %v648
        %vm8530 = vcmp.eq.s32.totalorder %v8528, %v648
        %v8531 = vsel %vm8529, 1.0, 0.0
        %v8532 = vsel %vm8530, 1.0, 0.0
        %8533 = vmatprep.subr.mxu0 0.0
        %8534 = vmatpush1.msra.mxu0 %v631
        %8535 = vmatprep.subr.mxu0 0.0
        %8536 = vmatpush1.msra.mxu0 %v632
        %8537 = vmatprep.subr.mxu0 0.0
        %8538 = vmatpush1.msra.mxu0 %v633
        %8539 = vmatprep.subr.mxu0 0.0
        %8540 = vmatpush1.msra.mxu0 %v634
        %8541 = vmatprep.subr.mxu0 0.0
        %8542 = vmatpush1.msra.mxu0 %v635
        %8543 = vmatprep.subr.mxu0 0.0
        %8544 = vmatpush1.msra.mxu0 %v636
        %8545 = vmatprep.subr.mxu0 0.0
        %8546 = vmatpush1.msra.mxu0 %v637
        %8547 = vmatprep.subr.mxu0 0.0
        %8548 = vmatpush1.msra.mxu0 %v638
        %8549 = vmatprep.subr.mxu0 0.0
        %8550 = vmatpush1.msra.mxu0 %v639
        %8551 = vmatprep.subr.mxu0 0.0
        %8552 = vmatpush1.msra.mxu0 %v640
        %8553 = vmatprep.subr.mxu0 0.0
        %8554 = vmatpush1.msra.mxu0 %v641
        %8555 = vmatprep.subr.mxu0 0.0
        %8556 = vmatpush1.msra.mxu0 %v642
        %8557 = vmatprep.subr.mxu0 0.0
        %8558 = vmatpush1.msra.mxu0 %v643
        %8559 = vmatprep.subr.mxu0 0.0
        %8560 = vmatpush1.msra.mxu0 %v644
        %8561 = vmatprep.subr.mxu0 0.0
        %8562 = vmatpush1.msra.mxu0 %v645
        %8563 = vmatprep.subr.mxu0 0.0
        %8564 = vmatpush1.msra.mxu0 %v646
        %8565 = vmatprep.subr.mxu0 0.0
        %8566 = vmatpush1.msra.mxu0 0.0
        %8567 = vmatprep.subr.mxu0 0.0
        %8568 = vmatpush1.msra.mxu0 0.0
        %8569 = vmatprep.subr.mxu0 0.0
        %8570 = vmatpush1.msra.mxu0 0.0
        %8571 = vmatprep.subr.mxu0 0.0
        %8572 = vmatpush1.msra.mxu0 0.0
        %8573 = vmatprep.subr.mxu0 0.0
        %8574 = vmatpush1.msra.mxu0 0.0
        %8575 = vmatprep.subr.mxu0 0.0
        %8576 = vmatpush1.msra.mxu0 0.0
        %8577 = vmatprep.subr.mxu0 0.0
        %8578 = vmatpush1.msra.mxu0 0.0
        %8579 = vmatprep.subr.mxu0 0.0
        %8580 = vmatpush1.msra.mxu0 0.0
        %8581 = vmatprep.subr.mxu0 0.0
        %8582 = vmatpush1.msra.mxu0 0.0
        %8583 = vmatprep.subr.mxu0 0.0
        %8584 = vmatpush1.msra.mxu0 0.0
        %8585 = vmatprep.subr.mxu0 0.0
        %8586 = vmatpush1.msra.mxu0 0.0
        %8587 = vmatprep.subr.mxu0 0.0
        %8588 = vmatpush1.msra.mxu0 0.0
        %8589 = vmatprep.subr.mxu0 0.0
        %8590 = vmatpush1.msra.mxu0 0.0
        %8591 = vmatprep.subr.mxu0 0.0
        %8592 = vmatpush1.msra.mxu0 0.0
        %8593 = vmatprep.subr.mxu0 0.0
        %8594 = vmatpush1.msra.mxu0 0.0
        %8595 = vmatprep.subr.mxu0 0.0
        %8596 = vmatpush1.msra.mxu0 0.0
        %8597 = vmatprep.mubr.f32.mxu0 0.0
        %8598 = vmatmul.mubr.f32.gmra.mrb[0].mxu0 %v8531
        %v8599 = vpop.f32.mrb[0].mxu0
        %v8600 = vadd.f32 0.0, %v8599
        %v8601 = vpop.f32.mrb[0].mxu0
        %8602 = vmatprep.mubr.f32.mxu0 0.0
        %8603 = vmatmul.mubr.f32.gmra.mrb[0].mxu0 %v8532
        %v8604 = vpop.f32.mrb[0].mxu0
        %v8605 = vadd.f32 0.0, %v8604
        %v8606 = vpop.f32.mrb[0].mxu0
        %8607 = vdwg.mxu0
        %v8608 = vld [vmem:[%s2 + $0x5a0] sm:$0xff]
        %v8609 = vld [vmem:[%s2 + $0x5a8] sm:$0xff]
        %v8610 = vld [vmem:[%s2 + $0x5b0] sm:$0xff]
        %v8611 = vld [vmem:[%s2 + $0x5b8] sm:$0xff]
        %v8613 = vsel %vm832, %v8600, 0
        %v8616 = vsel %vm832, %v8605, 0
        %8618 = vmatprep.subr.mxu0 0.0
        %8619 = vmatpush1.msra.mxu0 %v8608
        %8620 = vmatprep.subr.mxu0 0.0
        %8621 = vmatpush1.msra.mxu0 %v8609
        %8622 = vmatprep.subr.mxu0 0.0
        %8623 = vmatpush1.msra.mxu0 %v8610
        %8624 = vmatprep.subr.mxu0 0.0
        %8625 = vmatpush1.msra.mxu0 %v8611
        %8626 = vmatprep.subr.mxu0 0.0
        %8627 = vmatpush1.msra.mxu0 0.0
        %8628 = vmatprep.subr.mxu0 0.0
        %8629 = vmatpush1.msra.mxu0 0.0
        %8630 = vmatprep.subr.mxu0 0.0
        %8631 = vmatpush1.msra.mxu0 0.0
        %8632 = vmatprep.subr.mxu0 0.0
        %8633 = vmatpush1.msra.mxu0 0.0
        %8634 = vmatprep.subr.mxu0 0.0
        %8635 = vmatpush1.msra.mxu0 0.0
        %8636 = vmatprep.subr.mxu0 0.0
        %8637 = vmatpush1.msra.mxu0 0.0
        %8638 = vmatprep.subr.mxu0 0.0
        %8639 = vmatpush1.msra.mxu0 0.0
        %8640 = vmatprep.subr.mxu0 0.0
        %8641 = vmatpush1.msra.mxu0 0.0
        %8642 = vmatprep.subr.mxu0 0.0
        %8643 = vmatpush1.msra.mxu0 0.0
        %8644 = vmatprep.subr.mxu0 0.0
        %8645 = vmatpush1.msra.mxu0 0.0
        %8646 = vmatprep.subr.mxu0 0.0
        %8647 = vmatpush1.msra.mxu0 0.0
        %8648 = vmatprep.subr.mxu0 0.0
        %8649 = vmatpush1.msra.mxu0 0.0
        %8650 = vmatprep.subr.mxu0 0.0
        %8651 = vmatpush1.msra.mxu0 0.0
        %8652 = vmatprep.subr.mxu0 0.0
        %8653 = vmatpush1.msra.mxu0 0.0
        %8654 = vmatprep.subr.mxu0 0.0
        %8655 = vmatpush1.msra.mxu0 0.0
        %8656 = vmatprep.subr.mxu0 0.0
        %8657 = vmatpush1.msra.mxu0 0.0
        %8658 = vmatprep.subr.mxu0 0.0
        %8659 = vmatpush1.msra.mxu0 0.0
        %8660 = vmatprep.subr.mxu0 0.0
        %8661 = vmatpush1.msra.mxu0 0.0
        %8662 = vmatprep.subr.mxu0 0.0
        %8663 = vmatpush1.msra.mxu0 0.0
        %8664 = vmatprep.subr.mxu0 0.0
        %8665 = vmatpush1.msra.mxu0 0.0
        %8666 = vmatprep.subr.mxu0 0.0
        %8667 = vmatpush1.msra.mxu0 0.0
        %8668 = vmatprep.subr.mxu0 0.0
        %8669 = vmatpush1.msra.mxu0 0.0
        %8670 = vmatprep.subr.mxu0 0.0
        %8671 = vmatpush1.msra.mxu0 0.0
        %8672 = vmatprep.subr.mxu0 0.0
        %8673 = vmatpush1.msra.mxu0 0.0
        %8674 = vmatprep.subr.mxu0 0.0
        %8675 = vmatpush1.msra.mxu0 0.0
        %8676 = vmatprep.subr.mxu0 0.0
        %8677 = vmatpush1.msra.mxu0 0.0
        %8678 = vmatprep.subr.mxu0 0.0
        %8679 = vmatpush1.msra.mxu0 0.0
        %8680 = vmatprep.subr.mxu0 0.0
        %8681 = vmatpush1.msra.mxu0 0.0
        %8682 = vmatprep.mubr.f32.mxu0 0.0
        %8683 = vmatmul.mubr.f32.gmra.mrb[0].mxu0 %v8613
        %v8684 = vpop.f32.mrb[0].mxu0
        %v8685 = vadd.f32 0.0, %v8684
        %v8686 = vpop.f32.mrb[0].mxu0
        %8687 = vmatprep.mubr.f32.mxu0 0.0
        %8688 = vmatmul.mubr.f32.gmra.mrb[0].mxu0 %v8616
        %v8689 = vpop.f32.mrb[0].mxu0
        %v8690 = vadd.f32 0.0, %v8689
        %v8691 = vpop.f32.mrb[0].mxu0
        %8692 = vdwg.mxu0
        %v8693 = vadd.f32 %v8518, %v8685
        %v8694 = vadd.f32 %v8519, %v8690
        %s8695 = scalar_lea.vmem %s601, 736 [#allocation2]
        %v8696 = vld [vmem:[%s8695] sm:$0xff]
        %v8697 = vld [vmem:[%s8695 + $0x8] sm:$0xff]
        %8698 = vset.pattern.permute.xlu0 0
        %8699 = vperm.xlu0 %8698, %v8696
        %v8700 = vpop.permute.xlu0 %8699
        %8701 = vset.pattern.permute.xlu0 0
        %8702 = vperm.xlu0 %8701, %v8697
        %v8703 = vpop.permute.xlu0 %8702
        %vm8704 = vcmp.eq.s32.totalorder %v8700, %v648
        %vm8705 = vcmp.eq.s32.totalorder %v8703, %v648
        %v8706 = vsel %vm8704, 1.0, 0.0
        %v8707 = vsel %vm8705, 1.0, 0.0
        %8708 = vmatprep.subr.mxu0 0.0
        %8709 = vmatpush1.msra.mxu0 %v631
        %8710 = vmatprep.subr.mxu0 0.0
        %8711 = vmatpush1.msra.mxu0 %v632
        %8712 = vmatprep.subr.mxu0 0.0
        %8713 = vmatpush1.msra.mxu0 %v633
        %8714 = vmatprep.subr.mxu0 0.0
        %8715 = vmatpush1.msra.mxu0 %v634
        %8716 = vmatprep.subr.mxu0 0.0
        %8717 = vmatpush1.msra.mxu0 %v635
        %8718 = vmatprep.subr.mxu0 0.0
        %8719 = vmatpush1.msra.mxu0 %v636
        %8720 = vmatprep.subr.mxu0 0.0
        %8721 = vmatpush1.msra.mxu0 %v637
        %8722 = vmatprep.subr.mxu0 0.0
        %8723 = vmatpush1.msra.mxu0 %v638
        %8724 = vmatprep.subr.mxu0 0.0
        %8725 = vmatpush1.msra.mxu0 %v639
        %8726 = vmatprep.subr.mxu0 0.0
        %8727 = vmatpush1.msra.mxu0 %v640
        %8728 = vmatprep.subr.mxu0 0.0
        %8729 = vmatpush1.msra.mxu0 %v641
        %8730 = vmatprep.subr.mxu0 0.0
        %8731 = vmatpush1.msra.mxu0 %v642
        %8732 = vmatprep.subr.mxu0 0.0
        %8733 = vmatpush1.msra.mxu0 %v643
        %8734 = vmatprep.subr.mxu0 0.0
        %8735 = vmatpush1.msra.mxu0 %v644
        %8736 = vmatprep.subr.mxu0 0.0
        %8737 = vmatpush1.msra.mxu0 %v645
        %8738 = vmatprep.subr.mxu0 0.0
        %8739 = vmatpush1.msra.mxu0 %v646
        %8740 = vmatprep.subr.mxu0 0.0
        %8741 = vmatpush1.msra.mxu0 0.0
        %8742 = vmatprep.subr.mxu0 0.0
        %8743 = vmatpush1.msra.mxu0 0.0
        %8744 = vmatprep.subr.mxu0 0.0
        %8745 = vmatpush1.msra.mxu0 0.0
        %8746 = vmatprep.subr.mxu0 0.0
        %8747 = vmatpush1.msra.mxu0 0.0
        %8748 = vmatprep.subr.mxu0 0.0
        %8749 = vmatpush1.msra.mxu0 0.0
        %8750 = vmatprep.subr.mxu0 0.0
        %8751 = vmatpush1.msra.mxu0 0.0
        %8752 = vmatprep.subr.mxu0 0.0
        %8753 = vmatpush1.msra.mxu0 0.0
        %8754 = vmatprep.subr.mxu0 0.0
        %8755 = vmatpush1.msra.mxu0 0.0
        %8756 = vmatprep.subr.mxu0 0.0
        %8757 = vmatpush1.msra.mxu0 0.0
        %8758 = vmatprep.subr.mxu0 0.0
        %8759 = vmatpush1.msra.mxu0 0.0
        %8760 = vmatprep.subr.mxu0 0.0
        %8761 = vmatpush1.msra.mxu0 0.0
        %8762 = vmatprep.subr.mxu0 0.0
        %8763 = vmatpush1.msra.mxu0 0.0
        %8764 = vmatprep.subr.mxu0 0.0
        %8765 = vmatpush1.msra.mxu0 0.0
        %8766 = vmatprep.subr.mxu0 0.0
        %8767 = vmatpush1.msra.mxu0 0.0
        %8768 = vmatprep.subr.mxu0 0.0
        %8769 = vmatpush1.msra.mxu0 0.0
        %8770 = vmatprep.subr.mxu0 0.0
        %8771 = vmatpush1.msra.mxu0 0.0
        %8772 = vmatprep.mubr.f32.mxu0 0.0
        %8773 = vmatmul.mubr.f32.gmra.mrb[0].mxu0 %v8706
        %v8774 = vpop.f32.mrb[0].mxu0
        %v8775 = vadd.f32 0.0, %v8774
        %v8776 = vpop.f32.mrb[0].mxu0
        %8777 = vmatprep.mubr.f32.mxu0 0.0
        %8778 = vmatmul.mubr.f32.gmra.mrb[0].mxu0 %v8707
        %v8779 = vpop.f32.mrb[0].mxu0
        %v8780 = vadd.f32 0.0, %v8779
        %v8781 = vpop.f32.mrb[0].mxu0
        %8782 = vdwg.mxu0
        %v8783 = vld [vmem:[%s2 + $0x5c0] sm:$0xff]
        %v8784 = vld [vmem:[%s2 + $0x5c8] sm:$0xff]
        %v8785 = vld [vmem:[%s2 + $0x5d0] sm:$0xff]
        %v8786 = vld [vmem:[%s2 + $0x5d8] sm:$0xff]
        %v8788 = vsel %vm832, %v8775, 0
        %v8791 = vsel %vm832, %v8780, 0
        %8793 = vmatprep.subr.mxu0 0.0
        %8794 = vmatpush1.msra.mxu0 %v8783
        %8795 = vmatprep.subr.mxu0 0.0
        %8796 = vmatpush1.msra.mxu0 %v8784
        %8797 = vmatprep.subr.mxu0 0.0
        %8798 = vmatpush1.msra.mxu0 %v8785
        %8799 = vmatprep.subr.mxu0 0.0
        %8800 = vmatpush1.msra.mxu0 %v8786
        %8801 = vmatprep.subr.mxu0 0.0
        %8802 = vmatpush1.msra.mxu0 0.0
        %8803 = vmatprep.subr.mxu0 0.0
        %8804 = vmatpush1.msra.mxu0 0.0
        %8805 = vmatprep.subr.mxu0 0.0
        %8806 = vmatpush1.msra.mxu0 0.0
        %8807 = vmatprep.subr.mxu0 0.0
        %8808 = vmatpush1.msra.mxu0 0.0
        %8809 = vmatprep.subr.mxu0 0.0
        %8810 = vmatpush1.msra.mxu0 0.0
        %8811 = vmatprep.subr.mxu0 0.0
        %8812 = vmatpush1.msra.mxu0 0.0
        %8813 = vmatprep.subr.mxu0 0.0
        %8814 = vmatpush1.msra.mxu0 0.0
        %8815 = vmatprep.subr.mxu0 0.0
        %8816 = vmatpush1.msra.mxu0 0.0
        %8817 = vmatprep.subr.mxu0 0.0
        %8818 = vmatpush1.msra.mxu0 0.0
        %8819 = vmatprep.subr.mxu0 0.0
        %8820 = vmatpush1.msra.mxu0 0.0
        %8821 = vmatprep.subr.mxu0 0.0
        %8822 = vmatpush1.msra.mxu0 0.0
        %8823 = vmatprep.subr.mxu0 0.0
        %8824 = vmatpush1.msra.mxu0 0.0
        %8825 = vmatprep.subr.mxu0 0.0
        %8826 = vmatpush1.msra.mxu0 0.0
        %8827 = vmatprep.subr.mxu0 0.0
        %8828 = vmatpush1.msra.mxu0 0.0
        %8829 = vmatprep.subr.mxu0 0.0
        %8830 = vmatpush1.msra.mxu0 0.0
        %8831 = vmatprep.subr.mxu0 0.0
        %8832 = vmatpush1.msra.mxu0 0.0
        %8833 = vmatprep.subr.mxu0 0.0
        %8834 = vmatpush1.msra.mxu0 0.0
        %8835 = vmatprep.subr.mxu0 0.0
        %8836 = vmatpush1.msra.mxu0 0.0
        %8837 = vmatprep.subr.mxu0 0.0
        %8838 = vmatpush1.msra.mxu0 0.0
        %8839 = vmatprep.subr.mxu0 0.0
        %8840 = vmatpush1.msra.mxu0 0.0
        %8841 = vmatprep.subr.mxu0 0.0
        %8842 = vmatpush1.msra.mxu0 0.0
        %8843 = vmatprep.subr.mxu0 0.0
        %8844 = vmatpush1.msra.mxu0 0.0
        %8845 = vmatprep.subr.mxu0 0.0
        %8846 = vmatpush1.msra.mxu0 0.0
        %8847 = vmatprep.subr.mxu0 0.0
        %8848 = vmatpush1.msra.mxu0 0.0
        %8849 = vmatprep.subr.mxu0 0.0
        %8850 = vmatpush1.msra.mxu0 0.0
        %8851 = vmatprep.subr.mxu0 0.0
        %8852 = vmatpush1.msra.mxu0 0.0
        %8853 = vmatprep.subr.mxu0 0.0
        %8854 = vmatpush1.msra.mxu0 0.0
        %8855 = vmatprep.subr.mxu0 0.0
        %8856 = vmatpush1.msra.mxu0 0.0
        %8857 = vmatprep.mubr.f32.mxu0 0.0
        %8858 = vmatmul.mubr.f32.gmra.mrb[0].mxu0 %v8788
        %v8859 = vpop.f32.mrb[0].mxu0
        %v8860 = vadd.f32 0.0, %v8859
        %v8861 = vpop.f32.mrb[0].mxu0
        %8862 = vmatprep.mubr.f32.mxu0 0.0
        %8863 = vmatmul.mubr.f32.gmra.mrb[0].mxu0 %v8791
        %v8864 = vpop.f32.mrb[0].mxu0
        %v8865 = vadd.f32 0.0, %v8864
        %v8866 = vpop.f32.mrb[0].mxu0
        %8867 = vdwg.mxu0
        %v8868 = vadd.f32 %v8693, %v8860
        %v8869 = vadd.f32 %v8694, %v8865
        %s8870 = scalar_lea.vmem %s601, 752 [#allocation2]
        %v8871 = vld [vmem:[%s8870] sm:$0xff]
        %v8872 = vld [vmem:[%s8870 + $0x8] sm:$0xff]
        %8873 = vset.pattern.permute.xlu0 0
        %8874 = vperm.xlu0 %8873, %v8871
        %v8875 = vpop.permute.xlu0 %8874
        %8876 = vset.pattern.permute.xlu0 0
        %8877 = vperm.xlu0 %8876, %v8872
        %v8878 = vpop.permute.xlu0 %8877
        %vm8879 = vcmp.eq.s32.totalorder %v8875, %v648
        %vm8880 = vcmp.eq.s32.totalorder %v8878, %v648
        %v8881 = vsel %vm8879, 1.0, 0.0
        %v8882 = vsel %vm8880, 1.0, 0.0
        %8883 = vmatprep.subr.mxu0 0.0
        %8884 = vmatpush1.msra.mxu0 %v631
        %8885 = vmatprep.subr.mxu0 0.0
        %8886 = vmatpush1.msra.mxu0 %v632
        %8887 = vmatprep.subr.mxu0 0.0
        %8888 = vmatpush1.msra.mxu0 %v633
        %8889 = vmatprep.subr.mxu0 0.0
        %8890 = vmatpush1.msra.mxu0 %v634
        %8891 = vmatprep.subr.mxu0 0.0
        %8892 = vmatpush1.msra.mxu0 %v635
        %8893 = vmatprep.subr.mxu0 0.0
        %8894 = vmatpush1.msra.mxu0 %v636
        %8895 = vmatprep.subr.mxu0 0.0
        %8896 = vmatpush1.msra.mxu0 %v637
        %8897 = vmatprep.subr.mxu0 0.0
        %8898 = vmatpush1.msra.mxu0 %v638
        %8899 = vmatprep.subr.mxu0 0.0
        %8900 = vmatpush1.msra.mxu0 %v639
        %8901 = vmatprep.subr.mxu0 0.0
        %8902 = vmatpush1.msra.mxu0 %v640
        %8903 = vmatprep.subr.mxu0 0.0
        %8904 = vmatpush1.msra.mxu0 %v641
        %8905 = vmatprep.subr.mxu0 0.0
        %8906 = vmatpush1.msra.mxu0 %v642
        %8907 = vmatprep.subr.mxu0 0.0
        %8908 = vmatpush1.msra.mxu0 %v643
        %8909 = vmatprep.subr.mxu0 0.0
        %8910 = vmatpush1.msra.mxu0 %v644
        %8911 = vmatprep.subr.mxu0 0.0
        %8912 = vmatpush1.msra.mxu0 %v645
        %8913 = vmatprep.subr.mxu0 0.0
        %8914 = vmatpush1.msra.mxu0 %v646
        %8915 = vmatprep.subr.mxu0 0.0
        %8916 = vmatpush1.msra.mxu0 0.0
        %8917 = vmatprep.subr.mxu0 0.0
        %8918 = vmatpush1.msra.mxu0 0.0
        %8919 = vmatprep.subr.mxu0 0.0
        %8920 = vmatpush1.msra.mxu0 0.0
        %8921 = vmatprep.subr.mxu0 0.0
        %8922 = vmatpush1.msra.mxu0 0.0
        %8923 = vmatprep.subr.mxu0 0.0
        %8924 = vmatpush1.msra.mxu0 0.0
        %8925 = vmatprep.subr.mxu0 0.0
        %8926 = vmatpush1.msra.mxu0 0.0
        %8927 = vmatprep.subr.mxu0 0.0
        %8928 = vmatpush1.msra.mxu0 0.0
        %8929 = vmatprep.subr.mxu0 0.0
        %8930 = vmatpush1.msra.mxu0 0.0
        %8931 = vmatprep.subr.mxu0 0.0
        %8932 = vmatpush1.msra.mxu0 0.0
        %8933 = vmatprep.subr.mxu0 0.0
        %8934 = vmatpush1.msra.mxu0 0.0
        %8935 = vmatprep.subr.mxu0 0.0
        %8936 = vmatpush1.msra.mxu0 0.0
        %8937 = vmatprep.subr.mxu0 0.0
        %8938 = vmatpush1.msra.mxu0 0.0
        %8939 = vmatprep.subr.mxu0 0.0
        %8940 = vmatpush1.msra.mxu0 0.0
        %8941 = vmatprep.subr.mxu0 0.0
        %8942 = vmatpush1.msra.mxu0 0.0
        %8943 = vmatprep.subr.mxu0 0.0
        %8944 = vmatpush1.msra.mxu0 0.0
        %8945 = vmatprep.subr.mxu0 0.0
        %8946 = vmatpush1.msra.mxu0 0.0
        %8947 = vmatprep.mubr.f32.mxu0 0.0
        %8948 = vmatmul.mubr.f32.gmra.mrb[0].mxu0 %v8881
        %v8949 = vpop.f32.mrb[0].mxu0
        %v8950 = vadd.f32 0.0, %v8949
        %v8951 = vpop.f32.mrb[0].mxu0
        %8952 = vmatprep.mubr.f32.mxu0 0.0
        %8953 = vmatmul.mubr.f32.gmra.mrb[0].mxu0 %v8882
        %v8954 = vpop.f32.mrb[0].mxu0
        %v8955 = vadd.f32 0.0, %v8954
        %v8956 = vpop.f32.mrb[0].mxu0
        %8957 = vdwg.mxu0
        %v8958 = vld [vmem:[%s2 + $0x5e0] sm:$0xff]
        %v8959 = vld [vmem:[%s2 + $0x5e8] sm:$0xff]
        %v8960 = vld [vmem:[%s2 + $0x5f0] sm:$0xff]
        %v8961 = vld [vmem:[%s2 + $0x5f8] sm:$0xff]
        %v8963 = vsel %vm832, %v8950, 0
        %v8966 = vsel %vm832, %v8955, 0
        %8968 = vmatprep.subr.mxu0 0.0
        %8969 = vmatpush1.msra.mxu0 %v8958
        %8970 = vmatprep.subr.mxu0 0.0
        %8971 = vmatpush1.msra.mxu0 %v8959
        %8972 = vmatprep.subr.mxu0 0.0
        %8973 = vmatpush1.msra.mxu0 %v8960
        %8974 = vmatprep.subr.mxu0 0.0
        %8975 = vmatpush1.msra.mxu0 %v8961
        %8976 = vmatprep.subr.mxu0 0.0
        %8977 = vmatpush1.msra.mxu0 0.0
        %8978 = vmatprep.subr.mxu0 0.0
        %8979 = vmatpush1.msra.mxu0 0.0
        %8980 = vmatprep.subr.mxu0 0.0
        %8981 = vmatpush1.msra.mxu0 0.0
        %8982 = vmatprep.subr.mxu0 0.0
        %8983 = vmatpush1.msra.mxu0 0.0
        %8984 = vmatprep.subr.mxu0 0.0
        %8985 = vmatpush1.msra.mxu0 0.0
        %8986 = vmatprep.subr.mxu0 0.0
        %8987 = vmatpush1.msra.mxu0 0.0
        %8988 = vmatprep.subr.mxu0 0.0
        %8989 = vmatpush1.msra.mxu0 0.0
        %8990 = vmatprep.subr.mxu0 0.0
        %8991 = vmatpush1.msra.mxu0 0.0
        %8992 = vmatprep.subr.mxu0 0.0
        %8993 = vmatpush1.msra.mxu0 0.0
        %8994 = vmatprep.subr.mxu0 0.0
        %8995 = vmatpush1.msra.mxu0 0.0
        %8996 = vmatprep.subr.mxu0 0.0
        %8997 = vmatpush1.msra.mxu0 0.0
        %8998 = vmatprep.subr.mxu0 0.0
        %8999 = vmatpush1.msra.mxu0 0.0
        %9000 = vmatprep.subr.mxu0 0.0
        %9001 = vmatpush1.msra.mxu0 0.0
        %9002 = vmatprep.subr.mxu0 0.0
        %9003 = vmatpush1.msra.mxu0 0.0
        %9004 = vmatprep.subr.mxu0 0.0
        %9005 = vmatpush1.msra.mxu0 0.0
        %9006 = vmatprep.subr.mxu0 0.0
        %9007 = vmatpush1.msra.mxu0 0.0
        %9008 = vmatprep.subr.mxu0 0.0
        %9009 = vmatpush1.msra.mxu0 0.0
        %9010 = vmatprep.subr.mxu0 0.0
        %9011 = vmatpush1.msra.mxu0 0.0
        %9012 = vmatprep.subr.mxu0 0.0
        %9013 = vmatpush1.msra.mxu0 0.0
        %9014 = vmatprep.subr.mxu0 0.0
        %9015 = vmatpush1.msra.mxu0 0.0
        %9016 = vmatprep.subr.mxu0 0.0
        %9017 = vmatpush1.msra.mxu0 0.0
        %9018 = vmatprep.subr.mxu0 0.0
        %9019 = vmatpush1.msra.mxu0 0.0
        %9020 = vmatprep.subr.mxu0 0.0
        %9021 = vmatpush1.msra.mxu0 0.0
        %9022 = vmatprep.subr.mxu0 0.0
        %9023 = vmatpush1.msra.mxu0 0.0
        %9024 = vmatprep.subr.mxu0 0.0
        %9025 = vmatpush1.msra.mxu0 0.0
        %9026 = vmatprep.subr.mxu0 0.0
        %9027 = vmatpush1.msra.mxu0 0.0
        %9028 = vmatprep.subr.mxu0 0.0
        %9029 = vmatpush1.msra.mxu0 0.0
        %9030 = vmatprep.subr.mxu0 0.0
        %9031 = vmatpush1.msra.mxu0 0.0
        %9032 = vmatprep.mubr.f32.mxu0 0.0
        %9033 = vmatmul.mubr.f32.gmra.mrb[0].mxu0 %v8963
        %v9034 = vpop.f32.mrb[0].mxu0
        %v9035 = vadd.f32 0.0, %v9034
        %v9036 = vpop.f32.mrb[0].mxu0
        %9037 = vmatprep.mubr.f32.mxu0 0.0
        %9038 = vmatmul.mubr.f32.gmra.mrb[0].mxu0 %v8966
        %v9039 = vpop.f32.mrb[0].mxu0
        %v9040 = vadd.f32 0.0, %v9039
        %v9041 = vpop.f32.mrb[0].mxu0
        %9042 = vdwg.mxu0
        %v9043 = vadd.f32 %v8868, %v9035
        %v9044 = vadd.f32 %v8869, %v9040
        %s9045 = scalar_lea.vmem %s601, 768 [#allocation2]
        %v9046 = vld [vmem:[%s9045] sm:$0xff]
        %v9047 = vld [vmem:[%s9045 + $0x8] sm:$0xff]
        %9048 = vset.pattern.permute.xlu0 0
        %9049 = vperm.xlu0 %9048, %v9046
        %v9050 = vpop.permute.xlu0 %9049
        %9051 = vset.pattern.permute.xlu0 0
        %9052 = vperm.xlu0 %9051, %v9047
        %v9053 = vpop.permute.xlu0 %9052
        %vm9054 = vcmp.eq.s32.totalorder %v9050, %v648
        %vm9055 = vcmp.eq.s32.totalorder %v9053, %v648
        %v9056 = vsel %vm9054, 1.0, 0.0
        %v9057 = vsel %vm9055, 1.0, 0.0
        %9058 = vmatprep.subr.mxu0 0.0
        %9059 = vmatpush1.msra.mxu0 %v631
        %9060 = vmatprep.subr.mxu0 0.0
        %9061 = vmatpush1.msra.mxu0 %v632
        %9062 = vmatprep.subr.mxu0 0.0
        %9063 = vmatpush1.msra.mxu0 %v633
        %9064 = vmatprep.subr.mxu0 0.0
        %9065 = vmatpush1.msra.mxu0 %v634
        %9066 = vmatprep.subr.mxu0 0.0
        %9067 = vmatpush1.msra.mxu0 %v635
        %9068 = vmatprep.subr.mxu0 0.0
        %9069 = vmatpush1.msra.mxu0 %v636
        %9070 = vmatprep.subr.mxu0 0.0
        %9071 = vmatpush1.msra.mxu0 %v637
        %9072 = vmatprep.subr.mxu0 0.0
        %9073 = vmatpush1.msra.mxu0 %v638
        %9074 = vmatprep.subr.mxu0 0.0
        %9075 = vmatpush1.msra.mxu0 %v639
        %9076 = vmatprep.subr.mxu0 0.0
        %9077 = vmatpush1.msra.mxu0 %v640
        %9078 = vmatprep.subr.mxu0 0.0
        %9079 = vmatpush1.msra.mxu0 %v641
        %9080 = vmatprep.subr.mxu0 0.0
        %9081 = vmatpush1.msra.mxu0 %v642
        %9082 = vmatprep.subr.mxu0 0.0
        %9083 = vmatpush1.msra.mxu0 %v643
        %9084 = vmatprep.subr.mxu0 0.0
        %9085 = vmatpush1.msra.mxu0 %v644
        %9086 = vmatprep.subr.mxu0 0.0
        %9087 = vmatpush1.msra.mxu0 %v645
        %9088 = vmatprep.subr.mxu0 0.0
        %9089 = vmatpush1.msra.mxu0 %v646
        %9090 = vmatprep.subr.mxu0 0.0
        %9091 = vmatpush1.msra.mxu0 0.0
        %9092 = vmatprep.subr.mxu0 0.0
        %9093 = vmatpush1.msra.mxu0 0.0
        %9094 = vmatprep.subr.mxu0 0.0
        %9095 = vmatpush1.msra.mxu0 0.0
        %9096 = vmatprep.subr.mxu0 0.0
        %9097 = vmatpush1.msra.mxu0 0.0
        %9098 = vmatprep.subr.mxu0 0.0
        %9099 = vmatpush1.msra.mxu0 0.0
        %9100 = vmatprep.subr.mxu0 0.0
        %9101 = vmatpush1.msra.mxu0 0.0
        %9102 = vmatprep.subr.mxu0 0.0
        %9103 = vmatpush1.msra.mxu0 0.0
        %9104 = vmatprep.subr.mxu0 0.0
        %9105 = vmatpush1.msra.mxu0 0.0
        %9106 = vmatprep.subr.mxu0 0.0
        %9107 = vmatpush1.msra.mxu0 0.0
        %9108 = vmatprep.subr.mxu0 0.0
        %9109 = vmatpush1.msra.mxu0 0.0
        %9110 = vmatprep.subr.mxu0 0.0
        %9111 = vmatpush1.msra.mxu0 0.0
        %9112 = vmatprep.subr.mxu0 0.0
        %9113 = vmatpush1.msra.mxu0 0.0
        %9114 = vmatprep.subr.mxu0 0.0
        %9115 = vmatpush1.msra.mxu0 0.0
        %9116 = vmatprep.subr.mxu0 0.0
        %9117 = vmatpush1.msra.mxu0 0.0
        %9118 = vmatprep.subr.mxu0 0.0
        %9119 = vmatpush1.msra.mxu0 0.0
        %9120 = vmatprep.subr.mxu0 0.0
        %9121 = vmatpush1.msra.mxu0 0.0
        %9122 = vmatprep.mubr.f32.mxu0 0.0
        %9123 = vmatmul.mubr.f32.gmra.mrb[0].mxu0 %v9056
        %v9124 = vpop.f32.mrb[0].mxu0
        %v9125 = vadd.f32 0.0, %v9124
        %v9126 = vpop.f32.mrb[0].mxu0
        %9127 = vmatprep.mubr.f32.mxu0 0.0
        %9128 = vmatmul.mubr.f32.gmra.mrb[0].mxu0 %v9057
        %v9129 = vpop.f32.mrb[0].mxu0
        %v9130 = vadd.f32 0.0, %v9129
        %v9131 = vpop.f32.mrb[0].mxu0
        %9132 = vdwg.mxu0
        %v9133 = vld [vmem:[%s2 + $0x600] sm:$0xff]
        %v9134 = vld [vmem:[%s2 + $0x608] sm:$0xff]
        %v9135 = vld [vmem:[%s2 + $0x610] sm:$0xff]
        %v9136 = vld [vmem:[%s2 + $0x618] sm:$0xff]
        %v9138 = vsel %vm832, %v9125, 0
        %v9141 = vsel %vm832, %v9130, 0
        %9143 = vmatprep.subr.mxu0 0.0
        %9144 = vmatpush1.msra.mxu0 %v9133
        %9145 = vmatprep.subr.mxu0 0.0
        %9146 = vmatpush1.msra.mxu0 %v9134
        %9147 = vmatprep.subr.mxu0 0.0
        %9148 = vmatpush1.msra.mxu0 %v9135
        %9149 = vmatprep.subr.mxu0 0.0
        %9150 = vmatpush1.msra.mxu0 %v9136
        %9151 = vmatprep.subr.mxu0 0.0
        %9152 = vmatpush1.msra.mxu0 0.0
        %9153 = vmatprep.subr.mxu0 0.0
        %9154 = vmatpush1.msra.mxu0 0.0
        %9155 = vmatprep.subr.mxu0 0.0
        %9156 = vmatpush1.msra.mxu0 0.0
        %9157 = vmatprep.subr.mxu0 0.0
        %9158 = vmatpush1.msra.mxu0 0.0
        %9159 = vmatprep.subr.mxu0 0.0
        %9160 = vmatpush1.msra.mxu0 0.0
        %9161 = vmatprep.subr.mxu0 0.0
        %9162 = vmatpush1.msra.mxu0 0.0
        %9163 = vmatprep.subr.mxu0 0.0
        %9164 = vmatpush1.msra.mxu0 0.0
        %9165 = vmatprep.subr.mxu0 0.0
        %9166 = vmatpush1.msra.mxu0 0.0
        %9167 = vmatprep.subr.mxu0 0.0
        %9168 = vmatpush1.msra.mxu0 0.0
        %9169 = vmatprep.subr.mxu0 0.0
        %9170 = vmatpush1.msra.mxu0 0.0
        %9171 = vmatprep.subr.mxu0 0.0
        %9172 = vmatpush1.msra.mxu0 0.0
        %9173 = vmatprep.subr.mxu0 0.0
        %9174 = vmatpush1.msra.mxu0 0.0
        %9175 = vmatprep.subr.mxu0 0.0
        %9176 = vmatpush1.msra.mxu0 0.0
        %9177 = vmatprep.subr.mxu0 0.0
        %9178 = vmatpush1.msra.mxu0 0.0
        %9179 = vmatprep.subr.mxu0 0.0
        %9180 = vmatpush1.msra.mxu0 0.0
        %9181 = vmatprep.subr.mxu0 0.0
        %9182 = vmatpush1.msra.mxu0 0.0
        %9183 = vmatprep.subr.mxu0 0.0
        %9184 = vmatpush1.msra.mxu0 0.0
        %9185 = vmatprep.subr.mxu0 0.0
        %9186 = vmatpush1.msra.mxu0 0.0
        %9187 = vmatprep.subr.mxu0 0.0
        %9188 = vmatpush1.msra.mxu0 0.0
        %9189 = vmatprep.subr.mxu0 0.0
        %9190 = vmatpush1.msra.mxu0 0.0
        %9191 = vmatprep.subr.mxu0 0.0
        %9192 = vmatpush1.msra.mxu0 0.0
        %9193 = vmatprep.subr.mxu0 0.0
        %9194 = vmatpush1.msra.mxu0 0.0
        %9195 = vmatprep.subr.mxu0 0.0
        %9196 = vmatpush1.msra.mxu0 0.0
        %9197 = vmatprep.subr.mxu0 0.0
        %9198 = vmatpush1.msra.mxu0 0.0
        %9199 = vmatprep.subr.mxu0 0.0
        %9200 = vmatpush1.msra.mxu0 0.0
        %9201 = vmatprep.subr.mxu0 0.0
        %9202 = vmatpush1.msra.mxu0 0.0
        %9203 = vmatprep.subr.mxu0 0.0
        %9204 = vmatpush1.msra.mxu0 0.0
        %9205 = vmatprep.subr.mxu0 0.0
        %9206 = vmatpush1.msra.mxu0 0.0
        %9207 = vmatprep.mubr.f32.mxu0 0.0
        %9208 = vmatmul.mubr.f32.gmra.mrb[0].mxu0 %v9138
        %v9209 = vpop.f32.mrb[0].mxu0
        %v9210 = vadd.f32 0.0, %v9209
        %v9211 = vpop.f32.mrb[0].mxu0
        %9212 = vmatprep.mubr.f32.mxu0 0.0
        %9213 = vmatmul.mubr.f32.gmra.mrb[0].mxu0 %v9141
        %v9214 = vpop.f32.mrb[0].mxu0
        %v9215 = vadd.f32 0.0, %v9214
        %v9216 = vpop.f32.mrb[0].mxu0
        %9217 = vdwg.mxu0
        %v9218 = vadd.f32 %v9043, %v9210
        %v9219 = vadd.f32 %v9044, %v9215
        %s9220 = scalar_lea.vmem %s601, 784 [#allocation2]
        %v9221 = vld [vmem:[%s9220] sm:$0xff]
        %v9222 = vld [vmem:[%s9220 + $0x8] sm:$0xff]
        %9223 = vset.pattern.permute.xlu0 0
        %9224 = vperm.xlu0 %9223, %v9221
        %v9225 = vpop.permute.xlu0 %9224
        %9226 = vset.pattern.permute.xlu0 0
        %9227 = vperm.xlu0 %9226, %v9222
        %v9228 = vpop.permute.xlu0 %9227
        %vm9229 = vcmp.eq.s32.totalorder %v9225, %v648
        %vm9230 = vcmp.eq.s32.totalorder %v9228, %v648
        %v9231 = vsel %vm9229, 1.0, 0.0
        %v9232 = vsel %vm9230, 1.0, 0.0
        %9233 = vmatprep.subr.mxu0 0.0
        %9234 = vmatpush1.msra.mxu0 %v631
        %9235 = vmatprep.subr.mxu0 0.0
        %9236 = vmatpush1.msra.mxu0 %v632
        %9237 = vmatprep.subr.mxu0 0.0
        %9238 = vmatpush1.msra.mxu0 %v633
        %9239 = vmatprep.subr.mxu0 0.0
        %9240 = vmatpush1.msra.mxu0 %v634
        %9241 = vmatprep.subr.mxu0 0.0
        %9242 = vmatpush1.msra.mxu0 %v635
        %9243 = vmatprep.subr.mxu0 0.0
        %9244 = vmatpush1.msra.mxu0 %v636
        %9245 = vmatprep.subr.mxu0 0.0
        %9246 = vmatpush1.msra.mxu0 %v637
        %9247 = vmatprep.subr.mxu0 0.0
        %9248 = vmatpush1.msra.mxu0 %v638
        %9249 = vmatprep.subr.mxu0 0.0
        %9250 = vmatpush1.msra.mxu0 %v639
        %9251 = vmatprep.subr.mxu0 0.0
        %9252 = vmatpush1.msra.mxu0 %v640
        %9253 = vmatprep.subr.mxu0 0.0
        %9254 = vmatpush1.msra.mxu0 %v641
        %9255 = vmatprep.subr.mxu0 0.0
        %9256 = vmatpush1.msra.mxu0 %v642
        %9257 = vmatprep.subr.mxu0 0.0
        %9258 = vmatpush1.msra.mxu0 %v643
        %9259 = vmatprep.subr.mxu0 0.0
        %9260 = vmatpush1.msra.mxu0 %v644
        %9261 = vmatprep.subr.mxu0 0.0
        %9262 = vmatpush1.msra.mxu0 %v645
        %9263 = vmatprep.subr.mxu0 0.0
        %9264 = vmatpush1.msra.mxu0 %v646
        %9265 = vmatprep.subr.mxu0 0.0
        %9266 = vmatpush1.msra.mxu0 0.0
        %9267 = vmatprep.subr.mxu0 0.0
        %9268 = vmatpush1.msra.mxu0 0.0
        %9269 = vmatprep.subr.mxu0 0.0
        %9270 = vmatpush1.msra.mxu0 0.0
        %9271 = vmatprep.subr.mxu0 0.0
        %9272 = vmatpush1.msra.mxu0 0.0
        %9273 = vmatprep.subr.mxu0 0.0
        %9274 = vmatpush1.msra.mxu0 0.0
        %9275 = vmatprep.subr.mxu0 0.0
        %9276 = vmatpush1.msra.mxu0 0.0
        %9277 = vmatprep.subr.mxu0 0.0
        %9278 = vmatpush1.msra.mxu0 0.0
        %9279 = vmatprep.subr.mxu0 0.0
        %9280 = vmatpush1.msra.mxu0 0.0
        %9281 = vmatprep.subr.mxu0 0.0
        %9282 = vmatpush1.msra.mxu0 0.0
        %9283 = vmatprep.subr.mxu0 0.0
        %9284 = vmatpush1.msra.mxu0 0.0
        %9285 = vmatprep.subr.mxu0 0.0
        %9286 = vmatpush1.msra.mxu0 0.0
        %9287 = vmatprep.subr.mxu0 0.0
        %9288 = vmatpush1.msra.mxu0 0.0
        %9289 = vmatprep.subr.mxu0 0.0
        %9290 = vmatpush1.msra.mxu0 0.0
        %9291 = vmatprep.subr.mxu0 0.0
        %9292 = vmatpush1.msra.mxu0 0.0
        %9293 = vmatprep.subr.mxu0 0.0
        %9294 = vmatpush1.msra.mxu0 0.0
        %9295 = vmatprep.subr.mxu0 0.0
        %9296 = vmatpush1.msra.mxu0 0.0
        %9297 = vmatprep.mubr.f32.mxu0 0.0
        %9298 = vmatmul.mubr.f32.gmra.mrb[0].mxu0 %v9231
        %v9299 = vpop.f32.mrb[0].mxu0
        %v9300 = vadd.f32 0.0, %v9299
        %v9301 = vpop.f32.mrb[0].mxu0
        %9302 = vmatprep.mubr.f32.mxu0 0.0
        %9303 = vmatmul.mubr.f32.gmra.mrb[0].mxu0 %v9232
        %v9304 = vpop.f32.mrb[0].mxu0
        %v9305 = vadd.f32 0.0, %v9304
        %v9306 = vpop.f32.mrb[0].mxu0
        %9307 = vdwg.mxu0
        %v9308 = vld [vmem:[%s2 + $0x620] sm:$0xff]
        %v9309 = vld [vmem:[%s2 + $0x628] sm:$0xff]
        %v9310 = vld [vmem:[%s2 + $0x630] sm:$0xff]
        %v9311 = vld [vmem:[%s2 + $0x638] sm:$0xff]
        %v9313 = vsel %vm832, %v9300, 0
        %v9316 = vsel %vm832, %v9305, 0
        %9318 = vmatprep.subr.mxu0 0.0
        %9319 = vmatpush1.msra.mxu0 %v9308
        %9320 = vmatprep.subr.mxu0 0.0
        %9321 = vmatpush1.msra.mxu0 %v9309
        %9322 = vmatprep.subr.mxu0 0.0
        %9323 = vmatpush1.msra.mxu0 %v9310
        %9324 = vmatprep.subr.mxu0 0.0
        %9325 = vmatpush1.msra.mxu0 %v9311
        %9326 = vmatprep.subr.mxu0 0.0
        %9327 = vmatpush1.msra.mxu0 0.0
        %9328 = vmatprep.subr.mxu0 0.0
        %9329 = vmatpush1.msra.mxu0 0.0
        %9330 = vmatprep.subr.mxu0 0.0
        %9331 = vmatpush1.msra.mxu0 0.0
        %9332 = vmatprep.subr.mxu0 0.0
        %9333 = vmatpush1.msra.mxu0 0.0
        %9334 = vmatprep.subr.mxu0 0.0
        %9335 = vmatpush1.msra.mxu0 0.0
        %9336 = vmatprep.subr.mxu0 0.0
        %9337 = vmatpush1.msra.mxu0 0.0
        %9338 = vmatprep.subr.mxu0 0.0
        %9339 = vmatpush1.msra.mxu0 0.0
        %9340 = vmatprep.subr.mxu0 0.0
        %9341 = vmatpush1.msra.mxu0 0.0
        %9342 = vmatprep.subr.mxu0 0.0
        %9343 = vmatpush1.msra.mxu0 0.0
        %9344 = vmatprep.subr.mxu0 0.0
        %9345 = vmatpush1.msra.mxu0 0.0
        %9346 = vmatprep.subr.mxu0 0.0
        %9347 = vmatpush1.msra.mxu0 0.0
        %9348 = vmatprep.subr.mxu0 0.0
        %9349 = vmatpush1.msra.mxu0 0.0
        %9350 = vmatprep.subr.mxu0 0.0
        %9351 = vmatpush1.msra.mxu0 0.0
        %9352 = vmatprep.subr.mxu0 0.0
        %9353 = vmatpush1.msra.mxu0 0.0
        %9354 = vmatprep.subr.mxu0 0.0
        %9355 = vmatpush1.msra.mxu0 0.0
        %9356 = vmatprep.subr.mxu0 0.0
        %9357 = vmatpush1.msra.mxu0 0.0
        %9358 = vmatprep.subr.mxu0 0.0
        %9359 = vmatpush1.msra.mxu0 0.0
        %9360 = vmatprep.subr.mxu0 0.0
        %9361 = vmatpush1.msra.mxu0 0.0
        %9362 = vmatprep.subr.mxu0 0.0
        %9363 = vmatpush1.msra.mxu0 0.0
        %9364 = vmatprep.subr.mxu0 0.0
        %9365 = vmatpush1.msra.mxu0 0.0
        %9366 = vmatprep.subr.mxu0 0.0
        %9367 = vmatpush1.msra.mxu0 0.0
        %9368 = vmatprep.subr.mxu0 0.0
        %9369 = vmatpush1.msra.mxu0 0.0
        %9370 = vmatprep.subr.mxu0 0.0
        %9371 = vmatpush1.msra.mxu0 0.0
        %9372 = vmatprep.subr.mxu0 0.0
        %9373 = vmatpush1.msra.mxu0 0.0
        %9374 = vmatprep.subr.mxu0 0.0
        %9375 = vmatpush1.msra.mxu0 0.0
        %9376 = vmatprep.subr.mxu0 0.0
        %9377 = vmatpush1.msra.mxu0 0.0
        %9378 = vmatprep.subr.mxu0 0.0
        %9379 = vmatpush1.msra.mxu0 0.0
        %9380 = vmatprep.subr.mxu0 0.0
        %9381 = vmatpush1.msra.mxu0 0.0
        %9382 = vmatprep.mubr.f32.mxu0 0.0
        %9383 = vmatmul.mubr.f32.gmra.mrb[0].mxu0 %v9313
        %v9384 = vpop.f32.mrb[0].mxu0
        %v9385 = vadd.f32 0.0, %v9384
        %v9386 = vpop.f32.mrb[0].mxu0
        %9387 = vmatprep.mubr.f32.mxu0 0.0
        %9388 = vmatmul.mubr.f32.gmra.mrb[0].mxu0 %v9316
        %v9389 = vpop.f32.mrb[0].mxu0
        %v9390 = vadd.f32 0.0, %v9389
        %v9391 = vpop.f32.mrb[0].mxu0
        %9392 = vdwg.mxu0
        %v9393 = vadd.f32 %v9218, %v9385
        %v9394 = vadd.f32 %v9219, %v9390
        %v9395 = vld [vmem:[%s3] sm:$0x1]
        %v9397 = vlaneseq
        %v9398 = vshrl.u32 %v9397, 7
        %v9399 = vsub.s32 0, %v9398
        %v9400 = vrot.slane %v9395, %v9399
        %v9402 = vadd.f32 %v9393, %v9400
        %v9403 = vadd.f32 %v9394, %v9400
        %vm9404 = vcmask 48128
        %9405 = vst.msk [vmem:[%s629] sm:$0xff] %vm9404, %v9402
        %9406 = vst.msk [vmem:[%s629 + $0x8] sm:$0xff] %vm9404, %v9403
        %s9407 = smul.u32 2, %s15
        %p9408 = scmp.lt.s32.totalorder %s9407, 3
        %s9409 = scalar_select %p9408, %s9407, 3
        %s9410 = smul.addr %s9409, 8
        %s9411 = scalar_lea.vmem %s4, %s9410
        // Predicated region
        $region75: #{tpu_custom_call.1} parent=69 // pred_check
          %p9412 = pneg %p122
        $region76: #{tpu_custom_call.1} parent=69 // pred_check_branch
          %9414 = sbr.rel (%p9412) target = $region78
        $region77: #{tpu_custom_call.1} parent=69 // pred_region
          %s9415 = smul.u32 2, %s15
        $region78: #{tpu_custom_call.1} parent=69 // pred_fallthru
          _
      $region70: #{tpu_custom_call.1} parent=5 // pred_fallthru
        _
      %p9416 = scmp.le.s32.totalorder 2, %s10
      // Predicated region
      $region79: #{tpu_custom_call.1} parent=5 // pred_check
        %p9417 = pneg %p9416
      $region80: #{tpu_custom_call.1} parent=5 // pred_check_branch
        %9419 = sbr.rel (%p9417) target = $region82
      $region81: #{tpu_custom_call.1} parent=5 // pred_region
        %s9420 = ssub.s32 %s10, 2
        // Predicated region
        $region83: #{tpu_custom_call.1} parent=81 // pred_check
          %p9421 = pneg %p128
        $region84: #{tpu_custom_call.1} parent=81 // pred_check_branch
          %9423 = sbr.rel (%p9421) target = $region86
        $region85: #{tpu_custom_call.1} parent=81 // pred_region
          %s9424 = smul.u32 2, %s16
          %p9425 = scmp.lt.s32.totalorder %s9424, 3
          %s9426 = scalar_select %p9425, %s9424, 3
          %s9427 = smul.addr %s9426, 8
          %s9428 = scalar_lea.vmem %s4, %s9427
        $region86: #{tpu_custom_call.1} parent=81 // pred_fallthru
          _
      $region82: #{tpu_custom_call.1} parent=5 // pred_fallthru
        _
    $region6: #{tpu_custom_call.1} parent=1 // loop_footer
      %s14 = sadd.s32 1, %s10
    $region7: #{tpu_custom_call.1} parent=1 // loop_footer_branch
      %9 = sbr.rel target = $region3
    $region8: #{tpu_custom_call.1} parent=1 // loop_exit
      _

</llo_original>
